<compile_context>
chip_gen: v5e
topology: v5e:2x2
jax: 0.10.0
libtpu: 0.0.40
codegen_flags: <defaults>
</compile_context>

<pallas_src>
import numpy as np

import jax
import jax.numpy as jnp
from jax import lax
from jax.experimental import pallas as pl
from jax.experimental.pallas import tpu as pltpu

# ---------------------------------------------------------------------------
# Static network geometry (LeNet-5 Caffe on 28x28 inputs).
# ---------------------------------------------------------------------------
H_IN, W_IN = 28, 28
KH = KW = 5
C1, C2 = 20, 50                 # conv1 / conv2 output channels
OH1 = OW1 = 24                  # conv1 output spatial (pre-pool)
PH1 = PW1 = 12                  # conv1 output spatial (post-pool)
OH2 = OW2 = 8                   # conv2 output spatial (pre-pool)
PH2 = PW2 = 4                   # conv2 output spatial (post-pool)
N1 = C1 * OW1                   # 480: conv1 matmul N, columns ordered (co1, ow1)
N2 = C2 * OW2                   # 400: conv2 matmul N, columns ordered (co2, ow2)
K2 = N1 - 1                     # 479: conv2 matmul K (last, never-read col dropped)
K3 = N2 - 1                     # 399: fc3  matmul K
FC3_N = 512                     # fc3 outputs padded 500 -> 512
LANES = 128                     # fc4 classes padded 10 -> 128 (lane-dense output)
NEG_INF = -1e30


def _round_up(x, m):
    return ((x + m - 1) // m) * m


# ---------------------------------------------------------------------------
# The single fused kernel.
# Activation layout inside the kernel: rows = (image_row, batch-in-tile),
# lanes = (channel, width) flattened with width minor.  All reshapes only
# split/merge the row dim at multiples of the batch tile (bt % 8 == 0), so
# they are tile-aligned and layout-free.
# ---------------------------------------------------------------------------
def lenet5_fused_kernel(x_ref, w1b_ref, b1_ref, w2b_ref, b2_ref,
                        w3b_ref, b3_ref, w4_ref, b4_ref, o_ref):
    bt = o_ref.shape[0]
    x = x_ref[...]                                              # (28, bt, 28) bf16

    # --- conv1: 5 width-banded matmuls (one per kernel row) + bias + ReLU ----
    acc = jnp.dot(x[0:OH1].reshape(OH1 * bt, W_IN), w1b_ref[0],
                  preferred_element_type=jnp.float32)
    for kh in range(1, KH):
        acc += jnp.dot(x[kh:kh + OH1].reshape(OH1 * bt, W_IN), w1b_ref[kh],
                       preferred_element_type=jnp.float32)
    y = jnp.maximum(acc + b1_ref[...], 0.0).astype(jnp.bfloat16)    # (24*bt, 480)

    # --- 2x2 max-pool, fully vectorized: width pairs via a 1-lane shift,
    #     height pairs via a tile-aligned reshape of the (oh, b) row dim. ----
    y = jnp.maximum(y[:, :K2], y[:, 1:])                            # (24*bt, 479)
    y = y.reshape(PH1, 2, bt, K2)
    y1p = jnp.maximum(y[:, 0], y[:, 1])                             # (12, bt, 479)

    # --- conv2: same banded structure over the pooled map (valid pooled
    #     values sit at even width positions; the banded weights read only
    #     those columns). -----------------------------------------------------
    acc = jnp.dot(y1p[0:OH2].reshape(OH2 * bt, K2), w2b_ref[0],
                  preferred_element_type=jnp.float32)
    for kh in range(1, KH):
        acc += jnp.dot(y1p[kh:kh + OH2].reshape(OH2 * bt, K2), w2b_ref[kh],
                       preferred_element_type=jnp.float32)
    y = jnp.maximum(acc + b2_ref[...], 0.0).astype(jnp.bfloat16)    # (8*bt, 400)

    y = jnp.maximum(y[:, :K3], y[:, 1:])                            # (8*bt, 399)
    y = y.reshape(PH2, 2, bt, K3)
    y2p = jnp.maximum(y[:, 0], y[:, 1])                             # (4, bt, 399)

    # --- fc3 (+ReLU): 4 per-pooled-row matmuls keep batch as the MXU M dim ---
    h = jnp.dot(y2p[0], w3b_ref[0], preferred_element_type=jnp.float32)
    for r in range(1, PH2):
        h += jnp.dot(y2p[r], w3b_ref[r], preferred_element_type=jnp.float32)
    h = jnp.maximum(h + b3_ref[...], 0.0).astype(jnp.bfloat16)      # (bt, 512)

    # --- fc4 + log_softmax; padded class lanes are masked by the -1e30 that
    #     was baked into the prepared bias. -----------------------------------
    z = jnp.dot(h, w4_ref[...], preferred_element_type=jnp.float32) + b4_ref[...]
    zs = z - jnp.max(z, axis=-1, keepdims=True)
    o_ref[...] = zs - jnp.log(jnp.sum(jnp.exp(zs), axis=-1, keepdims=True))


# ---------------------------------------------------------------------------
# One-time weight re-layout (host side, outside the jitted forward).
# Builds the banded conv/fc matrices consumed by the kernel.
# ---------------------------------------------------------------------------
def prepare_params(params):
    (w1, b1), (w2, b2), (w3, b3), (w4, b4) = [
        (np.asarray(w, np.float32), np.asarray(b, np.float32)) for (w, b) in params]

    # conv1 -> width-banded: w1b[kh][w, co*24 + ow] = w1[co, 0, kh, w - ow].
    w1b = np.zeros((KH, W_IN, N1), np.float32)
    kh, co, ow, kw = np.meshgrid(np.arange(KH), np.arange(C1),
                                 np.arange(OW1), np.arange(KW), indexing="ij")
    w1b[kh, ow + kw, co * OW1 + ow] = w1[co, 0, kh, kw]
    b1t = np.repeat(b1, OW1)[None, :]                               # (1, 480)

    # conv2 reads the un-compacted pooled conv1 layout (valid values live at
    # even width positions 2*(ow2 + kw)); odd-width rows stay zero.
    w2b = np.zeros((KH, N1, N2), np.float32)
    kh, co, ci, ow, kw = np.meshgrid(np.arange(KH), np.arange(C2), np.arange(C1),
                                     np.arange(OW2), np.arange(KW), indexing="ij")
    w2b[kh, ci * OW1 + 2 * (ow + kw), co * OW2 + ow] = w2[co, ci, kh, kw]
    w2b = w2b[:, :K2, :]                                            # (5, 479, 400)
    b2t = np.repeat(b2, OW2)[None, :]                               # (1, 400)

    # fc3 split per pooled row h2, reading even width lanes of the conv2
    # layout; the column permutation reproduces torch's x.view(-1, 50*4*4).
    n3 = w3.shape[0]                                                # 500
    w3b = np.zeros((PH2, N2, FC3_N), np.float32)
    h2, co, wq, j = np.meshgrid(np.arange(PH2), np.arange(C2),
                                np.arange(PW2), np.arange(n3), indexing="ij")
    w3b[h2, co * OW2 + 2 * wq, j] = w3[j, co * (PH2 * PW2) + h2 * PW2 + wq]
    w3b = w3b[:, :K3, :]                                            # (4, 399, 512)
    b3p = np.zeros((1, FC3_N), np.float32)
    b3p[0, :n3] = b3

    # fc4 (transposed, lane-padded); bake the padded-class mask into the bias.
    w4p = np.zeros((FC3_N, LANES), np.float32)
    w4p[: w4.shape[1], : w4.shape[0]] = w4.T
    b4p = np.full((1, LANES), NEG_INF, np.float32)
    b4p[0, : w4.shape[0]] = b4

    bf16 = lambda a: jnp.asarray(a, jnp.bfloat16)
    f32 = lambda a: jnp.asarray(a, jnp.float32)
    return (bf16(w1b), f32(b1t), bf16(w2b), f32(b2t),
            bf16(w3b), f32(b3p), bf16(w4p), f32(b4p))


# ---------------------------------------------------------------------------
# Forward pass: one pallas_call, grid over batch tiles only.
# ---------------------------------------------------------------------------
def lenet5_caffe_forward(x_nchw, prepped, *, batch_tile=128):
    w1b, b1t, w2b, b2t, w3b, b3p, w4p, b4p = prepped
    B = x_nchw.shape[0]
    bt = min(batch_tile, _round_up(B, 8))          # multiple of 8, <= 128
    Bp = _round_up(B, bt)

    # (B,1,28,28) -> (h, b, w) bf16: image rows become a leading (untiled)
    # dim and the batch is the sublane dim of every in-kernel matmul operand.
    x = jnp.transpose(x_nchw.reshape(B, H_IN, W_IN), (1, 0, 2)).astype(jnp.bfloat16)
    if Bp != B:
        x = jnp.pad(x, ((0, 0), (0, Bp - B), (0, 0)))

    out = pl.pallas_call(
        lenet5_fused_kernel,
        out_shape=jax.ShapeDtypeStruct((Bp, LANES), jnp.float32),
        grid=(Bp // bt,),
        in_specs=[
            pl.BlockSpec((H_IN, bt, W_IN), lambda i: (0, i, 0)),      # input tile
            pl.BlockSpec((KH, W_IN, N1), lambda i: (0, 0, 0)),        # conv1 banded
            pl.BlockSpec((1, N1), lambda i: (0, 0)),
            pl.BlockSpec((KH, K2, N2), lambda i: (0, 0, 0)),          # conv2 banded
            pl.BlockSpec((1, N2), lambda i: (0, 0)),
            pl.BlockSpec((PH2, K3, FC3_N), lambda i: (0, 0, 0)),      # fc3 banded
            pl.BlockSpec((1, FC3_N), lambda i: (0, 0)),
            pl.BlockSpec((FC3_N, LANES), lambda i: (0, 0)),           # fc4
            pl.BlockSpec((1, LANES), lambda i: (0, 0)),
        ],
        out_specs=pl.BlockSpec((bt, LANES), lambda i: (i, 0)),
        compiler_params=pltpu.CompilerParams(
            dimension_semantics=("parallel",),
            vmem_limit_bytes=48 * 1024 * 1024),
    )(x, w1b, b1t, w2b, b2t, w3b, b3p, w4p, b4p)
    # Padded batch rows / padded class lanes are sliced off here.
    return out[:B, :10]


# ---------------------------------------------------------------------------
# Pure-JAX f32 reference (for the self-check) and parameter init.
# ---------------------------------------------------------------------------
def lenet5_reference(x_nchw, params):
    (w1, b1), (w2, b2), (w3, b3), (w4, b4) = params
    dn = ("NCHW", "OIHW", "NCHW")
    y = lax.conv_general_dilated(x_nchw, w1, (1, 1), "VALID", dimension_numbers=dn)
    y = jax.nn.relu(y + b1[None, :, None, None])
    y = lax.reduce_window(y, -jnp.inf, lax.max, (1, 1, 2, 2), (1, 1, 2, 2), "VALID")
    y = lax.conv_general_dilated(y, w2, (1, 1), "VALID", dimension_numbers=dn)
    y = jax.nn.relu(y + b2[None, :, None, None])
    y = lax.reduce_window(y, -jnp.inf, lax.max, (1, 1, 2, 2), (1, 1, 2, 2), "VALID")
    y = y.reshape(y.shape[0], -1)                     # torch view(-1, 50*4*4) order
    y = jax.nn.relu(y @ w3.T + b3)
    return jax.nn.log_softmax(y @ w4.T + b4, axis=-1)


def init_params(key):
    ks = jax.random.split(key, 8)
    scale = 0.05
    w1 = scale * jax.random.normal(ks[0], (20, 1, 5, 5), jnp.float32)
    b1 = scale * jax.random.normal(ks[1], (20,), jnp.float32)
    w2 = scale * jax.random.normal(ks[2], (50, 20, 5, 5), jnp.float32)
    b2 = scale * jax.random.normal(ks[3], (50,), jnp.float32)
    w3 = scale * jax.random.normal(ks[4], (500, 800), jnp.float32)
    b3 = scale * jax.random.normal(ks[5], (500,), jnp.float32)
    w4 = scale * jax.random.normal(ks[6], (10, 500), jnp.float32)
    b4 = scale * jax.random.normal(ks[7], (10,), jnp.float32)
    return ((w1, b1), (w2, b2), (w3, b3), (w4, b4))


if __name__ == "__main__":
    key = jax.random.PRNGKey(0)
    k_params, k_x = jax.random.split(key)
    params = init_params(k_params)
    prepped = prepare_params(params)       # one-time weight re-layout (not jitted)

    # 28x28 input is required so fc3 sees 50*4*4 features (MNIST-sized).
    x = jax.random.normal(k_x, (2, 1, 28, 28), jnp.float32)

    out = jax.block_until_ready(jax.jit(lenet5_caffe_forward)(x, prepped))
    assert out.shape == (2, 10)
    assert bool(jnp.all(jnp.isfinite(out)))

    # Loose-tolerance check against the f32 reference (bf16 MXU inputs with
    # f32 accumulation -> small expected mixed-precision drift).
    ref = jax.block_until_ready(jax.jit(lenet5_reference)(x, params))
    err = float(jnp.max(jnp.abs(out - ref)))
    assert err < 0.1, f"mismatch vs reference: max abs err {err}"

    print("KERNEL_OK")
</pallas_src>

<mosaic_0001>
module attributes {stable_mosaic.version = 11 : i64} {
  func.func @lenet5_fused_kernel(%arg0: i32, %arg1: memref<28x8x28xbf16, #tpu.memory_space<vmem>>, %arg2: memref<5x28x480xbf16, #tpu.memory_space<vmem>>, %arg3: memref<1x480xf32, #tpu.memory_space<vmem>>, %arg4: memref<5x479x400xbf16, #tpu.memory_space<vmem>>, %arg5: memref<1x400xf32, #tpu.memory_space<vmem>>, %arg6: memref<4x399x512xbf16, #tpu.memory_space<vmem>>, %arg7: memref<1x512xf32, #tpu.memory_space<vmem>>, %arg8: memref<512x128xbf16, #tpu.memory_space<vmem>>, %arg9: memref<1x128xf32, #tpu.memory_space<vmem>>, %arg10: memref<8x128xf32, #tpu.memory_space<vmem>>) attributes {dimension_semantics = [#tpu.dimension_semantics<parallel>], iteration_bounds = array<i64: 1>, scalar_prefetch = 0 : i64, scratch_operands = 0 : i64, tpu.core_type = #tpu.core_type<tc>, window_params = [{transform_indices = @transform_0, window_bounds = array<i64: 28, 8, 28>}, {pipeline_mode = #tpu.pipeline_mode<synchronous>, transform_indices = @transform_1, window_bounds = array<i64: 5, 28, 480>}, {pipeline_mode = #tpu.pipeline_mode<synchronous>, transform_indices = @transform_2, window_bounds = array<i64: 1, 480>}, {pipeline_mode = #tpu.pipeline_mode<synchronous>, transform_indices = @transform_3, window_bounds = array<i64: 5, 479, 400>}, {pipeline_mode = #tpu.pipeline_mode<synchronous>, transform_indices = @transform_4, window_bounds = array<i64: 1, 400>}, {pipeline_mode = #tpu.pipeline_mode<synchronous>, transform_indices = @transform_5, window_bounds = array<i64: 4, 399, 512>}, {pipeline_mode = #tpu.pipeline_mode<synchronous>, transform_indices = @transform_6, window_bounds = array<i64: 1, 512>}, {pipeline_mode = #tpu.pipeline_mode<synchronous>, transform_indices = @transform_7, window_bounds = array<i64: 512, 128>}, {pipeline_mode = #tpu.pipeline_mode<synchronous>, transform_indices = @transform_8, window_bounds = array<i64: 1, 128>}, {transform_indices = @transform_9, window_bounds = array<i64: 8, 128>}]} {
    %c0 = arith.constant 0 : index
    %c0_0 = arith.constant 0 : index
    %c0_1 = arith.constant 0 : index
    %0 = vector.load %arg1[%c0, %c0_0, %c0_1] : memref<28x8x28xbf16, #tpu.memory_space<vmem>>, vector<28x8x28xbf16>
    %1 = vector.extract_strided_slice %0 {offsets = [0, 0, 0], sizes = [24, 8, 28], strides = [1, 1, 1]} : vector<28x8x28xbf16> to vector<24x8x28xbf16>
    %2 = vector.shape_cast %1 : vector<24x8x28xbf16> to vector<192x28xbf16>
    %c0_2 = arith.constant 0 : index
    %c0_3 = arith.constant 0 : index
    %c0_4 = arith.constant 0 : index
    %3 = vector.load %arg2[%c0_2, %c0_3, %c0_4] : memref<5x28x480xbf16, #tpu.memory_space<vmem>>, vector<1x28x480xbf16>
    %4 = vector.shape_cast %3 : vector<1x28x480xbf16> to vector<28x480xbf16>
    %cst = arith.constant dense<0.000000e+00> : vector<192x480xf32>
    %5 = tpu.matmul %2, %4, %cst {dimension_numbers = #tpu.dot_dimension_numbers<[1], [0], [0], [1], [0, 0, 1, 1], [], []>} : vector<192x28xbf16>, vector<28x480xbf16>, vector<192x480xf32> -> vector<192x480xf32>
    %6 = vector.extract_strided_slice %0 {offsets = [1, 0, 0], sizes = [24, 8, 28], strides = [1, 1, 1]} : vector<28x8x28xbf16> to vector<24x8x28xbf16>
    %7 = vector.shape_cast %6 : vector<24x8x28xbf16> to vector<192x28xbf16>
    %c1 = arith.constant 1 : index
    %c0_5 = arith.constant 0 : index
    %c0_6 = arith.constant 0 : index
    %8 = vector.load %arg2[%c1, %c0_5, %c0_6] : memref<5x28x480xbf16, #tpu.memory_space<vmem>>, vector<1x28x480xbf16>
    %9 = vector.shape_cast %8 : vector<1x28x480xbf16> to vector<28x480xbf16>
    %cst_7 = arith.constant dense<0.000000e+00> : vector<192x480xf32>
    %10 = tpu.matmul %7, %9, %cst_7 {dimension_numbers = #tpu.dot_dimension_numbers<[1], [0], [0], [1], [0, 0, 1, 1], [], []>} : vector<192x28xbf16>, vector<28x480xbf16>, vector<192x480xf32> -> vector<192x480xf32>
    %11 = arith.addf %5, %10 : vector<192x480xf32>
    %12 = vector.extract_strided_slice %0 {offsets = [2, 0, 0], sizes = [24, 8, 28], strides = [1, 1, 1]} : vector<28x8x28xbf16> to vector<24x8x28xbf16>
    %13 = vector.shape_cast %12 : vector<24x8x28xbf16> to vector<192x28xbf16>
    %c2 = arith.constant 2 : index
    %c0_8 = arith.constant 0 : index
    %c0_9 = arith.constant 0 : index
    %14 = vector.load %arg2[%c2, %c0_8, %c0_9] : memref<5x28x480xbf16, #tpu.memory_space<vmem>>, vector<1x28x480xbf16>
    %15 = vector.shape_cast %14 : vector<1x28x480xbf16> to vector<28x480xbf16>
    %cst_10 = arith.constant dense<0.000000e+00> : vector<192x480xf32>
    %16 = tpu.matmul %13, %15, %cst_10 {dimension_numbers = #tpu.dot_dimension_numbers<[1], [0], [0], [1], [0, 0, 1, 1], [], []>} : vector<192x28xbf16>, vector<28x480xbf16>, vector<192x480xf32> -> vector<192x480xf32>
    %17 = arith.addf %11, %16 : vector<192x480xf32>
    %18 = vector.extract_strided_slice %0 {offsets = [3, 0, 0], sizes = [24, 8, 28], strides = [1, 1, 1]} : vector<28x8x28xbf16> to vector<24x8x28xbf16>
    %19 = vector.shape_cast %18 : vector<24x8x28xbf16> to vector<192x28xbf16>
    %c3 = arith.constant 3 : index
    %c0_11 = arith.constant 0 : index
    %c0_12 = arith.constant 0 : index
    %20 = vector.load %arg2[%c3, %c0_11, %c0_12] : memref<5x28x480xbf16, #tpu.memory_space<vmem>>, vector<1x28x480xbf16>
    %21 = vector.shape_cast %20 : vector<1x28x480xbf16> to vector<28x480xbf16>
    %cst_13 = arith.constant dense<0.000000e+00> : vector<192x480xf32>
    %22 = tpu.matmul %19, %21, %cst_13 {dimension_numbers = #tpu.dot_dimension_numbers<[1], [0], [0], [1], [0, 0, 1, 1], [], []>} : vector<192x28xbf16>, vector<28x480xbf16>, vector<192x480xf32> -> vector<192x480xf32>
    %23 = arith.addf %17, %22 : vector<192x480xf32>
    %24 = vector.extract_strided_slice %0 {offsets = [4, 0, 0], sizes = [24, 8, 28], strides = [1, 1, 1]} : vector<28x8x28xbf16> to vector<24x8x28xbf16>
    %25 = vector.shape_cast %24 : vector<24x8x28xbf16> to vector<192x28xbf16>
    %c4 = arith.constant 4 : index
    %c0_14 = arith.constant 0 : index
    %c0_15 = arith.constant 0 : index
    %26 = vector.load %arg2[%c4, %c0_14, %c0_15] : memref<5x28x480xbf16, #tpu.memory_space<vmem>>, vector<1x28x480xbf16>
    %27 = vector.shape_cast %26 : vector<1x28x480xbf16> to vector<28x480xbf16>
    %cst_16 = arith.constant dense<0.000000e+00> : vector<192x480xf32>
    %28 = tpu.matmul %25, %27, %cst_16 {dimension_numbers = #tpu.dot_dimension_numbers<[1], [0], [0], [1], [0, 0, 1, 1], [], []>} : vector<192x28xbf16>, vector<28x480xbf16>, vector<192x480xf32> -> vector<192x480xf32>
    %29 = arith.addf %23, %28 : vector<192x480xf32>
    %c0_17 = arith.constant 0 : index
    %c0_18 = arith.constant 0 : index
    %30 = vector.load %arg3[%c0_17, %c0_18] : memref<1x480xf32, #tpu.memory_space<vmem>>, vector<1x480xf32>
    %31 = vector.broadcast %30 : vector<1x480xf32> to vector<192x480xf32>
    %32 = arith.addf %29, %31 : vector<192x480xf32>
    %cst_19 = arith.constant 0.000000e+00 : f32
    %33 = vector.broadcast %cst_19 : f32 to vector<192x480xf32>
    %34 = arith.maximumf %32, %33 : vector<192x480xf32>
    %35 = arith.truncf %34 : vector<192x480xf32> to vector<192x480xbf16>
    %36 = vector.extract_strided_slice %35 {offsets = [0, 0], sizes = [192, 479], strides = [1, 1]} : vector<192x480xbf16> to vector<192x479xbf16>
    %37 = vector.extract_strided_slice %35 {offsets = [0, 1], sizes = [192, 479], strides = [1, 1]} : vector<192x480xbf16> to vector<192x479xbf16>
    %38 = arith.maximumf %36, %37 : vector<192x479xbf16>
    %39 = vector.shape_cast %38 : vector<192x479xbf16> to vector<12x2x8x479xbf16>
    %40 = vector.extract_strided_slice %39 {offsets = [0, 0, 0, 0], sizes = [12, 1, 8, 479], strides = [1, 1, 1, 1]} : vector<12x2x8x479xbf16> to vector<12x1x8x479xbf16>
    %41 = vector.shape_cast %40 : vector<12x1x8x479xbf16> to vector<12x8x479xbf16>
    %42 = vector.extract_strided_slice %39 {offsets = [0, 1, 0, 0], sizes = [12, 1, 8, 479], strides = [1, 1, 1, 1]} : vector<12x2x8x479xbf16> to vector<12x1x8x479xbf16>
    %43 = vector.shape_cast %42 : vector<12x1x8x479xbf16> to vector<12x8x479xbf16>
    %44 = arith.maximumf %41, %43 : vector<12x8x479xbf16>
    %45 = vector.extract_strided_slice %44 {offsets = [0, 0, 0], sizes = [8, 8, 479], strides = [1, 1, 1]} : vector<12x8x479xbf16> to vector<8x8x479xbf16>
    %46 = vector.shape_cast %45 : vector<8x8x479xbf16> to vector<64x479xbf16>
    %c0_20 = arith.constant 0 : index
    %c0_21 = arith.constant 0 : index
    %c0_22 = arith.constant 0 : index
    %47 = vector.load %arg4[%c0_20, %c0_21, %c0_22] : memref<5x479x400xbf16, #tpu.memory_space<vmem>>, vector<1x479x400xbf16>
    %48 = vector.shape_cast %47 : vector<1x479x400xbf16> to vector<479x400xbf16>
    %cst_23 = arith.constant dense<0.000000e+00> : vector<64x400xf32>
    %49 = tpu.matmul %46, %48, %cst_23 {dimension_numbers = #tpu.dot_dimension_numbers<[1], [0], [0], [1], [0, 0, 1, 1], [], []>} : vector<64x479xbf16>, vector<479x400xbf16>, vector<64x400xf32> -> vector<64x400xf32>
    %50 = vector.extract_strided_slice %44 {offsets = [1, 0, 0], sizes = [8, 8, 479], strides = [1, 1, 1]} : vector<12x8x479xbf16> to vector<8x8x479xbf16>
    %51 = vector.shape_cast %50 : vector<8x8x479xbf16> to vector<64x479xbf16>
    %c1_24 = arith.constant 1 : index
    %c0_25 = arith.constant 0 : index
    %c0_26 = arith.constant 0 : index
    %52 = vector.load %arg4[%c1_24, %c0_25, %c0_26] : memref<5x479x400xbf16, #tpu.memory_space<vmem>>, vector<1x479x400xbf16>
    %53 = vector.shape_cast %52 : vector<1x479x400xbf16> to vector<479x400xbf16>
    %cst_27 = arith.constant dense<0.000000e+00> : vector<64x400xf32>
    %54 = tpu.matmul %51, %53, %cst_27 {dimension_numbers = #tpu.dot_dimension_numbers<[1], [0], [0], [1], [0, 0, 1, 1], [], []>} : vector<64x479xbf16>, vector<479x400xbf16>, vector<64x400xf32> -> vector<64x400xf32>
    %55 = arith.addf %49, %54 : vector<64x400xf32>
    %56 = vector.extract_strided_slice %44 {offsets = [2, 0, 0], sizes = [8, 8, 479], strides = [1, 1, 1]} : vector<12x8x479xbf16> to vector<8x8x479xbf16>
    %57 = vector.shape_cast %56 : vector<8x8x479xbf16> to vector<64x479xbf16>
    %c2_28 = arith.constant 2 : index
    %c0_29 = arith.constant 0 : index
    %c0_30 = arith.constant 0 : index
    %58 = vector.load %arg4[%c2_28, %c0_29, %c0_30] : memref<5x479x400xbf16, #tpu.memory_space<vmem>>, vector<1x479x400xbf16>
    %59 = vector.shape_cast %58 : vector<1x479x400xbf16> to vector<479x400xbf16>
    %cst_31 = arith.constant dense<0.000000e+00> : vector<64x400xf32>
    %60 = tpu.matmul %57, %59, %cst_31 {dimension_numbers = #tpu.dot_dimension_numbers<[1], [0], [0], [1], [0, 0, 1, 1], [], []>} : vector<64x479xbf16>, vector<479x400xbf16>, vector<64x400xf32> -> vector<64x400xf32>
    %61 = arith.addf %55, %60 : vector<64x400xf32>
    %62 = vector.extract_strided_slice %44 {offsets = [3, 0, 0], sizes = [8, 8, 479], strides = [1, 1, 1]} : vector<12x8x479xbf16> to vector<8x8x479xbf16>
    %63 = vector.shape_cast %62 : vector<8x8x479xbf16> to vector<64x479xbf16>
    %c3_32 = arith.constant 3 : index
    %c0_33 = arith.constant 0 : index
    %c0_34 = arith.constant 0 : index
    %64 = vector.load %arg4[%c3_32, %c0_33, %c0_34] : memref<5x479x400xbf16, #tpu.memory_space<vmem>>, vector<1x479x400xbf16>
    %65 = vector.shape_cast %64 : vector<1x479x400xbf16> to vector<479x400xbf16>
    %cst_35 = arith.constant dense<0.000000e+00> : vector<64x400xf32>
    %66 = tpu.matmul %63, %65, %cst_35 {dimension_numbers = #tpu.dot_dimension_numbers<[1], [0], [0], [1], [0, 0, 1, 1], [], []>} : vector<64x479xbf16>, vector<479x400xbf16>, vector<64x400xf32> -> vector<64x400xf32>
    %67 = arith.addf %61, %66 : vector<64x400xf32>
    %68 = vector.extract_strided_slice %44 {offsets = [4, 0, 0], sizes = [8, 8, 479], strides = [1, 1, 1]} : vector<12x8x479xbf16> to vector<8x8x479xbf16>
    %69 = vector.shape_cast %68 : vector<8x8x479xbf16> to vector<64x479xbf16>
    %c4_36 = arith.constant 4 : index
    %c0_37 = arith.constant 0 : index
    %c0_38 = arith.constant 0 : index
    %70 = vector.load %arg4[%c4_36, %c0_37, %c0_38] : memref<5x479x400xbf16, #tpu.memory_space<vmem>>, vector<1x479x400xbf16>
    %71 = vector.shape_cast %70 : vector<1x479x400xbf16> to vector<479x400xbf16>
    %cst_39 = arith.constant dense<0.000000e+00> : vector<64x400xf32>
    %72 = tpu.matmul %69, %71, %cst_39 {dimension_numbers = #tpu.dot_dimension_numbers<[1], [0], [0], [1], [0, 0, 1, 1], [], []>} : vector<64x479xbf16>, vector<479x400xbf16>, vector<64x400xf32> -> vector<64x400xf32>
    %73 = arith.addf %67, %72 : vector<64x400xf32>
    %c0_40 = arith.constant 0 : index
    %c0_41 = arith.constant 0 : index
    %74 = vector.load %arg5[%c0_40, %c0_41] : memref<1x400xf32, #tpu.memory_space<vmem>>, vector<1x400xf32>
    %75 = vector.broadcast %74 : vector<1x400xf32> to vector<64x400xf32>
    %76 = arith.addf %73, %75 : vector<64x400xf32>
    %cst_42 = arith.constant 0.000000e+00 : f32
    %77 = vector.broadcast %cst_42 : f32 to vector<64x400xf32>
    %78 = arith.maximumf %76, %77 : vector<64x400xf32>
    %79 = arith.truncf %78 : vector<64x400xf32> to vector<64x400xbf16>
    %80 = vector.extract_strided_slice %79 {offsets = [0, 0], sizes = [64, 399], strides = [1, 1]} : vector<64x400xbf16> to vector<64x399xbf16>
    %81 = vector.extract_strided_slice %79 {offsets = [0, 1], sizes = [64, 399], strides = [1, 1]} : vector<64x400xbf16> to vector<64x399xbf16>
    %82 = arith.maximumf %80, %81 : vector<64x399xbf16>
    %83 = vector.shape_cast %82 : vector<64x399xbf16> to vector<4x2x8x399xbf16>
    %84 = vector.extract_strided_slice %83 {offsets = [0, 0, 0, 0], sizes = [4, 1, 8, 399], strides = [1, 1, 1, 1]} : vector<4x2x8x399xbf16> to vector<4x1x8x399xbf16>
    %85 = vector.shape_cast %84 : vector<4x1x8x399xbf16> to vector<4x8x399xbf16>
    %86 = vector.extract_strided_slice %83 {offsets = [0, 1, 0, 0], sizes = [4, 1, 8, 399], strides = [1, 1, 1, 1]} : vector<4x2x8x399xbf16> to vector<4x1x8x399xbf16>
    %87 = vector.shape_cast %86 : vector<4x1x8x399xbf16> to vector<4x8x399xbf16>
    %88 = arith.maximumf %85, %87 : vector<4x8x399xbf16>
    %89 = vector.extract_strided_slice %88 {offsets = [0, 0, 0], sizes = [1, 8, 399], strides = [1, 1, 1]} : vector<4x8x399xbf16> to vector<1x8x399xbf16>
    %90 = vector.shape_cast %89 : vector<1x8x399xbf16> to vector<8x399xbf16>
    %c0_43 = arith.constant 0 : index
    %c0_44 = arith.constant 0 : index
    %c0_45 = arith.constant 0 : index
    %91 = vector.load %arg6[%c0_43, %c0_44, %c0_45] : memref<4x399x512xbf16, #tpu.memory_space<vmem>>, vector<1x399x512xbf16>
    %92 = vector.shape_cast %91 : vector<1x399x512xbf16> to vector<399x512xbf16>
    %cst_46 = arith.constant dense<0.000000e+00> : vector<8x512xf32>
    %93 = tpu.matmul %90, %92, %cst_46 {dimension_numbers = #tpu.dot_dimension_numbers<[1], [0], [0], [1], [0, 0, 1, 1], [], []>} : vector<8x399xbf16>, vector<399x512xbf16>, vector<8x512xf32> -> vector<8x512xf32>
    %94 = vector.extract_strided_slice %88 {offsets = [1, 0, 0], sizes = [1, 8, 399], strides = [1, 1, 1]} : vector<4x8x399xbf16> to vector<1x8x399xbf16>
    %95 = vector.shape_cast %94 : vector<1x8x399xbf16> to vector<8x399xbf16>
    %c1_47 = arith.constant 1 : index
    %c0_48 = arith.constant 0 : index
    %c0_49 = arith.constant 0 : index
    %96 = vector.load %arg6[%c1_47, %c0_48, %c0_49] : memref<4x399x512xbf16, #tpu.memory_space<vmem>>, vector<1x399x512xbf16>
    %97 = vector.shape_cast %96 : vector<1x399x512xbf16> to vector<399x512xbf16>
    %cst_50 = arith.constant dense<0.000000e+00> : vector<8x512xf32>
    %98 = tpu.matmul %95, %97, %cst_50 {dimension_numbers = #tpu.dot_dimension_numbers<[1], [0], [0], [1], [0, 0, 1, 1], [], []>} : vector<8x399xbf16>, vector<399x512xbf16>, vector<8x512xf32> -> vector<8x512xf32>
    %99 = arith.addf %93, %98 : vector<8x512xf32>
    %100 = vector.extract_strided_slice %88 {offsets = [2, 0, 0], sizes = [1, 8, 399], strides = [1, 1, 1]} : vector<4x8x399xbf16> to vector<1x8x399xbf16>
    %101 = vector.shape_cast %100 : vector<1x8x399xbf16> to vector<8x399xbf16>
    %c2_51 = arith.constant 2 : index
    %c0_52 = arith.constant 0 : index
    %c0_53 = arith.constant 0 : index
    %102 = vector.load %arg6[%c2_51, %c0_52, %c0_53] : memref<4x399x512xbf16, #tpu.memory_space<vmem>>, vector<1x399x512xbf16>
    %103 = vector.shape_cast %102 : vector<1x399x512xbf16> to vector<399x512xbf16>
    %cst_54 = arith.constant dense<0.000000e+00> : vector<8x512xf32>
    %104 = tpu.matmul %101, %103, %cst_54 {dimension_numbers = #tpu.dot_dimension_numbers<[1], [0], [0], [1], [0, 0, 1, 1], [], []>} : vector<8x399xbf16>, vector<399x512xbf16>, vector<8x512xf32> -> vector<8x512xf32>
    %105 = arith.addf %99, %104 : vector<8x512xf32>
    %106 = vector.extract_strided_slice %88 {offsets = [3, 0, 0], sizes = [1, 8, 399], strides = [1, 1, 1]} : vector<4x8x399xbf16> to vector<1x8x399xbf16>
    %107 = vector.shape_cast %106 : vector<1x8x399xbf16> to vector<8x399xbf16>
    %c3_55 = arith.constant 3 : index
    %c0_56 = arith.constant 0 : index
    %c0_57 = arith.constant 0 : index
    %108 = vector.load %arg6[%c3_55, %c0_56, %c0_57] : memref<4x399x512xbf16, #tpu.memory_space<vmem>>, vector<1x399x512xbf16>
    %109 = vector.shape_cast %108 : vector<1x399x512xbf16> to vector<399x512xbf16>
    %cst_58 = arith.constant dense<0.000000e+00> : vector<8x512xf32>
    %110 = tpu.matmul %107, %109, %cst_58 {dimension_numbers = #tpu.dot_dimension_numbers<[1], [0], [0], [1], [0, 0, 1, 1], [], []>} : vector<8x399xbf16>, vector<399x512xbf16>, vector<8x512xf32> -> vector<8x512xf32>
    %111 = arith.addf %105, %110 : vector<8x512xf32>
    %c0_59 = arith.constant 0 : index
    %c0_60 = arith.constant 0 : index
    %112 = vector.load %arg7[%c0_59, %c0_60] : memref<1x512xf32, #tpu.memory_space<vmem>>, vector<1x512xf32>
    %113 = vector.broadcast %112 : vector<1x512xf32> to vector<8x512xf32>
    %114 = arith.addf %111, %113 : vector<8x512xf32>
    %cst_61 = arith.constant 0.000000e+00 : f32
    %115 = vector.broadcast %cst_61 : f32 to vector<8x512xf32>
    %116 = arith.maximumf %114, %115 : vector<8x512xf32>
    %117 = arith.truncf %116 : vector<8x512xf32> to vector<8x512xbf16>
    %c0_62 = arith.constant 0 : index
    %c0_63 = arith.constant 0 : index
    %118 = vector.load %arg8[%c0_62, %c0_63] : memref<512x128xbf16, #tpu.memory_space<vmem>>, vector<512x128xbf16>
    %cst_64 = arith.constant dense<0.000000e+00> : vector<8x128xf32>
    %119 = tpu.matmul %117, %118, %cst_64 {dimension_numbers = #tpu.dot_dimension_numbers<[1], [0], [0], [1], [0, 0, 1, 1], [], []>} : vector<8x512xbf16>, vector<512x128xbf16>, vector<8x128xf32> -> vector<8x128xf32>
    %c0_65 = arith.constant 0 : index
    %c0_66 = arith.constant 0 : index
    %120 = vector.load %arg9[%c0_65, %c0_66] : memref<1x128xf32, #tpu.memory_space<vmem>>, vector<1x128xf32>
    %121 = vector.broadcast %120 : vector<1x128xf32> to vector<8x128xf32>
    %122 = arith.addf %119, %121 : vector<8x128xf32>
    %cst_67 = arith.constant dense<0xFF800000> : vector<8xf32>
    %123 = vector.multi_reduction <maximumf>, %122, %cst_67 [1] : vector<8x128xf32> to vector<8xf32>
    %124 = vector.shape_cast %123 : vector<8xf32> to vector<8x1xf32>
    %125 = vector.broadcast %124 : vector<8x1xf32> to vector<8x128xf32>
    %126 = arith.subf %122, %125 : vector<8x128xf32>
    %127 = math.exp %126 : vector<8x128xf32>
    %cst_68 = arith.constant dense<0.000000e+00> : vector<8xf32>
    %128 = vector.multi_reduction <add>, %127, %cst_68 [1] : vector<8x128xf32> to vector<8xf32>
    %129 = vector.shape_cast %128 : vector<8xf32> to vector<8x1xf32>
    %130 = math.log %129 : vector<8x1xf32>
    %131 = vector.broadcast %130 : vector<8x1xf32> to vector<8x128xf32>
    %132 = arith.subf %126, %131 : vector<8x128xf32>
    %c0_69 = arith.constant 0 : index
    %c0_70 = arith.constant 0 : index
    %133 = vector.load %arg10[%c0_69, %c0_70] : memref<8x128xf32, #tpu.memory_space<vmem>>, vector<8x128xf32>
    tpu.vector_store %arg10[%c0_69, %c0_70], %132 {strides = array<i32>} : memref<8x128xf32, #tpu.memory_space<vmem>>, vector<8x128xf32>,
    return
  }
  func.func @transform_0(%arg0: i32) -> (i32, i32, i32) {
    %c0_i32 = arith.constant 0 : i32
    %c0_i32_0 = arith.constant 0 : i32
    %c0_i32_1 = arith.constant 0 : i32
    return %c0_i32, %arg0, %c0_i32_0 : i32, i32, i32
  }
  func.func @transform_1(%arg0: i32) -> (i32, i32, i32) {
    %c0_i32 = arith.constant 0 : i32
    %c0_i32_0 = arith.constant 0 : i32
    %c0_i32_1 = arith.constant 0 : i32
    %c0_i32_2 = arith.constant 0 : i32
    return %c0_i32, %c0_i32_0, %c0_i32_1 : i32, i32, i32
  }
  func.func @transform_2(%arg0: i32) -> (i32, i32) {
    %c0_i32 = arith.constant 0 : i32
    %c0_i32_0 = arith.constant 0 : i32
    %c0_i32_1 = arith.constant 0 : i32
    return %c0_i32, %c0_i32_0 : i32, i32
  }
  func.func @transform_3(%arg0: i32) -> (i32, i32, i32) {
    %c0_i32 = arith.constant 0 : i32
    %c0_i32_0 = arith.constant 0 : i32
    %c0_i32_1 = arith.constant 0 : i32
    %c0_i32_2 = arith.constant 0 : i32
    return %c0_i32, %c0_i32_0, %c0_i32_1 : i32, i32, i32
  }
  func.func @transform_4(%arg0: i32) -> (i32, i32) {
    %c0_i32 = arith.constant 0 : i32
    %c0_i32_0 = arith.constant 0 : i32
    %c0_i32_1 = arith.constant 0 : i32
    return %c0_i32, %c0_i32_0 : i32, i32
  }
  func.func @transform_5(%arg0: i32) -> (i32, i32, i32) {
    %c0_i32 = arith.constant 0 : i32
    %c0_i32_0 = arith.constant 0 : i32
    %c0_i32_1 = arith.constant 0 : i32
    %c0_i32_2 = arith.constant 0 : i32
    return %c0_i32, %c0_i32_0, %c0_i32_1 : i32, i32, i32
  }
  func.func @transform_6(%arg0: i32) -> (i32, i32) {
    %c0_i32 = arith.constant 0 : i32
    %c0_i32_0 = arith.constant 0 : i32
    %c0_i32_1 = arith.constant 0 : i32
    return %c0_i32, %c0_i32_0 : i32, i32
  }
  func.func @transform_7(%arg0: i32) -> (i32, i32) {
    %c0_i32 = arith.constant 0 : i32
    %c0_i32_0 = arith.constant 0 : i32
    %c0_i32_1 = arith.constant 0 : i32
    return %c0_i32, %c0_i32_0 : i32, i32
  }
  func.func @transform_8(%arg0: i32) -> (i32, i32) {
    %c0_i32 = arith.constant 0 : i32
    %c0_i32_0 = arith.constant 0 : i32
    %c0_i32_1 = arith.constant 0 : i32
    return %c0_i32, %c0_i32_0 : i32, i32
  }
  func.func @transform_9(%arg0: i32) -> (i32, i32) {
    %c0_i32 = arith.constant 0 : i32
    %c0_i32_0 = arith.constant 0 : i32
    return %arg0, %c0_i32 : i32, i32
  }
}

</mosaic_0001>

<llo_original>
// kernel: lenet5_caffe_forward.1
$region0: #{lenet5_caffe_forward.1}
  #allocation0 [shape = 'u32[]', space=smem, size = 0x4, offset = 0x4, fixed_abs, tag = 'smem constant byte address 0x4 - core index']
  #allocation1 [shape = 'u32[72,128]{1,0:T(1,128)}', space=vmem, size = 0x9000, scoped, tag = 'internal scratch']
  %s0 = inlined_call_operand.vmem [shape: bf16[28,8,28], index: 0, kind: input, shape index: {}]
  %s1 = inlined_call_operand.vmem [shape: bf16[5,28,480], index: 1, kind: input, shape index: {}]
  %s2 = inlined_call_operand.vmem [shape: f32[1,480], index: 2, kind: input, shape index: {}]
  %s3 = inlined_call_operand.vmem [shape: bf16[5,479,400], index: 3, kind: input, shape index: {}]
  %s4 = inlined_call_operand.vmem [shape: f32[1,400], index: 4, kind: input, shape index: {}]
  %s5 = inlined_call_operand.vmem [shape: bf16[4,399,512], index: 5, kind: input, shape index: {}]
  %s6 = inlined_call_operand.vmem [shape: f32[1,512], index: 6, kind: input, shape index: {}]
  %s7 = inlined_call_operand.vmem [shape: bf16[512,128], index: 7, kind: input, shape index: {}]
  %s8 = inlined_call_operand.vmem [shape: f32[1,128], index: 8, kind: input, shape index: {}]
  %s9 = inlined_call_operand.vmem [shape: f32[8,128], index: 9, kind: output, shape index: {}]
  %s10 = sld [smem:[#allocation0]]
  $region46: #{lenet5_caffe_forward.1} parent=0
    _
  %s12 = ssub.s32 1, %s10
  %s13 = scalar_select 0, %s12, %s10
  // Predicated region
  $region2: #{lenet5_caffe_forward.1} parent=0 // pred_check
    _
  $region3: #{lenet5_caffe_forward.1} parent=0 // pred_check_branch
    %15 = sbr.rel (0) target = $region5
  $region4: #{lenet5_caffe_forward.1} parent=0 // pred_region
    _
  $region5: #{lenet5_caffe_forward.1} parent=0 // pred_fallthru
    _
  // Predicated region
  $region6: #{lenet5_caffe_forward.1} parent=0 // pred_check
    _
  $region7: #{lenet5_caffe_forward.1} parent=0 // pred_check_branch
    %17 = sbr.rel (0) target = $region9
  $region8: #{lenet5_caffe_forward.1} parent=0 // pred_region
    _
  $region9: #{lenet5_caffe_forward.1} parent=0 // pred_fallthru
    _
  // Predicated region
  $region10: #{lenet5_caffe_forward.1} parent=0 // pred_check
    _
  $region11: #{lenet5_caffe_forward.1} parent=0 // pred_check_branch
    %19 = sbr.rel (0) target = $region13
  $region12: #{lenet5_caffe_forward.1} parent=0 // pred_region
    _
  $region13: #{lenet5_caffe_forward.1} parent=0 // pred_fallthru
    _
  // Predicated region
  $region14: #{lenet5_caffe_forward.1} parent=0 // pred_check
    _
  $region15: #{lenet5_caffe_forward.1} parent=0 // pred_check_branch
    %21 = sbr.rel (0) target = $region17
  $region16: #{lenet5_caffe_forward.1} parent=0 // pred_region
    _
  $region17: #{lenet5_caffe_forward.1} parent=0 // pred_fallthru
    _
  // Predicated region
  $region18: #{lenet5_caffe_forward.1} parent=0 // pred_check
    _
  $region19: #{lenet5_caffe_forward.1} parent=0 // pred_check_branch
    %23 = sbr.rel (0) target = $region21
  $region20: #{lenet5_caffe_forward.1} parent=0 // pred_region
    _
  $region21: #{lenet5_caffe_forward.1} parent=0 // pred_fallthru
    _
  // Predicated region
  $region22: #{lenet5_caffe_forward.1} parent=0 // pred_check
    _
  $region23: #{lenet5_caffe_forward.1} parent=0 // pred_check_branch
    %25 = sbr.rel (0) target = $region25
  $region24: #{lenet5_caffe_forward.1} parent=0 // pred_region
    _
  $region25: #{lenet5_caffe_forward.1} parent=0 // pred_fallthru
    _
  // Predicated region
  $region26: #{lenet5_caffe_forward.1} parent=0 // pred_check
    _
  $region27: #{lenet5_caffe_forward.1} parent=0 // pred_check_branch
    %27 = sbr.rel (0) target = $region29
  $region28: #{lenet5_caffe_forward.1} parent=0 // pred_region
    _
  $region29: #{lenet5_caffe_forward.1} parent=0 // pred_fallthru
    _
  // Predicated region
  $region30: #{lenet5_caffe_forward.1} parent=0 // pred_check
    _
  $region31: #{lenet5_caffe_forward.1} parent=0 // pred_check_branch
    %29 = sbr.rel (0) target = $region33
  $region32: #{lenet5_caffe_forward.1} parent=0 // pred_region
    _
  $region33: #{lenet5_caffe_forward.1} parent=0 // pred_fallthru
    _
  // Predicated region
  $region34: #{lenet5_caffe_forward.1} parent=0 // pred_check
    _
  $region35: #{lenet5_caffe_forward.1} parent=0 // pred_check_branch
    %31 = sbr.rel (0) target = $region37
  $region36: #{lenet5_caffe_forward.1} parent=0 // pred_region
    _
  $region37: #{lenet5_caffe_forward.1} parent=0 // pred_fallthru
    _
  %v33 = vld [vmem:[%s0] sm:$0xf]
  %v34 = vld [vmem:[%s0 + $0x4] sm:$0xf]
  %v35 = vld [vmem:[%s0 + $0x8] sm:$0xf]
  %v36 = vld [vmem:[%s0 + $0xc] sm:$0xf]
  %v37 = vld [vmem:[%s0 + $0x10] sm:$0xf]
  %v38 = vld [vmem:[%s0 + $0x14] sm:$0xf]
  %v39 = vld [vmem:[%s0 + $0x18] sm:$0xf]
  %v40 = vld [vmem:[%s0 + $0x1c] sm:$0xf]
  %v41 = vld [vmem:[%s0 + $0x20] sm:$0xf]
  %v42 = vld [vmem:[%s0 + $0x24] sm:$0xf]
  %v43 = vld [vmem:[%s0 + $0x28] sm:$0xf]
  %v44 = vld [vmem:[%s0 + $0x2c] sm:$0xf]
  %v45 = vld [vmem:[%s0 + $0x30] sm:$0xf]
  %v46 = vld [vmem:[%s0 + $0x34] sm:$0xf]
  %v47 = vld [vmem:[%s0 + $0x38] sm:$0xf]
  %v48 = vld [vmem:[%s0 + $0x3c] sm:$0xf]
  %v49 = vld [vmem:[%s0 + $0x40] sm:$0xf]
  %v50 = vld [vmem:[%s0 + $0x44] sm:$0xf]
  %v51 = vld [vmem:[%s0 + $0x48] sm:$0xf]
  %v52 = vld [vmem:[%s0 + $0x4c] sm:$0xf]
  %v53 = vld [vmem:[%s0 + $0x50] sm:$0xf]
  %v54 = vld [vmem:[%s0 + $0x54] sm:$0xf]
  %v55 = vld [vmem:[%s0 + $0x58] sm:$0xf]
  %v56 = vld [vmem:[%s0 + $0x5c] sm:$0xf]
  %v57 = vld [vmem:[%s0 + $0x60] sm:$0xf]
  %v58 = vld [vmem:[%s0 + $0x64] sm:$0xf]
  %v59 = vld [vmem:[%s0 + $0x68] sm:$0xf]
  %v60 = vld [vmem:[%s0 + $0x6c] sm:$0xf]
  %v61 = vld [vmem:[%s1] sm:$0xff]
  %v62 = vld [vmem:[%s1 + $0x8] sm:$0xff]
  %v63 = vld [vmem:[%s1 + $0x10] sm:$0xff]
  %v64 = vld [vmem:[%s1 + $0x18] sm:$0xff]
  %v65 = vld [vmem:[%s1 + $0x20] sm:$0xff]
  %v66 = vld [vmem:[%s1 + $0x28] sm:$0xff]
  %v67 = vld [vmem:[%s1 + $0x30] sm:$0x33]
  %v68 = vld [vmem:[%s1 + $0x38] sm:$0x33]
  %s69 = scalar_lea.vmem %s1, 64
  %v70 = vld [vmem:[%s69] sm:$0xff]
  %v71 = vld [vmem:[%s69 + $0x8] sm:$0xff]
  %v72 = vld [vmem:[%s69 + $0x10] sm:$0xff]
  %v73 = vld [vmem:[%s69 + $0x18] sm:$0xff]
  %v74 = vld [vmem:[%s69 + $0x20] sm:$0xff]
  %v75 = vld [vmem:[%s69 + $0x28] sm:$0xff]
  %v76 = vld [vmem:[%s69 + $0x30] sm:$0x33]
  %v77 = vld [vmem:[%s69 + $0x38] sm:$0x33]
  %v102 = vunpack.c.l.b16 %v34
  %v103 = vunpack.c.l.b16 %v35
  %v104 = vunpack.c.l.b16 %v36
  %v105 = vunpack.c.l.b16 %v37
  %v106 = vunpack.c.l.b16 %v38
  %v107 = vunpack.c.l.b16 %v39
  %v108 = vunpack.c.l.b16 %v40
  %v109 = vunpack.c.l.b16 %v41
  %v110 = vunpack.c.l.b16 %v42
  %v111 = vunpack.c.l.b16 %v43
  %v112 = vunpack.c.l.b16 %v44
  %v113 = vunpack.c.l.b16 %v45
  %v114 = vunpack.c.l.b16 %v46
  %v115 = vunpack.c.l.b16 %v47
  %v116 = vunpack.c.l.b16 %v48
  %v117 = vunpack.c.l.b16 %v49
  %v118 = vunpack.c.l.b16 %v50
  %v119 = vunpack.c.l.b16 %v51
  %v120 = vunpack.c.l.b16 %v52
  %v121 = vunpack.c.l.b16 %v53
  %v122 = vunpack.c.l.b16 %v54
  %v123 = vunpack.c.l.b16 %v55
  %v124 = vunpack.c.l.b16 %v56
  %v125 = vunpack.c.l.b16 %v57
  %v126 = vpack.c.b16 %v103, %v102
  %v127 = vpack.c.b16 %v105, %v104
  %v128 = vpack.c.b16 %v107, %v106
  %v129 = vpack.c.b16 %v109, %v108
  %v130 = vpack.c.b16 %v111, %v110
  %v131 = vpack.c.b16 %v113, %v112
  %v132 = vpack.c.b16 %v115, %v114
  %v133 = vpack.c.b16 %v117, %v116
  %v134 = vpack.c.b16 %v119, %v118
  %v135 = vpack.c.b16 %v121, %v120
  %v136 = vpack.c.b16 %v123, %v122
  %v137 = vpack.c.b16 %v125, %v124
  %v146 = vunpack.c.l.b16 %v70
  %v147 = vunpack.c.h.b16 %v70
  %v148 = vunpack.c.l.b16 %v71
  %v149 = vunpack.c.h.b16 %v71
  %v150 = vunpack.c.l.b16 %v72
  %v151 = vunpack.c.h.b16 %v72
  %v152 = vunpack.c.l.b16 %v73
  %v153 = vunpack.c.h.b16 %v73
  %v154 = vunpack.c.l.b16 %v74
  %v155 = vunpack.c.h.b16 %v74
  %v156 = vunpack.c.l.b16 %v75
  %v157 = vunpack.c.h.b16 %v75
  %v158 = vunpack.c.l.b16 %v76
  %v159 = vunpack.c.h.b16 %v76
  %v160 = vunpack.c.l.b16 %v77
  %v161 = vunpack.c.h.b16 %v77
  %v162 = vpack.c.b16 %v150, %v146
  %v163 = vpack.c.b16 %v151, %v147
  %v164 = vpack.c.b16 %v152, %v148
  %v165 = vpack.c.b16 %v153, %v149
  %v166 = vpack.c.b16 %v158, %v154
  %v167 = vpack.c.b16 %v159, %v155
  %v168 = vpack.c.b16 %v160, %v156
  %v169 = vpack.c.b16 %v161, %v157
  %vm174 = vcmask 228352
  %v176 = vsel %vm174, %v126, 0
  %v179 = vsel %vm174, %v127, 0
  %v182 = vsel %vm174, %v128, 0
  %v185 = vsel %vm174, %v129, 0
  %v188 = vsel %vm174, %v130, 0
  %v191 = vsel %vm174, %v131, 0
  %v194 = vsel %vm174, %v132, 0
  %v197 = vsel %vm174, %v133, 0
  %v200 = vsel %vm174, %v134, 0
  %v203 = vsel %vm174, %v135, 0
  %v206 = vsel %vm174, %v136, 0
  %v209 = vsel %vm174, %v137, 0
  %vm211 = vcmask 1045504
  %v213 = vsel %vm211, %v166, 0
  %v216 = vsel %vm211, %v167, 0
  %v219 = vsel %vm211, %v168, 0
  %v222 = vsel %vm211, %v169, 0
  %224 = vmatpush.bf16.msra.mxu0 0
  %225 = vmatpush.bf16.msra.mxu0 0
  %226 = vmatpush.bf16.msra.mxu0 0
  %227 = vmatpush.bf16.msra.mxu0 0
  %228 = vmatpush.bf16.msra.mxu0 0
  %229 = vmatpush.bf16.msra.mxu0 0
  %230 = vmatpush.bf16.msra.mxu0 %v213
  %231 = vmatpush.bf16.msra.mxu0 %v162
  %232 = vmatmul.bf16.gmra.mxu0 %v176
  %v233 = vpop.f32.mrf.mxu0
  %v234 = vadd.f32 0.0, %v233
  %v235 = vpop.f32.mrf.mxu0
  %v236 = vadd.f32 0.0, %v235
  %237 = vmatmul.bf16.gmra.mxu0 %v179
  %v238 = vpop.f32.mrf.mxu0
  %v239 = vadd.f32 0.0, %v238
  %v240 = vpop.f32.mrf.mxu0
  %v241 = vadd.f32 0.0, %v240
  %242 = vmatmul.bf16.gmra.mxu0 %v182
  %v243 = vpop.f32.mrf.mxu0
  %v244 = vadd.f32 0.0, %v243
  %v245 = vpop.f32.mrf.mxu0
  %v246 = vadd.f32 0.0, %v245
  %247 = vmatmul.bf16.gmra.mxu0 %v185
  %v248 = vpop.f32.mrf.mxu0
  %v249 = vadd.f32 0.0, %v248
  %v250 = vpop.f32.mrf.mxu0
  %v251 = vadd.f32 0.0, %v250
  %252 = vmatmul.bf16.gmra.mxu0 %v188
  %v253 = vpop.f32.mrf.mxu0
  %v254 = vadd.f32 0.0, %v253
  %v255 = vpop.f32.mrf.mxu0
  %v256 = vadd.f32 0.0, %v255
  %257 = vmatmul.bf16.gmra.mxu0 %v191
  %v258 = vpop.f32.mrf.mxu0
  %v259 = vadd.f32 0.0, %v258
  %v260 = vpop.f32.mrf.mxu0
  %v261 = vadd.f32 0.0, %v260
  %262 = vmatmul.bf16.gmra.mxu0 %v194
  %v263 = vpop.f32.mrf.mxu0
  %v264 = vadd.f32 0.0, %v263
  %v265 = vpop.f32.mrf.mxu0
  %v266 = vadd.f32 0.0, %v265
  %267 = vmatmul.bf16.gmra.mxu0 %v197
  %v268 = vpop.f32.mrf.mxu0
  %v269 = vadd.f32 0.0, %v268
  %v270 = vpop.f32.mrf.mxu0
  %v271 = vadd.f32 0.0, %v270
  %272 = vmatmul.bf16.gmra.mxu0 %v200
  %v273 = vpop.f32.mrf.mxu0
  %v274 = vadd.f32 0.0, %v273
  %v275 = vpop.f32.mrf.mxu0
  %v276 = vadd.f32 0.0, %v275
  %277 = vmatmul.bf16.gmra.mxu0 %v203
  %v278 = vpop.f32.mrf.mxu0
  %v279 = vadd.f32 0.0, %v278
  %v280 = vpop.f32.mrf.mxu0
  %v281 = vadd.f32 0.0, %v280
  %282 = vmatmul.bf16.gmra.mxu0 %v206
  %v283 = vpop.f32.mrf.mxu0
  %v284 = vadd.f32 0.0, %v283
  %v285 = vpop.f32.mrf.mxu0
  %v286 = vadd.f32 0.0, %v285
  %287 = vmatmul.bf16.gmra.mxu0 %v209
  %v288 = vpop.f32.mrf.mxu0
  %v289 = vadd.f32 0.0, %v288
  %v290 = vpop.f32.mrf.mxu0
  %v291 = vadd.f32 0.0, %v290
  %292 = vdwg.mxu0
  %293 = vmatpush.bf16.msra.mxu0 0
  %294 = vmatpush.bf16.msra.mxu0 0
  %295 = vmatpush.bf16.msra.mxu0 0
  %296 = vmatpush.bf16.msra.mxu0 0
  %297 = vmatpush.bf16.msra.mxu0 0
  %298 = vmatpush.bf16.msra.mxu0 0
  %299 = vmatpush.bf16.msra.mxu0 %v216
  %300 = vmatpush.bf16.msra.mxu0 %v163
  %301 = vmatmul.bf16.gmra.mxu0 %v176
  %v302 = vpop.f32.mrf.mxu0
  %v303 = vadd.f32 0.0, %v302
  %v304 = vpop.f32.mrf.mxu0
  %v305 = vadd.f32 0.0, %v304
  %306 = vmatmul.bf16.gmra.mxu0 %v179
  %v307 = vpop.f32.mrf.mxu0
  %v308 = vadd.f32 0.0, %v307
  %v309 = vpop.f32.mrf.mxu0
  %v310 = vadd.f32 0.0, %v309
  %311 = vmatmul.bf16.gmra.mxu0 %v182
  %v312 = vpop.f32.mrf.mxu0
  %v313 = vadd.f32 0.0, %v312
  %v314 = vpop.f32.mrf.mxu0
  %v315 = vadd.f32 0.0, %v314
  %316 = vmatmul.bf16.gmra.mxu0 %v185
  %v317 = vpop.f32.mrf.mxu0
  %v318 = vadd.f32 0.0, %v317
  %v319 = vpop.f32.mrf.mxu0
  %v320 = vadd.f32 0.0, %v319
  %321 = vmatmul.bf16.gmra.mxu0 %v188
  %v322 = vpop.f32.mrf.mxu0
  %v323 = vadd.f32 0.0, %v322
  %v324 = vpop.f32.mrf.mxu0
  %v325 = vadd.f32 0.0, %v324
  %326 = vmatmul.bf16.gmra.mxu0 %v191
  %v327 = vpop.f32.mrf.mxu0
  %v328 = vadd.f32 0.0, %v327
  %v329 = vpop.f32.mrf.mxu0
  %v330 = vadd.f32 0.0, %v329
  %331 = vmatmul.bf16.gmra.mxu0 %v194
  %v332 = vpop.f32.mrf.mxu0
  %v333 = vadd.f32 0.0, %v332
  %v334 = vpop.f32.mrf.mxu0
  %v335 = vadd.f32 0.0, %v334
  %336 = vmatmul.bf16.gmra.mxu0 %v197
  %v337 = vpop.f32.mrf.mxu0
  %v338 = vadd.f32 0.0, %v337
  %v339 = vpop.f32.mrf.mxu0
  %v340 = vadd.f32 0.0, %v339
  %341 = vmatmul.bf16.gmra.mxu0 %v200
  %v342 = vpop.f32.mrf.mxu0
  %v343 = vadd.f32 0.0, %v342
  %v344 = vpop.f32.mrf.mxu0
  %v345 = vadd.f32 0.0, %v344
  %346 = vmatmul.bf16.gmra.mxu0 %v203
  %v347 = vpop.f32.mrf.mxu0
  %v348 = vadd.f32 0.0, %v347
  %v349 = vpop.f32.mrf.mxu0
  %v350 = vadd.f32 0.0, %v349
  %351 = vmatmul.bf16.gmra.mxu0 %v206
  %v352 = vpop.f32.mrf.mxu0
  %v353 = vadd.f32 0.0, %v352
  %v354 = vpop.f32.mrf.mxu0
  %v355 = vadd.f32 0.0, %v354
  %356 = vmatmul.bf16.gmra.mxu0 %v209
  %v357 = vpop.f32.mrf.mxu0
  %v358 = vadd.f32 0.0, %v357
  %v359 = vpop.f32.mrf.mxu0
  %v360 = vadd.f32 0.0, %v359
  %361 = vdwg.mxu0
  %362 = vmatpush.bf16.msra.mxu0 0
  %363 = vmatpush.bf16.msra.mxu0 0
  %364 = vmatpush.bf16.msra.mxu0 0
  %365 = vmatpush.bf16.msra.mxu0 0
  %366 = vmatpush.bf16.msra.mxu0 0
  %367 = vmatpush.bf16.msra.mxu0 0
  %368 = vmatpush.bf16.msra.mxu0 %v219
  %369 = vmatpush.bf16.msra.mxu0 %v164
  %370 = vmatmul.bf16.gmra.mxu0 %v176
  %v371 = vpop.f32.mrf.mxu0
  %v372 = vadd.f32 0.0, %v371
  %v373 = vpop.f32.mrf.mxu0
  %v374 = vadd.f32 0.0, %v373
  %375 = vmatmul.bf16.gmra.mxu0 %v179
  %v376 = vpop.f32.mrf.mxu0
  %v377 = vadd.f32 0.0, %v376
  %v378 = vpop.f32.mrf.mxu0
  %v379 = vadd.f32 0.0, %v378
  %380 = vmatmul.bf16.gmra.mxu0 %v182
  %v381 = vpop.f32.mrf.mxu0
  %v382 = vadd.f32 0.0, %v381
  %v383 = vpop.f32.mrf.mxu0
  %v384 = vadd.f32 0.0, %v383
  %385 = vmatmul.bf16.gmra.mxu0 %v185
  %v386 = vpop.f32.mrf.mxu0
  %v387 = vadd.f32 0.0, %v386
  %v388 = vpop.f32.mrf.mxu0
  %v389 = vadd.f32 0.0, %v388
  %390 = vmatmul.bf16.gmra.mxu0 %v188
  %v391 = vpop.f32.mrf.mxu0
  %v392 = vadd.f32 0.0, %v391
  %v393 = vpop.f32.mrf.mxu0
  %v394 = vadd.f32 0.0, %v393
  %395 = vmatmul.bf16.gmra.mxu0 %v191
  %v396 = vpop.f32.mrf.mxu0
  %v397 = vadd.f32 0.0, %v396
  %v398 = vpop.f32.mrf.mxu0
  %v399 = vadd.f32 0.0, %v398
  %400 = vmatmul.bf16.gmra.mxu0 %v194
  %v401 = vpop.f32.mrf.mxu0
  %v402 = vadd.f32 0.0, %v401
  %v403 = vpop.f32.mrf.mxu0
  %v404 = vadd.f32 0.0, %v403
  %405 = vmatmul.bf16.gmra.mxu0 %v197
  %v406 = vpop.f32.mrf.mxu0
  %v407 = vadd.f32 0.0, %v406
  %v408 = vpop.f32.mrf.mxu0
  %v409 = vadd.f32 0.0, %v408
  %410 = vmatmul.bf16.gmra.mxu0 %v200
  %v411 = vpop.f32.mrf.mxu0
  %v412 = vadd.f32 0.0, %v411
  %v413 = vpop.f32.mrf.mxu0
  %v414 = vadd.f32 0.0, %v413
  %415 = vmatmul.bf16.gmra.mxu0 %v203
  %v416 = vpop.f32.mrf.mxu0
  %v417 = vadd.f32 0.0, %v416
  %v418 = vpop.f32.mrf.mxu0
  %v419 = vadd.f32 0.0, %v418
  %420 = vmatmul.bf16.gmra.mxu0 %v206
  %v421 = vpop.f32.mrf.mxu0
  %v422 = vadd.f32 0.0, %v421
  %v423 = vpop.f32.mrf.mxu0
  %v424 = vadd.f32 0.0, %v423
  %425 = vmatmul.bf16.gmra.mxu0 %v209
  %v426 = vpop.f32.mrf.mxu0
  %v427 = vadd.f32 0.0, %v426
  %v428 = vpop.f32.mrf.mxu0
  %v429 = vadd.f32 0.0, %v428
  %430 = vdwg.mxu0
  %431 = vmatpush.bf16.msra.mxu0 0
  %432 = vmatpush.bf16.msra.mxu0 0
  %433 = vmatpush.bf16.msra.mxu0 0
  %434 = vmatpush.bf16.msra.mxu0 0
  %435 = vmatpush.bf16.msra.mxu0 0
  %436 = vmatpush.bf16.msra.mxu0 0
  %437 = vmatpush.bf16.msra.mxu0 %v222
  %438 = vmatpush.bf16.msra.mxu0 %v165
  %439 = vmatmul.bf16.gmra.mxu0 %v176
  %v440 = vpop.f32.mrf.mxu0
  %v441 = vadd.f32 0.0, %v440
  %v442 = vpop.f32.mrf.mxu0
  %v443 = vadd.f32 0.0, %v442
  %444 = vmatmul.bf16.gmra.mxu0 %v179
  %v445 = vpop.f32.mrf.mxu0
  %v446 = vadd.f32 0.0, %v445
  %v447 = vpop.f32.mrf.mxu0
  %v448 = vadd.f32 0.0, %v447
  %449 = vmatmul.bf16.gmra.mxu0 %v182
  %v450 = vpop.f32.mrf.mxu0
  %v451 = vadd.f32 0.0, %v450
  %v452 = vpop.f32.mrf.mxu0
  %v453 = vadd.f32 0.0, %v452
  %454 = vmatmul.bf16.gmra.mxu0 %v185
  %v455 = vpop.f32.mrf.mxu0
  %v456 = vadd.f32 0.0, %v455
  %v457 = vpop.f32.mrf.mxu0
  %v458 = vadd.f32 0.0, %v457
  %459 = vmatmul.bf16.gmra.mxu0 %v188
  %v460 = vpop.f32.mrf.mxu0
  %v461 = vadd.f32 0.0, %v460
  %v462 = vpop.f32.mrf.mxu0
  %v463 = vadd.f32 0.0, %v462
  %464 = vmatmul.bf16.gmra.mxu0 %v191
  %v465 = vpop.f32.mrf.mxu0
  %v466 = vadd.f32 0.0, %v465
  %v467 = vpop.f32.mrf.mxu0
  %v468 = vadd.f32 0.0, %v467
  %469 = vmatmul.bf16.gmra.mxu0 %v194
  %v470 = vpop.f32.mrf.mxu0
  %v471 = vadd.f32 0.0, %v470
  %v472 = vpop.f32.mrf.mxu0
  %v473 = vadd.f32 0.0, %v472
  %474 = vmatmul.bf16.gmra.mxu0 %v197
  %v475 = vpop.f32.mrf.mxu0
  %v476 = vadd.f32 0.0, %v475
  %v477 = vpop.f32.mrf.mxu0
  %v478 = vadd.f32 0.0, %v477
  %479 = vmatmul.bf16.gmra.mxu0 %v200
  %v480 = vpop.f32.mrf.mxu0
  %v481 = vadd.f32 0.0, %v480
  %v482 = vpop.f32.mrf.mxu0
  %v483 = vadd.f32 0.0, %v482
  %484 = vmatmul.bf16.gmra.mxu0 %v203
  %v485 = vpop.f32.mrf.mxu0
  %v486 = vadd.f32 0.0, %v485
  %v487 = vpop.f32.mrf.mxu0
  %v488 = vadd.f32 0.0, %v487
  %489 = vmatmul.bf16.gmra.mxu0 %v206
  %v490 = vpop.f32.mrf.mxu0
  %v491 = vadd.f32 0.0, %v490
  %v492 = vpop.f32.mrf.mxu0
  %v493 = vadd.f32 0.0, %v492
  %494 = vmatmul.bf16.gmra.mxu0 %v209
  %v495 = vpop.f32.mrf.mxu0
  %v496 = vadd.f32 0.0, %v495
  %v497 = vpop.f32.mrf.mxu0
  %v498 = vadd.f32 0.0, %v497
  %499 = vdwg.mxu0
  %v501 = vunpack.c.l.b16 %v33
  %v502 = vpack.c.b16 %v102, %v501
  %v503 = vpack.c.b16 %v104, %v103
  %v504 = vpack.c.b16 %v106, %v105
  %v505 = vpack.c.b16 %v108, %v107
  %v506 = vpack.c.b16 %v110, %v109
  %v507 = vpack.c.b16 %v112, %v111
  %v508 = vpack.c.b16 %v114, %v113
  %v509 = vpack.c.b16 %v116, %v115
  %v510 = vpack.c.b16 %v118, %v117
  %v511 = vpack.c.b16 %v120, %v119
  %v512 = vpack.c.b16 %v122, %v121
  %v513 = vpack.c.b16 %v124, %v123
  %v522 = vunpack.c.l.b16 %v61
  %v523 = vunpack.c.h.b16 %v61
  %v524 = vunpack.c.l.b16 %v62
  %v525 = vunpack.c.h.b16 %v62
  %v526 = vunpack.c.l.b16 %v63
  %v527 = vunpack.c.h.b16 %v63
  %v528 = vunpack.c.l.b16 %v64
  %v529 = vunpack.c.h.b16 %v64
  %v530 = vunpack.c.l.b16 %v65
  %v531 = vunpack.c.h.b16 %v65
  %v532 = vunpack.c.l.b16 %v66
  %v533 = vunpack.c.h.b16 %v66
  %v534 = vunpack.c.l.b16 %v67
  %v535 = vunpack.c.h.b16 %v67
  %v536 = vunpack.c.l.b16 %v68
  %v537 = vunpack.c.h.b16 %v68
  %v538 = vpack.c.b16 %v526, %v522
  %v539 = vpack.c.b16 %v527, %v523
  %v540 = vpack.c.b16 %v528, %v524
  %v541 = vpack.c.b16 %v529, %v525
  %v542 = vpack.c.b16 %v534, %v530
  %v543 = vpack.c.b16 %v535, %v531
  %v544 = vpack.c.b16 %v536, %v532
  %v545 = vpack.c.b16 %v537, %v533
  %v551 = vsel %vm174, %v502, 0
  %v554 = vsel %vm174, %v503, 0
  %v557 = vsel %vm174, %v504, 0
  %v560 = vsel %vm174, %v505, 0
  %v563 = vsel %vm174, %v506, 0
  %v566 = vsel %vm174, %v507, 0
  %v569 = vsel %vm174, %v508, 0
  %v572 = vsel %vm174, %v509, 0
  %v575 = vsel %vm174, %v510, 0
  %v578 = vsel %vm174, %v511, 0
  %v581 = vsel %vm174, %v512, 0
  %v584 = vsel %vm174, %v513, 0
  %v587 = vsel %vm211, %v542, 0
  %v590 = vsel %vm211, %v543, 0
  %v593 = vsel %vm211, %v544, 0
  %v596 = vsel %vm211, %v545, 0
  %598 = vmatpush.bf16.msra.mxu0 0
  %599 = vmatpush.bf16.msra.mxu0 0
  %600 = vmatpush.bf16.msra.mxu0 0
  %601 = vmatpush.bf16.msra.mxu0 0
  %602 = vmatpush.bf16.msra.mxu0 0
  %603 = vmatpush.bf16.msra.mxu0 0
  %604 = vmatpush.bf16.msra.mxu0 %v587
  %605 = vmatpush.bf16.msra.mxu0 %v538
  %606 = vmatmul.bf16.gmra.mxu0 %v551
  %v607 = vpop.f32.mrf.mxu0
  %v608 = vadd.f32 %v234, %v607
  %v609 = vpop.f32.mrf.mxu0
  %v610 = vadd.f32 %v236, %v609
  %611 = vmatmul.bf16.gmra.mxu0 %v554
  %v612 = vpop.f32.mrf.mxu0
  %v613 = vadd.f32 %v239, %v612
  %v614 = vpop.f32.mrf.mxu0
  %v615 = vadd.f32 %v241, %v614
  %616 = vmatmul.bf16.gmra.mxu0 %v557
  %v617 = vpop.f32.mrf.mxu0
  %v618 = vadd.f32 %v244, %v617
  %v619 = vpop.f32.mrf.mxu0
  %v620 = vadd.f32 %v246, %v619
  %621 = vmatmul.bf16.gmra.mxu0 %v560
  %v622 = vpop.f32.mrf.mxu0
  %v623 = vadd.f32 %v249, %v622
  %v624 = vpop.f32.mrf.mxu0
  %v625 = vadd.f32 %v251, %v624
  %626 = vmatmul.bf16.gmra.mxu0 %v563
  %v627 = vpop.f32.mrf.mxu0
  %v628 = vadd.f32 %v254, %v627
  %v629 = vpop.f32.mrf.mxu0
  %v630 = vadd.f32 %v256, %v629
  %631 = vmatmul.bf16.gmra.mxu0 %v566
  %v632 = vpop.f32.mrf.mxu0
  %v633 = vadd.f32 %v259, %v632
  %v634 = vpop.f32.mrf.mxu0
  %v635 = vadd.f32 %v261, %v634
  %636 = vmatmul.bf16.gmra.mxu0 %v569
  %v637 = vpop.f32.mrf.mxu0
  %v638 = vadd.f32 %v264, %v637
  %v639 = vpop.f32.mrf.mxu0
  %v640 = vadd.f32 %v266, %v639
  %641 = vmatmul.bf16.gmra.mxu0 %v572
  %v642 = vpop.f32.mrf.mxu0
  %v643 = vadd.f32 %v269, %v642
  %v644 = vpop.f32.mrf.mxu0
  %v645 = vadd.f32 %v271, %v644
  %646 = vmatmul.bf16.gmra.mxu0 %v575
  %v647 = vpop.f32.mrf.mxu0
  %v648 = vadd.f32 %v274, %v647
  %v649 = vpop.f32.mrf.mxu0
  %v650 = vadd.f32 %v276, %v649
  %651 = vmatmul.bf16.gmra.mxu0 %v578
  %v652 = vpop.f32.mrf.mxu0
  %v653 = vadd.f32 %v279, %v652
  %v654 = vpop.f32.mrf.mxu0
  %v655 = vadd.f32 %v281, %v654
  %656 = vmatmul.bf16.gmra.mxu0 %v581
  %v657 = vpop.f32.mrf.mxu0
  %v658 = vadd.f32 %v284, %v657
  %v659 = vpop.f32.mrf.mxu0
  %v660 = vadd.f32 %v286, %v659
  %661 = vmatmul.bf16.gmra.mxu0 %v584
  %v662 = vpop.f32.mrf.mxu0
  %v663 = vadd.f32 %v289, %v662
  %v664 = vpop.f32.mrf.mxu0
  %v665 = vadd.f32 %v291, %v664
  %666 = vdwg.mxu0
  %667 = vmatpush.bf16.msra.mxu0 0
  %668 = vmatpush.bf16.msra.mxu0 0
  %669 = vmatpush.bf16.msra.mxu0 0
  %670 = vmatpush.bf16.msra.mxu0 0
  %671 = vmatpush.bf16.msra.mxu0 0
  %672 = vmatpush.bf16.msra.mxu0 0
  %673 = vmatpush.bf16.msra.mxu0 %v590
  %674 = vmatpush.bf16.msra.mxu0 %v539
  %675 = vmatmul.bf16.gmra.mxu0 %v551
  %v676 = vpop.f32.mrf.mxu0
  %v677 = vadd.f32 %v303, %v676
  %v678 = vpop.f32.mrf.mxu0
  %v679 = vadd.f32 %v305, %v678
  %680 = vmatmul.bf16.gmra.mxu0 %v554
  %v681 = vpop.f32.mrf.mxu0
  %v682 = vadd.f32 %v308, %v681
  %v683 = vpop.f32.mrf.mxu0
  %v684 = vadd.f32 %v310, %v683
  %685 = vmatmul.bf16.gmra.mxu0 %v557
  %v686 = vpop.f32.mrf.mxu0
  %v687 = vadd.f32 %v313, %v686
  %v688 = vpop.f32.mrf.mxu0
  %v689 = vadd.f32 %v315, %v688
  %690 = vmatmul.bf16.gmra.mxu0 %v560
  %v691 = vpop.f32.mrf.mxu0
  %v692 = vadd.f32 %v318, %v691
  %v693 = vpop.f32.mrf.mxu0
  %v694 = vadd.f32 %v320, %v693
  %695 = vmatmul.bf16.gmra.mxu0 %v563
  %v696 = vpop.f32.mrf.mxu0
  %v697 = vadd.f32 %v323, %v696
  %v698 = vpop.f32.mrf.mxu0
  %v699 = vadd.f32 %v325, %v698
  %700 = vmatmul.bf16.gmra.mxu0 %v566
  %v701 = vpop.f32.mrf.mxu0
  %v702 = vadd.f32 %v328, %v701
  %v703 = vpop.f32.mrf.mxu0
  %v704 = vadd.f32 %v330, %v703
  %705 = vmatmul.bf16.gmra.mxu0 %v569
  %v706 = vpop.f32.mrf.mxu0
  %v707 = vadd.f32 %v333, %v706
  %v708 = vpop.f32.mrf.mxu0
  %v709 = vadd.f32 %v335, %v708
  %710 = vmatmul.bf16.gmra.mxu0 %v572
  %v711 = vpop.f32.mrf.mxu0
  %v712 = vadd.f32 %v338, %v711
  %v713 = vpop.f32.mrf.mxu0
  %v714 = vadd.f32 %v340, %v713
  %715 = vmatmul.bf16.gmra.mxu0 %v575
  %v716 = vpop.f32.mrf.mxu0
  %v717 = vadd.f32 %v343, %v716
  %v718 = vpop.f32.mrf.mxu0
  %v719 = vadd.f32 %v345, %v718
  %720 = vmatmul.bf16.gmra.mxu0 %v578
  %v721 = vpop.f32.mrf.mxu0
  %v722 = vadd.f32 %v348, %v721
  %v723 = vpop.f32.mrf.mxu0
  %v724 = vadd.f32 %v350, %v723
  %725 = vmatmul.bf16.gmra.mxu0 %v581
  %v726 = vpop.f32.mrf.mxu0
  %v727 = vadd.f32 %v353, %v726
  %v728 = vpop.f32.mrf.mxu0
  %v729 = vadd.f32 %v355, %v728
  %730 = vmatmul.bf16.gmra.mxu0 %v584
  %v731 = vpop.f32.mrf.mxu0
  %v732 = vadd.f32 %v358, %v731
  %v733 = vpop.f32.mrf.mxu0
  %v734 = vadd.f32 %v360, %v733
  %735 = vdwg.mxu0
  %736 = vmatpush.bf16.msra.mxu0 0
  %737 = vmatpush.bf16.msra.mxu0 0
  %738 = vmatpush.bf16.msra.mxu0 0
  %739 = vmatpush.bf16.msra.mxu0 0
  %740 = vmatpush.bf16.msra.mxu0 0
  %741 = vmatpush.bf16.msra.mxu0 0
  %742 = vmatpush.bf16.msra.mxu0 %v593
  %743 = vmatpush.bf16.msra.mxu0 %v540
  %744 = vmatmul.bf16.gmra.mxu0 %v551
  %v745 = vpop.f32.mrf.mxu0
  %v746 = vadd.f32 %v372, %v745
  %v747 = vpop.f32.mrf.mxu0
  %v748 = vadd.f32 %v374, %v747
  %749 = vmatmul.bf16.gmra.mxu0 %v554
  %v750 = vpop.f32.mrf.mxu0
  %v751 = vadd.f32 %v377, %v750
  %v752 = vpop.f32.mrf.mxu0
  %v753 = vadd.f32 %v379, %v752
  %754 = vmatmul.bf16.gmra.mxu0 %v557
  %v755 = vpop.f32.mrf.mxu0
  %v756 = vadd.f32 %v382, %v755
  %v757 = vpop.f32.mrf.mxu0
  %v758 = vadd.f32 %v384, %v757
  %759 = vmatmul.bf16.gmra.mxu0 %v560
  %v760 = vpop.f32.mrf.mxu0
  %v761 = vadd.f32 %v387, %v760
  %v762 = vpop.f32.mrf.mxu0
  %v763 = vadd.f32 %v389, %v762
  %764 = vmatmul.bf16.gmra.mxu0 %v563
  %v765 = vpop.f32.mrf.mxu0
  %v766 = vadd.f32 %v392, %v765
  %v767 = vpop.f32.mrf.mxu0
  %v768 = vadd.f32 %v394, %v767
  %769 = vmatmul.bf16.gmra.mxu0 %v566
  %v770 = vpop.f32.mrf.mxu0
  %v771 = vadd.f32 %v397, %v770
  %v772 = vpop.f32.mrf.mxu0
  %v773 = vadd.f32 %v399, %v772
  %774 = vmatmul.bf16.gmra.mxu0 %v569
  %v775 = vpop.f32.mrf.mxu0
  %v776 = vadd.f32 %v402, %v775
  %v777 = vpop.f32.mrf.mxu0
  %v778 = vadd.f32 %v404, %v777
  %779 = vmatmul.bf16.gmra.mxu0 %v572
  %v780 = vpop.f32.mrf.mxu0
  %v781 = vadd.f32 %v407, %v780
  %v782 = vpop.f32.mrf.mxu0
  %v783 = vadd.f32 %v409, %v782
  %784 = vmatmul.bf16.gmra.mxu0 %v575
  %v785 = vpop.f32.mrf.mxu0
  %v786 = vadd.f32 %v412, %v785
  %v787 = vpop.f32.mrf.mxu0
  %v788 = vadd.f32 %v414, %v787
  %789 = vmatmul.bf16.gmra.mxu0 %v578
  %v790 = vpop.f32.mrf.mxu0
  %v791 = vadd.f32 %v417, %v790
  %v792 = vpop.f32.mrf.mxu0
  %v793 = vadd.f32 %v419, %v792
  %794 = vmatmul.bf16.gmra.mxu0 %v581
  %v795 = vpop.f32.mrf.mxu0
  %v796 = vadd.f32 %v422, %v795
  %v797 = vpop.f32.mrf.mxu0
  %v798 = vadd.f32 %v424, %v797
  %799 = vmatmul.bf16.gmra.mxu0 %v584
  %v800 = vpop.f32.mrf.mxu0
  %v801 = vadd.f32 %v427, %v800
  %v802 = vpop.f32.mrf.mxu0
  %v803 = vadd.f32 %v429, %v802
  %804 = vdwg.mxu0
  %805 = vmatpush.bf16.msra.mxu0 0
  %806 = vmatpush.bf16.msra.mxu0 0
  %807 = vmatpush.bf16.msra.mxu0 0
  %808 = vmatpush.bf16.msra.mxu0 0
  %809 = vmatpush.bf16.msra.mxu0 0
  %810 = vmatpush.bf16.msra.mxu0 0
  %811 = vmatpush.bf16.msra.mxu0 %v596
  %812 = vmatpush.bf16.msra.mxu0 %v541
  %813 = vmatmul.bf16.gmra.mxu0 %v551
  %v814 = vpop.f32.mrf.mxu0
  %v815 = vadd.f32 %v441, %v814
  %v816 = vpop.f32.mrf.mxu0
  %v817 = vadd.f32 %v443, %v816
  %818 = vmatmul.bf16.gmra.mxu0 %v554
  %v819 = vpop.f32.mrf.mxu0
  %v820 = vadd.f32 %v446, %v819
  %v821 = vpop.f32.mrf.mxu0
  %v822 = vadd.f32 %v448, %v821
  %823 = vmatmul.bf16.gmra.mxu0 %v557
  %v824 = vpop.f32.mrf.mxu0
  %v825 = vadd.f32 %v451, %v824
  %v826 = vpop.f32.mrf.mxu0
  %v827 = vadd.f32 %v453, %v826
  %828 = vmatmul.bf16.gmra.mxu0 %v560
  %v829 = vpop.f32.mrf.mxu0
  %v830 = vadd.f32 %v456, %v829
  %v831 = vpop.f32.mrf.mxu0
  %v832 = vadd.f32 %v458, %v831
  %833 = vmatmul.bf16.gmra.mxu0 %v563
  %v834 = vpop.f32.mrf.mxu0
  %v835 = vadd.f32 %v461, %v834
  %v836 = vpop.f32.mrf.mxu0
  %v837 = vadd.f32 %v463, %v836
  %838 = vmatmul.bf16.gmra.mxu0 %v566
  %v839 = vpop.f32.mrf.mxu0
  %v840 = vadd.f32 %v466, %v839
  %v841 = vpop.f32.mrf.mxu0
  %v842 = vadd.f32 %v468, %v841
  %843 = vmatmul.bf16.gmra.mxu0 %v569
  %v844 = vpop.f32.mrf.mxu0
  %v845 = vadd.f32 %v471, %v844
  %v846 = vpop.f32.mrf.mxu0
  %v847 = vadd.f32 %v473, %v846
  %848 = vmatmul.bf16.gmra.mxu0 %v572
  %v849 = vpop.f32.mrf.mxu0
  %v850 = vadd.f32 %v476, %v849
  %v851 = vpop.f32.mrf.mxu0
  %v852 = vadd.f32 %v478, %v851
  %853 = vmatmul.bf16.gmra.mxu0 %v575
  %v854 = vpop.f32.mrf.mxu0
  %v855 = vadd.f32 %v481, %v854
  %v856 = vpop.f32.mrf.mxu0
  %v857 = vadd.f32 %v483, %v856
  %858 = vmatmul.bf16.gmra.mxu0 %v578
  %v859 = vpop.f32.mrf.mxu0
  %v860 = vadd.f32 %v486, %v859
  %v861 = vpop.f32.mrf.mxu0
  %v862 = vadd.f32 %v488, %v861
  %863 = vmatmul.bf16.gmra.mxu0 %v581
  %v864 = vpop.f32.mrf.mxu0
  %v865 = vadd.f32 %v491, %v864
  %v866 = vpop.f32.mrf.mxu0
  %v867 = vadd.f32 %v493, %v866
  %868 = vmatmul.bf16.gmra.mxu0 %v584
  %v869 = vpop.f32.mrf.mxu0
  %v870 = vadd.f32 %v496, %v869
  %v871 = vpop.f32.mrf.mxu0
  %v872 = vadd.f32 %v498, %v871
  %873 = vdwg.mxu0
  %s874 = scalar_lea.vmem %s1, 128
  %v875 = vld [vmem:[%s874] sm:$0xff]
  %v876 = vld [vmem:[%s874 + $0x8] sm:$0xff]
  %v877 = vld [vmem:[%s874 + $0x10] sm:$0xff]
  %v878 = vld [vmem:[%s874 + $0x18] sm:$0xff]
  %v879 = vld [vmem:[%s874 + $0x20] sm:$0xff]
  %v880 = vld [vmem:[%s874 + $0x28] sm:$0xff]
  %v881 = vld [vmem:[%s874 + $0x30] sm:$0x33]
  %v882 = vld [vmem:[%s874 + $0x38] sm:$0x33]
  %v884 = vunpack.c.l.b16 %v58
  %v885 = vpack.c.b16 %v884, %v125
  %v894 = vunpack.c.l.b16 %v875
  %v895 = vunpack.c.h.b16 %v875
  %v896 = vunpack.c.l.b16 %v876
  %v897 = vunpack.c.h.b16 %v876
  %v898 = vunpack.c.l.b16 %v877
  %v899 = vunpack.c.h.b16 %v877
  %v900 = vunpack.c.l.b16 %v878
  %v901 = vunpack.c.h.b16 %v878
  %v902 = vunpack.c.l.b16 %v879
  %v903 = vunpack.c.h.b16 %v879
  %v904 = vunpack.c.l.b16 %v880
  %v905 = vunpack.c.h.b16 %v880
  %v906 = vunpack.c.l.b16 %v881
  %v907 = vunpack.c.h.b16 %v881
  %v908 = vunpack.c.l.b16 %v882
  %v909 = vunpack.c.h.b16 %v882
  %v910 = vpack.c.b16 %v898, %v894
  %v911 = vpack.c.b16 %v899, %v895
  %v912 = vpack.c.b16 %v900, %v896
  %v913 = vpack.c.b16 %v901, %v897
  %v914 = vpack.c.b16 %v906, %v902
  %v915 = vpack.c.b16 %v907, %v903
  %v916 = vpack.c.b16 %v908, %v904
  %v917 = vpack.c.b16 %v909, %v905
  %v923 = vsel %vm174, %v885, 0
  %v926 = vsel %vm211, %v914, 0
  %v929 = vsel %vm211, %v915, 0
  %v932 = vsel %vm211, %v916, 0
  %v935 = vsel %vm211, %v917, 0
  %937 = vmatpush.bf16.msra.mxu0 0
  %938 = vmatpush.bf16.msra.mxu0 0
  %939 = vmatpush.bf16.msra.mxu0 0
  %940 = vmatpush.bf16.msra.mxu0 0
  %941 = vmatpush.bf16.msra.mxu0 0
  %942 = vmatpush.bf16.msra.mxu0 0
  %943 = vmatpush.bf16.msra.mxu0 %v926
  %944 = vmatpush.bf16.msra.mxu0 %v910
  %945 = vmatmul.bf16.gmra.mxu0 %v554
  %v946 = vpop.f32.mrf.mxu0
  %v947 = vadd.f32 0.0, %v946
  %v948 = vpop.f32.mrf.mxu0
  %v949 = vadd.f32 0.0, %v948
  %950 = vmatmul.bf16.gmra.mxu0 %v557
  %v951 = vpop.f32.mrf.mxu0
  %v952 = vadd.f32 0.0, %v951
  %v953 = vpop.f32.mrf.mxu0
  %v954 = vadd.f32 0.0, %v953
  %955 = vmatmul.bf16.gmra.mxu0 %v560
  %v956 = vpop.f32.mrf.mxu0
  %v957 = vadd.f32 0.0, %v956
  %v958 = vpop.f32.mrf.mxu0
  %v959 = vadd.f32 0.0, %v958
  %960 = vmatmul.bf16.gmra.mxu0 %v563
  %v961 = vpop.f32.mrf.mxu0
  %v962 = vadd.f32 0.0, %v961
  %v963 = vpop.f32.mrf.mxu0
  %v964 = vadd.f32 0.0, %v963
  %965 = vmatmul.bf16.gmra.mxu0 %v566
  %v966 = vpop.f32.mrf.mxu0
  %v967 = vadd.f32 0.0, %v966
  %v968 = vpop.f32.mrf.mxu0
  %v969 = vadd.f32 0.0, %v968
  %970 = vmatmul.bf16.gmra.mxu0 %v569
  %v971 = vpop.f32.mrf.mxu0
  %v972 = vadd.f32 0.0, %v971
  %v973 = vpop.f32.mrf.mxu0
  %v974 = vadd.f32 0.0, %v973
  %975 = vmatmul.bf16.gmra.mxu0 %v572
  %v976 = vpop.f32.mrf.mxu0
  %v977 = vadd.f32 0.0, %v976
  %v978 = vpop.f32.mrf.mxu0
  %v979 = vadd.f32 0.0, %v978
  %980 = vmatmul.bf16.gmra.mxu0 %v575
  %v981 = vpop.f32.mrf.mxu0
  %v982 = vadd.f32 0.0, %v981
  %v983 = vpop.f32.mrf.mxu0
  %v984 = vadd.f32 0.0, %v983
  %985 = vmatmul.bf16.gmra.mxu0 %v578
  %v986 = vpop.f32.mrf.mxu0
  %v987 = vadd.f32 0.0, %v986
  %v988 = vpop.f32.mrf.mxu0
  %v989 = vadd.f32 0.0, %v988
  %990 = vmatmul.bf16.gmra.mxu0 %v581
  %v991 = vpop.f32.mrf.mxu0
  %v992 = vadd.f32 0.0, %v991
  %v993 = vpop.f32.mrf.mxu0
  %v994 = vadd.f32 0.0, %v993
  %995 = vmatmul.bf16.gmra.mxu0 %v584
  %v996 = vpop.f32.mrf.mxu0
  %v997 = vadd.f32 0.0, %v996
  %v998 = vpop.f32.mrf.mxu0
  %v999 = vadd.f32 0.0, %v998
  %1000 = vmatmul.bf16.gmra.mxu0 %v923
  %v1001 = vpop.f32.mrf.mxu0
  %v1002 = vadd.f32 0.0, %v1001
  %v1003 = vpop.f32.mrf.mxu0
  %v1004 = vadd.f32 0.0, %v1003
  %1005 = vdwg.mxu0
  %1006 = vmatpush.bf16.msra.mxu0 0
  %1007 = vmatpush.bf16.msra.mxu0 0
  %1008 = vmatpush.bf16.msra.mxu0 0
  %1009 = vmatpush.bf16.msra.mxu0 0
  %1010 = vmatpush.bf16.msra.mxu0 0
  %1011 = vmatpush.bf16.msra.mxu0 0
  %1012 = vmatpush.bf16.msra.mxu0 %v929
  %1013 = vmatpush.bf16.msra.mxu0 %v911
  %1014 = vmatmul.bf16.gmra.mxu0 %v554
  %v1015 = vpop.f32.mrf.mxu0
  %v1016 = vadd.f32 0.0, %v1015
  %v1017 = vpop.f32.mrf.mxu0
  %v1018 = vadd.f32 0.0, %v1017
  %1019 = vmatmul.bf16.gmra.mxu0 %v557
  %v1020 = vpop.f32.mrf.mxu0
  %v1021 = vadd.f32 0.0, %v1020
  %v1022 = vpop.f32.mrf.mxu0
  %v1023 = vadd.f32 0.0, %v1022
  %1024 = vmatmul.bf16.gmra.mxu0 %v560
  %v1025 = vpop.f32.mrf.mxu0
  %v1026 = vadd.f32 0.0, %v1025
  %v1027 = vpop.f32.mrf.mxu0
  %v1028 = vadd.f32 0.0, %v1027
  %1029 = vmatmul.bf16.gmra.mxu0 %v563
  %v1030 = vpop.f32.mrf.mxu0
  %v1031 = vadd.f32 0.0, %v1030
  %v1032 = vpop.f32.mrf.mxu0
  %v1033 = vadd.f32 0.0, %v1032
  %1034 = vmatmul.bf16.gmra.mxu0 %v566
  %v1035 = vpop.f32.mrf.mxu0
  %v1036 = vadd.f32 0.0, %v1035
  %v1037 = vpop.f32.mrf.mxu0
  %v1038 = vadd.f32 0.0, %v1037
  %1039 = vmatmul.bf16.gmra.mxu0 %v569
  %v1040 = vpop.f32.mrf.mxu0
  %v1041 = vadd.f32 0.0, %v1040
  %v1042 = vpop.f32.mrf.mxu0
  %v1043 = vadd.f32 0.0, %v1042
  %1044 = vmatmul.bf16.gmra.mxu0 %v572
  %v1045 = vpop.f32.mrf.mxu0
  %v1046 = vadd.f32 0.0, %v1045
  %v1047 = vpop.f32.mrf.mxu0
  %v1048 = vadd.f32 0.0, %v1047
  %1049 = vmatmul.bf16.gmra.mxu0 %v575
  %v1050 = vpop.f32.mrf.mxu0
  %v1051 = vadd.f32 0.0, %v1050
  %v1052 = vpop.f32.mrf.mxu0
  %v1053 = vadd.f32 0.0, %v1052
  %1054 = vmatmul.bf16.gmra.mxu0 %v578
  %v1055 = vpop.f32.mrf.mxu0
  %v1056 = vadd.f32 0.0, %v1055
  %v1057 = vpop.f32.mrf.mxu0
  %v1058 = vadd.f32 0.0, %v1057
  %1059 = vmatmul.bf16.gmra.mxu0 %v581
  %v1060 = vpop.f32.mrf.mxu0
  %v1061 = vadd.f32 0.0, %v1060
  %v1062 = vpop.f32.mrf.mxu0
  %v1063 = vadd.f32 0.0, %v1062
  %1064 = vmatmul.bf16.gmra.mxu0 %v584
  %v1065 = vpop.f32.mrf.mxu0
  %v1066 = vadd.f32 0.0, %v1065
  %v1067 = vpop.f32.mrf.mxu0
  %v1068 = vadd.f32 0.0, %v1067
  %1069 = vmatmul.bf16.gmra.mxu0 %v923
  %v1070 = vpop.f32.mrf.mxu0
  %v1071 = vadd.f32 0.0, %v1070
  %v1072 = vpop.f32.mrf.mxu0
  %v1073 = vadd.f32 0.0, %v1072
  %1074 = vdwg.mxu0
  %1075 = vmatpush.bf16.msra.mxu0 0
  %1076 = vmatpush.bf16.msra.mxu0 0
  %1077 = vmatpush.bf16.msra.mxu0 0
  %1078 = vmatpush.bf16.msra.mxu0 0
  %1079 = vmatpush.bf16.msra.mxu0 0
  %1080 = vmatpush.bf16.msra.mxu0 0
  %1081 = vmatpush.bf16.msra.mxu0 %v932
  %1082 = vmatpush.bf16.msra.mxu0 %v912
  %1083 = vmatmul.bf16.gmra.mxu0 %v554
  %v1084 = vpop.f32.mrf.mxu0
  %v1085 = vadd.f32 0.0, %v1084
  %v1086 = vpop.f32.mrf.mxu0
  %v1087 = vadd.f32 0.0, %v1086
  %1088 = vmatmul.bf16.gmra.mxu0 %v557
  %v1089 = vpop.f32.mrf.mxu0
  %v1090 = vadd.f32 0.0, %v1089
  %v1091 = vpop.f32.mrf.mxu0
  %v1092 = vadd.f32 0.0, %v1091
  %1093 = vmatmul.bf16.gmra.mxu0 %v560
  %v1094 = vpop.f32.mrf.mxu0
  %v1095 = vadd.f32 0.0, %v1094
  %v1096 = vpop.f32.mrf.mxu0
  %v1097 = vadd.f32 0.0, %v1096
  %1098 = vmatmul.bf16.gmra.mxu0 %v563
  %v1099 = vpop.f32.mrf.mxu0
  %v1100 = vadd.f32 0.0, %v1099
  %v1101 = vpop.f32.mrf.mxu0
  %v1102 = vadd.f32 0.0, %v1101
  %1103 = vmatmul.bf16.gmra.mxu0 %v566
  %v1104 = vpop.f32.mrf.mxu0
  %v1105 = vadd.f32 0.0, %v1104
  %v1106 = vpop.f32.mrf.mxu0
  %v1107 = vadd.f32 0.0, %v1106
  %1108 = vmatmul.bf16.gmra.mxu0 %v569
  %v1109 = vpop.f32.mrf.mxu0
  %v1110 = vadd.f32 0.0, %v1109
  %v1111 = vpop.f32.mrf.mxu0
  %v1112 = vadd.f32 0.0, %v1111
  %1113 = vmatmul.bf16.gmra.mxu0 %v572
  %v1114 = vpop.f32.mrf.mxu0
  %v1115 = vadd.f32 0.0, %v1114
  %v1116 = vpop.f32.mrf.mxu0
  %v1117 = vadd.f32 0.0, %v1116
  %1118 = vmatmul.bf16.gmra.mxu0 %v575
  %v1119 = vpop.f32.mrf.mxu0
  %v1120 = vadd.f32 0.0, %v1119
  %v1121 = vpop.f32.mrf.mxu0
  %v1122 = vadd.f32 0.0, %v1121
  %1123 = vmatmul.bf16.gmra.mxu0 %v578
  %v1124 = vpop.f32.mrf.mxu0
  %v1125 = vadd.f32 0.0, %v1124
  %v1126 = vpop.f32.mrf.mxu0
  %v1127 = vadd.f32 0.0, %v1126
  %1128 = vmatmul.bf16.gmra.mxu0 %v581
  %v1129 = vpop.f32.mrf.mxu0
  %v1130 = vadd.f32 0.0, %v1129
  %v1131 = vpop.f32.mrf.mxu0
  %v1132 = vadd.f32 0.0, %v1131
  %1133 = vmatmul.bf16.gmra.mxu0 %v584
  %v1134 = vpop.f32.mrf.mxu0
  %v1135 = vadd.f32 0.0, %v1134
  %v1136 = vpop.f32.mrf.mxu0
  %v1137 = vadd.f32 0.0, %v1136
  %1138 = vmatmul.bf16.gmra.mxu0 %v923
  %v1139 = vpop.f32.mrf.mxu0
  %v1140 = vadd.f32 0.0, %v1139
  %v1141 = vpop.f32.mrf.mxu0
  %v1142 = vadd.f32 0.0, %v1141
  %1143 = vdwg.mxu0
  %1144 = vmatpush.bf16.msra.mxu0 0
  %1145 = vmatpush.bf16.msra.mxu0 0
  %1146 = vmatpush.bf16.msra.mxu0 0
  %1147 = vmatpush.bf16.msra.mxu0 0
  %1148 = vmatpush.bf16.msra.mxu0 0
  %1149 = vmatpush.bf16.msra.mxu0 0
  %1150 = vmatpush.bf16.msra.mxu0 %v935
  %1151 = vmatpush.bf16.msra.mxu0 %v913
  %1152 = vmatmul.bf16.gmra.mxu0 %v554
  %v1153 = vpop.f32.mrf.mxu0
  %v1154 = vadd.f32 0.0, %v1153
  %v1155 = vpop.f32.mrf.mxu0
  %v1156 = vadd.f32 0.0, %v1155
  %1157 = vmatmul.bf16.gmra.mxu0 %v557
  %v1158 = vpop.f32.mrf.mxu0
  %v1159 = vadd.f32 0.0, %v1158
  %v1160 = vpop.f32.mrf.mxu0
  %v1161 = vadd.f32 0.0, %v1160
  %1162 = vmatmul.bf16.gmra.mxu0 %v560
  %v1163 = vpop.f32.mrf.mxu0
  %v1164 = vadd.f32 0.0, %v1163
  %v1165 = vpop.f32.mrf.mxu0
  %v1166 = vadd.f32 0.0, %v1165
  %1167 = vmatmul.bf16.gmra.mxu0 %v563
  %v1168 = vpop.f32.mrf.mxu0
  %v1169 = vadd.f32 0.0, %v1168
  %v1170 = vpop.f32.mrf.mxu0
  %v1171 = vadd.f32 0.0, %v1170
  %1172 = vmatmul.bf16.gmra.mxu0 %v566
  %v1173 = vpop.f32.mrf.mxu0
  %v1174 = vadd.f32 0.0, %v1173
  %v1175 = vpop.f32.mrf.mxu0
  %v1176 = vadd.f32 0.0, %v1175
  %1177 = vmatmul.bf16.gmra.mxu0 %v569
  %v1178 = vpop.f32.mrf.mxu0
  %v1179 = vadd.f32 0.0, %v1178
  %v1180 = vpop.f32.mrf.mxu0
  %v1181 = vadd.f32 0.0, %v1180
  %1182 = vmatmul.bf16.gmra.mxu0 %v572
  %v1183 = vpop.f32.mrf.mxu0
  %v1184 = vadd.f32 0.0, %v1183
  %v1185 = vpop.f32.mrf.mxu0
  %v1186 = vadd.f32 0.0, %v1185
  %1187 = vmatmul.bf16.gmra.mxu0 %v575
  %v1188 = vpop.f32.mrf.mxu0
  %v1189 = vadd.f32 0.0, %v1188
  %v1190 = vpop.f32.mrf.mxu0
  %v1191 = vadd.f32 0.0, %v1190
  %1192 = vmatmul.bf16.gmra.mxu0 %v578
  %v1193 = vpop.f32.mrf.mxu0
  %v1194 = vadd.f32 0.0, %v1193
  %v1195 = vpop.f32.mrf.mxu0
  %v1196 = vadd.f32 0.0, %v1195
  %1197 = vmatmul.bf16.gmra.mxu0 %v581
  %v1198 = vpop.f32.mrf.mxu0
  %v1199 = vadd.f32 0.0, %v1198
  %v1200 = vpop.f32.mrf.mxu0
  %v1201 = vadd.f32 0.0, %v1200
  %1202 = vmatmul.bf16.gmra.mxu0 %v584
  %v1203 = vpop.f32.mrf.mxu0
  %v1204 = vadd.f32 0.0, %v1203
  %v1205 = vpop.f32.mrf.mxu0
  %v1206 = vadd.f32 0.0, %v1205
  %1207 = vmatmul.bf16.gmra.mxu0 %v923
  %v1208 = vpop.f32.mrf.mxu0
  %v1209 = vadd.f32 0.0, %v1208
  %v1210 = vpop.f32.mrf.mxu0
  %v1211 = vadd.f32 0.0, %v1210
  %1212 = vdwg.mxu0
  %v1213 = vadd.f32 %v608, %v947
  %v1214 = vadd.f32 %v677, %v1016
  %v1215 = vadd.f32 %v746, %v1085
  %v1216 = vadd.f32 %v815, %v1154
  %v1217 = vadd.f32 %v610, %v949
  %v1218 = vadd.f32 %v679, %v1018
  %v1219 = vadd.f32 %v748, %v1087
  %v1220 = vadd.f32 %v817, %v1156
  %v1221 = vadd.f32 %v613, %v952
  %v1222 = vadd.f32 %v682, %v1021
  %v1223 = vadd.f32 %v751, %v1090
  %v1224 = vadd.f32 %v820, %v1159
  %v1225 = vadd.f32 %v615, %v954
  %v1226 = vadd.f32 %v684, %v1023
  %v1227 = vadd.f32 %v753, %v1092
  %v1228 = vadd.f32 %v822, %v1161
  %v1229 = vadd.f32 %v618, %v957
  %v1230 = vadd.f32 %v687, %v1026
  %v1231 = vadd.f32 %v756, %v1095
  %v1232 = vadd.f32 %v825, %v1164
  %v1233 = vadd.f32 %v620, %v959
  %v1234 = vadd.f32 %v689, %v1028
  %v1235 = vadd.f32 %v758, %v1097
  %v1236 = vadd.f32 %v827, %v1166
  %v1237 = vadd.f32 %v623, %v962
  %v1238 = vadd.f32 %v692, %v1031
  %v1239 = vadd.f32 %v761, %v1100
  %v1240 = vadd.f32 %v830, %v1169
  %v1241 = vadd.f32 %v625, %v964
  %v1242 = vadd.f32 %v694, %v1033
  %v1243 = vadd.f32 %v763, %v1102
  %v1244 = vadd.f32 %v832, %v1171
  %v1245 = vadd.f32 %v628, %v967
  %v1246 = vadd.f32 %v697, %v1036
  %v1247 = vadd.f32 %v766, %v1105
  %v1248 = vadd.f32 %v835, %v1174
  %v1249 = vadd.f32 %v630, %v969
  %v1250 = vadd.f32 %v699, %v1038
  %v1251 = vadd.f32 %v768, %v1107
  %v1252 = vadd.f32 %v837, %v1176
  %v1253 = vadd.f32 %v633, %v972
  %v1254 = vadd.f32 %v702, %v1041
  %v1255 = vadd.f32 %v771, %v1110
  %v1256 = vadd.f32 %v840, %v1179
  %v1257 = vadd.f32 %v635, %v974
  %v1258 = vadd.f32 %v704, %v1043
  %v1259 = vadd.f32 %v773, %v1112
  %v1260 = vadd.f32 %v842, %v1181
  %v1261 = vadd.f32 %v638, %v977
  %v1262 = vadd.f32 %v707, %v1046
  %v1263 = vadd.f32 %v776, %v1115
  %v1264 = vadd.f32 %v845, %v1184
  %v1265 = vadd.f32 %v640, %v979
  %v1266 = vadd.f32 %v709, %v1048
  %v1267 = vadd.f32 %v778, %v1117
  %v1268 = vadd.f32 %v847, %v1186
  %v1269 = vadd.f32 %v643, %v982
  %v1270 = vadd.f32 %v712, %v1051
  %v1271 = vadd.f32 %v781, %v1120
  %v1272 = vadd.f32 %v850, %v1189
  %v1273 = vadd.f32 %v645, %v984
  %v1274 = vadd.f32 %v714, %v1053
  %v1275 = vadd.f32 %v783, %v1122
  %v1276 = vadd.f32 %v852, %v1191
  %v1277 = vadd.f32 %v648, %v987
  %v1278 = vadd.f32 %v717, %v1056
  %v1279 = vadd.f32 %v786, %v1125
  %v1280 = vadd.f32 %v855, %v1194
  %v1281 = vadd.f32 %v650, %v989
  %v1282 = vadd.f32 %v719, %v1058
  %v1283 = vadd.f32 %v788, %v1127
  %v1284 = vadd.f32 %v857, %v1196
  %v1285 = vadd.f32 %v653, %v992
  %v1286 = vadd.f32 %v722, %v1061
  %v1287 = vadd.f32 %v791, %v1130
  %v1288 = vadd.f32 %v860, %v1199
  %v1289 = vadd.f32 %v655, %v994
  %v1290 = vadd.f32 %v724, %v1063
  %v1291 = vadd.f32 %v793, %v1132
  %v1292 = vadd.f32 %v862, %v1201
  %v1293 = vadd.f32 %v658, %v997
  %v1294 = vadd.f32 %v727, %v1066
  %v1295 = vadd.f32 %v796, %v1135
  %v1296 = vadd.f32 %v865, %v1204
  %v1297 = vadd.f32 %v660, %v999
  %v1298 = vadd.f32 %v729, %v1068
  %v1299 = vadd.f32 %v798, %v1137
  %v1300 = vadd.f32 %v867, %v1206
  %v1301 = vadd.f32 %v663, %v1002
  %v1302 = vadd.f32 %v732, %v1071
  %v1303 = vadd.f32 %v801, %v1140
  %v1304 = vadd.f32 %v870, %v1209
  %v1305 = vadd.f32 %v665, %v1004
  %v1306 = vadd.f32 %v734, %v1073
  %v1307 = vadd.f32 %v803, %v1142
  %v1308 = vadd.f32 %v872, %v1211
  %s1309 = scalar_lea.vmem %s1, 192
  %v1310 = vld [vmem:[%s1309] sm:$0xff]
  %v1311 = vld [vmem:[%s1309 + $0x8] sm:$0xff]
  %v1312 = vld [vmem:[%s1309 + $0x10] sm:$0xff]
  %v1313 = vld [vmem:[%s1309 + $0x18] sm:$0xff]
  %v1314 = vld [vmem:[%s1309 + $0x20] sm:$0xff]
  %v1315 = vld [vmem:[%s1309 + $0x28] sm:$0xff]
  %v1316 = vld [vmem:[%s1309 + $0x30] sm:$0x33]
  %v1317 = vld [vmem:[%s1309 + $0x38] sm:$0x33]
  %v1319 = vunpack.c.l.b16 %v59
  %v1320 = vpack.c.b16 %v1319, %v884
  %v1329 = vunpack.c.l.b16 %v1310
  %v1330 = vunpack.c.h.b16 %v1310
  %v1331 = vunpack.c.l.b16 %v1311
  %v1332 = vunpack.c.h.b16 %v1311
  %v1333 = vunpack.c.l.b16 %v1312
  %v1334 = vunpack.c.h.b16 %v1312
  %v1335 = vunpack.c.l.b16 %v1313
  %v1336 = vunpack.c.h.b16 %v1313
  %v1337 = vunpack.c.l.b16 %v1314
  %v1338 = vunpack.c.h.b16 %v1314
  %v1339 = vunpack.c.l.b16 %v1315
  %v1340 = vunpack.c.h.b16 %v1315
  %v1341 = vunpack.c.l.b16 %v1316
  %v1342 = vunpack.c.h.b16 %v1316
  %v1343 = vunpack.c.l.b16 %v1317
  %v1344 = vunpack.c.h.b16 %v1317
  %v1345 = vpack.c.b16 %v1333, %v1329
  %v1346 = vpack.c.b16 %v1334, %v1330
  %v1347 = vpack.c.b16 %v1335, %v1331
  %v1348 = vpack.c.b16 %v1336, %v1332
  %v1349 = vpack.c.b16 %v1341, %v1337
  %v1350 = vpack.c.b16 %v1342, %v1338
  %v1351 = vpack.c.b16 %v1343, %v1339
  %v1352 = vpack.c.b16 %v1344, %v1340
  %v1358 = vsel %vm174, %v1320, 0
  %v1361 = vsel %vm211, %v1349, 0
  %v1364 = vsel %vm211, %v1350, 0
  %v1367 = vsel %vm211, %v1351, 0
  %v1370 = vsel %vm211, %v1352, 0
  %1372 = vmatpush.bf16.msra.mxu0 0
  %1373 = vmatpush.bf16.msra.mxu0 0
  %1374 = vmatpush.bf16.msra.mxu0 0
  %1375 = vmatpush.bf16.msra.mxu0 0
  %1376 = vmatpush.bf16.msra.mxu0 0
  %1377 = vmatpush.bf16.msra.mxu0 0
  %1378 = vmatpush.bf16.msra.mxu0 %v1361
  %1379 = vmatpush.bf16.msra.mxu0 %v1345
  %1380 = vmatmul.bf16.gmra.mxu0 %v179
  %v1381 = vpop.f32.mrf.mxu0
  %v1382 = vadd.f32 0.0, %v1381
  %v1383 = vpop.f32.mrf.mxu0
  %v1384 = vadd.f32 0.0, %v1383
  %1385 = vmatmul.bf16.gmra.mxu0 %v182
  %v1386 = vpop.f32.mrf.mxu0
  %v1387 = vadd.f32 0.0, %v1386
  %v1388 = vpop.f32.mrf.mxu0
  %v1389 = vadd.f32 0.0, %v1388
  %1390 = vmatmul.bf16.gmra.mxu0 %v185
  %v1391 = vpop.f32.mrf.mxu0
  %v1392 = vadd.f32 0.0, %v1391
  %v1393 = vpop.f32.mrf.mxu0
  %v1394 = vadd.f32 0.0, %v1393
  %1395 = vmatmul.bf16.gmra.mxu0 %v188
  %v1396 = vpop.f32.mrf.mxu0
  %v1397 = vadd.f32 0.0, %v1396
  %v1398 = vpop.f32.mrf.mxu0
  %v1399 = vadd.f32 0.0, %v1398
  %1400 = vmatmul.bf16.gmra.mxu0 %v191
  %v1401 = vpop.f32.mrf.mxu0
  %v1402 = vadd.f32 0.0, %v1401
  %v1403 = vpop.f32.mrf.mxu0
  %v1404 = vadd.f32 0.0, %v1403
  %1405 = vmatmul.bf16.gmra.mxu0 %v194
  %v1406 = vpop.f32.mrf.mxu0
  %v1407 = vadd.f32 0.0, %v1406
  %v1408 = vpop.f32.mrf.mxu0
  %v1409 = vadd.f32 0.0, %v1408
  %1410 = vmatmul.bf16.gmra.mxu0 %v197
  %v1411 = vpop.f32.mrf.mxu0
  %v1412 = vadd.f32 0.0, %v1411
  %v1413 = vpop.f32.mrf.mxu0
  %v1414 = vadd.f32 0.0, %v1413
  %1415 = vmatmul.bf16.gmra.mxu0 %v200
  %v1416 = vpop.f32.mrf.mxu0
  %v1417 = vadd.f32 0.0, %v1416
  %v1418 = vpop.f32.mrf.mxu0
  %v1419 = vadd.f32 0.0, %v1418
  %1420 = vmatmul.bf16.gmra.mxu0 %v203
  %v1421 = vpop.f32.mrf.mxu0
  %v1422 = vadd.f32 0.0, %v1421
  %v1423 = vpop.f32.mrf.mxu0
  %v1424 = vadd.f32 0.0, %v1423
  %1425 = vmatmul.bf16.gmra.mxu0 %v206
  %v1426 = vpop.f32.mrf.mxu0
  %v1427 = vadd.f32 0.0, %v1426
  %v1428 = vpop.f32.mrf.mxu0
  %v1429 = vadd.f32 0.0, %v1428
  %1430 = vmatmul.bf16.gmra.mxu0 %v209
  %v1431 = vpop.f32.mrf.mxu0
  %v1432 = vadd.f32 0.0, %v1431
  %v1433 = vpop.f32.mrf.mxu0
  %v1434 = vadd.f32 0.0, %v1433
  %1435 = vmatmul.bf16.gmra.mxu0 %v1358
  %v1436 = vpop.f32.mrf.mxu0
  %v1437 = vadd.f32 0.0, %v1436
  %v1438 = vpop.f32.mrf.mxu0
  %v1439 = vadd.f32 0.0, %v1438
  %1440 = vdwg.mxu0
  %1441 = vmatpush.bf16.msra.mxu0 0
  %1442 = vmatpush.bf16.msra.mxu0 0
  %1443 = vmatpush.bf16.msra.mxu0 0
  %1444 = vmatpush.bf16.msra.mxu0 0
  %1445 = vmatpush.bf16.msra.mxu0 0
  %1446 = vmatpush.bf16.msra.mxu0 0
  %1447 = vmatpush.bf16.msra.mxu0 %v1364
  %1448 = vmatpush.bf16.msra.mxu0 %v1346
  %1449 = vmatmul.bf16.gmra.mxu0 %v179
  %v1450 = vpop.f32.mrf.mxu0
  %v1451 = vadd.f32 0.0, %v1450
  %v1452 = vpop.f32.mrf.mxu0
  %v1453 = vadd.f32 0.0, %v1452
  %1454 = vmatmul.bf16.gmra.mxu0 %v182
  %v1455 = vpop.f32.mrf.mxu0
  %v1456 = vadd.f32 0.0, %v1455
  %v1457 = vpop.f32.mrf.mxu0
  %v1458 = vadd.f32 0.0, %v1457
  %1459 = vmatmul.bf16.gmra.mxu0 %v185
  %v1460 = vpop.f32.mrf.mxu0
  %v1461 = vadd.f32 0.0, %v1460
  %v1462 = vpop.f32.mrf.mxu0
  %v1463 = vadd.f32 0.0, %v1462
  %1464 = vmatmul.bf16.gmra.mxu0 %v188
  %v1465 = vpop.f32.mrf.mxu0
  %v1466 = vadd.f32 0.0, %v1465
  %v1467 = vpop.f32.mrf.mxu0
  %v1468 = vadd.f32 0.0, %v1467
  %1469 = vmatmul.bf16.gmra.mxu0 %v191
  %v1470 = vpop.f32.mrf.mxu0
  %v1471 = vadd.f32 0.0, %v1470
  %v1472 = vpop.f32.mrf.mxu0
  %v1473 = vadd.f32 0.0, %v1472
  %1474 = vmatmul.bf16.gmra.mxu0 %v194
  %v1475 = vpop.f32.mrf.mxu0
  %v1476 = vadd.f32 0.0, %v1475
  %v1477 = vpop.f32.mrf.mxu0
  %v1478 = vadd.f32 0.0, %v1477
  %1479 = vmatmul.bf16.gmra.mxu0 %v197
  %v1480 = vpop.f32.mrf.mxu0
  %v1481 = vadd.f32 0.0, %v1480
  %v1482 = vpop.f32.mrf.mxu0
  %v1483 = vadd.f32 0.0, %v1482
  %1484 = vmatmul.bf16.gmra.mxu0 %v200
  %v1485 = vpop.f32.mrf.mxu0
  %v1486 = vadd.f32 0.0, %v1485
  %v1487 = vpop.f32.mrf.mxu0
  %v1488 = vadd.f32 0.0, %v1487
  %1489 = vmatmul.bf16.gmra.mxu0 %v203
  %v1490 = vpop.f32.mrf.mxu0
  %v1491 = vadd.f32 0.0, %v1490
  %v1492 = vpop.f32.mrf.mxu0
  %v1493 = vadd.f32 0.0, %v1492
  %1494 = vmatmul.bf16.gmra.mxu0 %v206
  %v1495 = vpop.f32.mrf.mxu0
  %v1496 = vadd.f32 0.0, %v1495
  %v1497 = vpop.f32.mrf.mxu0
  %v1498 = vadd.f32 0.0, %v1497
  %1499 = vmatmul.bf16.gmra.mxu0 %v209
  %v1500 = vpop.f32.mrf.mxu0
  %v1501 = vadd.f32 0.0, %v1500
  %v1502 = vpop.f32.mrf.mxu0
  %v1503 = vadd.f32 0.0, %v1502
  %1504 = vmatmul.bf16.gmra.mxu0 %v1358
  %v1505 = vpop.f32.mrf.mxu0
  %v1506 = vadd.f32 0.0, %v1505
  %v1507 = vpop.f32.mrf.mxu0
  %v1508 = vadd.f32 0.0, %v1507
  %1509 = vdwg.mxu0
  %1510 = vmatpush.bf16.msra.mxu0 0
  %1511 = vmatpush.bf16.msra.mxu0 0
  %1512 = vmatpush.bf16.msra.mxu0 0
  %1513 = vmatpush.bf16.msra.mxu0 0
  %1514 = vmatpush.bf16.msra.mxu0 0
  %1515 = vmatpush.bf16.msra.mxu0 0
  %1516 = vmatpush.bf16.msra.mxu0 %v1367
  %1517 = vmatpush.bf16.msra.mxu0 %v1347
  %1518 = vmatmul.bf16.gmra.mxu0 %v179
  %v1519 = vpop.f32.mrf.mxu0
  %v1520 = vadd.f32 0.0, %v1519
  %v1521 = vpop.f32.mrf.mxu0
  %v1522 = vadd.f32 0.0, %v1521
  %1523 = vmatmul.bf16.gmra.mxu0 %v182
  %v1524 = vpop.f32.mrf.mxu0
  %v1525 = vadd.f32 0.0, %v1524
  %v1526 = vpop.f32.mrf.mxu0
  %v1527 = vadd.f32 0.0, %v1526
  %1528 = vmatmul.bf16.gmra.mxu0 %v185
  %v1529 = vpop.f32.mrf.mxu0
  %v1530 = vadd.f32 0.0, %v1529
  %v1531 = vpop.f32.mrf.mxu0
  %v1532 = vadd.f32 0.0, %v1531
  %1533 = vmatmul.bf16.gmra.mxu0 %v188
  %v1534 = vpop.f32.mrf.mxu0
  %v1535 = vadd.f32 0.0, %v1534
  %v1536 = vpop.f32.mrf.mxu0
  %v1537 = vadd.f32 0.0, %v1536
  %1538 = vmatmul.bf16.gmra.mxu0 %v191
  %v1539 = vpop.f32.mrf.mxu0
  %v1540 = vadd.f32 0.0, %v1539
  %v1541 = vpop.f32.mrf.mxu0
  %v1542 = vadd.f32 0.0, %v1541
  %1543 = vmatmul.bf16.gmra.mxu0 %v194
  %v1544 = vpop.f32.mrf.mxu0
  %v1545 = vadd.f32 0.0, %v1544
  %v1546 = vpop.f32.mrf.mxu0
  %v1547 = vadd.f32 0.0, %v1546
  %1548 = vmatmul.bf16.gmra.mxu0 %v197
  %v1549 = vpop.f32.mrf.mxu0
  %v1550 = vadd.f32 0.0, %v1549
  %v1551 = vpop.f32.mrf.mxu0
  %v1552 = vadd.f32 0.0, %v1551
  %1553 = vmatmul.bf16.gmra.mxu0 %v200
  %v1554 = vpop.f32.mrf.mxu0
  %v1555 = vadd.f32 0.0, %v1554
  %v1556 = vpop.f32.mrf.mxu0
  %v1557 = vadd.f32 0.0, %v1556
  %1558 = vmatmul.bf16.gmra.mxu0 %v203
  %v1559 = vpop.f32.mrf.mxu0
  %v1560 = vadd.f32 0.0, %v1559
  %v1561 = vpop.f32.mrf.mxu0
  %v1562 = vadd.f32 0.0, %v1561
  %1563 = vmatmul.bf16.gmra.mxu0 %v206
  %v1564 = vpop.f32.mrf.mxu0
  %v1565 = vadd.f32 0.0, %v1564
  %v1566 = vpop.f32.mrf.mxu0
  %v1567 = vadd.f32 0.0, %v1566
  %1568 = vmatmul.bf16.gmra.mxu0 %v209
  %v1569 = vpop.f32.mrf.mxu0
  %v1570 = vadd.f32 0.0, %v1569
  %v1571 = vpop.f32.mrf.mxu0
  %v1572 = vadd.f32 0.0, %v1571
  %1573 = vmatmul.bf16.gmra.mxu0 %v1358
  %v1574 = vpop.f32.mrf.mxu0
  %v1575 = vadd.f32 0.0, %v1574
  %v1576 = vpop.f32.mrf.mxu0
  %v1577 = vadd.f32 0.0, %v1576
  %1578 = vdwg.mxu0
  %1579 = vmatpush.bf16.msra.mxu0 0
  %1580 = vmatpush.bf16.msra.mxu0 0
  %1581 = vmatpush.bf16.msra.mxu0 0
  %1582 = vmatpush.bf16.msra.mxu0 0
  %1583 = vmatpush.bf16.msra.mxu0 0
  %1584 = vmatpush.bf16.msra.mxu0 0
  %1585 = vmatpush.bf16.msra.mxu0 %v1370
  %1586 = vmatpush.bf16.msra.mxu0 %v1348
  %1587 = vmatmul.bf16.gmra.mxu0 %v179
  %v1588 = vpop.f32.mrf.mxu0
  %v1589 = vadd.f32 0.0, %v1588
  %v1590 = vpop.f32.mrf.mxu0
  %v1591 = vadd.f32 0.0, %v1590
  %1592 = vmatmul.bf16.gmra.mxu0 %v182
  %v1593 = vpop.f32.mrf.mxu0
  %v1594 = vadd.f32 0.0, %v1593
  %v1595 = vpop.f32.mrf.mxu0
  %v1596 = vadd.f32 0.0, %v1595
  %1597 = vmatmul.bf16.gmra.mxu0 %v185
  %v1598 = vpop.f32.mrf.mxu0
  %v1599 = vadd.f32 0.0, %v1598
  %v1600 = vpop.f32.mrf.mxu0
  %v1601 = vadd.f32 0.0, %v1600
  %1602 = vmatmul.bf16.gmra.mxu0 %v188
  %v1603 = vpop.f32.mrf.mxu0
  %v1604 = vadd.f32 0.0, %v1603
  %v1605 = vpop.f32.mrf.mxu0
  %v1606 = vadd.f32 0.0, %v1605
  %1607 = vmatmul.bf16.gmra.mxu0 %v191
  %v1608 = vpop.f32.mrf.mxu0
  %v1609 = vadd.f32 0.0, %v1608
  %v1610 = vpop.f32.mrf.mxu0
  %v1611 = vadd.f32 0.0, %v1610
  %1612 = vmatmul.bf16.gmra.mxu0 %v194
  %v1613 = vpop.f32.mrf.mxu0
  %v1614 = vadd.f32 0.0, %v1613
  %v1615 = vpop.f32.mrf.mxu0
  %v1616 = vadd.f32 0.0, %v1615
  %1617 = vmatmul.bf16.gmra.mxu0 %v197
  %v1618 = vpop.f32.mrf.mxu0
  %v1619 = vadd.f32 0.0, %v1618
  %v1620 = vpop.f32.mrf.mxu0
  %v1621 = vadd.f32 0.0, %v1620
  %1622 = vmatmul.bf16.gmra.mxu0 %v200
  %v1623 = vpop.f32.mrf.mxu0
  %v1624 = vadd.f32 0.0, %v1623
  %v1625 = vpop.f32.mrf.mxu0
  %v1626 = vadd.f32 0.0, %v1625
  %1627 = vmatmul.bf16.gmra.mxu0 %v203
  %v1628 = vpop.f32.mrf.mxu0
  %v1629 = vadd.f32 0.0, %v1628
  %v1630 = vpop.f32.mrf.mxu0
  %v1631 = vadd.f32 0.0, %v1630
  %1632 = vmatmul.bf16.gmra.mxu0 %v206
  %v1633 = vpop.f32.mrf.mxu0
  %v1634 = vadd.f32 0.0, %v1633
  %v1635 = vpop.f32.mrf.mxu0
  %v1636 = vadd.f32 0.0, %v1635
  %1637 = vmatmul.bf16.gmra.mxu0 %v209
  %v1638 = vpop.f32.mrf.mxu0
  %v1639 = vadd.f32 0.0, %v1638
  %v1640 = vpop.f32.mrf.mxu0
  %v1641 = vadd.f32 0.0, %v1640
  %1642 = vmatmul.bf16.gmra.mxu0 %v1358
  %v1643 = vpop.f32.mrf.mxu0
  %v1644 = vadd.f32 0.0, %v1643
  %v1645 = vpop.f32.mrf.mxu0
  %v1646 = vadd.f32 0.0, %v1645
  %1647 = vdwg.mxu0
  %v1648 = vadd.f32 %v1213, %v1382
  %v1649 = vadd.f32 %v1214, %v1451
  %v1650 = vadd.f32 %v1215, %v1520
  %v1651 = vadd.f32 %v1216, %v1589
  %v1652 = vadd.f32 %v1217, %v1384
  %v1653 = vadd.f32 %v1218, %v1453
  %v1654 = vadd.f32 %v1219, %v1522
  %v1655 = vadd.f32 %v1220, %v1591
  %v1656 = vadd.f32 %v1221, %v1387
  %v1657 = vadd.f32 %v1222, %v1456
  %v1658 = vadd.f32 %v1223, %v1525
  %v1659 = vadd.f32 %v1224, %v1594
  %v1660 = vadd.f32 %v1225, %v1389
  %v1661 = vadd.f32 %v1226, %v1458
  %v1662 = vadd.f32 %v1227, %v1527
  %v1663 = vadd.f32 %v1228, %v1596
  %v1664 = vadd.f32 %v1229, %v1392
  %v1665 = vadd.f32 %v1230, %v1461
  %v1666 = vadd.f32 %v1231, %v1530
  %v1667 = vadd.f32 %v1232, %v1599
  %v1668 = vadd.f32 %v1233, %v1394
  %v1669 = vadd.f32 %v1234, %v1463
  %v1670 = vadd.f32 %v1235, %v1532
  %v1671 = vadd.f32 %v1236, %v1601
  %v1672 = vadd.f32 %v1237, %v1397
  %v1673 = vadd.f32 %v1238, %v1466
  %v1674 = vadd.f32 %v1239, %v1535
  %v1675 = vadd.f32 %v1240, %v1604
  %v1676 = vadd.f32 %v1241, %v1399
  %v1677 = vadd.f32 %v1242, %v1468
  %v1678 = vadd.f32 %v1243, %v1537
  %v1679 = vadd.f32 %v1244, %v1606
  %v1680 = vadd.f32 %v1245, %v1402
  %v1681 = vadd.f32 %v1246, %v1471
  %v1682 = vadd.f32 %v1247, %v1540
  %v1683 = vadd.f32 %v1248, %v1609
  %v1684 = vadd.f32 %v1249, %v1404
  %v1685 = vadd.f32 %v1250, %v1473
  %v1686 = vadd.f32 %v1251, %v1542
  %v1687 = vadd.f32 %v1252, %v1611
  %v1688 = vadd.f32 %v1253, %v1407
  %v1689 = vadd.f32 %v1254, %v1476
  %v1690 = vadd.f32 %v1255, %v1545
  %v1691 = vadd.f32 %v1256, %v1614
  %v1692 = vadd.f32 %v1257, %v1409
  %v1693 = vadd.f32 %v1258, %v1478
  %v1694 = vadd.f32 %v1259, %v1547
  %v1695 = vadd.f32 %v1260, %v1616
  %v1696 = vadd.f32 %v1261, %v1412
  %v1697 = vadd.f32 %v1262, %v1481
  %v1698 = vadd.f32 %v1263, %v1550
  %v1699 = vadd.f32 %v1264, %v1619
  %v1700 = vadd.f32 %v1265, %v1414
  %v1701 = vadd.f32 %v1266, %v1483
  %v1702 = vadd.f32 %v1267, %v1552
  %v1703 = vadd.f32 %v1268, %v1621
  %v1704 = vadd.f32 %v1269, %v1417
  %v1705 = vadd.f32 %v1270, %v1486
  %v1706 = vadd.f32 %v1271, %v1555
  %v1707 = vadd.f32 %v1272, %v1624
  %v1708 = vadd.f32 %v1273, %v1419
  %v1709 = vadd.f32 %v1274, %v1488
  %v1710 = vadd.f32 %v1275, %v1557
  %v1711 = vadd.f32 %v1276, %v1626
  %v1712 = vadd.f32 %v1277, %v1422
  %v1713 = vadd.f32 %v1278, %v1491
  %v1714 = vadd.f32 %v1279, %v1560
  %v1715 = vadd.f32 %v1280, %v1629
  %v1716 = vadd.f32 %v1281, %v1424
  %v1717 = vadd.f32 %v1282, %v1493
  %v1718 = vadd.f32 %v1283, %v1562
  %v1719 = vadd.f32 %v1284, %v1631
  %v1720 = vadd.f32 %v1285, %v1427
  %v1721 = vadd.f32 %v1286, %v1496
  %v1722 = vadd.f32 %v1287, %v1565
  %v1723 = vadd.f32 %v1288, %v1634
  %v1724 = vadd.f32 %v1289, %v1429
  %v1725 = vadd.f32 %v1290, %v1498
  %v1726 = vadd.f32 %v1291, %v1567
  %v1727 = vadd.f32 %v1292, %v1636
  %v1728 = vadd.f32 %v1293, %v1432
  %v1729 = vadd.f32 %v1294, %v1501
  %v1730 = vadd.f32 %v1295, %v1570
  %v1731 = vadd.f32 %v1296, %v1639
  %v1732 = vadd.f32 %v1297, %v1434
  %v1733 = vadd.f32 %v1298, %v1503
  %v1734 = vadd.f32 %v1299, %v1572
  %v1735 = vadd.f32 %v1300, %v1641
  %v1736 = vadd.f32 %v1301, %v1437
  %v1737 = vadd.f32 %v1302, %v1506
  %v1738 = vadd.f32 %v1303, %v1575
  %v1739 = vadd.f32 %v1304, %v1644
  %v1740 = vadd.f32 %v1305, %v1439
  %v1741 = vadd.f32 %v1306, %v1508
  %v1742 = vadd.f32 %v1307, %v1577
  %v1743 = vadd.f32 %v1308, %v1646
  %s1744 = scalar_lea.vmem %s1, 256
  %v1745 = vld [vmem:[%s1744] sm:$0xff]
  %v1746 = vld [vmem:[%s1744 + $0x8] sm:$0xff]
  %v1747 = vld [vmem:[%s1744 + $0x10] sm:$0xff]
  %v1748 = vld [vmem:[%s1744 + $0x18] sm:$0xff]
  %v1749 = vld [vmem:[%s1744 + $0x20] sm:$0xff]
  %v1750 = vld [vmem:[%s1744 + $0x28] sm:$0xff]
  %v1751 = vld [vmem:[%s1744 + $0x30] sm:$0x33]
  %v1752 = vld [vmem:[%s1744 + $0x38] sm:$0x33]
  %v1754 = vunpack.c.l.b16 %v60
  %v1755 = vpack.c.b16 %v1754, %v1319
  %v1764 = vunpack.c.l.b16 %v1745
  %v1765 = vunpack.c.h.b16 %v1745
  %v1766 = vunpack.c.l.b16 %v1746
  %v1767 = vunpack.c.h.b16 %v1746
  %v1768 = vunpack.c.l.b16 %v1747
  %v1769 = vunpack.c.h.b16 %v1747
  %v1770 = vunpack.c.l.b16 %v1748
  %v1771 = vunpack.c.h.b16 %v1748
  %v1772 = vunpack.c.l.b16 %v1749
  %v1773 = vunpack.c.h.b16 %v1749
  %v1774 = vunpack.c.l.b16 %v1750
  %v1775 = vunpack.c.h.b16 %v1750
  %v1776 = vunpack.c.l.b16 %v1751
  %v1777 = vunpack.c.h.b16 %v1751
  %v1778 = vunpack.c.l.b16 %v1752
  %v1779 = vunpack.c.h.b16 %v1752
  %v1780 = vpack.c.b16 %v1768, %v1764
  %v1781 = vpack.c.b16 %v1769, %v1765
  %v1782 = vpack.c.b16 %v1770, %v1766
  %v1783 = vpack.c.b16 %v1771, %v1767
  %v1784 = vpack.c.b16 %v1776, %v1772
  %v1785 = vpack.c.b16 %v1777, %v1773
  %v1786 = vpack.c.b16 %v1778, %v1774
  %v1787 = vpack.c.b16 %v1779, %v1775
  %v1793 = vsel %vm174, %v1755, 0
  %v1796 = vsel %vm211, %v1784, 0
  %v1799 = vsel %vm211, %v1785, 0
  %v1802 = vsel %vm211, %v1786, 0
  %v1805 = vsel %vm211, %v1787, 0
  %1807 = vmatpush.bf16.msra.mxu0 0
  %1808 = vmatpush.bf16.msra.mxu0 0
  %1809 = vmatpush.bf16.msra.mxu0 0
  %1810 = vmatpush.bf16.msra.mxu0 0
  %1811 = vmatpush.bf16.msra.mxu0 0
  %1812 = vmatpush.bf16.msra.mxu0 0
  %1813 = vmatpush.bf16.msra.mxu0 %v1796
  %1814 = vmatpush.bf16.msra.mxu0 %v1780
  %1815 = vmatmul.bf16.gmra.mxu0 %v557
  %v1816 = vpop.f32.mrf.mxu0
  %v1817 = vadd.f32 0.0, %v1816
  %v1818 = vpop.f32.mrf.mxu0
  %v1819 = vadd.f32 0.0, %v1818
  %1820 = vmatmul.bf16.gmra.mxu0 %v560
  %v1821 = vpop.f32.mrf.mxu0
  %v1822 = vadd.f32 0.0, %v1821
  %v1823 = vpop.f32.mrf.mxu0
  %v1824 = vadd.f32 0.0, %v1823
  %1825 = vmatmul.bf16.gmra.mxu0 %v563
  %v1826 = vpop.f32.mrf.mxu0
  %v1827 = vadd.f32 0.0, %v1826
  %v1828 = vpop.f32.mrf.mxu0
  %v1829 = vadd.f32 0.0, %v1828
  %1830 = vmatmul.bf16.gmra.mxu0 %v566
  %v1831 = vpop.f32.mrf.mxu0
  %v1832 = vadd.f32 0.0, %v1831
  %v1833 = vpop.f32.mrf.mxu0
  %v1834 = vadd.f32 0.0, %v1833
  %1835 = vmatmul.bf16.gmra.mxu0 %v569
  %v1836 = vpop.f32.mrf.mxu0
  %v1837 = vadd.f32 0.0, %v1836
  %v1838 = vpop.f32.mrf.mxu0
  %v1839 = vadd.f32 0.0, %v1838
  %1840 = vmatmul.bf16.gmra.mxu0 %v572
  %v1841 = vpop.f32.mrf.mxu0
  %v1842 = vadd.f32 0.0, %v1841
  %v1843 = vpop.f32.mrf.mxu0
  %v1844 = vadd.f32 0.0, %v1843
  %1845 = vmatmul.bf16.gmra.mxu0 %v575
  %v1846 = vpop.f32.mrf.mxu0
  %v1847 = vadd.f32 0.0, %v1846
  %v1848 = vpop.f32.mrf.mxu0
  %v1849 = vadd.f32 0.0, %v1848
  %1850 = vmatmul.bf16.gmra.mxu0 %v578
  %v1851 = vpop.f32.mrf.mxu0
  %v1852 = vadd.f32 0.0, %v1851
  %v1853 = vpop.f32.mrf.mxu0
  %v1854 = vadd.f32 0.0, %v1853
  %1855 = vmatmul.bf16.gmra.mxu0 %v581
  %v1856 = vpop.f32.mrf.mxu0
  %v1857 = vadd.f32 0.0, %v1856
  %v1858 = vpop.f32.mrf.mxu0
  %v1859 = vadd.f32 0.0, %v1858
  %1860 = vmatmul.bf16.gmra.mxu0 %v584
  %v1861 = vpop.f32.mrf.mxu0
  %v1862 = vadd.f32 0.0, %v1861
  %v1863 = vpop.f32.mrf.mxu0
  %v1864 = vadd.f32 0.0, %v1863
  %1865 = vmatmul.bf16.gmra.mxu0 %v923
  %v1866 = vpop.f32.mrf.mxu0
  %v1867 = vadd.f32 0.0, %v1866
  %v1868 = vpop.f32.mrf.mxu0
  %v1869 = vadd.f32 0.0, %v1868
  %1870 = vmatmul.bf16.gmra.mxu0 %v1793
  %v1871 = vpop.f32.mrf.mxu0
  %v1872 = vadd.f32 0.0, %v1871
  %v1873 = vpop.f32.mrf.mxu0
  %v1874 = vadd.f32 0.0, %v1873
  %1875 = vdwg.mxu0
  %1876 = vmatpush.bf16.msra.mxu0 0
  %1877 = vmatpush.bf16.msra.mxu0 0
  %1878 = vmatpush.bf16.msra.mxu0 0
  %1879 = vmatpush.bf16.msra.mxu0 0
  %1880 = vmatpush.bf16.msra.mxu0 0
  %1881 = vmatpush.bf16.msra.mxu0 0
  %1882 = vmatpush.bf16.msra.mxu0 %v1799
  %1883 = vmatpush.bf16.msra.mxu0 %v1781
  %1884 = vmatmul.bf16.gmra.mxu0 %v557
  %v1885 = vpop.f32.mrf.mxu0
  %v1886 = vadd.f32 0.0, %v1885
  %v1887 = vpop.f32.mrf.mxu0
  %v1888 = vadd.f32 0.0, %v1887
  %1889 = vmatmul.bf16.gmra.mxu0 %v560
  %v1890 = vpop.f32.mrf.mxu0
  %v1891 = vadd.f32 0.0, %v1890
  %v1892 = vpop.f32.mrf.mxu0
  %v1893 = vadd.f32 0.0, %v1892
  %1894 = vmatmul.bf16.gmra.mxu0 %v563
  %v1895 = vpop.f32.mrf.mxu0
  %v1896 = vadd.f32 0.0, %v1895
  %v1897 = vpop.f32.mrf.mxu0
  %v1898 = vadd.f32 0.0, %v1897
  %1899 = vmatmul.bf16.gmra.mxu0 %v566
  %v1900 = vpop.f32.mrf.mxu0
  %v1901 = vadd.f32 0.0, %v1900
  %v1902 = vpop.f32.mrf.mxu0
  %v1903 = vadd.f32 0.0, %v1902
  %1904 = vmatmul.bf16.gmra.mxu0 %v569
  %v1905 = vpop.f32.mrf.mxu0
  %v1906 = vadd.f32 0.0, %v1905
  %v1907 = vpop.f32.mrf.mxu0
  %v1908 = vadd.f32 0.0, %v1907
  %1909 = vmatmul.bf16.gmra.mxu0 %v572
  %v1910 = vpop.f32.mrf.mxu0
  %v1911 = vadd.f32 0.0, %v1910
  %v1912 = vpop.f32.mrf.mxu0
  %v1913 = vadd.f32 0.0, %v1912
  %1914 = vmatmul.bf16.gmra.mxu0 %v575
  %v1915 = vpop.f32.mrf.mxu0
  %v1916 = vadd.f32 0.0, %v1915
  %v1917 = vpop.f32.mrf.mxu0
  %v1918 = vadd.f32 0.0, %v1917
  %1919 = vmatmul.bf16.gmra.mxu0 %v578
  %v1920 = vpop.f32.mrf.mxu0
  %v1921 = vadd.f32 0.0, %v1920
  %v1922 = vpop.f32.mrf.mxu0
  %v1923 = vadd.f32 0.0, %v1922
  %1924 = vmatmul.bf16.gmra.mxu0 %v581
  %v1925 = vpop.f32.mrf.mxu0
  %v1926 = vadd.f32 0.0, %v1925
  %v1927 = vpop.f32.mrf.mxu0
  %v1928 = vadd.f32 0.0, %v1927
  %1929 = vmatmul.bf16.gmra.mxu0 %v584
  %v1930 = vpop.f32.mrf.mxu0
  %v1931 = vadd.f32 0.0, %v1930
  %v1932 = vpop.f32.mrf.mxu0
  %v1933 = vadd.f32 0.0, %v1932
  %1934 = vmatmul.bf16.gmra.mxu0 %v923
  %v1935 = vpop.f32.mrf.mxu0
  %v1936 = vadd.f32 0.0, %v1935
  %v1937 = vpop.f32.mrf.mxu0
  %v1938 = vadd.f32 0.0, %v1937
  %1939 = vmatmul.bf16.gmra.mxu0 %v1793
  %v1940 = vpop.f32.mrf.mxu0
  %v1941 = vadd.f32 0.0, %v1940
  %v1942 = vpop.f32.mrf.mxu0
  %v1943 = vadd.f32 0.0, %v1942
  %1944 = vdwg.mxu0
  %1945 = vmatpush.bf16.msra.mxu0 0
  %1946 = vmatpush.bf16.msra.mxu0 0
  %1947 = vmatpush.bf16.msra.mxu0 0
  %1948 = vmatpush.bf16.msra.mxu0 0
  %1949 = vmatpush.bf16.msra.mxu0 0
  %1950 = vmatpush.bf16.msra.mxu0 0
  %1951 = vmatpush.bf16.msra.mxu0 %v1802
  %1952 = vmatpush.bf16.msra.mxu0 %v1782
  %1953 = vmatmul.bf16.gmra.mxu0 %v557
  %v1954 = vpop.f32.mrf.mxu0
  %v1955 = vadd.f32 0.0, %v1954
  %v1956 = vpop.f32.mrf.mxu0
  %v1957 = vadd.f32 0.0, %v1956
  %1958 = vmatmul.bf16.gmra.mxu0 %v560
  %v1959 = vpop.f32.mrf.mxu0
  %v1960 = vadd.f32 0.0, %v1959
  %v1961 = vpop.f32.mrf.mxu0
  %v1962 = vadd.f32 0.0, %v1961
  %1963 = vmatmul.bf16.gmra.mxu0 %v563
  %v1964 = vpop.f32.mrf.mxu0
  %v1965 = vadd.f32 0.0, %v1964
  %v1966 = vpop.f32.mrf.mxu0
  %v1967 = vadd.f32 0.0, %v1966
  %1968 = vmatmul.bf16.gmra.mxu0 %v566
  %v1969 = vpop.f32.mrf.mxu0
  %v1970 = vadd.f32 0.0, %v1969
  %v1971 = vpop.f32.mrf.mxu0
  %v1972 = vadd.f32 0.0, %v1971
  %1973 = vmatmul.bf16.gmra.mxu0 %v569
  %v1974 = vpop.f32.mrf.mxu0
  %v1975 = vadd.f32 0.0, %v1974
  %v1976 = vpop.f32.mrf.mxu0
  %v1977 = vadd.f32 0.0, %v1976
  %1978 = vmatmul.bf16.gmra.mxu0 %v572
  %v1979 = vpop.f32.mrf.mxu0
  %v1980 = vadd.f32 0.0, %v1979
  %v1981 = vpop.f32.mrf.mxu0
  %v1982 = vadd.f32 0.0, %v1981
  %1983 = vmatmul.bf16.gmra.mxu0 %v575
  %v1984 = vpop.f32.mrf.mxu0
  %v1985 = vadd.f32 0.0, %v1984
  %v1986 = vpop.f32.mrf.mxu0
  %v1987 = vadd.f32 0.0, %v1986
  %1988 = vmatmul.bf16.gmra.mxu0 %v578
  %v1989 = vpop.f32.mrf.mxu0
  %v1990 = vadd.f32 0.0, %v1989
  %v1991 = vpop.f32.mrf.mxu0
  %v1992 = vadd.f32 0.0, %v1991
  %1993 = vmatmul.bf16.gmra.mxu0 %v581
  %v1994 = vpop.f32.mrf.mxu0
  %v1995 = vadd.f32 0.0, %v1994
  %v1996 = vpop.f32.mrf.mxu0
  %v1997 = vadd.f32 0.0, %v1996
  %1998 = vmatmul.bf16.gmra.mxu0 %v584
  %v1999 = vpop.f32.mrf.mxu0
  %v2000 = vadd.f32 0.0, %v1999
  %v2001 = vpop.f32.mrf.mxu0
  %v2002 = vadd.f32 0.0, %v2001
  %2003 = vmatmul.bf16.gmra.mxu0 %v923
  %v2004 = vpop.f32.mrf.mxu0
  %v2005 = vadd.f32 0.0, %v2004
  %v2006 = vpop.f32.mrf.mxu0
  %v2007 = vadd.f32 0.0, %v2006
  %2008 = vmatmul.bf16.gmra.mxu0 %v1793
  %v2009 = vpop.f32.mrf.mxu0
  %v2010 = vadd.f32 0.0, %v2009
  %v2011 = vpop.f32.mrf.mxu0
  %v2012 = vadd.f32 0.0, %v2011
  %2013 = vdwg.mxu0
  %2014 = vmatpush.bf16.msra.mxu0 0
  %2015 = vmatpush.bf16.msra.mxu0 0
  %2016 = vmatpush.bf16.msra.mxu0 0
  %2017 = vmatpush.bf16.msra.mxu0 0
  %2018 = vmatpush.bf16.msra.mxu0 0
  %2019 = vmatpush.bf16.msra.mxu0 0
  %2020 = vmatpush.bf16.msra.mxu0 %v1805
  %2021 = vmatpush.bf16.msra.mxu0 %v1783
  %2022 = vmatmul.bf16.gmra.mxu0 %v557
  %v2023 = vpop.f32.mrf.mxu0
  %v2024 = vadd.f32 0.0, %v2023
  %v2025 = vpop.f32.mrf.mxu0
  %v2026 = vadd.f32 0.0, %v2025
  %2027 = vmatmul.bf16.gmra.mxu0 %v560
  %v2028 = vpop.f32.mrf.mxu0
  %v2029 = vadd.f32 0.0, %v2028
  %v2030 = vpop.f32.mrf.mxu0
  %v2031 = vadd.f32 0.0, %v2030
  %2032 = vmatmul.bf16.gmra.mxu0 %v563
  %v2033 = vpop.f32.mrf.mxu0
  %v2034 = vadd.f32 0.0, %v2033
  %v2035 = vpop.f32.mrf.mxu0
  %v2036 = vadd.f32 0.0, %v2035
  %2037 = vmatmul.bf16.gmra.mxu0 %v566
  %v2038 = vpop.f32.mrf.mxu0
  %v2039 = vadd.f32 0.0, %v2038
  %v2040 = vpop.f32.mrf.mxu0
  %v2041 = vadd.f32 0.0, %v2040
  %2042 = vmatmul.bf16.gmra.mxu0 %v569
  %v2043 = vpop.f32.mrf.mxu0
  %v2044 = vadd.f32 0.0, %v2043
  %v2045 = vpop.f32.mrf.mxu0
  %v2046 = vadd.f32 0.0, %v2045
  %2047 = vmatmul.bf16.gmra.mxu0 %v572
  %v2048 = vpop.f32.mrf.mxu0
  %v2049 = vadd.f32 0.0, %v2048
  %v2050 = vpop.f32.mrf.mxu0
  %v2051 = vadd.f32 0.0, %v2050
  %2052 = vmatmul.bf16.gmra.mxu0 %v575
  %v2053 = vpop.f32.mrf.mxu0
  %v2054 = vadd.f32 0.0, %v2053
  %v2055 = vpop.f32.mrf.mxu0
  %v2056 = vadd.f32 0.0, %v2055
  %2057 = vmatmul.bf16.gmra.mxu0 %v578
  %v2058 = vpop.f32.mrf.mxu0
  %v2059 = vadd.f32 0.0, %v2058
  %v2060 = vpop.f32.mrf.mxu0
  %v2061 = vadd.f32 0.0, %v2060
  %2062 = vmatmul.bf16.gmra.mxu0 %v581
  %v2063 = vpop.f32.mrf.mxu0
  %v2064 = vadd.f32 0.0, %v2063
  %v2065 = vpop.f32.mrf.mxu0
  %v2066 = vadd.f32 0.0, %v2065
  %2067 = vmatmul.bf16.gmra.mxu0 %v584
  %v2068 = vpop.f32.mrf.mxu0
  %v2069 = vadd.f32 0.0, %v2068
  %v2070 = vpop.f32.mrf.mxu0
  %v2071 = vadd.f32 0.0, %v2070
  %2072 = vmatmul.bf16.gmra.mxu0 %v923
  %v2073 = vpop.f32.mrf.mxu0
  %v2074 = vadd.f32 0.0, %v2073
  %v2075 = vpop.f32.mrf.mxu0
  %v2076 = vadd.f32 0.0, %v2075
  %2077 = vmatmul.bf16.gmra.mxu0 %v1793
  %v2078 = vpop.f32.mrf.mxu0
  %v2079 = vadd.f32 0.0, %v2078
  %v2080 = vpop.f32.mrf.mxu0
  %v2081 = vadd.f32 0.0, %v2080
  %2082 = vdwg.mxu0
  %v2083 = vadd.f32 %v1648, %v1817
  %v2084 = vadd.f32 %v1649, %v1886
  %v2085 = vadd.f32 %v1650, %v1955
  %v2086 = vadd.f32 %v1651, %v2024
  %v2087 = vadd.f32 %v1652, %v1819
  %v2088 = vadd.f32 %v1653, %v1888
  %v2089 = vadd.f32 %v1654, %v1957
  %v2090 = vadd.f32 %v1655, %v2026
  %v2091 = vadd.f32 %v1656, %v1822
  %v2092 = vadd.f32 %v1657, %v1891
  %v2093 = vadd.f32 %v1658, %v1960
  %v2094 = vadd.f32 %v1659, %v2029
  %v2095 = vadd.f32 %v1660, %v1824
  %v2096 = vadd.f32 %v1661, %v1893
  %v2097 = vadd.f32 %v1662, %v1962
  %v2098 = vadd.f32 %v1663, %v2031
  %v2099 = vadd.f32 %v1664, %v1827
  %v2100 = vadd.f32 %v1665, %v1896
  %v2101 = vadd.f32 %v1666, %v1965
  %v2102 = vadd.f32 %v1667, %v2034
  %v2103 = vadd.f32 %v1668, %v1829
  %v2104 = vadd.f32 %v1669, %v1898
  %v2105 = vadd.f32 %v1670, %v1967
  %v2106 = vadd.f32 %v1671, %v2036
  %v2107 = vadd.f32 %v1672, %v1832
  %v2108 = vadd.f32 %v1673, %v1901
  %v2109 = vadd.f32 %v1674, %v1970
  %v2110 = vadd.f32 %v1675, %v2039
  %v2111 = vadd.f32 %v1676, %v1834
  %v2112 = vadd.f32 %v1677, %v1903
  %v2113 = vadd.f32 %v1678, %v1972
  %v2114 = vadd.f32 %v1679, %v2041
  %v2115 = vadd.f32 %v1680, %v1837
  %v2116 = vadd.f32 %v1681, %v1906
  %v2117 = vadd.f32 %v1682, %v1975
  %v2118 = vadd.f32 %v1683, %v2044
  %v2119 = vadd.f32 %v1684, %v1839
  %v2120 = vadd.f32 %v1685, %v1908
  %v2121 = vadd.f32 %v1686, %v1977
  %v2122 = vadd.f32 %v1687, %v2046
  %v2123 = vadd.f32 %v1688, %v1842
  %v2124 = vadd.f32 %v1689, %v1911
  %v2125 = vadd.f32 %v1690, %v1980
  %v2126 = vadd.f32 %v1691, %v2049
  %v2127 = vadd.f32 %v1692, %v1844
  %v2128 = vadd.f32 %v1693, %v1913
  %v2129 = vadd.f32 %v1694, %v1982
  %v2130 = vadd.f32 %v1695, %v2051
  %v2131 = vadd.f32 %v1696, %v1847
  %v2132 = vadd.f32 %v1697, %v1916
  %v2133 = vadd.f32 %v1698, %v1985
  %v2134 = vadd.f32 %v1699, %v2054
  %v2135 = vadd.f32 %v1700, %v1849
  %v2136 = vadd.f32 %v1701, %v1918
  %v2137 = vadd.f32 %v1702, %v1987
  %v2138 = vadd.f32 %v1703, %v2056
  %v2139 = vadd.f32 %v1704, %v1852
  %v2140 = vadd.f32 %v1705, %v1921
  %v2141 = vadd.f32 %v1706, %v1990
  %v2142 = vadd.f32 %v1707, %v2059
  %v2143 = vadd.f32 %v1708, %v1854
  %v2144 = vadd.f32 %v1709, %v1923
  %v2145 = vadd.f32 %v1710, %v1992
  %v2146 = vadd.f32 %v1711, %v2061
  %v2147 = vadd.f32 %v1712, %v1857
  %v2148 = vadd.f32 %v1713, %v1926
  %v2149 = vadd.f32 %v1714, %v1995
  %v2150 = vadd.f32 %v1715, %v2064
  %v2151 = vadd.f32 %v1716, %v1859
  %v2152 = vadd.f32 %v1717, %v1928
  %v2153 = vadd.f32 %v1718, %v1997
  %v2154 = vadd.f32 %v1719, %v2066
  %v2155 = vadd.f32 %v1720, %v1862
  %v2156 = vadd.f32 %v1721, %v1931
  %v2157 = vadd.f32 %v1722, %v2000
  %v2158 = vadd.f32 %v1723, %v2069
  %v2159 = vadd.f32 %v1724, %v1864
  %v2160 = vadd.f32 %v1725, %v1933
  %v2161 = vadd.f32 %v1726, %v2002
  %v2162 = vadd.f32 %v1727, %v2071
  %v2163 = vadd.f32 %v1728, %v1867
  %v2164 = vadd.f32 %v1729, %v1936
  %v2165 = vadd.f32 %v1730, %v2005
  %v2166 = vadd.f32 %v1731, %v2074
  %v2167 = vadd.f32 %v1732, %v1869
  %v2168 = vadd.f32 %v1733, %v1938
  %v2169 = vadd.f32 %v1734, %v2007
  %v2170 = vadd.f32 %v1735, %v2076
  %v2171 = vadd.f32 %v1736, %v1872
  %v2172 = vadd.f32 %v1737, %v1941
  %v2173 = vadd.f32 %v1738, %v2010
  %v2174 = vadd.f32 %v1739, %v2079
  %v2175 = vadd.f32 %v1740, %v1874
  %v2176 = vadd.f32 %v1741, %v1943
  %v2177 = vadd.f32 %v1742, %v2012
  %v2178 = vadd.f32 %v1743, %v2081
  %v2179 = vld [vmem:[%s2] sm:$0xf]
  %v2181 = vperm.slane %v2179, 0
  %v2182 = vperm.slane %v2179, 1
  %v2183 = vperm.slane %v2179, 2
  %v2184 = vperm.slane %v2179, 3
  %v2189 = vadd.f32 %v2083, %v2181
  %v2190 = vadd.f32 %v2084, %v2182
  %v2191 = vadd.f32 %v2085, %v2183
  %v2192 = vadd.f32 %v2086, %v2184
  %v2193 = vadd.f32 %v2087, %v2181
  %v2194 = vadd.f32 %v2088, %v2182
  %v2195 = vadd.f32 %v2089, %v2183
  %v2196 = vadd.f32 %v2090, %v2184
  %v2197 = vadd.f32 %v2091, %v2181
  %v2198 = vadd.f32 %v2092, %v2182
  %v2199 = vadd.f32 %v2093, %v2183
  %v2200 = vadd.f32 %v2094, %v2184
  %v2201 = vadd.f32 %v2095, %v2181
  %v2202 = vadd.f32 %v2096, %v2182
  %v2203 = vadd.f32 %v2097, %v2183
  %v2204 = vadd.f32 %v2098, %v2184
  %v2205 = vadd.f32 %v2099, %v2181
  %v2206 = vadd.f32 %v2100, %v2182
  %v2207 = vadd.f32 %v2101, %v2183
  %v2208 = vadd.f32 %v2102, %v2184
  %v2209 = vadd.f32 %v2103, %v2181
  %v2210 = vadd.f32 %v2104, %v2182
  %v2211 = vadd.f32 %v2105, %v2183
  %v2212 = vadd.f32 %v2106, %v2184
  %v2213 = vadd.f32 %v2107, %v2181
  %v2214 = vadd.f32 %v2108, %v2182
  %v2215 = vadd.f32 %v2109, %v2183
  %v2216 = vadd.f32 %v2110, %v2184
  %v2217 = vadd.f32 %v2111, %v2181
  %v2218 = vadd.f32 %v2112, %v2182
  %v2219 = vadd.f32 %v2113, %v2183
  %v2220 = vadd.f32 %v2114, %v2184
  %v2221 = vadd.f32 %v2115, %v2181
  %v2222 = vadd.f32 %v2116, %v2182
  %v2223 = vadd.f32 %v2117, %v2183
  %v2224 = vadd.f32 %v2118, %v2184
  %v2225 = vadd.f32 %v2119, %v2181
  %v2226 = vadd.f32 %v2120, %v2182
  %v2227 = vadd.f32 %v2121, %v2183
  %v2228 = vadd.f32 %v2122, %v2184
  %v2229 = vadd.f32 %v2123, %v2181
  %v2230 = vadd.f32 %v2124, %v2182
  %v2231 = vadd.f32 %v2125, %v2183
  %v2232 = vadd.f32 %v2126, %v2184
  %v2233 = vadd.f32 %v2127, %v2181
  %v2234 = vadd.f32 %v2128, %v2182
  %v2235 = vadd.f32 %v2129, %v2183
  %v2236 = vadd.f32 %v2130, %v2184
  %v2237 = vadd.f32 %v2131, %v2181
  %v2238 = vadd.f32 %v2132, %v2182
  %v2239 = vadd.f32 %v2133, %v2183
  %v2240 = vadd.f32 %v2134, %v2184
  %v2241 = vadd.f32 %v2135, %v2181
  %v2242 = vadd.f32 %v2136, %v2182
  %v2243 = vadd.f32 %v2137, %v2183
  %v2244 = vadd.f32 %v2138, %v2184
  %v2245 = vadd.f32 %v2139, %v2181
  %v2246 = vadd.f32 %v2140, %v2182
  %v2247 = vadd.f32 %v2141, %v2183
  %v2248 = vadd.f32 %v2142, %v2184
  %v2249 = vadd.f32 %v2143, %v2181
  %v2250 = vadd.f32 %v2144, %v2182
  %v2251 = vadd.f32 %v2145, %v2183
  %v2252 = vadd.f32 %v2146, %v2184
  %v2253 = vadd.f32 %v2147, %v2181
  %v2254 = vadd.f32 %v2148, %v2182
  %v2255 = vadd.f32 %v2149, %v2183
  %v2256 = vadd.f32 %v2150, %v2184
  %v2257 = vadd.f32 %v2151, %v2181
  %v2258 = vadd.f32 %v2152, %v2182
  %v2259 = vadd.f32 %v2153, %v2183
  %v2260 = vadd.f32 %v2154, %v2184
  %v2261 = vadd.f32 %v2155, %v2181
  %v2262 = vadd.f32 %v2156, %v2182
  %v2263 = vadd.f32 %v2157, %v2183
  %v2264 = vadd.f32 %v2158, %v2184
  %v2265 = vadd.f32 %v2159, %v2181
  %v2266 = vadd.f32 %v2160, %v2182
  %v2267 = vadd.f32 %v2161, %v2183
  %v2268 = vadd.f32 %v2162, %v2184
  %v2269 = vadd.f32 %v2163, %v2181
  %v2270 = vadd.f32 %v2164, %v2182
  %v2271 = vadd.f32 %v2165, %v2183
  %v2272 = vadd.f32 %v2166, %v2184
  %v2273 = vadd.f32 %v2167, %v2181
  %v2274 = vadd.f32 %v2168, %v2182
  %v2275 = vadd.f32 %v2169, %v2183
  %v2276 = vadd.f32 %v2170, %v2184
  %v2277 = vadd.f32 %v2171, %v2181
  %v2278 = vadd.f32 %v2172, %v2182
  %v2279 = vadd.f32 %v2173, %v2183
  %v2280 = vadd.f32 %v2174, %v2184
  %v2281 = vadd.f32 %v2175, %v2181
  %v2282 = vadd.f32 %v2176, %v2182
  %v2283 = vadd.f32 %v2177, %v2183
  %v2284 = vadd.f32 %v2178, %v2184
  %v2285 = vmax.f32 %v2189, 0.0
  %v2286 = vmax.f32 %v2190, 0.0
  %v2287 = vmax.f32 %v2191, 0.0
  %v2288 = vmax.f32 %v2192, 0.0
  %v2289 = vmax.f32 %v2193, 0.0
  %v2290 = vmax.f32 %v2194, 0.0
  %v2291 = vmax.f32 %v2195, 0.0
  %v2292 = vmax.f32 %v2196, 0.0
  %v2293 = vmax.f32 %v2197, 0.0
  %v2294 = vmax.f32 %v2198, 0.0
  %v2295 = vmax.f32 %v2199, 0.0
  %v2296 = vmax.f32 %v2200, 0.0
  %v2297 = vmax.f32 %v2201, 0.0
  %v2298 = vmax.f32 %v2202, 0.0
  %v2299 = vmax.f32 %v2203, 0.0
  %v2300 = vmax.f32 %v2204, 0.0
  %v2301 = vmax.f32 %v2205, 0.0
  %v2302 = vmax.f32 %v2206, 0.0
  %v2303 = vmax.f32 %v2207, 0.0
  %v2304 = vmax.f32 %v2208, 0.0
  %v2305 = vmax.f32 %v2209, 0.0
  %v2306 = vmax.f32 %v2210, 0.0
  %v2307 = vmax.f32 %v2211, 0.0
  %v2308 = vmax.f32 %v2212, 0.0
  %v2309 = vmax.f32 %v2213, 0.0
  %v2310 = vmax.f32 %v2214, 0.0
  %v2311 = vmax.f32 %v2215, 0.0
  %v2312 = vmax.f32 %v2216, 0.0
  %v2313 = vmax.f32 %v2217, 0.0
  %v2314 = vmax.f32 %v2218, 0.0
  %v2315 = vmax.f32 %v2219, 0.0
  %v2316 = vmax.f32 %v2220, 0.0
  %v2317 = vmax.f32 %v2221, 0.0
  %v2318 = vmax.f32 %v2222, 0.0
  %v2319 = vmax.f32 %v2223, 0.0
  %v2320 = vmax.f32 %v2224, 0.0
  %v2321 = vmax.f32 %v2225, 0.0
  %v2322 = vmax.f32 %v2226, 0.0
  %v2323 = vmax.f32 %v2227, 0.0
  %v2324 = vmax.f32 %v2228, 0.0
  %v2325 = vmax.f32 %v2229, 0.0
  %v2326 = vmax.f32 %v2230, 0.0
  %v2327 = vmax.f32 %v2231, 0.0
  %v2328 = vmax.f32 %v2232, 0.0
  %v2329 = vmax.f32 %v2233, 0.0
  %v2330 = vmax.f32 %v2234, 0.0
  %v2331 = vmax.f32 %v2235, 0.0
  %v2332 = vmax.f32 %v2236, 0.0
  %v2333 = vmax.f32 %v2237, 0.0
  %v2334 = vmax.f32 %v2238, 0.0
  %v2335 = vmax.f32 %v2239, 0.0
  %v2336 = vmax.f32 %v2240, 0.0
  %v2337 = vmax.f32 %v2241, 0.0
  %v2338 = vmax.f32 %v2242, 0.0
  %v2339 = vmax.f32 %v2243, 0.0
  %v2340 = vmax.f32 %v2244, 0.0
  %v2341 = vmax.f32 %v2245, 0.0
  %v2342 = vmax.f32 %v2246, 0.0
  %v2343 = vmax.f32 %v2247, 0.0
  %v2344 = vmax.f32 %v2248, 0.0
  %v2345 = vmax.f32 %v2249, 0.0
  %v2346 = vmax.f32 %v2250, 0.0
  %v2347 = vmax.f32 %v2251, 0.0
  %v2348 = vmax.f32 %v2252, 0.0
  %v2349 = vmax.f32 %v2253, 0.0
  %v2350 = vmax.f32 %v2254, 0.0
  %v2351 = vmax.f32 %v2255, 0.0
  %v2352 = vmax.f32 %v2256, 0.0
  %v2353 = vmax.f32 %v2257, 0.0
  %v2354 = vmax.f32 %v2258, 0.0
  %v2355 = vmax.f32 %v2259, 0.0
  %v2356 = vmax.f32 %v2260, 0.0
  %v2357 = vmax.f32 %v2261, 0.0
  %v2358 = vmax.f32 %v2262, 0.0
  %v2359 = vmax.f32 %v2263, 0.0
  %v2360 = vmax.f32 %v2264, 0.0
  %v2361 = vmax.f32 %v2265, 0.0
  %v2362 = vmax.f32 %v2266, 0.0
  %v2363 = vmax.f32 %v2267, 0.0
  %v2364 = vmax.f32 %v2268, 0.0
  %v2365 = vmax.f32 %v2269, 0.0
  %v2366 = vmax.f32 %v2270, 0.0
  %v2367 = vmax.f32 %v2271, 0.0
  %v2368 = vmax.f32 %v2272, 0.0
  %v2369 = vmax.f32 %v2273, 0.0
  %v2370 = vmax.f32 %v2274, 0.0
  %v2371 = vmax.f32 %v2275, 0.0
  %v2372 = vmax.f32 %v2276, 0.0
  %v2373 = vmax.f32 %v2277, 0.0
  %v2374 = vmax.f32 %v2278, 0.0
  %v2375 = vmax.f32 %v2279, 0.0
  %v2376 = vmax.f32 %v2280, 0.0
  %v2377 = vmax.f32 %v2281, 0.0
  %v2378 = vmax.f32 %v2282, 0.0
  %v2379 = vmax.f32 %v2283, 0.0
  %v2380 = vmax.f32 %v2284, 0.0
  %v2381 = vpack.c.bf16 %v2286, %v2285
  %v2382 = vpack.c.bf16 %v2288, %v2287
  %v2383 = vpack.c.bf16 %v2290, %v2289
  %v2384 = vpack.c.bf16 %v2292, %v2291
  %v2385 = vpack.c.bf16 %v2294, %v2293
  %v2386 = vpack.c.bf16 %v2296, %v2295
  %v2387 = vpack.c.bf16 %v2298, %v2297
  %v2388 = vpack.c.bf16 %v2300, %v2299
  %v2389 = vpack.c.bf16 %v2302, %v2301
  %v2390 = vpack.c.bf16 %v2304, %v2303
  %v2391 = vpack.c.bf16 %v2306, %v2305
  %v2392 = vpack.c.bf16 %v2308, %v2307
  %v2393 = vpack.c.bf16 %v2310, %v2309
  %v2394 = vpack.c.bf16 %v2312, %v2311
  %v2395 = vpack.c.bf16 %v2314, %v2313
  %v2396 = vpack.c.bf16 %v2316, %v2315
  %v2397 = vpack.c.bf16 %v2318, %v2317
  %v2398 = vpack.c.bf16 %v2320, %v2319
  %v2399 = vpack.c.bf16 %v2322, %v2321
  %v2400 = vpack.c.bf16 %v2324, %v2323
  %v2401 = vpack.c.bf16 %v2326, %v2325
  %v2402 = vpack.c.bf16 %v2328, %v2327
  %v2403 = vpack.c.bf16 %v2330, %v2329
  %v2404 = vpack.c.bf16 %v2332, %v2331
  %v2405 = vpack.c.bf16 %v2334, %v2333
  %v2406 = vpack.c.bf16 %v2336, %v2335
  %v2407 = vpack.c.bf16 %v2338, %v2337
  %v2408 = vpack.c.bf16 %v2340, %v2339
  %v2409 = vpack.c.bf16 %v2342, %v2341
  %v2410 = vpack.c.bf16 %v2344, %v2343
  %v2411 = vpack.c.bf16 %v2346, %v2345
  %v2412 = vpack.c.bf16 %v2348, %v2347
  %v2413 = vpack.c.bf16 %v2350, %v2349
  %v2414 = vpack.c.bf16 %v2352, %v2351
  %v2415 = vpack.c.bf16 %v2354, %v2353
  %v2416 = vpack.c.bf16 %v2356, %v2355
  %v2417 = vpack.c.bf16 %v2358, %v2357
  %v2418 = vpack.c.bf16 %v2360, %v2359
  %v2419 = vpack.c.bf16 %v2362, %v2361
  %v2420 = vpack.c.bf16 %v2364, %v2363
  %v2421 = vpack.c.bf16 %v2366, %v2365
  %v2422 = vpack.c.bf16 %v2368, %v2367
  %v2423 = vpack.c.bf16 %v2370, %v2369
  %v2424 = vpack.c.bf16 %v2372, %v2371
  %v2425 = vpack.c.bf16 %v2374, %v2373
  %v2426 = vpack.c.bf16 %v2376, %v2375
  %v2427 = vpack.c.bf16 %v2378, %v2377
  %v2428 = vpack.c.bf16 %v2380, %v2379
  %v2429 = vunpack.c.l.bf16 %v2381
  %v2430 = vunpack.c.h.bf16 %v2381
  %v2431 = vunpack.c.l.bf16 %v2382
  %v2432 = vunpack.c.h.bf16 %v2382
  %v2433 = vunpack.c.l.bf16 %v2383
  %v2434 = vunpack.c.h.bf16 %v2383
  %v2435 = vunpack.c.l.bf16 %v2384
  %v2436 = vunpack.c.h.bf16 %v2384
  %v2437 = vunpack.c.l.bf16 %v2385
  %v2438 = vunpack.c.h.bf16 %v2385
  %v2439 = vunpack.c.l.bf16 %v2386
  %v2440 = vunpack.c.h.bf16 %v2386
  %v2441 = vunpack.c.l.bf16 %v2387
  %v2442 = vunpack.c.h.bf16 %v2387
  %v2443 = vunpack.c.l.bf16 %v2388
  %v2444 = vunpack.c.h.bf16 %v2388
  %v2445 = vunpack.c.l.bf16 %v2389
  %v2446 = vunpack.c.h.bf16 %v2389
  %v2447 = vunpack.c.l.bf16 %v2390
  %v2448 = vunpack.c.h.bf16 %v2390
  %v2449 = vunpack.c.l.bf16 %v2391
  %v2450 = vunpack.c.h.bf16 %v2391
  %v2451 = vunpack.c.l.bf16 %v2392
  %v2452 = vunpack.c.h.bf16 %v2392
  %v2453 = vunpack.c.l.bf16 %v2393
  %v2454 = vunpack.c.h.bf16 %v2393
  %v2455 = vunpack.c.l.bf16 %v2394
  %v2456 = vunpack.c.h.bf16 %v2394
  %v2457 = vunpack.c.l.bf16 %v2395
  %v2458 = vunpack.c.h.bf16 %v2395
  %v2459 = vunpack.c.l.bf16 %v2396
  %v2460 = vunpack.c.h.bf16 %v2396
  %v2461 = vunpack.c.l.bf16 %v2397
  %v2462 = vunpack.c.h.bf16 %v2397
  %v2463 = vunpack.c.l.bf16 %v2398
  %v2464 = vunpack.c.h.bf16 %v2398
  %v2465 = vunpack.c.l.bf16 %v2399
  %v2466 = vunpack.c.h.bf16 %v2399
  %v2467 = vunpack.c.l.bf16 %v2400
  %v2468 = vunpack.c.h.bf16 %v2400
  %v2469 = vunpack.c.l.bf16 %v2401
  %v2470 = vunpack.c.h.bf16 %v2401
  %v2471 = vunpack.c.l.bf16 %v2402
  %v2472 = vunpack.c.h.bf16 %v2402
  %v2473 = vunpack.c.l.bf16 %v2403
  %v2474 = vunpack.c.h.bf16 %v2403
  %v2475 = vunpack.c.l.bf16 %v2404
  %v2476 = vunpack.c.h.bf16 %v2404
  %v2477 = vunpack.c.l.bf16 %v2405
  %v2478 = vunpack.c.h.bf16 %v2405
  %v2479 = vunpack.c.l.bf16 %v2406
  %v2480 = vunpack.c.h.bf16 %v2406
  %v2481 = vunpack.c.l.bf16 %v2407
  %v2482 = vunpack.c.h.bf16 %v2407
  %v2483 = vunpack.c.l.bf16 %v2408
  %v2484 = vunpack.c.h.bf16 %v2408
  %v2485 = vunpack.c.l.bf16 %v2409
  %v2486 = vunpack.c.h.bf16 %v2409
  %v2487 = vunpack.c.l.bf16 %v2410
  %v2488 = vunpack.c.h.bf16 %v2410
  %v2489 = vunpack.c.l.bf16 %v2411
  %v2490 = vunpack.c.h.bf16 %v2411
  %v2491 = vunpack.c.l.bf16 %v2412
  %v2492 = vunpack.c.h.bf16 %v2412
  %v2493 = vunpack.c.l.bf16 %v2413
  %v2494 = vunpack.c.h.bf16 %v2413
  %v2495 = vunpack.c.l.bf16 %v2414
  %v2496 = vunpack.c.h.bf16 %v2414
  %v2497 = vunpack.c.l.bf16 %v2415
  %v2498 = vunpack.c.h.bf16 %v2415
  %v2499 = vunpack.c.l.bf16 %v2416
  %v2500 = vunpack.c.h.bf16 %v2416
  %v2501 = vunpack.c.l.bf16 %v2417
  %v2502 = vunpack.c.h.bf16 %v2417
  %v2503 = vunpack.c.l.bf16 %v2418
  %v2504 = vunpack.c.h.bf16 %v2418
  %v2505 = vunpack.c.l.bf16 %v2419
  %v2506 = vunpack.c.h.bf16 %v2419
  %v2507 = vunpack.c.l.bf16 %v2420
  %v2508 = vunpack.c.h.bf16 %v2420
  %v2509 = vunpack.c.l.bf16 %v2421
  %v2510 = vunpack.c.h.bf16 %v2421
  %v2511 = vunpack.c.l.bf16 %v2422
  %v2512 = vunpack.c.h.bf16 %v2422
  %v2513 = vunpack.c.l.bf16 %v2423
  %v2514 = vunpack.c.h.bf16 %v2423
  %v2515 = vunpack.c.l.bf16 %v2424
  %v2516 = vunpack.c.h.bf16 %v2424
  %v2517 = vunpack.c.l.bf16 %v2425
  %v2518 = vunpack.c.h.bf16 %v2425
  %v2519 = vunpack.c.l.bf16 %v2426
  %v2520 = vunpack.c.h.bf16 %v2426
  %v2521 = vunpack.c.l.bf16 %v2427
  %v2522 = vunpack.c.h.bf16 %v2427
  %v2523 = vunpack.c.l.bf16 %v2428
  %v2524 = vunpack.c.h.bf16 %v2428
  %2621 = vrot.lane.b32.xlu0 %v2429, 127
  %v2622 = vpop.permute.xlu0 %2621
  %2623 = vrot.lane.b32.xlu0 %v2430, 127
  %v2624 = vpop.permute.xlu0 %2623
  %2625 = vrot.lane.b32.xlu0 %v2431, 127
  %v2626 = vpop.permute.xlu0 %2625
  %2627 = vrot.lane.b32.xlu0 %v2432, 127
  %v2628 = vpop.permute.xlu0 %2627
  %2629 = vrot.lane.b32.xlu0 %v2433, 127
  %v2630 = vpop.permute.xlu0 %2629
  %2631 = vrot.lane.b32.xlu0 %v2434, 127
  %v2632 = vpop.permute.xlu0 %2631
  %2633 = vrot.lane.b32.xlu0 %v2435, 127
  %v2634 = vpop.permute.xlu0 %2633
  %2635 = vrot.lane.b32.xlu0 %v2436, 127
  %v2636 = vpop.permute.xlu0 %2635
  %2637 = vrot.lane.b32.xlu0 %v2437, 127
  %v2638 = vpop.permute.xlu0 %2637
  %2639 = vrot.lane.b32.xlu0 %v2438, 127
  %v2640 = vpop.permute.xlu0 %2639
  %2641 = vrot.lane.b32.xlu0 %v2439, 127
  %v2642 = vpop.permute.xlu0 %2641
  %2643 = vrot.lane.b32.xlu0 %v2440, 127
  %v2644 = vpop.permute.xlu0 %2643
  %2645 = vrot.lane.b32.xlu0 %v2441, 127
  %v2646 = vpop.permute.xlu0 %2645
  %2647 = vrot.lane.b32.xlu0 %v2442, 127
  %v2648 = vpop.permute.xlu0 %2647
  %2649 = vrot.lane.b32.xlu0 %v2443, 127
  %v2650 = vpop.permute.xlu0 %2649
  %2651 = vrot.lane.b32.xlu0 %v2444, 127
  %v2652 = vpop.permute.xlu0 %2651
  %2653 = vrot.lane.b32.xlu0 %v2445, 127
  %v2654 = vpop.permute.xlu0 %2653
  %2655 = vrot.lane.b32.xlu0 %v2446, 127
  %v2656 = vpop.permute.xlu0 %2655
  %2657 = vrot.lane.b32.xlu0 %v2447, 127
  %v2658 = vpop.permute.xlu0 %2657
  %2659 = vrot.lane.b32.xlu0 %v2448, 127
  %v2660 = vpop.permute.xlu0 %2659
  %2661 = vrot.lane.b32.xlu0 %v2449, 127
  %v2662 = vpop.permute.xlu0 %2661
  %2663 = vrot.lane.b32.xlu0 %v2450, 127
  %v2664 = vpop.permute.xlu0 %2663
  %2665 = vrot.lane.b32.xlu0 %v2451, 127
  %v2666 = vpop.permute.xlu0 %2665
  %2667 = vrot.lane.b32.xlu0 %v2452, 127
  %v2668 = vpop.permute.xlu0 %2667
  %2669 = vrot.lane.b32.xlu0 %v2453, 127
  %v2670 = vpop.permute.xlu0 %2669
  %2671 = vrot.lane.b32.xlu0 %v2454, 127
  %v2672 = vpop.permute.xlu0 %2671
  %2673 = vrot.lane.b32.xlu0 %v2455, 127
  %v2674 = vpop.permute.xlu0 %2673
  %2675 = vrot.lane.b32.xlu0 %v2456, 127
  %v2676 = vpop.permute.xlu0 %2675
  %2677 = vrot.lane.b32.xlu0 %v2457, 127
  %v2678 = vpop.permute.xlu0 %2677
  %2679 = vrot.lane.b32.xlu0 %v2458, 127
  %v2680 = vpop.permute.xlu0 %2679
  %2681 = vrot.lane.b32.xlu0 %v2459, 127
  %v2682 = vpop.permute.xlu0 %2681
  %2683 = vrot.lane.b32.xlu0 %v2460, 127
  %v2684 = vpop.permute.xlu0 %2683
  %2685 = vrot.lane.b32.xlu0 %v2461, 127
  %v2686 = vpop.permute.xlu0 %2685
  %2687 = vrot.lane.b32.xlu0 %v2462, 127
  %v2688 = vpop.permute.xlu0 %2687
  %2689 = vrot.lane.b32.xlu0 %v2463, 127
  %v2690 = vpop.permute.xlu0 %2689
  %2691 = vrot.lane.b32.xlu0 %v2464, 127
  %v2692 = vpop.permute.xlu0 %2691
  %2693 = vrot.lane.b32.xlu0 %v2465, 127
  %v2694 = vpop.permute.xlu0 %2693
  %2695 = vrot.lane.b32.xlu0 %v2466, 127
  %v2696 = vpop.permute.xlu0 %2695
  %2697 = vrot.lane.b32.xlu0 %v2467, 127
  %v2698 = vpop.permute.xlu0 %2697
  %2699 = vrot.lane.b32.xlu0 %v2468, 127
  %v2700 = vpop.permute.xlu0 %2699
  %2701 = vrot.lane.b32.xlu0 %v2469, 127
  %v2702 = vpop.permute.xlu0 %2701
  %2703 = vrot.lane.b32.xlu0 %v2470, 127
  %v2704 = vpop.permute.xlu0 %2703
  %2705 = vrot.lane.b32.xlu0 %v2471, 127
  %v2706 = vpop.permute.xlu0 %2705
  %2707 = vrot.lane.b32.xlu0 %v2472, 127
  %v2708 = vpop.permute.xlu0 %2707
  %2709 = vrot.lane.b32.xlu0 %v2473, 127
  %v2710 = vpop.permute.xlu0 %2709
  %2711 = vrot.lane.b32.xlu0 %v2474, 127
  %v2712 = vpop.permute.xlu0 %2711
  %2713 = vrot.lane.b32.xlu0 %v2475, 127
  %v2714 = vpop.permute.xlu0 %2713
  %2715 = vrot.lane.b32.xlu0 %v2476, 127
  %v2716 = vpop.permute.xlu0 %2715
  %2717 = vrot.lane.b32.xlu0 %v2477, 127
  %v2718 = vpop.permute.xlu0 %2717
  %2719 = vrot.lane.b32.xlu0 %v2478, 127
  %v2720 = vpop.permute.xlu0 %2719
  %2721 = vrot.lane.b32.xlu0 %v2479, 127
  %v2722 = vpop.permute.xlu0 %2721
  %2723 = vrot.lane.b32.xlu0 %v2480, 127
  %v2724 = vpop.permute.xlu0 %2723
  %2725 = vrot.lane.b32.xlu0 %v2481, 127
  %v2726 = vpop.permute.xlu0 %2725
  %2727 = vrot.lane.b32.xlu0 %v2482, 127
  %v2728 = vpop.permute.xlu0 %2727
  %2729 = vrot.lane.b32.xlu0 %v2483, 127
  %v2730 = vpop.permute.xlu0 %2729
  %2731 = vrot.lane.b32.xlu0 %v2484, 127
  %v2732 = vpop.permute.xlu0 %2731
  %2733 = vrot.lane.b32.xlu0 %v2485, 127
  %v2734 = vpop.permute.xlu0 %2733
  %2735 = vrot.lane.b32.xlu0 %v2486, 127
  %v2736 = vpop.permute.xlu0 %2735
  %2737 = vrot.lane.b32.xlu0 %v2487, 127
  %v2738 = vpop.permute.xlu0 %2737
  %2739 = vrot.lane.b32.xlu0 %v2488, 127
  %v2740 = vpop.permute.xlu0 %2739
  %2741 = vrot.lane.b32.xlu0 %v2489, 127
  %v2742 = vpop.permute.xlu0 %2741
  %2743 = vrot.lane.b32.xlu0 %v2490, 127
  %v2744 = vpop.permute.xlu0 %2743
  %2745 = vrot.lane.b32.xlu0 %v2491, 127
  %v2746 = vpop.permute.xlu0 %2745
  %2747 = vrot.lane.b32.xlu0 %v2492, 127
  %v2748 = vpop.permute.xlu0 %2747
  %2749 = vrot.lane.b32.xlu0 %v2493, 127
  %v2750 = vpop.permute.xlu0 %2749
  %2751 = vrot.lane.b32.xlu0 %v2494, 127
  %v2752 = vpop.permute.xlu0 %2751
  %2753 = vrot.lane.b32.xlu0 %v2495, 127
  %v2754 = vpop.permute.xlu0 %2753
  %2755 = vrot.lane.b32.xlu0 %v2496, 127
  %v2756 = vpop.permute.xlu0 %2755
  %2757 = vrot.lane.b32.xlu0 %v2497, 127
  %v2758 = vpop.permute.xlu0 %2757
  %2759 = vrot.lane.b32.xlu0 %v2498, 127
  %v2760 = vpop.permute.xlu0 %2759
  %2761 = vrot.lane.b32.xlu0 %v2499, 127
  %v2762 = vpop.permute.xlu0 %2761
  %2763 = vrot.lane.b32.xlu0 %v2500, 127
  %v2764 = vpop.permute.xlu0 %2763
  %2765 = vrot.lane.b32.xlu0 %v2501, 127
  %v2766 = vpop.permute.xlu0 %2765
  %2767 = vrot.lane.b32.xlu0 %v2502, 127
  %v2768 = vpop.permute.xlu0 %2767
  %2769 = vrot.lane.b32.xlu0 %v2503, 127
  %v2770 = vpop.permute.xlu0 %2769
  %2771 = vrot.lane.b32.xlu0 %v2504, 127
  %v2772 = vpop.permute.xlu0 %2771
  %2773 = vrot.lane.b32.xlu0 %v2505, 127
  %v2774 = vpop.permute.xlu0 %2773
  %2775 = vrot.lane.b32.xlu0 %v2506, 127
  %v2776 = vpop.permute.xlu0 %2775
  %2777 = vrot.lane.b32.xlu0 %v2507, 127
  %v2778 = vpop.permute.xlu0 %2777
  %2779 = vrot.lane.b32.xlu0 %v2508, 127
  %v2780 = vpop.permute.xlu0 %2779
  %2781 = vrot.lane.b32.xlu0 %v2509, 127
  %v2782 = vpop.permute.xlu0 %2781
  %2783 = vrot.lane.b32.xlu0 %v2510, 127
  %v2784 = vpop.permute.xlu0 %2783
  %2785 = vrot.lane.b32.xlu0 %v2511, 127
  %v2786 = vpop.permute.xlu0 %2785
  %2787 = vrot.lane.b32.xlu0 %v2512, 127
  %v2788 = vpop.permute.xlu0 %2787
  %2789 = vrot.lane.b32.xlu0 %v2513, 127
  %v2790 = vpop.permute.xlu0 %2789
  %2791 = vrot.lane.b32.xlu0 %v2514, 127
  %v2792 = vpop.permute.xlu0 %2791
  %2793 = vrot.lane.b32.xlu0 %v2515, 127
  %v2794 = vpop.permute.xlu0 %2793
  %2795 = vrot.lane.b32.xlu0 %v2516, 127
  %v2796 = vpop.permute.xlu0 %2795
  %2797 = vrot.lane.b32.xlu0 %v2517, 127
  %v2798 = vpop.permute.xlu0 %2797
  %2799 = vrot.lane.b32.xlu0 %v2518, 127
  %v2800 = vpop.permute.xlu0 %2799
  %2801 = vrot.lane.b32.xlu0 %v2519, 127
  %v2802 = vpop.permute.xlu0 %2801
  %2803 = vrot.lane.b32.xlu0 %v2520, 127
  %v2804 = vpop.permute.xlu0 %2803
  %2805 = vrot.lane.b32.xlu0 %v2521, 127
  %v2806 = vpop.permute.xlu0 %2805
  %2807 = vrot.lane.b32.xlu0 %v2522, 127
  %v2808 = vpop.permute.xlu0 %2807
  %2809 = vrot.lane.b32.xlu0 %v2523, 127
  %v2810 = vpop.permute.xlu0 %2809
  %2811 = vrot.lane.b32.xlu0 %v2524, 127
  %v2812 = vpop.permute.xlu0 %2811
  %vm2813 = vcmask 1039360
  %v2814 = vsel %vm2813, %v2622, %v2624
  %v2815 = vsel %vm2813, %v2624, %v2626
  %v2816 = vsel %vm2813, %v2626, %v2628
  %v2817 = vsel %vm2813, %v2630, %v2632
  %v2818 = vsel %vm2813, %v2632, %v2634
  %v2819 = vsel %vm2813, %v2634, %v2636
  %v2820 = vsel %vm2813, %v2638, %v2640
  %v2821 = vsel %vm2813, %v2640, %v2642
  %v2822 = vsel %vm2813, %v2642, %v2644
  %v2823 = vsel %vm2813, %v2646, %v2648
  %v2824 = vsel %vm2813, %v2648, %v2650
  %v2825 = vsel %vm2813, %v2650, %v2652
  %v2826 = vsel %vm2813, %v2654, %v2656
  %v2827 = vsel %vm2813, %v2656, %v2658
  %v2828 = vsel %vm2813, %v2658, %v2660
  %v2829 = vsel %vm2813, %v2662, %v2664
  %v2830 = vsel %vm2813, %v2664, %v2666
  %v2831 = vsel %vm2813, %v2666, %v2668
  %v2832 = vsel %vm2813, %v2670, %v2672
  %v2833 = vsel %vm2813, %v2672, %v2674
  %v2834 = vsel %vm2813, %v2674, %v2676
  %v2835 = vsel %vm2813, %v2678, %v2680
  %v2836 = vsel %vm2813, %v2680, %v2682
  %v2837 = vsel %vm2813, %v2682, %v2684
  %v2838 = vsel %vm2813, %v2686, %v2688
  %v2839 = vsel %vm2813, %v2688, %v2690
  %v2840 = vsel %vm2813, %v2690, %v2692
  %v2841 = vsel %vm2813, %v2694, %v2696
  %v2842 = vsel %vm2813, %v2696, %v2698
  %v2843 = vsel %vm2813, %v2698, %v2700
  %v2844 = vsel %vm2813, %v2702, %v2704
  %v2845 = vsel %vm2813, %v2704, %v2706
  %v2846 = vsel %vm2813, %v2706, %v2708
  %v2847 = vsel %vm2813, %v2710, %v2712
  %v2848 = vsel %vm2813, %v2712, %v2714
  %v2849 = vsel %vm2813, %v2714, %v2716
  %v2850 = vsel %vm2813, %v2718, %v2720
  %v2851 = vsel %vm2813, %v2720, %v2722
  %v2852 = vsel %vm2813, %v2722, %v2724
  %v2853 = vsel %vm2813, %v2726, %v2728
  %v2854 = vsel %vm2813, %v2728, %v2730
  %v2855 = vsel %vm2813, %v2730, %v2732
  %v2856 = vsel %vm2813, %v2734, %v2736
  %v2857 = vsel %vm2813, %v2736, %v2738
  %v2858 = vsel %vm2813, %v2738, %v2740
  %v2859 = vsel %vm2813, %v2742, %v2744
  %v2860 = vsel %vm2813, %v2744, %v2746
  %v2861 = vsel %vm2813, %v2746, %v2748
  %v2862 = vsel %vm2813, %v2750, %v2752
  %v2863 = vsel %vm2813, %v2752, %v2754
  %v2864 = vsel %vm2813, %v2754, %v2756
  %v2865 = vsel %vm2813, %v2758, %v2760
  %v2866 = vsel %vm2813, %v2760, %v2762
  %v2867 = vsel %vm2813, %v2762, %v2764
  %v2868 = vsel %vm2813, %v2766, %v2768
  %v2869 = vsel %vm2813, %v2768, %v2770
  %v2870 = vsel %vm2813, %v2770, %v2772
  %v2871 = vsel %vm2813, %v2774, %v2776
  %v2872 = vsel %vm2813, %v2776, %v2778
  %v2873 = vsel %vm2813, %v2778, %v2780
  %v2874 = vsel %vm2813, %v2782, %v2784
  %v2875 = vsel %vm2813, %v2784, %v2786
  %v2876 = vsel %vm2813, %v2786, %v2788
  %v2877 = vsel %vm2813, %v2790, %v2792
  %v2878 = vsel %vm2813, %v2792, %v2794
  %v2879 = vsel %vm2813, %v2794, %v2796
  %v2880 = vsel %vm2813, %v2798, %v2800
  %v2881 = vsel %vm2813, %v2800, %v2802
  %v2882 = vsel %vm2813, %v2802, %v2804
  %v2883 = vsel %vm2813, %v2806, %v2808
  %v2884 = vsel %vm2813, %v2808, %v2810
  %v2885 = vsel %vm2813, %v2810, %v2812
  %v2982 = vmax.f32 %v2429, %v2814
  %v2983 = vmax.f32 %v2430, %v2815
  %v2984 = vmax.f32 %v2431, %v2816
  %v2985 = vmax.f32 %v2432, %v2628
  %v2986 = vmax.f32 %v2433, %v2817
  %v2987 = vmax.f32 %v2434, %v2818
  %v2988 = vmax.f32 %v2435, %v2819
  %v2989 = vmax.f32 %v2436, %v2636
  %v2990 = vmax.f32 %v2437, %v2820
  %v2991 = vmax.f32 %v2438, %v2821
  %v2992 = vmax.f32 %v2439, %v2822
  %v2993 = vmax.f32 %v2440, %v2644
  %v2994 = vmax.f32 %v2441, %v2823
  %v2995 = vmax.f32 %v2442, %v2824
  %v2996 = vmax.f32 %v2443, %v2825
  %v2997 = vmax.f32 %v2444, %v2652
  %v2998 = vmax.f32 %v2445, %v2826
  %v2999 = vmax.f32 %v2446, %v2827
  %v3000 = vmax.f32 %v2447, %v2828
  %v3001 = vmax.f32 %v2448, %v2660
  %v3002 = vmax.f32 %v2449, %v2829
  %v3003 = vmax.f32 %v2450, %v2830
  %v3004 = vmax.f32 %v2451, %v2831
  %v3005 = vmax.f32 %v2452, %v2668
  %v3006 = vmax.f32 %v2453, %v2832
  %v3007 = vmax.f32 %v2454, %v2833
  %v3008 = vmax.f32 %v2455, %v2834
  %v3009 = vmax.f32 %v2456, %v2676
  %v3010 = vmax.f32 %v2457, %v2835
  %v3011 = vmax.f32 %v2458, %v2836
  %v3012 = vmax.f32 %v2459, %v2837
  %v3013 = vmax.f32 %v2460, %v2684
  %v3014 = vmax.f32 %v2461, %v2838
  %v3015 = vmax.f32 %v2462, %v2839
  %v3016 = vmax.f32 %v2463, %v2840
  %v3017 = vmax.f32 %v2464, %v2692
  %v3018 = vmax.f32 %v2465, %v2841
  %v3019 = vmax.f32 %v2466, %v2842
  %v3020 = vmax.f32 %v2467, %v2843
  %v3021 = vmax.f32 %v2468, %v2700
  %v3022 = vmax.f32 %v2469, %v2844
  %v3023 = vmax.f32 %v2470, %v2845
  %v3024 = vmax.f32 %v2471, %v2846
  %v3025 = vmax.f32 %v2472, %v2708
  %v3026 = vmax.f32 %v2473, %v2847
  %v3027 = vmax.f32 %v2474, %v2848
  %v3028 = vmax.f32 %v2475, %v2849
  %v3029 = vmax.f32 %v2476, %v2716
  %v3030 = vmax.f32 %v2477, %v2850
  %v3031 = vmax.f32 %v2478, %v2851
  %v3032 = vmax.f32 %v2479, %v2852
  %v3033 = vmax.f32 %v2480, %v2724
  %v3034 = vmax.f32 %v2481, %v2853
  %v3035 = vmax.f32 %v2482, %v2854
  %v3036 = vmax.f32 %v2483, %v2855
  %v3037 = vmax.f32 %v2484, %v2732
  %v3038 = vmax.f32 %v2485, %v2856
  %v3039 = vmax.f32 %v2486, %v2857
  %v3040 = vmax.f32 %v2487, %v2858
  %v3041 = vmax.f32 %v2488, %v2740
  %v3042 = vmax.f32 %v2489, %v2859
  %v3043 = vmax.f32 %v2490, %v2860
  %v3044 = vmax.f32 %v2491, %v2861
  %v3045 = vmax.f32 %v2492, %v2748
  %v3046 = vmax.f32 %v2493, %v2862
  %v3047 = vmax.f32 %v2494, %v2863
  %v3048 = vmax.f32 %v2495, %v2864
  %v3049 = vmax.f32 %v2496, %v2756
  %v3050 = vmax.f32 %v2497, %v2865
  %v3051 = vmax.f32 %v2498, %v2866
  %v3052 = vmax.f32 %v2499, %v2867
  %v3053 = vmax.f32 %v2500, %v2764
  %v3054 = vmax.f32 %v2501, %v2868
  %v3055 = vmax.f32 %v2502, %v2869
  %v3056 = vmax.f32 %v2503, %v2870
  %v3057 = vmax.f32 %v2504, %v2772
  %v3058 = vmax.f32 %v2505, %v2871
  %v3059 = vmax.f32 %v2506, %v2872
  %v3060 = vmax.f32 %v2507, %v2873
  %v3061 = vmax.f32 %v2508, %v2780
  %v3062 = vmax.f32 %v2509, %v2874
  %v3063 = vmax.f32 %v2510, %v2875
  %v3064 = vmax.f32 %v2511, %v2876
  %v3065 = vmax.f32 %v2512, %v2788
  %v3066 = vmax.f32 %v2513, %v2877
  %v3067 = vmax.f32 %v2514, %v2878
  %v3068 = vmax.f32 %v2515, %v2879
  %v3069 = vmax.f32 %v2516, %v2796
  %v3070 = vmax.f32 %v2517, %v2880
  %v3071 = vmax.f32 %v2518, %v2881
  %v3072 = vmax.f32 %v2519, %v2882
  %v3073 = vmax.f32 %v2520, %v2804
  %v3074 = vmax.f32 %v2521, %v2883
  %v3075 = vmax.f32 %v2522, %v2884
  %v3076 = vmax.f32 %v2523, %v2885
  %v3077 = vmax.f32 %v2524, %v2812
  %v3078 = vpack.c.bf16 %v2983, %v2982
  %v3079 = vpack.c.bf16 %v2985, %v2984
  %v3080 = vpack.c.bf16 %v2987, %v2986
  %v3081 = vpack.c.bf16 %v2989, %v2988
  %v3082 = vpack.c.bf16 %v2991, %v2990
  %v3083 = vpack.c.bf16 %v2993, %v2992
  %v3084 = vpack.c.bf16 %v2995, %v2994
  %v3085 = vpack.c.bf16 %v2997, %v2996
  %v3086 = vpack.c.bf16 %v2999, %v2998
  %v3087 = vpack.c.bf16 %v3001, %v3000
  %v3088 = vpack.c.bf16 %v3003, %v3002
  %v3089 = vpack.c.bf16 %v3005, %v3004
  %v3090 = vpack.c.bf16 %v3007, %v3006
  %v3091 = vpack.c.bf16 %v3009, %v3008
  %v3092 = vpack.c.bf16 %v3011, %v3010
  %v3093 = vpack.c.bf16 %v3013, %v3012
  %v3094 = vpack.c.bf16 %v3015, %v3014
  %v3095 = vpack.c.bf16 %v3017, %v3016
  %v3096 = vpack.c.bf16 %v3019, %v3018
  %v3097 = vpack.c.bf16 %v3021, %v3020
  %v3098 = vpack.c.bf16 %v3023, %v3022
  %v3099 = vpack.c.bf16 %v3025, %v3024
  %v3100 = vpack.c.bf16 %v3027, %v3026
  %v3101 = vpack.c.bf16 %v3029, %v3028
  %v3102 = vpack.c.bf16 %v3031, %v3030
  %v3103 = vpack.c.bf16 %v3033, %v3032
  %v3104 = vpack.c.bf16 %v3035, %v3034
  %v3105 = vpack.c.bf16 %v3037, %v3036
  %v3106 = vpack.c.bf16 %v3039, %v3038
  %v3107 = vpack.c.bf16 %v3041, %v3040
  %v3108 = vpack.c.bf16 %v3043, %v3042
  %v3109 = vpack.c.bf16 %v3045, %v3044
  %v3110 = vpack.c.bf16 %v3047, %v3046
  %v3111 = vpack.c.bf16 %v3049, %v3048
  %v3112 = vpack.c.bf16 %v3051, %v3050
  %v3113 = vpack.c.bf16 %v3053, %v3052
  %v3114 = vpack.c.bf16 %v3055, %v3054
  %v3115 = vpack.c.bf16 %v3057, %v3056
  %v3116 = vpack.c.bf16 %v3059, %v3058
  %v3117 = vpack.c.bf16 %v3061, %v3060
  %v3118 = vpack.c.bf16 %v3063, %v3062
  %v3119 = vpack.c.bf16 %v3065, %v3064
  %v3120 = vpack.c.bf16 %v3067, %v3066
  %v3121 = vpack.c.bf16 %v3069, %v3068
  %v3122 = vpack.c.bf16 %v3071, %v3070
  %v3123 = vpack.c.bf16 %v3073, %v3072
  %v3124 = vpack.c.bf16 %v3075, %v3074
  %v3125 = vpack.c.bf16 %v3077, %v3076
  %v3126 = vunpack.c.l.bf16 %v3078
  %v3127 = vunpack.c.h.bf16 %v3078
  %v3128 = vunpack.c.l.bf16 %v3079
  %v3129 = vunpack.c.h.bf16 %v3079
  %v3130 = vunpack.c.l.bf16 %v3082
  %v3131 = vunpack.c.h.bf16 %v3082
  %v3132 = vunpack.c.l.bf16 %v3083
  %v3133 = vunpack.c.h.bf16 %v3083
  %v3134 = vunpack.c.l.bf16 %v3086
  %v3135 = vunpack.c.h.bf16 %v3086
  %v3136 = vunpack.c.l.bf16 %v3087
  %v3137 = vunpack.c.h.bf16 %v3087
  %v3138 = vunpack.c.l.bf16 %v3090
  %v3139 = vunpack.c.h.bf16 %v3090
  %v3140 = vunpack.c.l.bf16 %v3091
  %v3141 = vunpack.c.h.bf16 %v3091
  %v3142 = vunpack.c.l.bf16 %v3094
  %v3143 = vunpack.c.h.bf16 %v3094
  %v3144 = vunpack.c.l.bf16 %v3095
  %v3145 = vunpack.c.h.bf16 %v3095
  %v3146 = vunpack.c.l.bf16 %v3098
  %v3147 = vunpack.c.h.bf16 %v3098
  %v3148 = vunpack.c.l.bf16 %v3099
  %v3149 = vunpack.c.h.bf16 %v3099
  %v3150 = vunpack.c.l.bf16 %v3102
  %v3151 = vunpack.c.h.bf16 %v3102
  %v3152 = vunpack.c.l.bf16 %v3103
  %v3153 = vunpack.c.h.bf16 %v3103
  %v3154 = vunpack.c.l.bf16 %v3106
  %v3155 = vunpack.c.h.bf16 %v3106
  %v3156 = vunpack.c.l.bf16 %v3107
  %v3157 = vunpack.c.h.bf16 %v3107
  %v3158 = vunpack.c.l.bf16 %v3110
  %v3159 = vunpack.c.h.bf16 %v3110
  %v3160 = vunpack.c.l.bf16 %v3111
  %v3161 = vunpack.c.h.bf16 %v3111
  %v3162 = vunpack.c.l.bf16 %v3114
  %v3163 = vunpack.c.h.bf16 %v3114
  %v3164 = vunpack.c.l.bf16 %v3115
  %v3165 = vunpack.c.h.bf16 %v3115
  %v3166 = vunpack.c.l.bf16 %v3118
  %v3167 = vunpack.c.h.bf16 %v3118
  %v3168 = vunpack.c.l.bf16 %v3119
  %v3169 = vunpack.c.h.bf16 %v3119
  %v3170 = vunpack.c.l.bf16 %v3122
  %v3171 = vunpack.c.h.bf16 %v3122
  %v3172 = vunpack.c.l.bf16 %v3123
  %v3173 = vunpack.c.h.bf16 %v3123
  %v3174 = vunpack.c.l.bf16 %v3080
  %v3175 = vunpack.c.h.bf16 %v3080
  %v3176 = vunpack.c.l.bf16 %v3081
  %v3177 = vunpack.c.h.bf16 %v3081
  %v3178 = vunpack.c.l.bf16 %v3084
  %v3179 = vunpack.c.h.bf16 %v3084
  %v3180 = vunpack.c.l.bf16 %v3085
  %v3181 = vunpack.c.h.bf16 %v3085
  %v3182 = vunpack.c.l.bf16 %v3088
  %v3183 = vunpack.c.h.bf16 %v3088
  %v3184 = vunpack.c.l.bf16 %v3089
  %v3185 = vunpack.c.h.bf16 %v3089
  %v3186 = vunpack.c.l.bf16 %v3092
  %v3187 = vunpack.c.h.bf16 %v3092
  %v3188 = vunpack.c.l.bf16 %v3093
  %v3189 = vunpack.c.h.bf16 %v3093
  %v3190 = vunpack.c.l.bf16 %v3096
  %v3191 = vunpack.c.h.bf16 %v3096
  %v3192 = vunpack.c.l.bf16 %v3097
  %v3193 = vunpack.c.h.bf16 %v3097
  %v3194 = vunpack.c.l.bf16 %v3100
  %v3195 = vunpack.c.h.bf16 %v3100
  %v3196 = vunpack.c.l.bf16 %v3101
  %v3197 = vunpack.c.h.bf16 %v3101
  %v3198 = vunpack.c.l.bf16 %v3104
  %v3199 = vunpack.c.h.bf16 %v3104
  %v3200 = vunpack.c.l.bf16 %v3105
  %v3201 = vunpack.c.h.bf16 %v3105
  %v3202 = vunpack.c.l.bf16 %v3108
  %v3203 = vunpack.c.h.bf16 %v3108
  %v3204 = vunpack.c.l.bf16 %v3109
  %v3205 = vunpack.c.h.bf16 %v3109
  %v3206 = vunpack.c.l.bf16 %v3112
  %v3207 = vunpack.c.h.bf16 %v3112
  %v3208 = vunpack.c.l.bf16 %v3113
  %v3209 = vunpack.c.h.bf16 %v3113
  %v3210 = vunpack.c.l.bf16 %v3116
  %v3211 = vunpack.c.h.bf16 %v3116
  %v3212 = vunpack.c.l.bf16 %v3117
  %v3213 = vunpack.c.h.bf16 %v3117
  %v3214 = vunpack.c.l.bf16 %v3120
  %v3215 = vunpack.c.h.bf16 %v3120
  %v3216 = vunpack.c.l.bf16 %v3121
  %v3217 = vunpack.c.h.bf16 %v3121
  %v3218 = vunpack.c.l.bf16 %v3124
  %v3219 = vunpack.c.h.bf16 %v3124
  %v3220 = vunpack.c.l.bf16 %v3125
  %v3221 = vunpack.c.h.bf16 %v3125
  %v3222 = vmax.f32 %v3126, %v3174
  %v3223 = vmax.f32 %v3127, %v3175
  %v3224 = vmax.f32 %v3128, %v3176
  %v3225 = vmax.f32 %v3129, %v3177
  %v3226 = vmax.f32 %v3130, %v3178
  %v3227 = vmax.f32 %v3131, %v3179
  %v3228 = vmax.f32 %v3132, %v3180
  %v3229 = vmax.f32 %v3133, %v3181
  %v3230 = vmax.f32 %v3134, %v3182
  %v3231 = vmax.f32 %v3135, %v3183
  %v3232 = vmax.f32 %v3136, %v3184
  %v3233 = vmax.f32 %v3137, %v3185
  %v3234 = vmax.f32 %v3138, %v3186
  %v3235 = vmax.f32 %v3139, %v3187
  %v3236 = vmax.f32 %v3140, %v3188
  %v3237 = vmax.f32 %v3141, %v3189
  %v3238 = vmax.f32 %v3142, %v3190
  %v3239 = vmax.f32 %v3143, %v3191
  %v3240 = vmax.f32 %v3144, %v3192
  %v3241 = vmax.f32 %v3145, %v3193
  %v3242 = vmax.f32 %v3146, %v3194
  %v3243 = vmax.f32 %v3147, %v3195
  %v3244 = vmax.f32 %v3148, %v3196
  %v3245 = vmax.f32 %v3149, %v3197
  %v3246 = vmax.f32 %v3150, %v3198
  %v3247 = vmax.f32 %v3151, %v3199
  %v3248 = vmax.f32 %v3152, %v3200
  %v3249 = vmax.f32 %v3153, %v3201
  %v3250 = vmax.f32 %v3154, %v3202
  %v3251 = vmax.f32 %v3155, %v3203
  %v3252 = vmax.f32 %v3156, %v3204
  %v3253 = vmax.f32 %v3157, %v3205
  %v3254 = vmax.f32 %v3158, %v3206
  %v3255 = vmax.f32 %v3159, %v3207
  %v3256 = vmax.f32 %v3160, %v3208
  %v3257 = vmax.f32 %v3161, %v3209
  %v3258 = vmax.f32 %v3162, %v3210
  %v3259 = vmax.f32 %v3163, %v3211
  %v3260 = vmax.f32 %v3164, %v3212
  %v3261 = vmax.f32 %v3165, %v3213
  %v3262 = vmax.f32 %v3166, %v3214
  %v3263 = vmax.f32 %v3167, %v3215
  %v3264 = vmax.f32 %v3168, %v3216
  %v3265 = vmax.f32 %v3169, %v3217
  %v3266 = vmax.f32 %v3170, %v3218
  %v3267 = vmax.f32 %v3171, %v3219
  %v3268 = vmax.f32 %v3172, %v3220
  %v3269 = vmax.f32 %v3173, %v3221
  %v3270 = vpack.c.bf16 %v3223, %v3222
  %v3271 = vpack.c.bf16 %v3225, %v3224
  %v3272 = vpack.c.bf16 %v3227, %v3226
  %v3273 = vpack.c.bf16 %v3229, %v3228
  %v3274 = vpack.c.bf16 %v3231, %v3230
  %v3275 = vpack.c.bf16 %v3233, %v3232
  %v3276 = vpack.c.bf16 %v3235, %v3234
  %v3277 = vpack.c.bf16 %v3237, %v3236
  %v3278 = vpack.c.bf16 %v3239, %v3238
  %v3279 = vpack.c.bf16 %v3241, %v3240
  %v3280 = vpack.c.bf16 %v3243, %v3242
  %v3281 = vpack.c.bf16 %v3245, %v3244
  %v3282 = vpack.c.bf16 %v3247, %v3246
  %v3283 = vpack.c.bf16 %v3249, %v3248
  %v3284 = vpack.c.bf16 %v3251, %v3250
  %v3285 = vpack.c.bf16 %v3253, %v3252
  %v3286 = vpack.c.bf16 %v3255, %v3254
  %v3287 = vpack.c.bf16 %v3257, %v3256
  %v3288 = vpack.c.bf16 %v3259, %v3258
  %v3289 = vpack.c.bf16 %v3261, %v3260
  %v3290 = vpack.c.bf16 %v3263, %v3262
  %v3291 = vpack.c.bf16 %v3265, %v3264
  %v3292 = vpack.c.bf16 %v3267, %v3266
  %v3293 = vpack.c.bf16 %v3269, %v3268
  %v3294 = vld [vmem:[%s3] sm:$0xff]
  %v3295 = vld [vmem:[%s3 + $0x8] sm:$0xff]
  %v3296 = vld [vmem:[%s3 + $0x10] sm:$0xff]
  %v3297 = vld [vmem:[%s3 + $0x18] sm:$0xff]
  %v3298 = vld [vmem:[%s3 + $0x20] sm:$0xff]
  %v3299 = vld [vmem:[%s3 + $0x28] sm:$0xff]
  %v3300 = vld [vmem:[%s3 + $0x30] sm:$0xff]
  %v3301 = vld [vmem:[%s3 + $0x38] sm:$0xff]
  %v3302 = vld [vmem:[%s3 + $0x40] sm:$0xff]
  %v3303 = vld [vmem:[%s3 + $0x48] sm:$0xff]
  %v3304 = vld [vmem:[%s3 + $0x50] sm:$0xff]
  %v3305 = vld [vmem:[%s3 + $0x58] sm:$0xff]
  %v3306 = vld [vmem:[%s3 + $0x60] sm:$0xff]
  %v3307 = vld [vmem:[%s3 + $0x68] sm:$0xff]
  %v3308 = vld [vmem:[%s3 + $0x70] sm:$0xff]
  %v3309 = vld [vmem:[%s3 + $0x78] sm:$0xff]
  %v3310 = vld [vmem:[%s3 + $0x80] sm:$0xff]
  %v3311 = vld [vmem:[%s3 + $0x88] sm:$0xff]
  %v3312 = vld [vmem:[%s3 + $0x90] sm:$0xff]
  %v3313 = vld [vmem:[%s3 + $0x98] sm:$0xff]
  %v3314 = vld [vmem:[%s3 + $0xa0] sm:$0xff]
  %v3315 = vld [vmem:[%s3 + $0xa8] sm:$0xff]
  %v3316 = vld [vmem:[%s3 + $0xb0] sm:$0xff]
  %v3317 = vld [vmem:[%s3 + $0xb8] sm:$0xff]
  %v3318 = vld [vmem:[%s3 + $0xc0] sm:$0xff]
  %v3319 = vld [vmem:[%s3 + $0xc8] sm:$0xff]
  %v3320 = vld [vmem:[%s3 + $0xd0] sm:$0xff]
  %v3321 = vld [vmem:[%s3 + $0xd8] sm:$0xff]
  %v3322 = vld [vmem:[%s3 + $0xe0] sm:$0xff]
  %v3323 = vld [vmem:[%s3 + $0xe8] sm:$0xff]
  %v3324 = vld [vmem:[%s3 + $0xf0] sm:$0xff]
  %v3325 = vld [vmem:[%s3 + $0xf8] sm:$0xff]
  %v3326 = vld [vmem:[%s3 + $0x100] sm:$0xff]
  %v3327 = vld [vmem:[%s3 + $0x108] sm:$0xff]
  %v3328 = vld [vmem:[%s3 + $0x110] sm:$0xff]
  %v3329 = vld [vmem:[%s3 + $0x118] sm:$0xff]
  %v3330 = vld [vmem:[%s3 + $0x120] sm:$0xff]
  %v3331 = vld [vmem:[%s3 + $0x128] sm:$0xff]
  %v3332 = vld [vmem:[%s3 + $0x130] sm:$0xff]
  %v3333 = vld [vmem:[%s3 + $0x138] sm:$0xff]
  %v3334 = vld [vmem:[%s3 + $0x140] sm:$0xff]
  %v3335 = vld [vmem:[%s3 + $0x148] sm:$0xff]
  %v3336 = vld [vmem:[%s3 + $0x150] sm:$0xff]
  %v3337 = vld [vmem:[%s3 + $0x158] sm:$0xff]
  %v3338 = vld [vmem:[%s3 + $0x160] sm:$0xff]
  %v3339 = vld [vmem:[%s3 + $0x168] sm:$0xff]
  %v3340 = vld [vmem:[%s3 + $0x170] sm:$0xff]
  %v3341 = vld [vmem:[%s3 + $0x178] sm:$0xff]
  %v3342 = vld [vmem:[%s3 + $0x180] sm:$0xff]
  %v3343 = vld [vmem:[%s3 + $0x188] sm:$0xff]
  %v3344 = vld [vmem:[%s3 + $0x190] sm:$0xff]
  %v3345 = vld [vmem:[%s3 + $0x198] sm:$0xff]
  %v3346 = vld [vmem:[%s3 + $0x1a0] sm:$0xff]
  %v3347 = vld [vmem:[%s3 + $0x1a8] sm:$0xff]
  %v3348 = vld [vmem:[%s3 + $0x1b0] sm:$0xff]
  %v3349 = vld [vmem:[%s3 + $0x1b8] sm:$0xff]
  %v3350 = vld [vmem:[%s3 + $0x1c0] sm:$0xff]
  %v3351 = vld [vmem:[%s3 + $0x1c8] sm:$0xff]
  %v3352 = vld [vmem:[%s3 + $0x1d0] sm:$0xff]
  %v3353 = vld [vmem:[%s3 + $0x1d8] sm:$0xff]
  %v3354 = vld [vmem:[%s3 + $0x1e0] sm:$0xff]
  %v3355 = vld [vmem:[%s3 + $0x1e8] sm:$0xff]
  %v3356 = vld [vmem:[%s3 + $0x1f0] sm:$0xff]
  %v3357 = vld [vmem:[%s3 + $0x1f8] sm:$0xff]
  %v3358 = vld [vmem:[%s3 + $0x200] sm:$0xff]
  %v3359 = vld [vmem:[%s3 + $0x208] sm:$0xff]
  %v3360 = vld [vmem:[%s3 + $0x210] sm:$0xff]
  %v3361 = vld [vmem:[%s3 + $0x218] sm:$0xff]
  %v3362 = vld [vmem:[%s3 + $0x220] sm:$0xff]
  %v3363 = vld [vmem:[%s3 + $0x228] sm:$0xff]
  %v3364 = vld [vmem:[%s3 + $0x230] sm:$0xff]
  %v3365 = vld [vmem:[%s3 + $0x238] sm:$0xff]
  %v3366 = vld [vmem:[%s3 + $0x240] sm:$0xff]
  %v3367 = vld [vmem:[%s3 + $0x248] sm:$0xff]
  %v3368 = vld [vmem:[%s3 + $0x250] sm:$0xff]
  %v3369 = vld [vmem:[%s3 + $0x258] sm:$0xff]
  %v3370 = vld [vmem:[%s3 + $0x260] sm:$0xff]
  %v3371 = vld [vmem:[%s3 + $0x268] sm:$0xff]
  %v3372 = vld [vmem:[%s3 + $0x270] sm:$0xff]
  %v3373 = vld [vmem:[%s3 + $0x278] sm:$0xff]
  %v3374 = vld [vmem:[%s3 + $0x280] sm:$0xff]
  %v3375 = vld [vmem:[%s3 + $0x288] sm:$0xff]
  %v3376 = vld [vmem:[%s3 + $0x290] sm:$0xff]
  %v3377 = vld [vmem:[%s3 + $0x298] sm:$0xff]
  %v3378 = vld [vmem:[%s3 + $0x2a0] sm:$0xff]
  %v3379 = vld [vmem:[%s3 + $0x2a8] sm:$0xff]
  %v3380 = vld [vmem:[%s3 + $0x2b0] sm:$0xff]
  %v3381 = vld [vmem:[%s3 + $0x2b8] sm:$0xff]
  %v3382 = vld [vmem:[%s3 + $0x2c0] sm:$0xff]
  %v3383 = vld [vmem:[%s3 + $0x2c8] sm:$0xff]
  %v3384 = vld [vmem:[%s3 + $0x2d0] sm:$0xff]
  %v3385 = vld [vmem:[%s3 + $0x2d8] sm:$0xff]
  %v3386 = vld [vmem:[%s3 + $0x2e0] sm:$0xff]
  %v3387 = vld [vmem:[%s3 + $0x2e8] sm:$0xff]
  %v3388 = vld [vmem:[%s3 + $0x2f0] sm:$0xff]
  %v3389 = vld [vmem:[%s3 + $0x2f8] sm:$0xff]
  %v3390 = vld [vmem:[%s3 + $0x300] sm:$0xff]
  %v3391 = vld [vmem:[%s3 + $0x308] sm:$0xff]
  %v3392 = vld [vmem:[%s3 + $0x310] sm:$0xff]
  %v3393 = vld [vmem:[%s3 + $0x318] sm:$0xff]
  %v3394 = vld [vmem:[%s3 + $0x320] sm:$0xff]
  %v3395 = vld [vmem:[%s3 + $0x328] sm:$0xff]
  %v3396 = vld [vmem:[%s3 + $0x330] sm:$0xff]
  %v3397 = vld [vmem:[%s3 + $0x338] sm:$0xff]
  %v3398 = vld [vmem:[%s3 + $0x340] sm:$0xff]
  %v3399 = vld [vmem:[%s3 + $0x348] sm:$0xff]
  %v3400 = vld [vmem:[%s3 + $0x350] sm:$0xff]
  %v3401 = vld [vmem:[%s3 + $0x358] sm:$0xff]
  %v3402 = vld [vmem:[%s3 + $0x360] sm:$0xff]
  %v3403 = vld [vmem:[%s3 + $0x368] sm:$0xff]
  %v3404 = vld [vmem:[%s3 + $0x370] sm:$0xff]
  %v3405 = vld [vmem:[%s3 + $0x378] sm:$0xff]
  %v3406 = vld [vmem:[%s3 + $0x380] sm:$0xff]
  %v3407 = vld [vmem:[%s3 + $0x388] sm:$0xff]
  %v3408 = vld [vmem:[%s3 + $0x390] sm:$0xff]
  %v3409 = vld [vmem:[%s3 + $0x398] sm:$0xff]
  %v3410 = vld [vmem:[%s3 + $0x3a0] sm:$0xff]
  %v3411 = vld [vmem:[%s3 + $0x3a8] sm:$0xff]
  %v3412 = vld [vmem:[%s3 + $0x3b0] sm:$0xff]
  %v3413 = vld [vmem:[%s3 + $0x3b8] sm:$0xff]
  %s3414 = scalar_lea.vmem %s3, 960
  %v3415 = vld [vmem:[%s3414] sm:$0xff]
  %v3416 = vld [vmem:[%s3414 + $0x8] sm:$0xff]
  %v3417 = vld [vmem:[%s3414 + $0x10] sm:$0xff]
  %v3418 = vld [vmem:[%s3414 + $0x18] sm:$0xff]
  %v3419 = vld [vmem:[%s3414 + $0x20] sm:$0xff]
  %v3420 = vld [vmem:[%s3414 + $0x28] sm:$0xff]
  %v3421 = vld [vmem:[%s3414 + $0x30] sm:$0xff]
  %v3422 = vld [vmem:[%s3414 + $0x38] sm:$0xff]
  %v3423 = vld [vmem:[%s3414 + $0x40] sm:$0xff]
  %v3424 = vld [vmem:[%s3414 + $0x48] sm:$0xff]
  %v3425 = vld [vmem:[%s3414 + $0x50] sm:$0xff]
  %v3426 = vld [vmem:[%s3414 + $0x58] sm:$0xff]
  %v3427 = vld [vmem:[%s3414 + $0x60] sm:$0xff]
  %v3428 = vld [vmem:[%s3414 + $0x68] sm:$0xff]
  %v3429 = vld [vmem:[%s3414 + $0x70] sm:$0xff]
  %v3430 = vld [vmem:[%s3414 + $0x78] sm:$0xff]
  %v3431 = vld [vmem:[%s3414 + $0x80] sm:$0xff]
  %v3432 = vld [vmem:[%s3414 + $0x88] sm:$0xff]
  %v3433 = vld [vmem:[%s3414 + $0x90] sm:$0xff]
  %v3434 = vld [vmem:[%s3414 + $0x98] sm:$0xff]
  %v3435 = vld [vmem:[%s3414 + $0xa0] sm:$0xff]
  %v3436 = vld [vmem:[%s3414 + $0xa8] sm:$0xff]
  %v3437 = vld [vmem:[%s3414 + $0xb0] sm:$0xff]
  %v3438 = vld [vmem:[%s3414 + $0xb8] sm:$0xff]
  %v3439 = vld [vmem:[%s3414 + $0xc0] sm:$0xff]
  %v3440 = vld [vmem:[%s3414 + $0xc8] sm:$0xff]
  %v3441 = vld [vmem:[%s3414 + $0xd0] sm:$0xff]
  %v3442 = vld [vmem:[%s3414 + $0xd8] sm:$0xff]
  %v3443 = vld [vmem:[%s3414 + $0xe0] sm:$0xff]
  %v3444 = vld [vmem:[%s3414 + $0xe8] sm:$0xff]
  %v3445 = vld [vmem:[%s3414 + $0xf0] sm:$0xff]
  %v3446 = vld [vmem:[%s3414 + $0xf8] sm:$0xff]
  %v3447 = vld [vmem:[%s3414 + $0x100] sm:$0xff]
  %v3448 = vld [vmem:[%s3414 + $0x108] sm:$0xff]
  %v3449 = vld [vmem:[%s3414 + $0x110] sm:$0xff]
  %v3450 = vld [vmem:[%s3414 + $0x118] sm:$0xff]
  %v3451 = vld [vmem:[%s3414 + $0x120] sm:$0xff]
  %v3452 = vld [vmem:[%s3414 + $0x128] sm:$0xff]
  %v3453 = vld [vmem:[%s3414 + $0x130] sm:$0xff]
  %v3454 = vld [vmem:[%s3414 + $0x138] sm:$0xff]
  %v3455 = vld [vmem:[%s3414 + $0x140] sm:$0xff]
  %v3456 = vld [vmem:[%s3414 + $0x148] sm:$0xff]
  %v3457 = vld [vmem:[%s3414 + $0x150] sm:$0xff]
  %v3458 = vld [vmem:[%s3414 + $0x158] sm:$0xff]
  %v3459 = vld [vmem:[%s3414 + $0x160] sm:$0xff]
  %v3460 = vld [vmem:[%s3414 + $0x168] sm:$0xff]
  %v3461 = vld [vmem:[%s3414 + $0x170] sm:$0xff]
  %v3462 = vld [vmem:[%s3414 + $0x178] sm:$0xff]
  %v3463 = vld [vmem:[%s3414 + $0x180] sm:$0xff]
  %v3464 = vld [vmem:[%s3414 + $0x188] sm:$0xff]
  %v3465 = vld [vmem:[%s3414 + $0x190] sm:$0xff]
  %v3466 = vld [vmem:[%s3414 + $0x198] sm:$0xff]
  %v3467 = vld [vmem:[%s3414 + $0x1a0] sm:$0xff]
  %v3468 = vld [vmem:[%s3414 + $0x1a8] sm:$0xff]
  %v3469 = vld [vmem:[%s3414 + $0x1b0] sm:$0xff]
  %v3470 = vld [vmem:[%s3414 + $0x1b8] sm:$0xff]
  %v3471 = vld [vmem:[%s3414 + $0x1c0] sm:$0xff]
  %v3472 = vld [vmem:[%s3414 + $0x1c8] sm:$0xff]
  %v3473 = vld [vmem:[%s3414 + $0x1d0] sm:$0xff]
  %v3474 = vld [vmem:[%s3414 + $0x1d8] sm:$0xff]
  %v3475 = vld [vmem:[%s3414 + $0x1e0] sm:$0xff]
  %v3476 = vld [vmem:[%s3414 + $0x1e8] sm:$0xff]
  %v3477 = vld [vmem:[%s3414 + $0x1f0] sm:$0xff]
  %v3478 = vld [vmem:[%s3414 + $0x1f8] sm:$0xff]
  %v3479 = vld [vmem:[%s3414 + $0x200] sm:$0xff]
  %v3480 = vld [vmem:[%s3414 + $0x208] sm:$0xff]
  %v3481 = vld [vmem:[%s3414 + $0x210] sm:$0xff]
  %v3482 = vld [vmem:[%s3414 + $0x218] sm:$0xff]
  %v3483 = vld [vmem:[%s3414 + $0x220] sm:$0xff]
  %v3484 = vld [vmem:[%s3414 + $0x228] sm:$0xff]
  %v3485 = vld [vmem:[%s3414 + $0x230] sm:$0xff]
  %v3486 = vld [vmem:[%s3414 + $0x238] sm:$0xff]
  %v3487 = vld [vmem:[%s3414 + $0x240] sm:$0xff]
  %v3488 = vld [vmem:[%s3414 + $0x248] sm:$0xff]
  %v3489 = vld [vmem:[%s3414 + $0x250] sm:$0xff]
  %v3490 = vld [vmem:[%s3414 + $0x258] sm:$0xff]
  %v3491 = vld [vmem:[%s3414 + $0x260] sm:$0xff]
  %v3492 = vld [vmem:[%s3414 + $0x268] sm:$0xff]
  %v3493 = vld [vmem:[%s3414 + $0x270] sm:$0xff]
  %v3494 = vld [vmem:[%s3414 + $0x278] sm:$0xff]
  %v3495 = vld [vmem:[%s3414 + $0x280] sm:$0xff]
  %v3496 = vld [vmem:[%s3414 + $0x288] sm:$0xff]
  %v3497 = vld [vmem:[%s3414 + $0x290] sm:$0xff]
  %v3498 = vld [vmem:[%s3414 + $0x298] sm:$0xff]
  %v3499 = vld [vmem:[%s3414 + $0x2a0] sm:$0xff]
  %v3500 = vld [vmem:[%s3414 + $0x2a8] sm:$0xff]
  %v3501 = vld [vmem:[%s3414 + $0x2b0] sm:$0xff]
  %v3502 = vld [vmem:[%s3414 + $0x2b8] sm:$0xff]
  %v3503 = vld [vmem:[%s3414 + $0x2c0] sm:$0xff]
  %v3504 = vld [vmem:[%s3414 + $0x2c8] sm:$0xff]
  %v3505 = vld [vmem:[%s3414 + $0x2d0] sm:$0xff]
  %v3506 = vld [vmem:[%s3414 + $0x2d8] sm:$0xff]
  %v3507 = vld [vmem:[%s3414 + $0x2e0] sm:$0xff]
  %v3508 = vld [vmem:[%s3414 + $0x2e8] sm:$0xff]
  %v3509 = vld [vmem:[%s3414 + $0x2f0] sm:$0xff]
  %v3510 = vld [vmem:[%s3414 + $0x2f8] sm:$0xff]
  %v3511 = vld [vmem:[%s3414 + $0x300] sm:$0xff]
  %v3512 = vld [vmem:[%s3414 + $0x308] sm:$0xff]
  %v3513 = vld [vmem:[%s3414 + $0x310] sm:$0xff]
  %v3514 = vld [vmem:[%s3414 + $0x318] sm:$0xff]
  %v3515 = vld [vmem:[%s3414 + $0x320] sm:$0xff]
  %v3516 = vld [vmem:[%s3414 + $0x328] sm:$0xff]
  %v3517 = vld [vmem:[%s3414 + $0x330] sm:$0xff]
  %v3518 = vld [vmem:[%s3414 + $0x338] sm:$0xff]
  %v3519 = vld [vmem:[%s3414 + $0x340] sm:$0xff]
  %v3520 = vld [vmem:[%s3414 + $0x348] sm:$0xff]
  %v3521 = vld [vmem:[%s3414 + $0x350] sm:$0xff]
  %v3522 = vld [vmem:[%s3414 + $0x358] sm:$0xff]
  %v3523 = vld [vmem:[%s3414 + $0x360] sm:$0xff]
  %v3524 = vld [vmem:[%s3414 + $0x368] sm:$0xff]
  %v3525 = vld [vmem:[%s3414 + $0x370] sm:$0xff]
  %v3526 = vld [vmem:[%s3414 + $0x378] sm:$0xff]
  %v3527 = vld [vmem:[%s3414 + $0x380] sm:$0xff]
  %v3528 = vld [vmem:[%s3414 + $0x388] sm:$0xff]
  %v3529 = vld [vmem:[%s3414 + $0x390] sm:$0xff]
  %v3530 = vld [vmem:[%s3414 + $0x398] sm:$0xff]
  %v3531 = vld [vmem:[%s3414 + $0x3a0] sm:$0xff]
  %v3532 = vld [vmem:[%s3414 + $0x3a8] sm:$0xff]
  %v3533 = vld [vmem:[%s3414 + $0x3b0] sm:$0xff]
  %v3534 = vld [vmem:[%s3414 + $0x3b8] sm:$0xff]
  %v3551 = vunpack.c.l.b16 %v3272
  %v3552 = vunpack.c.h.b16 %v3272
  %v3553 = vunpack.c.l.b16 %v3273
  %v3554 = vunpack.c.h.b16 %v3273
  %v3555 = vunpack.c.l.b16 %v3274
  %v3556 = vunpack.c.h.b16 %v3274
  %v3557 = vunpack.c.l.b16 %v3275
  %v3558 = vunpack.c.h.b16 %v3275
  %v3559 = vunpack.c.l.b16 %v3276
  %v3560 = vunpack.c.h.b16 %v3276
  %v3561 = vunpack.c.l.b16 %v3277
  %v3562 = vunpack.c.h.b16 %v3277
  %v3563 = vunpack.c.l.b16 %v3278
  %v3564 = vunpack.c.h.b16 %v3278
  %v3565 = vunpack.c.l.b16 %v3279
  %v3566 = vunpack.c.h.b16 %v3279
  %v3567 = vunpack.c.l.b16 %v3280
  %v3568 = vunpack.c.h.b16 %v3280
  %v3569 = vunpack.c.l.b16 %v3281
  %v3570 = vunpack.c.h.b16 %v3281
  %v3571 = vunpack.c.l.b16 %v3282
  %v3572 = vunpack.c.h.b16 %v3282
  %v3573 = vunpack.c.l.b16 %v3283
  %v3574 = vunpack.c.h.b16 %v3283
  %v3575 = vunpack.c.l.b16 %v3284
  %v3576 = vunpack.c.h.b16 %v3284
  %v3577 = vunpack.c.l.b16 %v3285
  %v3578 = vunpack.c.h.b16 %v3285
  %v3579 = vunpack.c.l.b16 %v3286
  %v3580 = vunpack.c.h.b16 %v3286
  %v3581 = vunpack.c.l.b16 %v3287
  %v3582 = vunpack.c.h.b16 %v3287
  %v3583 = vpack.c.b16 %v3555, %v3551
  %v3584 = vpack.c.b16 %v3556, %v3552
  %v3585 = vpack.c.b16 %v3557, %v3553
  %v3586 = vpack.c.b16 %v3558, %v3554
  %v3587 = vpack.c.b16 %v3563, %v3559
  %v3588 = vpack.c.b16 %v3564, %v3560
  %v3589 = vpack.c.b16 %v3565, %v3561
  %v3590 = vpack.c.b16 %v3566, %v3562
  %v3591 = vpack.c.b16 %v3571, %v3567
  %v3592 = vpack.c.b16 %v3572, %v3568
  %v3593 = vpack.c.b16 %v3573, %v3569
  %v3594 = vpack.c.b16 %v3574, %v3570
  %v3595 = vpack.c.b16 %v3579, %v3575
  %v3596 = vpack.c.b16 %v3580, %v3576
  %v3597 = vpack.c.b16 %v3581, %v3577
  %v3598 = vpack.c.b16 %v3582, %v3578
  %v3731 = vunpack.c.l.b16 %v3415
  %v3732 = vunpack.c.h.b16 %v3415
  %v3733 = vunpack.c.l.b16 %v3416
  %v3734 = vunpack.c.h.b16 %v3416
  %v3735 = vunpack.c.l.b16 %v3417
  %v3736 = vunpack.c.h.b16 %v3417
  %v3737 = vunpack.c.l.b16 %v3418
  %v3738 = vunpack.c.h.b16 %v3418
  %v3739 = vunpack.c.l.b16 %v3419
  %v3740 = vunpack.c.h.b16 %v3419
  %v3741 = vunpack.c.l.b16 %v3420
  %v3742 = vunpack.c.h.b16 %v3420
  %v3743 = vunpack.c.l.b16 %v3421
  %v3744 = vunpack.c.h.b16 %v3421
  %v3745 = vunpack.c.l.b16 %v3422
  %v3746 = vunpack.c.h.b16 %v3422
  %v3747 = vunpack.c.l.b16 %v3423
  %v3748 = vunpack.c.h.b16 %v3423
  %v3749 = vunpack.c.l.b16 %v3424
  %v3750 = vunpack.c.h.b16 %v3424
  %v3751 = vunpack.c.l.b16 %v3425
  %v3752 = vunpack.c.h.b16 %v3425
  %v3753 = vunpack.c.l.b16 %v3426
  %v3754 = vunpack.c.h.b16 %v3426
  %v3755 = vunpack.c.l.b16 %v3427
  %v3756 = vunpack.c.h.b16 %v3427
  %v3757 = vunpack.c.l.b16 %v3428
  %v3758 = vunpack.c.h.b16 %v3428
  %v3759 = vunpack.c.l.b16 %v3429
  %v3760 = vunpack.c.h.b16 %v3429
  %v3761 = vunpack.c.l.b16 %v3430
  %v3762 = vunpack.c.h.b16 %v3430
  %v3763 = vunpack.c.l.b16 %v3431
  %v3764 = vunpack.c.h.b16 %v3431
  %v3765 = vunpack.c.l.b16 %v3432
  %v3766 = vunpack.c.h.b16 %v3432
  %v3767 = vunpack.c.l.b16 %v3433
  %v3768 = vunpack.c.h.b16 %v3433
  %v3769 = vunpack.c.l.b16 %v3434
  %v3770 = vunpack.c.h.b16 %v3434
  %v3771 = vunpack.c.l.b16 %v3435
  %v3772 = vunpack.c.h.b16 %v3435
  %v3773 = vunpack.c.l.b16 %v3436
  %v3774 = vunpack.c.h.b16 %v3436
  %v3775 = vunpack.c.l.b16 %v3437
  %v3776 = vunpack.c.h.b16 %v3437
  %v3777 = vunpack.c.l.b16 %v3438
  %v3778 = vunpack.c.h.b16 %v3438
  %v3779 = vunpack.c.l.b16 %v3439
  %v3780 = vunpack.c.h.b16 %v3439
  %v3781 = vunpack.c.l.b16 %v3440
  %v3782 = vunpack.c.h.b16 %v3440
  %v3783 = vunpack.c.l.b16 %v3441
  %v3784 = vunpack.c.h.b16 %v3441
  %v3785 = vunpack.c.l.b16 %v3442
  %v3786 = vunpack.c.h.b16 %v3442
  %v3787 = vunpack.c.l.b16 %v3443
  %v3788 = vunpack.c.h.b16 %v3443
  %v3789 = vunpack.c.l.b16 %v3444
  %v3790 = vunpack.c.h.b16 %v3444
  %v3791 = vunpack.c.l.b16 %v3445
  %v3792 = vunpack.c.h.b16 %v3445
  %v3793 = vunpack.c.l.b16 %v3446
  %v3794 = vunpack.c.h.b16 %v3446
  %v3795 = vunpack.c.l.b16 %v3447
  %v3796 = vunpack.c.h.b16 %v3447
  %v3797 = vunpack.c.l.b16 %v3448
  %v3798 = vunpack.c.h.b16 %v3448
  %v3799 = vunpack.c.l.b16 %v3449
  %v3800 = vunpack.c.h.b16 %v3449
  %v3801 = vunpack.c.l.b16 %v3450
  %v3802 = vunpack.c.h.b16 %v3450
  %v3803 = vunpack.c.l.b16 %v3451
  %v3804 = vunpack.c.h.b16 %v3451
  %v3805 = vunpack.c.l.b16 %v3452
  %v3806 = vunpack.c.h.b16 %v3452
  %v3807 = vunpack.c.l.b16 %v3453
  %v3808 = vunpack.c.h.b16 %v3453
  %v3809 = vunpack.c.l.b16 %v3454
  %v3810 = vunpack.c.h.b16 %v3454
  %v3811 = vunpack.c.l.b16 %v3455
  %v3812 = vunpack.c.h.b16 %v3455
  %v3813 = vunpack.c.l.b16 %v3456
  %v3814 = vunpack.c.h.b16 %v3456
  %v3815 = vunpack.c.l.b16 %v3457
  %v3816 = vunpack.c.h.b16 %v3457
  %v3817 = vunpack.c.l.b16 %v3458
  %v3818 = vunpack.c.h.b16 %v3458
  %v3819 = vunpack.c.l.b16 %v3459
  %v3820 = vunpack.c.h.b16 %v3459
  %v3821 = vunpack.c.l.b16 %v3460
  %v3822 = vunpack.c.h.b16 %v3460
  %v3823 = vunpack.c.l.b16 %v3461
  %v3824 = vunpack.c.h.b16 %v3461
  %v3825 = vunpack.c.l.b16 %v3462
  %v3826 = vunpack.c.h.b16 %v3462
  %v3827 = vunpack.c.l.b16 %v3463
  %v3828 = vunpack.c.h.b16 %v3463
  %v3829 = vunpack.c.l.b16 %v3464
  %v3830 = vunpack.c.h.b16 %v3464
  %v3831 = vunpack.c.l.b16 %v3465
  %v3832 = vunpack.c.h.b16 %v3465
  %v3833 = vunpack.c.l.b16 %v3466
  %v3834 = vunpack.c.h.b16 %v3466
  %v3835 = vunpack.c.l.b16 %v3467
  %v3836 = vunpack.c.h.b16 %v3467
  %v3837 = vunpack.c.l.b16 %v3468
  %v3838 = vunpack.c.h.b16 %v3468
  %v3839 = vunpack.c.l.b16 %v3469
  %v3840 = vunpack.c.h.b16 %v3469
  %v3841 = vunpack.c.l.b16 %v3470
  %v3842 = vunpack.c.h.b16 %v3470
  %v3843 = vunpack.c.l.b16 %v3471
  %v3844 = vunpack.c.h.b16 %v3471
  %v3845 = vunpack.c.l.b16 %v3472
  %v3846 = vunpack.c.h.b16 %v3472
  %v3847 = vunpack.c.l.b16 %v3473
  %v3848 = vunpack.c.h.b16 %v3473
  %v3849 = vunpack.c.l.b16 %v3474
  %v3850 = vunpack.c.h.b16 %v3474
  %v3851 = vunpack.c.l.b16 %v3475
  %v3852 = vunpack.c.h.b16 %v3475
  %v3853 = vunpack.c.l.b16 %v3476
  %v3854 = vunpack.c.h.b16 %v3476
  %v3855 = vunpack.c.l.b16 %v3477
  %v3856 = vunpack.c.h.b16 %v3477
  %v3857 = vunpack.c.l.b16 %v3478
  %v3858 = vunpack.c.h.b16 %v3478
  %v3859 = vunpack.c.l.b16 %v3479
  %v3860 = vunpack.c.h.b16 %v3479
  %v3861 = vunpack.c.l.b16 %v3480
  %v3862 = vunpack.c.h.b16 %v3480
  %v3863 = vunpack.c.l.b16 %v3481
  %v3864 = vunpack.c.h.b16 %v3481
  %v3865 = vunpack.c.l.b16 %v3482
  %v3866 = vunpack.c.h.b16 %v3482
  %v3867 = vunpack.c.l.b16 %v3483
  %v3868 = vunpack.c.h.b16 %v3483
  %v3869 = vunpack.c.l.b16 %v3484
  %v3870 = vunpack.c.h.b16 %v3484
  %v3871 = vunpack.c.l.b16 %v3485
  %v3872 = vunpack.c.h.b16 %v3485
  %v3873 = vunpack.c.l.b16 %v3486
  %v3874 = vunpack.c.h.b16 %v3486
  %v3875 = vunpack.c.l.b16 %v3487
  %v3876 = vunpack.c.h.b16 %v3487
  %v3877 = vunpack.c.l.b16 %v3488
  %v3878 = vunpack.c.h.b16 %v3488
  %v3879 = vunpack.c.l.b16 %v3489
  %v3880 = vunpack.c.h.b16 %v3489
  %v3881 = vunpack.c.l.b16 %v3490
  %v3882 = vunpack.c.h.b16 %v3490
  %v3883 = vunpack.c.l.b16 %v3491
  %v3884 = vunpack.c.h.b16 %v3491
  %v3885 = vunpack.c.l.b16 %v3492
  %v3886 = vunpack.c.h.b16 %v3492
  %v3887 = vunpack.c.l.b16 %v3493
  %v3888 = vunpack.c.h.b16 %v3493
  %v3889 = vunpack.c.l.b16 %v3494
  %v3890 = vunpack.c.h.b16 %v3494
  %v3891 = vunpack.c.l.b16 %v3495
  %v3892 = vunpack.c.h.b16 %v3495
  %v3893 = vunpack.c.l.b16 %v3496
  %v3894 = vunpack.c.h.b16 %v3496
  %v3895 = vunpack.c.l.b16 %v3497
  %v3896 = vunpack.c.h.b16 %v3497
  %v3897 = vunpack.c.l.b16 %v3498
  %v3898 = vunpack.c.h.b16 %v3498
  %v3899 = vunpack.c.l.b16 %v3499
  %v3900 = vunpack.c.h.b16 %v3499
  %v3901 = vunpack.c.l.b16 %v3500
  %v3902 = vunpack.c.h.b16 %v3500
  %v3903 = vunpack.c.l.b16 %v3501
  %v3904 = vunpack.c.h.b16 %v3501
  %v3905 = vunpack.c.l.b16 %v3502
  %v3906 = vunpack.c.h.b16 %v3502
  %v3907 = vunpack.c.l.b16 %v3503
  %v3908 = vunpack.c.h.b16 %v3503
  %v3909 = vunpack.c.l.b16 %v3504
  %v3910 = vunpack.c.h.b16 %v3504
  %v3911 = vunpack.c.l.b16 %v3505
  %v3912 = vunpack.c.h.b16 %v3505
  %v3913 = vunpack.c.l.b16 %v3506
  %v3914 = vunpack.c.h.b16 %v3506
  %v3915 = vunpack.c.l.b16 %v3507
  %v3916 = vunpack.c.h.b16 %v3507
  %v3917 = vunpack.c.l.b16 %v3508
  %v3918 = vunpack.c.h.b16 %v3508
  %v3919 = vunpack.c.l.b16 %v3509
  %v3920 = vunpack.c.h.b16 %v3509
  %v3921 = vunpack.c.l.b16 %v3510
  %v3922 = vunpack.c.h.b16 %v3510
  %v3923 = vunpack.c.l.b16 %v3511
  %v3924 = vunpack.c.h.b16 %v3511
  %v3925 = vunpack.c.l.b16 %v3512
  %v3926 = vunpack.c.h.b16 %v3512
  %v3927 = vunpack.c.l.b16 %v3513
  %v3928 = vunpack.c.h.b16 %v3513
  %v3929 = vunpack.c.l.b16 %v3514
  %v3930 = vunpack.c.h.b16 %v3514
  %v3931 = vunpack.c.l.b16 %v3515
  %v3932 = vunpack.c.h.b16 %v3515
  %v3933 = vunpack.c.l.b16 %v3516
  %v3934 = vunpack.c.h.b16 %v3516
  %v3935 = vunpack.c.l.b16 %v3517
  %v3936 = vunpack.c.h.b16 %v3517
  %v3937 = vunpack.c.l.b16 %v3518
  %v3938 = vunpack.c.h.b16 %v3518
  %v3939 = vunpack.c.l.b16 %v3519
  %v3940 = vunpack.c.h.b16 %v3519
  %v3941 = vunpack.c.l.b16 %v3520
  %v3942 = vunpack.c.h.b16 %v3520
  %v3943 = vunpack.c.l.b16 %v3521
  %v3944 = vunpack.c.h.b16 %v3521
  %v3945 = vunpack.c.l.b16 %v3522
  %v3946 = vunpack.c.h.b16 %v3522
  %v3947 = vunpack.c.l.b16 %v3523
  %v3948 = vunpack.c.h.b16 %v3523
  %v3949 = vunpack.c.l.b16 %v3524
  %v3950 = vunpack.c.h.b16 %v3524
  %v3951 = vunpack.c.l.b16 %v3525
  %v3952 = vunpack.c.h.b16 %v3525
  %v3953 = vunpack.c.l.b16 %v3526
  %v3954 = vunpack.c.h.b16 %v3526
  %v3955 = vunpack.c.l.b16 %v3527
  %v3956 = vunpack.c.h.b16 %v3527
  %v3957 = vunpack.c.l.b16 %v3528
  %v3958 = vunpack.c.h.b16 %v3528
  %v3959 = vunpack.c.l.b16 %v3529
  %v3960 = vunpack.c.h.b16 %v3529
  %v3961 = vunpack.c.l.b16 %v3530
  %v3962 = vunpack.c.h.b16 %v3530
  %v3963 = vunpack.c.l.b16 %v3531
  %v3964 = vunpack.c.h.b16 %v3531
  %v3965 = vunpack.c.l.b16 %v3532
  %v3966 = vunpack.c.h.b16 %v3532
  %v3967 = vunpack.c.l.b16 %v3533
  %v3968 = vunpack.c.h.b16 %v3533
  %v3969 = vunpack.c.l.b16 %v3534
  %v3970 = vunpack.c.h.b16 %v3534
  %v3971 = vpack.c.b16 %v3735, %v3731
  %v3972 = vpack.c.b16 %v3736, %v3732
  %v3973 = vpack.c.b16 %v3737, %v3733
  %v3974 = vpack.c.b16 %v3738, %v3734
  %v3975 = vpack.c.b16 %v3743, %v3739
  %v3976 = vpack.c.b16 %v3744, %v3740
  %v3977 = vpack.c.b16 %v3745, %v3741
  %v3978 = vpack.c.b16 %v3746, %v3742
  %v3979 = vpack.c.b16 %v3751, %v3747
  %v3980 = vpack.c.b16 %v3752, %v3748
  %v3981 = vpack.c.b16 %v3753, %v3749
  %v3982 = vpack.c.b16 %v3754, %v3750
  %v3983 = vpack.c.b16 %v3759, %v3755
  %v3984 = vpack.c.b16 %v3760, %v3756
  %v3985 = vpack.c.b16 %v3761, %v3757
  %v3986 = vpack.c.b16 %v3762, %v3758
  %v3987 = vpack.c.b16 %v3767, %v3763
  %v3988 = vpack.c.b16 %v3768, %v3764
  %v3989 = vpack.c.b16 %v3769, %v3765
  %v3990 = vpack.c.b16 %v3770, %v3766
  %v3991 = vpack.c.b16 %v3775, %v3771
  %v3992 = vpack.c.b16 %v3776, %v3772
  %v3993 = vpack.c.b16 %v3777, %v3773
  %v3994 = vpack.c.b16 %v3778, %v3774
  %v3995 = vpack.c.b16 %v3783, %v3779
  %v3996 = vpack.c.b16 %v3784, %v3780
  %v3997 = vpack.c.b16 %v3785, %v3781
  %v3998 = vpack.c.b16 %v3786, %v3782
  %v3999 = vpack.c.b16 %v3791, %v3787
  %v4000 = vpack.c.b16 %v3792, %v3788
  %v4001 = vpack.c.b16 %v3793, %v3789
  %v4002 = vpack.c.b16 %v3794, %v3790
  %v4003 = vpack.c.b16 %v3799, %v3795
  %v4004 = vpack.c.b16 %v3800, %v3796
  %v4005 = vpack.c.b16 %v3801, %v3797
  %v4006 = vpack.c.b16 %v3802, %v3798
  %v4007 = vpack.c.b16 %v3807, %v3803
  %v4008 = vpack.c.b16 %v3808, %v3804
  %v4009 = vpack.c.b16 %v3809, %v3805
  %v4010 = vpack.c.b16 %v3810, %v3806
  %v4011 = vpack.c.b16 %v3815, %v3811
  %v4012 = vpack.c.b16 %v3816, %v3812
  %v4013 = vpack.c.b16 %v3817, %v3813
  %v4014 = vpack.c.b16 %v3818, %v3814
  %v4015 = vpack.c.b16 %v3823, %v3819
  %v4016 = vpack.c.b16 %v3824, %v3820
  %v4017 = vpack.c.b16 %v3825, %v3821
  %v4018 = vpack.c.b16 %v3826, %v3822
  %v4019 = vpack.c.b16 %v3831, %v3827
  %v4020 = vpack.c.b16 %v3832, %v3828
  %v4021 = vpack.c.b16 %v3833, %v3829
  %v4022 = vpack.c.b16 %v3834, %v3830
  %v4023 = vpack.c.b16 %v3839, %v3835
  %v4024 = vpack.c.b16 %v3840, %v3836
  %v4025 = vpack.c.b16 %v3841, %v3837
  %v4026 = vpack.c.b16 %v3842, %v3838
  %v4027 = vpack.c.b16 %v3847, %v3843
  %v4028 = vpack.c.b16 %v3848, %v3844
  %v4029 = vpack.c.b16 %v3849, %v3845
  %v4030 = vpack.c.b16 %v3850, %v3846
  %v4031 = vpack.c.b16 %v3855, %v3851
  %v4032 = vpack.c.b16 %v3856, %v3852
  %v4033 = vpack.c.b16 %v3857, %v3853
  %v4034 = vpack.c.b16 %v3858, %v3854
  %v4035 = vpack.c.b16 %v3863, %v3859
  %v4036 = vpack.c.b16 %v3864, %v3860
  %v4037 = vpack.c.b16 %v3865, %v3861
  %v4038 = vpack.c.b16 %v3866, %v3862
  %v4039 = vpack.c.b16 %v3871, %v3867
  %v4040 = vpack.c.b16 %v3872, %v3868
  %v4041 = vpack.c.b16 %v3873, %v3869
  %v4042 = vpack.c.b16 %v3874, %v3870
  %v4043 = vpack.c.b16 %v3879, %v3875
  %v4044 = vpack.c.b16 %v3880, %v3876
  %v4045 = vpack.c.b16 %v3881, %v3877
  %v4046 = vpack.c.b16 %v3882, %v3878
  %v4047 = vpack.c.b16 %v3887, %v3883
  %v4048 = vpack.c.b16 %v3888, %v3884
  %v4049 = vpack.c.b16 %v3889, %v3885
  %v4050 = vpack.c.b16 %v3890, %v3886
  %v4051 = vpack.c.b16 %v3895, %v3891
  %v4052 = vpack.c.b16 %v3896, %v3892
  %v4053 = vpack.c.b16 %v3897, %v3893
  %v4054 = vpack.c.b16 %v3898, %v3894
  %v4055 = vpack.c.b16 %v3903, %v3899
  %v4056 = vpack.c.b16 %v3904, %v3900
  %v4057 = vpack.c.b16 %v3905, %v3901
  %v4058 = vpack.c.b16 %v3906, %v3902
  %v4059 = vpack.c.b16 %v3911, %v3907
  %v4060 = vpack.c.b16 %v3912, %v3908
  %v4061 = vpack.c.b16 %v3913, %v3909
  %v4062 = vpack.c.b16 %v3914, %v3910
  %v4063 = vpack.c.b16 %v3919, %v3915
  %v4064 = vpack.c.b16 %v3920, %v3916
  %v4065 = vpack.c.b16 %v3921, %v3917
  %v4066 = vpack.c.b16 %v3922, %v3918
  %v4067 = vpack.c.b16 %v3927, %v3923
  %v4068 = vpack.c.b16 %v3928, %v3924
  %v4069 = vpack.c.b16 %v3929, %v3925
  %v4070 = vpack.c.b16 %v3930, %v3926
  %v4071 = vpack.c.b16 %v3935, %v3931
  %v4072 = vpack.c.b16 %v3936, %v3932
  %v4073 = vpack.c.b16 %v3937, %v3933
  %v4074 = vpack.c.b16 %v3938, %v3934
  %v4075 = vpack.c.b16 %v3943, %v3939
  %v4076 = vpack.c.b16 %v3944, %v3940
  %v4077 = vpack.c.b16 %v3945, %v3941
  %v4078 = vpack.c.b16 %v3946, %v3942
  %v4079 = vpack.c.b16 %v3951, %v3947
  %v4080 = vpack.c.b16 %v3952, %v3948
  %v4081 = vpack.c.b16 %v3953, %v3949
  %v4082 = vpack.c.b16 %v3954, %v3950
  %v4083 = vpack.c.b16 %v3959, %v3955
  %v4084 = vpack.c.b16 %v3960, %v3956
  %v4085 = vpack.c.b16 %v3961, %v3957
  %v4086 = vpack.c.b16 %v3962, %v3958
  %v4087 = vpack.c.b16 %v3967, %v3963
  %v4088 = vpack.c.b16 %v3968, %v3964
  %v4089 = vpack.c.b16 %v3969, %v3965
  %v4090 = vpack.c.b16 %v3970, %v3966
  %vm4207 = vcmask 777216
  %v4209 = vsel %vm4207, %v3586, 0
  %v4212 = vsel %vm4207, %v3590, 0
  %v4215 = vsel %vm4207, %v3594, 0
  %v4218 = vsel %vm4207, %v3598, 0
  %vm4220 = vcmask 1046528
  %vm4221 = vcmask 1047552
  %v4222 = vsel %vm4220, 4294967295, 65535
  %v4223 = vsel %vm4221, %v4222, 0
  %v4225 = vand.u32 %v4087, %v4223
  %v4228 = vand.u32 %v4088, %v4223
  %v4231 = vand.u32 %v4089, %v4223
  %v4234 = vand.u32 %v4090, %v4223
  %4236 = vmatpush.bf16.msra.mxu0 %v3999
  %4237 = vmatpush.bf16.msra.mxu0 %v3995
  %4238 = vmatpush.bf16.msra.mxu0 %v3991
  %4239 = vmatpush.bf16.msra.mxu0 %v3987
  %4240 = vmatpush.bf16.msra.mxu0 %v3983
  %4241 = vmatpush.bf16.msra.mxu0 %v3979
  %4242 = vmatpush.bf16.msra.mxu0 %v3975
  %4243 = vmatpush.bf16.msra.mxu0 %v3971
  %4244 = vmatmul.bf16.gmra.mxu0 %v3583
  %v4245 = vpop.f32.mrf.mxu0
  %v4246 = vadd.f32 0.0, %v4245
  %v4247 = vpop.f32.mrf.mxu0
  %v4248 = vadd.f32 0.0, %v4247
  %4249 = vmatmul.bf16.gmra.mxu0 %v3587
  %v4250 = vpop.f32.mrf.mxu0
  %v4251 = vadd.f32 0.0, %v4250
  %v4252 = vpop.f32.mrf.mxu0
  %v4253 = vadd.f32 0.0, %v4252
  %4254 = vmatmul.bf16.gmra.mxu0 %v3591
  %v4255 = vpop.f32.mrf.mxu0
  %v4256 = vadd.f32 0.0, %v4255
  %v4257 = vpop.f32.mrf.mxu0
  %v4258 = vadd.f32 0.0, %v4257
  %4259 = vmatmul.bf16.gmra.mxu0 %v3595
  %v4260 = vpop.f32.mrf.mxu0
  %v4261 = vadd.f32 0.0, %v4260
  %v4262 = vpop.f32.mrf.mxu0
  %v4263 = vadd.f32 0.0, %v4262
  %4264 = vdwg.mxu0
  %4265 = vmatpush.bf16.msra.mxu0 %v4031
  %4266 = vmatpush.bf16.msra.mxu0 %v4027
  %4267 = vmatpush.bf16.msra.mxu0 %v4023
  %4268 = vmatpush.bf16.msra.mxu0 %v4019
  %4269 = vmatpush.bf16.msra.mxu0 %v4015
  %4270 = vmatpush.bf16.msra.mxu0 %v4011
  %4271 = vmatpush.bf16.msra.mxu0 %v4007
  %4272 = vmatpush.bf16.msra.mxu0 %v4003
  %4273 = vmatmul.bf16.gmra.mxu0 %v3584
  %v4274 = vpop.f32.mrf.mxu0
  %v4275 = vadd.f32 %v4246, %v4274
  %v4276 = vpop.f32.mrf.mxu0
  %v4277 = vadd.f32 %v4248, %v4276
  %4278 = vmatmul.bf16.gmra.mxu0 %v3588
  %v4279 = vpop.f32.mrf.mxu0
  %v4280 = vadd.f32 %v4251, %v4279
  %v4281 = vpop.f32.mrf.mxu0
  %v4282 = vadd.f32 %v4253, %v4281
  %4283 = vmatmul.bf16.gmra.mxu0 %v3592
  %v4284 = vpop.f32.mrf.mxu0
  %v4285 = vadd.f32 %v4256, %v4284
  %v4286 = vpop.f32.mrf.mxu0
  %v4287 = vadd.f32 %v4258, %v4286
  %4288 = vmatmul.bf16.gmra.mxu0 %v3596
  %v4289 = vpop.f32.mrf.mxu0
  %v4290 = vadd.f32 %v4261, %v4289
  %v4291 = vpop.f32.mrf.mxu0
  %v4292 = vadd.f32 %v4263, %v4291
  %4293 = vdwg.mxu0
  %4294 = vmatpush.bf16.msra.mxu0 %v4063
  %4295 = vmatpush.bf16.msra.mxu0 %v4059
  %4296 = vmatpush.bf16.msra.mxu0 %v4055
  %4297 = vmatpush.bf16.msra.mxu0 %v4051
  %4298 = vmatpush.bf16.msra.mxu0 %v4047
  %4299 = vmatpush.bf16.msra.mxu0 %v4043
  %4300 = vmatpush.bf16.msra.mxu0 %v4039
  %4301 = vmatpush.bf16.msra.mxu0 %v4035
  %4302 = vmatmul.bf16.gmra.mxu0 %v3585
  %v4303 = vpop.f32.mrf.mxu0
  %v4304 = vadd.f32 %v4275, %v4303
  %v4305 = vpop.f32.mrf.mxu0
  %v4306 = vadd.f32 %v4277, %v4305
  %4307 = vmatmul.bf16.gmra.mxu0 %v3589
  %v4308 = vpop.f32.mrf.mxu0
  %v4309 = vadd.f32 %v4280, %v4308
  %v4310 = vpop.f32.mrf.mxu0
  %v4311 = vadd.f32 %v4282, %v4310
  %4312 = vmatmul.bf16.gmra.mxu0 %v3593
  %v4313 = vpop.f32.mrf.mxu0
  %v4314 = vadd.f32 %v4285, %v4313
  %v4315 = vpop.f32.mrf.mxu0
  %v4316 = vadd.f32 %v4287, %v4315
  %4317 = vmatmul.bf16.gmra.mxu0 %v3597
  %v4318 = vpop.f32.mrf.mxu0
  %v4319 = vadd.f32 %v4290, %v4318
  %v4320 = vpop.f32.mrf.mxu0
  %v4321 = vadd.f32 %v4292, %v4320
  %4322 = vdwg.mxu0
  %4323 = vmatpush.bf16.msra.mxu0 0
  %4324 = vmatpush.bf16.msra.mxu0 0
  %4325 = vmatpush.bf16.msra.mxu0 %v4225
  %4326 = vmatpush.bf16.msra.mxu0 %v4083
  %4327 = vmatpush.bf16.msra.mxu0 %v4079
  %4328 = vmatpush.bf16.msra.mxu0 %v4075
  %4329 = vmatpush.bf16.msra.mxu0 %v4071
  %4330 = vmatpush.bf16.msra.mxu0 %v4067
  %4331 = vmatmul.bf16.gmra.mxu0 %v4209
  %v4332 = vpop.f32.mrf.mxu0
  %v4333 = vadd.f32 %v4304, %v4332
  %v4334 = vpop.f32.mrf.mxu0
  %v4335 = vadd.f32 %v4306, %v4334
  %4336 = vmatmul.bf16.gmra.mxu0 %v4212
  %v4337 = vpop.f32.mrf.mxu0
  %v4338 = vadd.f32 %v4309, %v4337
  %v4339 = vpop.f32.mrf.mxu0
  %v4340 = vadd.f32 %v4311, %v4339
  %4341 = vmatmul.bf16.gmra.mxu0 %v4215
  %v4342 = vpop.f32.mrf.mxu0
  %v4343 = vadd.f32 %v4314, %v4342
  %v4344 = vpop.f32.mrf.mxu0
  %v4345 = vadd.f32 %v4316, %v4344
  %4346 = vmatmul.bf16.gmra.mxu0 %v4218
  %v4347 = vpop.f32.mrf.mxu0
  %v4348 = vadd.f32 %v4319, %v4347
  %v4349 = vpop.f32.mrf.mxu0
  %v4350 = vadd.f32 %v4321, %v4349
  %4351 = vdwg.mxu0
  %4352 = vmatpush.bf16.msra.mxu0 %v4000
  %4353 = vmatpush.bf16.msra.mxu0 %v3996
  %4354 = vmatpush.bf16.msra.mxu0 %v3992
  %4355 = vmatpush.bf16.msra.mxu0 %v3988
  %4356 = vmatpush.bf16.msra.mxu0 %v3984
  %4357 = vmatpush.bf16.msra.mxu0 %v3980
  %4358 = vmatpush.bf16.msra.mxu0 %v3976
  %4359 = vmatpush.bf16.msra.mxu0 %v3972
  %4360 = vmatmul.bf16.gmra.mxu0 %v3583
  %v4361 = vpop.f32.mrf.mxu0
  %v4362 = vadd.f32 0.0, %v4361
  %v4363 = vpop.f32.mrf.mxu0
  %v4364 = vadd.f32 0.0, %v4363
  %4365 = vmatmul.bf16.gmra.mxu0 %v3587
  %v4366 = vpop.f32.mrf.mxu0
  %v4367 = vadd.f32 0.0, %v4366
  %v4368 = vpop.f32.mrf.mxu0
  %v4369 = vadd.f32 0.0, %v4368
  %4370 = vmatmul.bf16.gmra.mxu0 %v3591
  %v4371 = vpop.f32.mrf.mxu0
  %v4372 = vadd.f32 0.0, %v4371
  %v4373 = vpop.f32.mrf.mxu0
  %v4374 = vadd.f32 0.0, %v4373
  %4375 = vmatmul.bf16.gmra.mxu0 %v3595
  %v4376 = vpop.f32.mrf.mxu0
  %v4377 = vadd.f32 0.0, %v4376
  %v4378 = vpop.f32.mrf.mxu0
  %v4379 = vadd.f32 0.0, %v4378
  %4380 = vdwg.mxu0
  %4381 = vmatpush.bf16.msra.mxu0 %v4032
  %4382 = vmatpush.bf16.msra.mxu0 %v4028
  %4383 = vmatpush.bf16.msra.mxu0 %v4024
  %4384 = vmatpush.bf16.msra.mxu0 %v4020
  %4385 = vmatpush.bf16.msra.mxu0 %v4016
  %4386 = vmatpush.bf16.msra.mxu0 %v4012
  %4387 = vmatpush.bf16.msra.mxu0 %v4008
  %4388 = vmatpush.bf16.msra.mxu0 %v4004
  %4389 = vmatmul.bf16.gmra.mxu0 %v3584
  %v4390 = vpop.f32.mrf.mxu0
  %v4391 = vadd.f32 %v4362, %v4390
  %v4392 = vpop.f32.mrf.mxu0
  %v4393 = vadd.f32 %v4364, %v4392
  %4394 = vmatmul.bf16.gmra.mxu0 %v3588
  %v4395 = vpop.f32.mrf.mxu0
  %v4396 = vadd.f32 %v4367, %v4395
  %v4397 = vpop.f32.mrf.mxu0
  %v4398 = vadd.f32 %v4369, %v4397
  %4399 = vmatmul.bf16.gmra.mxu0 %v3592
  %v4400 = vpop.f32.mrf.mxu0
  %v4401 = vadd.f32 %v4372, %v4400
  %v4402 = vpop.f32.mrf.mxu0
  %v4403 = vadd.f32 %v4374, %v4402
  %4404 = vmatmul.bf16.gmra.mxu0 %v3596
  %v4405 = vpop.f32.mrf.mxu0
  %v4406 = vadd.f32 %v4377, %v4405
  %v4407 = vpop.f32.mrf.mxu0
  %v4408 = vadd.f32 %v4379, %v4407
  %4409 = vdwg.mxu0
  %4410 = vmatpush.bf16.msra.mxu0 %v4064
  %4411 = vmatpush.bf16.msra.mxu0 %v4060
  %4412 = vmatpush.bf16.msra.mxu0 %v4056
  %4413 = vmatpush.bf16.msra.mxu0 %v4052
  %4414 = vmatpush.bf16.msra.mxu0 %v4048
  %4415 = vmatpush.bf16.msra.mxu0 %v4044
  %4416 = vmatpush.bf16.msra.mxu0 %v4040
  %4417 = vmatpush.bf16.msra.mxu0 %v4036
  %4418 = vmatmul.bf16.gmra.mxu0 %v3585
  %v4419 = vpop.f32.mrf.mxu0
  %v4420 = vadd.f32 %v4391, %v4419
  %v4421 = vpop.f32.mrf.mxu0
  %v4422 = vadd.f32 %v4393, %v4421
  %4423 = vmatmul.bf16.gmra.mxu0 %v3589
  %v4424 = vpop.f32.mrf.mxu0
  %v4425 = vadd.f32 %v4396, %v4424
  %v4426 = vpop.f32.mrf.mxu0
  %v4427 = vadd.f32 %v4398, %v4426
  %4428 = vmatmul.bf16.gmra.mxu0 %v3593
  %v4429 = vpop.f32.mrf.mxu0
  %v4430 = vadd.f32 %v4401, %v4429
  %v4431 = vpop.f32.mrf.mxu0
  %v4432 = vadd.f32 %v4403, %v4431
  %4433 = vmatmul.bf16.gmra.mxu0 %v3597
  %v4434 = vpop.f32.mrf.mxu0
  %v4435 = vadd.f32 %v4406, %v4434
  %v4436 = vpop.f32.mrf.mxu0
  %v4437 = vadd.f32 %v4408, %v4436
  %4438 = vdwg.mxu0
  %4439 = vmatpush.bf16.msra.mxu0 0
  %4440 = vmatpush.bf16.msra.mxu0 0
  %4441 = vmatpush.bf16.msra.mxu0 %v4228
  %4442 = vmatpush.bf16.msra.mxu0 %v4084
  %4443 = vmatpush.bf16.msra.mxu0 %v4080
  %4444 = vmatpush.bf16.msra.mxu0 %v4076
  %4445 = vmatpush.bf16.msra.mxu0 %v4072
  %4446 = vmatpush.bf16.msra.mxu0 %v4068
  %4447 = vmatmul.bf16.gmra.mxu0 %v4209
  %v4448 = vpop.f32.mrf.mxu0
  %v4449 = vadd.f32 %v4420, %v4448
  %v4450 = vpop.f32.mrf.mxu0
  %v4451 = vadd.f32 %v4422, %v4450
  %4452 = vmatmul.bf16.gmra.mxu0 %v4212
  %v4453 = vpop.f32.mrf.mxu0
  %v4454 = vadd.f32 %v4425, %v4453
  %v4455 = vpop.f32.mrf.mxu0
  %v4456 = vadd.f32 %v4427, %v4455
  %4457 = vmatmul.bf16.gmra.mxu0 %v4215
  %v4458 = vpop.f32.mrf.mxu0
  %v4459 = vadd.f32 %v4430, %v4458
  %v4460 = vpop.f32.mrf.mxu0
  %v4461 = vadd.f32 %v4432, %v4460
  %4462 = vmatmul.bf16.gmra.mxu0 %v4218
  %v4463 = vpop.f32.mrf.mxu0
  %v4464 = vadd.f32 %v4435, %v4463
  %v4465 = vpop.f32.mrf.mxu0
  %v4466 = vadd.f32 %v4437, %v4465
  %4467 = vdwg.mxu0
  %4468 = vmatpush.bf16.msra.mxu0 %v4001
  %4469 = vmatpush.bf16.msra.mxu0 %v3997
  %4470 = vmatpush.bf16.msra.mxu0 %v3993
  %4471 = vmatpush.bf16.msra.mxu0 %v3989
  %4472 = vmatpush.bf16.msra.mxu0 %v3985
  %4473 = vmatpush.bf16.msra.mxu0 %v3981
  %4474 = vmatpush.bf16.msra.mxu0 %v3977
  %4475 = vmatpush.bf16.msra.mxu0 %v3973
  %4476 = vmatmul.bf16.gmra.mxu0 %v3583
  %v4477 = vpop.f32.mrf.mxu0
  %v4478 = vadd.f32 0.0, %v4477
  %v4479 = vpop.f32.mrf.mxu0
  %v4480 = vadd.f32 0.0, %v4479
  %4481 = vmatmul.bf16.gmra.mxu0 %v3587
  %v4482 = vpop.f32.mrf.mxu0
  %v4483 = vadd.f32 0.0, %v4482
  %v4484 = vpop.f32.mrf.mxu0
  %v4485 = vadd.f32 0.0, %v4484
  %4486 = vmatmul.bf16.gmra.mxu0 %v3591
  %v4487 = vpop.f32.mrf.mxu0
  %v4488 = vadd.f32 0.0, %v4487
  %v4489 = vpop.f32.mrf.mxu0
  %v4490 = vadd.f32 0.0, %v4489
  %4491 = vmatmul.bf16.gmra.mxu0 %v3595
  %v4492 = vpop.f32.mrf.mxu0
  %v4493 = vadd.f32 0.0, %v4492
  %v4494 = vpop.f32.mrf.mxu0
  %v4495 = vadd.f32 0.0, %v4494
  %4496 = vdwg.mxu0
  %4497 = vmatpush.bf16.msra.mxu0 %v4033
  %4498 = vmatpush.bf16.msra.mxu0 %v4029
  %4499 = vmatpush.bf16.msra.mxu0 %v4025
  %4500 = vmatpush.bf16.msra.mxu0 %v4021
  %4501 = vmatpush.bf16.msra.mxu0 %v4017
  %4502 = vmatpush.bf16.msra.mxu0 %v4013
  %4503 = vmatpush.bf16.msra.mxu0 %v4009
  %4504 = vmatpush.bf16.msra.mxu0 %v4005
  %4505 = vmatmul.bf16.gmra.mxu0 %v3584
  %v4506 = vpop.f32.mrf.mxu0
  %v4507 = vadd.f32 %v4478, %v4506
  %v4508 = vpop.f32.mrf.mxu0
  %v4509 = vadd.f32 %v4480, %v4508
  %4510 = vmatmul.bf16.gmra.mxu0 %v3588
  %v4511 = vpop.f32.mrf.mxu0
  %v4512 = vadd.f32 %v4483, %v4511
  %v4513 = vpop.f32.mrf.mxu0
  %v4514 = vadd.f32 %v4485, %v4513
  %4515 = vmatmul.bf16.gmra.mxu0 %v3592
  %v4516 = vpop.f32.mrf.mxu0
  %v4517 = vadd.f32 %v4488, %v4516
  %v4518 = vpop.f32.mrf.mxu0
  %v4519 = vadd.f32 %v4490, %v4518
  %4520 = vmatmul.bf16.gmra.mxu0 %v3596
  %v4521 = vpop.f32.mrf.mxu0
  %v4522 = vadd.f32 %v4493, %v4521
  %v4523 = vpop.f32.mrf.mxu0
  %v4524 = vadd.f32 %v4495, %v4523
  %4525 = vdwg.mxu0
  %4526 = vmatpush.bf16.msra.mxu0 %v4065
  %4527 = vmatpush.bf16.msra.mxu0 %v4061
  %4528 = vmatpush.bf16.msra.mxu0 %v4057
  %4529 = vmatpush.bf16.msra.mxu0 %v4053
  %4530 = vmatpush.bf16.msra.mxu0 %v4049
  %4531 = vmatpush.bf16.msra.mxu0 %v4045
  %4532 = vmatpush.bf16.msra.mxu0 %v4041
  %4533 = vmatpush.bf16.msra.mxu0 %v4037
  %4534 = vmatmul.bf16.gmra.mxu0 %v3585
  %v4535 = vpop.f32.mrf.mxu0
  %v4536 = vadd.f32 %v4507, %v4535
  %v4537 = vpop.f32.mrf.mxu0
  %v4538 = vadd.f32 %v4509, %v4537
  %4539 = vmatmul.bf16.gmra.mxu0 %v3589
  %v4540 = vpop.f32.mrf.mxu0
  %v4541 = vadd.f32 %v4512, %v4540
  %v4542 = vpop.f32.mrf.mxu0
  %v4543 = vadd.f32 %v4514, %v4542
  %4544 = vmatmul.bf16.gmra.mxu0 %v3593
  %v4545 = vpop.f32.mrf.mxu0
  %v4546 = vadd.f32 %v4517, %v4545
  %v4547 = vpop.f32.mrf.mxu0
  %v4548 = vadd.f32 %v4519, %v4547
  %4549 = vmatmul.bf16.gmra.mxu0 %v3597
  %v4550 = vpop.f32.mrf.mxu0
  %v4551 = vadd.f32 %v4522, %v4550
  %v4552 = vpop.f32.mrf.mxu0
  %v4553 = vadd.f32 %v4524, %v4552
  %4554 = vdwg.mxu0
  %4555 = vmatpush.bf16.msra.mxu0 0
  %4556 = vmatpush.bf16.msra.mxu0 0
  %4557 = vmatpush.bf16.msra.mxu0 %v4231
  %4558 = vmatpush.bf16.msra.mxu0 %v4085
  %4559 = vmatpush.bf16.msra.mxu0 %v4081
  %4560 = vmatpush.bf16.msra.mxu0 %v4077
  %4561 = vmatpush.bf16.msra.mxu0 %v4073
  %4562 = vmatpush.bf16.msra.mxu0 %v4069
  %4563 = vmatmul.bf16.gmra.mxu0 %v4209
  %v4564 = vpop.f32.mrf.mxu0
  %v4565 = vadd.f32 %v4536, %v4564
  %v4566 = vpop.f32.mrf.mxu0
  %v4567 = vadd.f32 %v4538, %v4566
  %4568 = vmatmul.bf16.gmra.mxu0 %v4212
  %v4569 = vpop.f32.mrf.mxu0
  %v4570 = vadd.f32 %v4541, %v4569
  %v4571 = vpop.f32.mrf.mxu0
  %v4572 = vadd.f32 %v4543, %v4571
  %4573 = vmatmul.bf16.gmra.mxu0 %v4215
  %v4574 = vpop.f32.mrf.mxu0
  %v4575 = vadd.f32 %v4546, %v4574
  %v4576 = vpop.f32.mrf.mxu0
  %v4577 = vadd.f32 %v4548, %v4576
  %4578 = vmatmul.bf16.gmra.mxu0 %v4218
  %v4579 = vpop.f32.mrf.mxu0
  %v4580 = vadd.f32 %v4551, %v4579
  %v4581 = vpop.f32.mrf.mxu0
  %v4582 = vadd.f32 %v4553, %v4581
  %4583 = vdwg.mxu0
  %4584 = vmatpush.bf16.msra.mxu0 %v4002
  %4585 = vmatpush.bf16.msra.mxu0 %v3998
  %4586 = vmatpush.bf16.msra.mxu0 %v3994
  %4587 = vmatpush.bf16.msra.mxu0 %v3990
  %4588 = vmatpush.bf16.msra.mxu0 %v3986
  %4589 = vmatpush.bf16.msra.mxu0 %v3982
  %4590 = vmatpush.bf16.msra.mxu0 %v3978
  %4591 = vmatpush.bf16.msra.mxu0 %v3974
  %4592 = vmatmul.bf16.gmra.mxu0 %v3583
  %v4593 = vpop.f32.mrf.mxu0
  %v4594 = vadd.f32 0.0, %v4593
  %v4595 = vpop.f32.mrf.mxu0
  %v4596 = vadd.f32 0.0, %v4595
  %4597 = vmatmul.bf16.gmra.mxu0 %v3587
  %v4598 = vpop.f32.mrf.mxu0
  %v4599 = vadd.f32 0.0, %v4598
  %v4600 = vpop.f32.mrf.mxu0
  %v4601 = vadd.f32 0.0, %v4600
  %4602 = vmatmul.bf16.gmra.mxu0 %v3591
  %v4603 = vpop.f32.mrf.mxu0
  %v4604 = vadd.f32 0.0, %v4603
  %v4605 = vpop.f32.mrf.mxu0
  %v4606 = vadd.f32 0.0, %v4605
  %4607 = vmatmul.bf16.gmra.mxu0 %v3595
  %v4608 = vpop.f32.mrf.mxu0
  %v4609 = vadd.f32 0.0, %v4608
  %v4610 = vpop.f32.mrf.mxu0
  %v4611 = vadd.f32 0.0, %v4610
  %4612 = vdwg.mxu0
  %4613 = vmatpush.bf16.msra.mxu0 %v4034
  %4614 = vmatpush.bf16.msra.mxu0 %v4030
  %4615 = vmatpush.bf16.msra.mxu0 %v4026
  %4616 = vmatpush.bf16.msra.mxu0 %v4022
  %4617 = vmatpush.bf16.msra.mxu0 %v4018
  %4618 = vmatpush.bf16.msra.mxu0 %v4014
  %4619 = vmatpush.bf16.msra.mxu0 %v4010
  %4620 = vmatpush.bf16.msra.mxu0 %v4006
  %4621 = vmatmul.bf16.gmra.mxu0 %v3584
  %v4622 = vpop.f32.mrf.mxu0
  %v4623 = vadd.f32 %v4594, %v4622
  %v4624 = vpop.f32.mrf.mxu0
  %v4625 = vadd.f32 %v4596, %v4624
  %4626 = vmatmul.bf16.gmra.mxu0 %v3588
  %v4627 = vpop.f32.mrf.mxu0
  %v4628 = vadd.f32 %v4599, %v4627
  %v4629 = vpop.f32.mrf.mxu0
  %v4630 = vadd.f32 %v4601, %v4629
  %4631 = vmatmul.bf16.gmra.mxu0 %v3592
  %v4632 = vpop.f32.mrf.mxu0
  %v4633 = vadd.f32 %v4604, %v4632
  %v4634 = vpop.f32.mrf.mxu0
  %v4635 = vadd.f32 %v4606, %v4634
  %4636 = vmatmul.bf16.gmra.mxu0 %v3596
  %v4637 = vpop.f32.mrf.mxu0
  %v4638 = vadd.f32 %v4609, %v4637
  %v4639 = vpop.f32.mrf.mxu0
  %v4640 = vadd.f32 %v4611, %v4639
  %4641 = vdwg.mxu0
  %4642 = vmatpush.bf16.msra.mxu0 %v4066
  %4643 = vmatpush.bf16.msra.mxu0 %v4062
  %4644 = vmatpush.bf16.msra.mxu0 %v4058
  %4645 = vmatpush.bf16.msra.mxu0 %v4054
  %4646 = vmatpush.bf16.msra.mxu0 %v4050
  %4647 = vmatpush.bf16.msra.mxu0 %v4046
  %4648 = vmatpush.bf16.msra.mxu0 %v4042
  %4649 = vmatpush.bf16.msra.mxu0 %v4038
  %4650 = vmatmul.bf16.gmra.mxu0 %v3585
  %v4651 = vpop.f32.mrf.mxu0
  %v4652 = vadd.f32 %v4623, %v4651
  %v4653 = vpop.f32.mrf.mxu0
  %v4654 = vadd.f32 %v4625, %v4653
  %4655 = vmatmul.bf16.gmra.mxu0 %v3589
  %v4656 = vpop.f32.mrf.mxu0
  %v4657 = vadd.f32 %v4628, %v4656
  %v4658 = vpop.f32.mrf.mxu0
  %v4659 = vadd.f32 %v4630, %v4658
  %4660 = vmatmul.bf16.gmra.mxu0 %v3593
  %v4661 = vpop.f32.mrf.mxu0
  %v4662 = vadd.f32 %v4633, %v4661
  %v4663 = vpop.f32.mrf.mxu0
  %v4664 = vadd.f32 %v4635, %v4663
  %4665 = vmatmul.bf16.gmra.mxu0 %v3597
  %v4666 = vpop.f32.mrf.mxu0
  %v4667 = vadd.f32 %v4638, %v4666
  %v4668 = vpop.f32.mrf.mxu0
  %v4669 = vadd.f32 %v4640, %v4668
  %4670 = vdwg.mxu0
  %4671 = vmatpush.bf16.msra.mxu0 0
  %4672 = vmatpush.bf16.msra.mxu0 0
  %4673 = vmatpush.bf16.msra.mxu0 %v4234
  %4674 = vmatpush.bf16.msra.mxu0 %v4086
  %4675 = vmatpush.bf16.msra.mxu0 %v4082
  %4676 = vmatpush.bf16.msra.mxu0 %v4078
  %4677 = vmatpush.bf16.msra.mxu0 %v4074
  %4678 = vmatpush.bf16.msra.mxu0 %v4070
  %4679 = vmatmul.bf16.gmra.mxu0 %v4209
  %v4680 = vpop.f32.mrf.mxu0
  %v4681 = vadd.f32 %v4652, %v4680
  %v4682 = vpop.f32.mrf.mxu0
  %v4683 = vadd.f32 %v4654, %v4682
  %4684 = vmatmul.bf16.gmra.mxu0 %v4212
  %v4685 = vpop.f32.mrf.mxu0
  %v4686 = vadd.f32 %v4657, %v4685
  %v4687 = vpop.f32.mrf.mxu0
  %v4688 = vadd.f32 %v4659, %v4687
  %4689 = vmatmul.bf16.gmra.mxu0 %v4215
  %v4690 = vpop.f32.mrf.mxu0
  %v4691 = vadd.f32 %v4662, %v4690
  %v4692 = vpop.f32.mrf.mxu0
  %v4693 = vadd.f32 %v4664, %v4692
  %4694 = vmatmul.bf16.gmra.mxu0 %v4218
  %v4695 = vpop.f32.mrf.mxu0
  %v4696 = vadd.f32 %v4667, %v4695
  %v4697 = vpop.f32.mrf.mxu0
  %v4698 = vadd.f32 %v4669, %v4697
  %4699 = vdwg.mxu0
  %v4702 = vunpack.c.l.b16 %v3270
  %v4703 = vunpack.c.h.b16 %v3270
  %v4704 = vunpack.c.l.b16 %v3271
  %v4705 = vunpack.c.h.b16 %v3271
  %v4706 = vpack.c.b16 %v3551, %v4702
  %v4707 = vpack.c.b16 %v3552, %v4703
  %v4708 = vpack.c.b16 %v3553, %v4704
  %v4709 = vpack.c.b16 %v3554, %v4705
  %v4710 = vpack.c.b16 %v3559, %v3555
  %v4711 = vpack.c.b16 %v3560, %v3556
  %v4712 = vpack.c.b16 %v3561, %v3557
  %v4713 = vpack.c.b16 %v3562, %v3558
  %v4714 = vpack.c.b16 %v3567, %v3563
  %v4715 = vpack.c.b16 %v3568, %v3564
  %v4716 = vpack.c.b16 %v3569, %v3565
  %v4717 = vpack.c.b16 %v3570, %v3566
  %v4718 = vpack.c.b16 %v3575, %v3571
  %v4719 = vpack.c.b16 %v3576, %v3572
  %v4720 = vpack.c.b16 %v3577, %v3573
  %v4721 = vpack.c.b16 %v3578, %v3574
  %v4854 = vunpack.c.l.b16 %v3294
  %v4855 = vunpack.c.h.b16 %v3294
  %v4856 = vunpack.c.l.b16 %v3295
  %v4857 = vunpack.c.h.b16 %v3295
  %v4858 = vunpack.c.l.b16 %v3296
  %v4859 = vunpack.c.h.b16 %v3296
  %v4860 = vunpack.c.l.b16 %v3297
  %v4861 = vunpack.c.h.b16 %v3297
  %v4862 = vunpack.c.l.b16 %v3298
  %v4863 = vunpack.c.h.b16 %v3298
  %v4864 = vunpack.c.l.b16 %v3299
  %v4865 = vunpack.c.h.b16 %v3299
  %v4866 = vunpack.c.l.b16 %v3300
  %v4867 = vunpack.c.h.b16 %v3300
  %v4868 = vunpack.c.l.b16 %v3301
  %v4869 = vunpack.c.h.b16 %v3301
  %v4870 = vunpack.c.l.b16 %v3302
  %v4871 = vunpack.c.h.b16 %v3302
  %v4872 = vunpack.c.l.b16 %v3303
  %v4873 = vunpack.c.h.b16 %v3303
  %v4874 = vunpack.c.l.b16 %v3304
  %v4875 = vunpack.c.h.b16 %v3304
  %v4876 = vunpack.c.l.b16 %v3305
  %v4877 = vunpack.c.h.b16 %v3305
  %v4878 = vunpack.c.l.b16 %v3306
  %v4879 = vunpack.c.h.b16 %v3306
  %v4880 = vunpack.c.l.b16 %v3307
  %v4881 = vunpack.c.h.b16 %v3307
  %v4882 = vunpack.c.l.b16 %v3308
  %v4883 = vunpack.c.h.b16 %v3308
  %v4884 = vunpack.c.l.b16 %v3309
  %v4885 = vunpack.c.h.b16 %v3309
  %v4886 = vunpack.c.l.b16 %v3310
  %v4887 = vunpack.c.h.b16 %v3310
  %v4888 = vunpack.c.l.b16 %v3311
  %v4889 = vunpack.c.h.b16 %v3311
  %v4890 = vunpack.c.l.b16 %v3312
  %v4891 = vunpack.c.h.b16 %v3312
  %v4892 = vunpack.c.l.b16 %v3313
  %v4893 = vunpack.c.h.b16 %v3313
  %v4894 = vunpack.c.l.b16 %v3314
  %v4895 = vunpack.c.h.b16 %v3314
  %v4896 = vunpack.c.l.b16 %v3315
  %v4897 = vunpack.c.h.b16 %v3315
  %v4898 = vunpack.c.l.b16 %v3316
  %v4899 = vunpack.c.h.b16 %v3316
  %v4900 = vunpack.c.l.b16 %v3317
  %v4901 = vunpack.c.h.b16 %v3317
  %v4902 = vunpack.c.l.b16 %v3318
  %v4903 = vunpack.c.h.b16 %v3318
  %v4904 = vunpack.c.l.b16 %v3319
  %v4905 = vunpack.c.h.b16 %v3319
  %v4906 = vunpack.c.l.b16 %v3320
  %v4907 = vunpack.c.h.b16 %v3320
  %v4908 = vunpack.c.l.b16 %v3321
  %v4909 = vunpack.c.h.b16 %v3321
  %v4910 = vunpack.c.l.b16 %v3322
  %v4911 = vunpack.c.h.b16 %v3322
  %v4912 = vunpack.c.l.b16 %v3323
  %v4913 = vunpack.c.h.b16 %v3323
  %v4914 = vunpack.c.l.b16 %v3324
  %v4915 = vunpack.c.h.b16 %v3324
  %v4916 = vunpack.c.l.b16 %v3325
  %v4917 = vunpack.c.h.b16 %v3325
  %v4918 = vunpack.c.l.b16 %v3326
  %v4919 = vunpack.c.h.b16 %v3326
  %v4920 = vunpack.c.l.b16 %v3327
  %v4921 = vunpack.c.h.b16 %v3327
  %v4922 = vunpack.c.l.b16 %v3328
  %v4923 = vunpack.c.h.b16 %v3328
  %v4924 = vunpack.c.l.b16 %v3329
  %v4925 = vunpack.c.h.b16 %v3329
  %v4926 = vunpack.c.l.b16 %v3330
  %v4927 = vunpack.c.h.b16 %v3330
  %v4928 = vunpack.c.l.b16 %v3331
  %v4929 = vunpack.c.h.b16 %v3331
  %v4930 = vunpack.c.l.b16 %v3332
  %v4931 = vunpack.c.h.b16 %v3332
  %v4932 = vunpack.c.l.b16 %v3333
  %v4933 = vunpack.c.h.b16 %v3333
  %v4934 = vunpack.c.l.b16 %v3334
  %v4935 = vunpack.c.h.b16 %v3334
  %v4936 = vunpack.c.l.b16 %v3335
  %v4937 = vunpack.c.h.b16 %v3335
  %v4938 = vunpack.c.l.b16 %v3336
  %v4939 = vunpack.c.h.b16 %v3336
  %v4940 = vunpack.c.l.b16 %v3337
  %v4941 = vunpack.c.h.b16 %v3337
  %v4942 = vunpack.c.l.b16 %v3338
  %v4943 = vunpack.c.h.b16 %v3338
  %v4944 = vunpack.c.l.b16 %v3339
  %v4945 = vunpack.c.h.b16 %v3339
  %v4946 = vunpack.c.l.b16 %v3340
  %v4947 = vunpack.c.h.b16 %v3340
  %v4948 = vunpack.c.l.b16 %v3341
  %v4949 = vunpack.c.h.b16 %v3341
  %v4950 = vunpack.c.l.b16 %v3342
  %v4951 = vunpack.c.h.b16 %v3342
  %v4952 = vunpack.c.l.b16 %v3343
  %v4953 = vunpack.c.h.b16 %v3343
  %v4954 = vunpack.c.l.b16 %v3344
  %v4955 = vunpack.c.h.b16 %v3344
  %v4956 = vunpack.c.l.b16 %v3345
  %v4957 = vunpack.c.h.b16 %v3345
  %v4958 = vunpack.c.l.b16 %v3346
  %v4959 = vunpack.c.h.b16 %v3346
  %v4960 = vunpack.c.l.b16 %v3347
  %v4961 = vunpack.c.h.b16 %v3347
  %v4962 = vunpack.c.l.b16 %v3348
  %v4963 = vunpack.c.h.b16 %v3348
  %v4964 = vunpack.c.l.b16 %v3349
  %v4965 = vunpack.c.h.b16 %v3349
  %v4966 = vunpack.c.l.b16 %v3350
  %v4967 = vunpack.c.h.b16 %v3350
  %v4968 = vunpack.c.l.b16 %v3351
  %v4969 = vunpack.c.h.b16 %v3351
  %v4970 = vunpack.c.l.b16 %v3352
  %v4971 = vunpack.c.h.b16 %v3352
  %v4972 = vunpack.c.l.b16 %v3353
  %v4973 = vunpack.c.h.b16 %v3353
  %v4974 = vunpack.c.l.b16 %v3354
  %v4975 = vunpack.c.h.b16 %v3354
  %v4976 = vunpack.c.l.b16 %v3355
  %v4977 = vunpack.c.h.b16 %v3355
  %v4978 = vunpack.c.l.b16 %v3356
  %v4979 = vunpack.c.h.b16 %v3356
  %v4980 = vunpack.c.l.b16 %v3357
  %v4981 = vunpack.c.h.b16 %v3357
  %v4982 = vunpack.c.l.b16 %v3358
  %v4983 = vunpack.c.h.b16 %v3358
  %v4984 = vunpack.c.l.b16 %v3359
  %v4985 = vunpack.c.h.b16 %v3359
  %v4986 = vunpack.c.l.b16 %v3360
  %v4987 = vunpack.c.h.b16 %v3360
  %v4988 = vunpack.c.l.b16 %v3361
  %v4989 = vunpack.c.h.b16 %v3361
  %v4990 = vunpack.c.l.b16 %v3362
  %v4991 = vunpack.c.h.b16 %v3362
  %v4992 = vunpack.c.l.b16 %v3363
  %v4993 = vunpack.c.h.b16 %v3363
  %v4994 = vunpack.c.l.b16 %v3364
  %v4995 = vunpack.c.h.b16 %v3364
  %v4996 = vunpack.c.l.b16 %v3365
  %v4997 = vunpack.c.h.b16 %v3365
  %v4998 = vunpack.c.l.b16 %v3366
  %v4999 = vunpack.c.h.b16 %v3366
  %v5000 = vunpack.c.l.b16 %v3367
  %v5001 = vunpack.c.h.b16 %v3367
  %v5002 = vunpack.c.l.b16 %v3368
  %v5003 = vunpack.c.h.b16 %v3368
  %v5004 = vunpack.c.l.b16 %v3369
  %v5005 = vunpack.c.h.b16 %v3369
  %v5006 = vunpack.c.l.b16 %v3370
  %v5007 = vunpack.c.h.b16 %v3370
  %v5008 = vunpack.c.l.b16 %v3371
  %v5009 = vunpack.c.h.b16 %v3371
  %v5010 = vunpack.c.l.b16 %v3372
  %v5011 = vunpack.c.h.b16 %v3372
  %v5012 = vunpack.c.l.b16 %v3373
  %v5013 = vunpack.c.h.b16 %v3373
  %v5014 = vunpack.c.l.b16 %v3374
  %v5015 = vunpack.c.h.b16 %v3374
  %v5016 = vunpack.c.l.b16 %v3375
  %v5017 = vunpack.c.h.b16 %v3375
  %v5018 = vunpack.c.l.b16 %v3376
  %v5019 = vunpack.c.h.b16 %v3376
  %v5020 = vunpack.c.l.b16 %v3377
  %v5021 = vunpack.c.h.b16 %v3377
  %v5022 = vunpack.c.l.b16 %v3378
  %v5023 = vunpack.c.h.b16 %v3378
  %v5024 = vunpack.c.l.b16 %v3379
  %v5025 = vunpack.c.h.b16 %v3379
  %v5026 = vunpack.c.l.b16 %v3380
  %v5027 = vunpack.c.h.b16 %v3380
  %v5028 = vunpack.c.l.b16 %v3381
  %v5029 = vunpack.c.h.b16 %v3381
  %v5030 = vunpack.c.l.b16 %v3382
  %v5031 = vunpack.c.h.b16 %v3382
  %v5032 = vunpack.c.l.b16 %v3383
  %v5033 = vunpack.c.h.b16 %v3383
  %v5034 = vunpack.c.l.b16 %v3384
  %v5035 = vunpack.c.h.b16 %v3384
  %v5036 = vunpack.c.l.b16 %v3385
  %v5037 = vunpack.c.h.b16 %v3385
  %v5038 = vunpack.c.l.b16 %v3386
  %v5039 = vunpack.c.h.b16 %v3386
  %v5040 = vunpack.c.l.b16 %v3387
  %v5041 = vunpack.c.h.b16 %v3387
  %v5042 = vunpack.c.l.b16 %v3388
  %v5043 = vunpack.c.h.b16 %v3388
  %v5044 = vunpack.c.l.b16 %v3389
  %v5045 = vunpack.c.h.b16 %v3389
  %v5046 = vunpack.c.l.b16 %v3390
  %v5047 = vunpack.c.h.b16 %v3390
  %v5048 = vunpack.c.l.b16 %v3391
  %v5049 = vunpack.c.h.b16 %v3391
  %v5050 = vunpack.c.l.b16 %v3392
  %v5051 = vunpack.c.h.b16 %v3392
  %v5052 = vunpack.c.l.b16 %v3393
  %v5053 = vunpack.c.h.b16 %v3393
  %v5054 = vunpack.c.l.b16 %v3394
  %v5055 = vunpack.c.h.b16 %v3394
  %v5056 = vunpack.c.l.b16 %v3395
  %v5057 = vunpack.c.h.b16 %v3395
  %v5058 = vunpack.c.l.b16 %v3396
  %v5059 = vunpack.c.h.b16 %v3396
  %v5060 = vunpack.c.l.b16 %v3397
  %v5061 = vunpack.c.h.b16 %v3397
  %v5062 = vunpack.c.l.b16 %v3398
  %v5063 = vunpack.c.h.b16 %v3398
  %v5064 = vunpack.c.l.b16 %v3399
  %v5065 = vunpack.c.h.b16 %v3399
  %v5066 = vunpack.c.l.b16 %v3400
  %v5067 = vunpack.c.h.b16 %v3400
  %v5068 = vunpack.c.l.b16 %v3401
  %v5069 = vunpack.c.h.b16 %v3401
  %v5070 = vunpack.c.l.b16 %v3402
  %v5071 = vunpack.c.h.b16 %v3402
  %v5072 = vunpack.c.l.b16 %v3403
  %v5073 = vunpack.c.h.b16 %v3403
  %v5074 = vunpack.c.l.b16 %v3404
  %v5075 = vunpack.c.h.b16 %v3404
  %v5076 = vunpack.c.l.b16 %v3405
  %v5077 = vunpack.c.h.b16 %v3405
  %v5078 = vunpack.c.l.b16 %v3406
  %v5079 = vunpack.c.h.b16 %v3406
  %v5080 = vunpack.c.l.b16 %v3407
  %v5081 = vunpack.c.h.b16 %v3407
  %v5082 = vunpack.c.l.b16 %v3408
  %v5083 = vunpack.c.h.b16 %v3408
  %v5084 = vunpack.c.l.b16 %v3409
  %v5085 = vunpack.c.h.b16 %v3409
  %v5086 = vunpack.c.l.b16 %v3410
  %v5087 = vunpack.c.h.b16 %v3410
  %v5088 = vunpack.c.l.b16 %v3411
  %v5089 = vunpack.c.h.b16 %v3411
  %v5090 = vunpack.c.l.b16 %v3412
  %v5091 = vunpack.c.h.b16 %v3412
  %v5092 = vunpack.c.l.b16 %v3413
  %v5093 = vunpack.c.h.b16 %v3413
  %v5094 = vpack.c.b16 %v4858, %v4854
  %v5095 = vpack.c.b16 %v4859, %v4855
  %v5096 = vpack.c.b16 %v4860, %v4856
  %v5097 = vpack.c.b16 %v4861, %v4857
  %v5098 = vpack.c.b16 %v4866, %v4862
  %v5099 = vpack.c.b16 %v4867, %v4863
  %v5100 = vpack.c.b16 %v4868, %v4864
  %v5101 = vpack.c.b16 %v4869, %v4865
  %v5102 = vpack.c.b16 %v4874, %v4870
  %v5103 = vpack.c.b16 %v4875, %v4871
  %v5104 = vpack.c.b16 %v4876, %v4872
  %v5105 = vpack.c.b16 %v4877, %v4873
  %v5106 = vpack.c.b16 %v4882, %v4878
  %v5107 = vpack.c.b16 %v4883, %v4879
  %v5108 = vpack.c.b16 %v4884, %v4880
  %v5109 = vpack.c.b16 %v4885, %v4881
  %v5110 = vpack.c.b16 %v4890, %v4886
  %v5111 = vpack.c.b16 %v4891, %v4887
  %v5112 = vpack.c.b16 %v4892, %v4888
  %v5113 = vpack.c.b16 %v4893, %v4889
  %v5114 = vpack.c.b16 %v4898, %v4894
  %v5115 = vpack.c.b16 %v4899, %v4895
  %v5116 = vpack.c.b16 %v4900, %v4896
  %v5117 = vpack.c.b16 %v4901, %v4897
  %v5118 = vpack.c.b16 %v4906, %v4902
  %v5119 = vpack.c.b16 %v4907, %v4903
  %v5120 = vpack.c.b16 %v4908, %v4904
  %v5121 = vpack.c.b16 %v4909, %v4905
  %v5122 = vpack.c.b16 %v4914, %v4910
  %v5123 = vpack.c.b16 %v4915, %v4911
  %v5124 = vpack.c.b16 %v4916, %v4912
  %v5125 = vpack.c.b16 %v4917, %v4913
  %v5126 = vpack.c.b16 %v4922, %v4918
  %v5127 = vpack.c.b16 %v4923, %v4919
  %v5128 = vpack.c.b16 %v4924, %v4920
  %v5129 = vpack.c.b16 %v4925, %v4921
  %v5130 = vpack.c.b16 %v4930, %v4926
  %v5131 = vpack.c.b16 %v4931, %v4927
  %v5132 = vpack.c.b16 %v4932, %v4928
  %v5133 = vpack.c.b16 %v4933, %v4929
  %v5134 = vpack.c.b16 %v4938, %v4934
  %v5135 = vpack.c.b16 %v4939, %v4935
  %v5136 = vpack.c.b16 %v4940, %v4936
  %v5137 = vpack.c.b16 %v4941, %v4937
  %v5138 = vpack.c.b16 %v4946, %v4942
  %v5139 = vpack.c.b16 %v4947, %v4943
  %v5140 = vpack.c.b16 %v4948, %v4944
  %v5141 = vpack.c.b16 %v4949, %v4945
  %v5142 = vpack.c.b16 %v4954, %v4950
  %v5143 = vpack.c.b16 %v4955, %v4951
  %v5144 = vpack.c.b16 %v4956, %v4952
  %v5145 = vpack.c.b16 %v4957, %v4953
  %v5146 = vpack.c.b16 %v4962, %v4958
  %v5147 = vpack.c.b16 %v4963, %v4959
  %v5148 = vpack.c.b16 %v4964, %v4960
  %v5149 = vpack.c.b16 %v4965, %v4961
  %v5150 = vpack.c.b16 %v4970, %v4966
  %v5151 = vpack.c.b16 %v4971, %v4967
  %v5152 = vpack.c.b16 %v4972, %v4968
  %v5153 = vpack.c.b16 %v4973, %v4969
  %v5154 = vpack.c.b16 %v4978, %v4974
  %v5155 = vpack.c.b16 %v4979, %v4975
  %v5156 = vpack.c.b16 %v4980, %v4976
  %v5157 = vpack.c.b16 %v4981, %v4977
  %v5158 = vpack.c.b16 %v4986, %v4982
  %v5159 = vpack.c.b16 %v4987, %v4983
  %v5160 = vpack.c.b16 %v4988, %v4984
  %v5161 = vpack.c.b16 %v4989, %v4985
  %v5162 = vpack.c.b16 %v4994, %v4990
  %v5163 = vpack.c.b16 %v4995, %v4991
  %v5164 = vpack.c.b16 %v4996, %v4992
  %v5165 = vpack.c.b16 %v4997, %v4993
  %v5166 = vpack.c.b16 %v5002, %v4998
  %v5167 = vpack.c.b16 %v5003, %v4999
  %v5168 = vpack.c.b16 %v5004, %v5000
  %v5169 = vpack.c.b16 %v5005, %v5001
  %v5170 = vpack.c.b16 %v5010, %v5006
  %v5171 = vpack.c.b16 %v5011, %v5007
  %v5172 = vpack.c.b16 %v5012, %v5008
  %v5173 = vpack.c.b16 %v5013, %v5009
  %v5174 = vpack.c.b16 %v5018, %v5014
  %v5175 = vpack.c.b16 %v5019, %v5015
  %v5176 = vpack.c.b16 %v5020, %v5016
  %v5177 = vpack.c.b16 %v5021, %v5017
  %v5178 = vpack.c.b16 %v5026, %v5022
  %v5179 = vpack.c.b16 %v5027, %v5023
  %v5180 = vpack.c.b16 %v5028, %v5024
  %v5181 = vpack.c.b16 %v5029, %v5025
  %v5182 = vpack.c.b16 %v5034, %v5030
  %v5183 = vpack.c.b16 %v5035, %v5031
  %v5184 = vpack.c.b16 %v5036, %v5032
  %v5185 = vpack.c.b16 %v5037, %v5033
  %v5186 = vpack.c.b16 %v5042, %v5038
  %v5187 = vpack.c.b16 %v5043, %v5039
  %v5188 = vpack.c.b16 %v5044, %v5040
  %v5189 = vpack.c.b16 %v5045, %v5041
  %v5190 = vpack.c.b16 %v5050, %v5046
  %v5191 = vpack.c.b16 %v5051, %v5047
  %v5192 = vpack.c.b16 %v5052, %v5048
  %v5193 = vpack.c.b16 %v5053, %v5049
  %v5194 = vpack.c.b16 %v5058, %v5054
  %v5195 = vpack.c.b16 %v5059, %v5055
  %v5196 = vpack.c.b16 %v5060, %v5056
  %v5197 = vpack.c.b16 %v5061, %v5057
  %v5198 = vpack.c.b16 %v5066, %v5062
  %v5199 = vpack.c.b16 %v5067, %v5063
  %v5200 = vpack.c.b16 %v5068, %v5064
  %v5201 = vpack.c.b16 %v5069, %v5065
  %v5202 = vpack.c.b16 %v5074, %v5070
  %v5203 = vpack.c.b16 %v5075, %v5071
  %v5204 = vpack.c.b16 %v5076, %v5072
  %v5205 = vpack.c.b16 %v5077, %v5073
  %v5206 = vpack.c.b16 %v5082, %v5078
  %v5207 = vpack.c.b16 %v5083, %v5079
  %v5208 = vpack.c.b16 %v5084, %v5080
  %v5209 = vpack.c.b16 %v5085, %v5081
  %v5210 = vpack.c.b16 %v5090, %v5086
  %v5211 = vpack.c.b16 %v5091, %v5087
  %v5212 = vpack.c.b16 %v5092, %v5088
  %v5213 = vpack.c.b16 %v5093, %v5089
  %v5331 = vsel %vm4207, %v4709, 0
  %v5334 = vsel %vm4207, %v4713, 0
  %v5337 = vsel %vm4207, %v4717, 0
  %v5340 = vsel %vm4207, %v4721, 0
  %v5343 = vand.u32 %v5210, %v4223
  %v5346 = vand.u32 %v5211, %v4223
  %v5349 = vand.u32 %v5212, %v4223
  %v5352 = vand.u32 %v5213, %v4223
  %5354 = vmatpush.bf16.msra.mxu0 %v5122
  %5355 = vmatpush.bf16.msra.mxu0 %v5118
  %5356 = vmatpush.bf16.msra.mxu0 %v5114
  %5357 = vmatpush.bf16.msra.mxu0 %v5110
  %5358 = vmatpush.bf16.msra.mxu0 %v5106
  %5359 = vmatpush.bf16.msra.mxu0 %v5102
  %5360 = vmatpush.bf16.msra.mxu0 %v5098
  %5361 = vmatpush.bf16.msra.mxu0 %v5094
  %5362 = vmatmul.bf16.gmra.mxu0 %v4706
  %v5363 = vpop.f32.mrf.mxu0
  %v5364 = vadd.f32 %v4333, %v5363
  %v5365 = vpop.f32.mrf.mxu0
  %v5366 = vadd.f32 %v4335, %v5365
  %5367 = vmatmul.bf16.gmra.mxu0 %v4710
  %v5368 = vpop.f32.mrf.mxu0
  %v5369 = vadd.f32 %v4338, %v5368
  %v5370 = vpop.f32.mrf.mxu0
  %v5371 = vadd.f32 %v4340, %v5370
  %5372 = vmatmul.bf16.gmra.mxu0 %v4714
  %v5373 = vpop.f32.mrf.mxu0
  %v5374 = vadd.f32 %v4343, %v5373
  %v5375 = vpop.f32.mrf.mxu0
  %v5376 = vadd.f32 %v4345, %v5375
  %5377 = vmatmul.bf16.gmra.mxu0 %v4718
  %v5378 = vpop.f32.mrf.mxu0
  %v5379 = vadd.f32 %v4348, %v5378
  %v5380 = vpop.f32.mrf.mxu0
  %v5381 = vadd.f32 %v4350, %v5380
  %5382 = vdwg.mxu0
  %5383 = vmatpush.bf16.msra.mxu0 %v5154
  %5384 = vmatpush.bf16.msra.mxu0 %v5150
  %5385 = vmatpush.bf16.msra.mxu0 %v5146
  %5386 = vmatpush.bf16.msra.mxu0 %v5142
  %5387 = vmatpush.bf16.msra.mxu0 %v5138
  %5388 = vmatpush.bf16.msra.mxu0 %v5134
  %5389 = vmatpush.bf16.msra.mxu0 %v5130
  %5390 = vmatpush.bf16.msra.mxu0 %v5126
  %5391 = vmatmul.bf16.gmra.mxu0 %v4707
  %v5392 = vpop.f32.mrf.mxu0
  %v5393 = vadd.f32 %v5364, %v5392
  %v5394 = vpop.f32.mrf.mxu0
  %v5395 = vadd.f32 %v5366, %v5394
  %5396 = vmatmul.bf16.gmra.mxu0 %v4711
  %v5397 = vpop.f32.mrf.mxu0
  %v5398 = vadd.f32 %v5369, %v5397
  %v5399 = vpop.f32.mrf.mxu0
  %v5400 = vadd.f32 %v5371, %v5399
  %5401 = vmatmul.bf16.gmra.mxu0 %v4715
  %v5402 = vpop.f32.mrf.mxu0
  %v5403 = vadd.f32 %v5374, %v5402
  %v5404 = vpop.f32.mrf.mxu0
  %v5405 = vadd.f32 %v5376, %v5404
  %5406 = vmatmul.bf16.gmra.mxu0 %v4719
  %v5407 = vpop.f32.mrf.mxu0
  %v5408 = vadd.f32 %v5379, %v5407
  %v5409 = vpop.f32.mrf.mxu0
  %v5410 = vadd.f32 %v5381, %v5409
  %5411 = vdwg.mxu0
  %5412 = vmatpush.bf16.msra.mxu0 %v5186
  %5413 = vmatpush.bf16.msra.mxu0 %v5182
  %5414 = vmatpush.bf16.msra.mxu0 %v5178
  %5415 = vmatpush.bf16.msra.mxu0 %v5174
  %5416 = vmatpush.bf16.msra.mxu0 %v5170
  %5417 = vmatpush.bf16.msra.mxu0 %v5166
  %5418 = vmatpush.bf16.msra.mxu0 %v5162
  %5419 = vmatpush.bf16.msra.mxu0 %v5158
  %5420 = vmatmul.bf16.gmra.mxu0 %v4708
  %v5421 = vpop.f32.mrf.mxu0
  %v5422 = vadd.f32 %v5393, %v5421
  %v5423 = vpop.f32.mrf.mxu0
  %v5424 = vadd.f32 %v5395, %v5423
  %5425 = vmatmul.bf16.gmra.mxu0 %v4712
  %v5426 = vpop.f32.mrf.mxu0
  %v5427 = vadd.f32 %v5398, %v5426
  %v5428 = vpop.f32.mrf.mxu0
  %v5429 = vadd.f32 %v5400, %v5428
  %5430 = vmatmul.bf16.gmra.mxu0 %v4716
  %v5431 = vpop.f32.mrf.mxu0
  %v5432 = vadd.f32 %v5403, %v5431
  %v5433 = vpop.f32.mrf.mxu0
  %v5434 = vadd.f32 %v5405, %v5433
  %5435 = vmatmul.bf16.gmra.mxu0 %v4720
  %v5436 = vpop.f32.mrf.mxu0
  %v5437 = vadd.f32 %v5408, %v5436
  %v5438 = vpop.f32.mrf.mxu0
  %v5439 = vadd.f32 %v5410, %v5438
  %5440 = vdwg.mxu0
  %5441 = vmatpush.bf16.msra.mxu0 0
  %5442 = vmatpush.bf16.msra.mxu0 0
  %5443 = vmatpush.bf16.msra.mxu0 %v5343
  %5444 = vmatpush.bf16.msra.mxu0 %v5206
  %5445 = vmatpush.bf16.msra.mxu0 %v5202
  %5446 = vmatpush.bf16.msra.mxu0 %v5198
  %5447 = vmatpush.bf16.msra.mxu0 %v5194
  %5448 = vmatpush.bf16.msra.mxu0 %v5190
  %5449 = vmatmul.bf16.gmra.mxu0 %v5331
  %v5450 = vpop.f32.mrf.mxu0
  %v5451 = vadd.f32 %v5422, %v5450
  %v5452 = vpop.f32.mrf.mxu0
  %v5453 = vadd.f32 %v5424, %v5452
  %5454 = vmatmul.bf16.gmra.mxu0 %v5334
  %v5455 = vpop.f32.mrf.mxu0
  %v5456 = vadd.f32 %v5427, %v5455
  %v5457 = vpop.f32.mrf.mxu0
  %v5458 = vadd.f32 %v5429, %v5457
  %5459 = vmatmul.bf16.gmra.mxu0 %v5337
  %v5460 = vpop.f32.mrf.mxu0
  %v5461 = vadd.f32 %v5432, %v5460
  %v5462 = vpop.f32.mrf.mxu0
  %v5463 = vadd.f32 %v5434, %v5462
  %5464 = vmatmul.bf16.gmra.mxu0 %v5340
  %v5465 = vpop.f32.mrf.mxu0
  %v5466 = vadd.f32 %v5437, %v5465
  %v5467 = vpop.f32.mrf.mxu0
  %v5468 = vadd.f32 %v5439, %v5467
  %5469 = vdwg.mxu0
  %5470 = vmatpush.bf16.msra.mxu0 %v5123
  %5471 = vmatpush.bf16.msra.mxu0 %v5119
  %5472 = vmatpush.bf16.msra.mxu0 %v5115
  %5473 = vmatpush.bf16.msra.mxu0 %v5111
  %5474 = vmatpush.bf16.msra.mxu0 %v5107
  %5475 = vmatpush.bf16.msra.mxu0 %v5103
  %5476 = vmatpush.bf16.msra.mxu0 %v5099
  %5477 = vmatpush.bf16.msra.mxu0 %v5095
  %5478 = vmatmul.bf16.gmra.mxu0 %v4706
  %v5479 = vpop.f32.mrf.mxu0
  %v5480 = vadd.f32 %v4449, %v5479
  %v5481 = vpop.f32.mrf.mxu0
  %v5482 = vadd.f32 %v4451, %v5481
  %5483 = vmatmul.bf16.gmra.mxu0 %v4710
  %v5484 = vpop.f32.mrf.mxu0
  %v5485 = vadd.f32 %v4454, %v5484
  %v5486 = vpop.f32.mrf.mxu0
  %v5487 = vadd.f32 %v4456, %v5486
  %5488 = vmatmul.bf16.gmra.mxu0 %v4714
  %v5489 = vpop.f32.mrf.mxu0
  %v5490 = vadd.f32 %v4459, %v5489
  %v5491 = vpop.f32.mrf.mxu0
  %v5492 = vadd.f32 %v4461, %v5491
  %5493 = vmatmul.bf16.gmra.mxu0 %v4718
  %v5494 = vpop.f32.mrf.mxu0
  %v5495 = vadd.f32 %v4464, %v5494
  %v5496 = vpop.f32.mrf.mxu0
  %v5497 = vadd.f32 %v4466, %v5496
  %5498 = vdwg.mxu0
  %5499 = vmatpush.bf16.msra.mxu0 %v5155
  %5500 = vmatpush.bf16.msra.mxu0 %v5151
  %5501 = vmatpush.bf16.msra.mxu0 %v5147
  %5502 = vmatpush.bf16.msra.mxu0 %v5143
  %5503 = vmatpush.bf16.msra.mxu0 %v5139
  %5504 = vmatpush.bf16.msra.mxu0 %v5135
  %5505 = vmatpush.bf16.msra.mxu0 %v5131
  %5506 = vmatpush.bf16.msra.mxu0 %v5127
  %5507 = vmatmul.bf16.gmra.mxu0 %v4707
  %v5508 = vpop.f32.mrf.mxu0
  %v5509 = vadd.f32 %v5480, %v5508
  %v5510 = vpop.f32.mrf.mxu0
  %v5511 = vadd.f32 %v5482, %v5510
  %5512 = vmatmul.bf16.gmra.mxu0 %v4711
  %v5513 = vpop.f32.mrf.mxu0
  %v5514 = vadd.f32 %v5485, %v5513
  %v5515 = vpop.f32.mrf.mxu0
  %v5516 = vadd.f32 %v5487, %v5515
  %5517 = vmatmul.bf16.gmra.mxu0 %v4715
  %v5518 = vpop.f32.mrf.mxu0
  %v5519 = vadd.f32 %v5490, %v5518
  %v5520 = vpop.f32.mrf.mxu0
  %v5521 = vadd.f32 %v5492, %v5520
  %5522 = vmatmul.bf16.gmra.mxu0 %v4719
  %v5523 = vpop.f32.mrf.mxu0
  %v5524 = vadd.f32 %v5495, %v5523
  %v5525 = vpop.f32.mrf.mxu0
  %v5526 = vadd.f32 %v5497, %v5525
  %5527 = vdwg.mxu0
  %5528 = vmatpush.bf16.msra.mxu0 %v5187
  %5529 = vmatpush.bf16.msra.mxu0 %v5183
  %5530 = vmatpush.bf16.msra.mxu0 %v5179
  %5531 = vmatpush.bf16.msra.mxu0 %v5175
  %5532 = vmatpush.bf16.msra.mxu0 %v5171
  %5533 = vmatpush.bf16.msra.mxu0 %v5167
  %5534 = vmatpush.bf16.msra.mxu0 %v5163
  %5535 = vmatpush.bf16.msra.mxu0 %v5159
  %5536 = vmatmul.bf16.gmra.mxu0 %v4708
  %v5537 = vpop.f32.mrf.mxu0
  %v5538 = vadd.f32 %v5509, %v5537
  %v5539 = vpop.f32.mrf.mxu0
  %v5540 = vadd.f32 %v5511, %v5539
  %5541 = vmatmul.bf16.gmra.mxu0 %v4712
  %v5542 = vpop.f32.mrf.mxu0
  %v5543 = vadd.f32 %v5514, %v5542
  %v5544 = vpop.f32.mrf.mxu0
  %v5545 = vadd.f32 %v5516, %v5544
  %5546 = vmatmul.bf16.gmra.mxu0 %v4716
  %v5547 = vpop.f32.mrf.mxu0
  %v5548 = vadd.f32 %v5519, %v5547
  %v5549 = vpop.f32.mrf.mxu0
  %v5550 = vadd.f32 %v5521, %v5549
  %5551 = vmatmul.bf16.gmra.mxu0 %v4720
  %v5552 = vpop.f32.mrf.mxu0
  %v5553 = vadd.f32 %v5524, %v5552
  %v5554 = vpop.f32.mrf.mxu0
  %v5555 = vadd.f32 %v5526, %v5554
  %5556 = vdwg.mxu0
  %5557 = vmatpush.bf16.msra.mxu0 0
  %5558 = vmatpush.bf16.msra.mxu0 0
  %5559 = vmatpush.bf16.msra.mxu0 %v5346
  %5560 = vmatpush.bf16.msra.mxu0 %v5207
  %5561 = vmatpush.bf16.msra.mxu0 %v5203
  %5562 = vmatpush.bf16.msra.mxu0 %v5199
  %5563 = vmatpush.bf16.msra.mxu0 %v5195
  %5564 = vmatpush.bf16.msra.mxu0 %v5191
  %5565 = vmatmul.bf16.gmra.mxu0 %v5331
  %v5566 = vpop.f32.mrf.mxu0
  %v5567 = vadd.f32 %v5538, %v5566
  %v5568 = vpop.f32.mrf.mxu0
  %v5569 = vadd.f32 %v5540, %v5568
  %5570 = vmatmul.bf16.gmra.mxu0 %v5334
  %v5571 = vpop.f32.mrf.mxu0
  %v5572 = vadd.f32 %v5543, %v5571
  %v5573 = vpop.f32.mrf.mxu0
  %v5574 = vadd.f32 %v5545, %v5573
  %5575 = vmatmul.bf16.gmra.mxu0 %v5337
  %v5576 = vpop.f32.mrf.mxu0
  %v5577 = vadd.f32 %v5548, %v5576
  %v5578 = vpop.f32.mrf.mxu0
  %v5579 = vadd.f32 %v5550, %v5578
  %5580 = vmatmul.bf16.gmra.mxu0 %v5340
  %v5581 = vpop.f32.mrf.mxu0
  %v5582 = vadd.f32 %v5553, %v5581
  %v5583 = vpop.f32.mrf.mxu0
  %v5584 = vadd.f32 %v5555, %v5583
  %5585 = vdwg.mxu0
  %5586 = vmatpush.bf16.msra.mxu0 %v5124
  %5587 = vmatpush.bf16.msra.mxu0 %v5120
  %5588 = vmatpush.bf16.msra.mxu0 %v5116
  %5589 = vmatpush.bf16.msra.mxu0 %v5112
  %5590 = vmatpush.bf16.msra.mxu0 %v5108
  %5591 = vmatpush.bf16.msra.mxu0 %v5104
  %5592 = vmatpush.bf16.msra.mxu0 %v5100
  %5593 = vmatpush.bf16.msra.mxu0 %v5096
  %5594 = vmatmul.bf16.gmra.mxu0 %v4706
  %v5595 = vpop.f32.mrf.mxu0
  %v5596 = vadd.f32 %v4565, %v5595
  %v5597 = vpop.f32.mrf.mxu0
  %v5598 = vadd.f32 %v4567, %v5597
  %5599 = vmatmul.bf16.gmra.mxu0 %v4710
  %v5600 = vpop.f32.mrf.mxu0
  %v5601 = vadd.f32 %v4570, %v5600
  %v5602 = vpop.f32.mrf.mxu0
  %v5603 = vadd.f32 %v4572, %v5602
  %5604 = vmatmul.bf16.gmra.mxu0 %v4714
  %v5605 = vpop.f32.mrf.mxu0
  %v5606 = vadd.f32 %v4575, %v5605
  %v5607 = vpop.f32.mrf.mxu0
  %v5608 = vadd.f32 %v4577, %v5607
  %5609 = vmatmul.bf16.gmra.mxu0 %v4718
  %v5610 = vpop.f32.mrf.mxu0
  %v5611 = vadd.f32 %v4580, %v5610
  %v5612 = vpop.f32.mrf.mxu0
  %v5613 = vadd.f32 %v4582, %v5612
  %5614 = vdwg.mxu0
  %5615 = vmatpush.bf16.msra.mxu0 %v5156
  %5616 = vmatpush.bf16.msra.mxu0 %v5152
  %5617 = vmatpush.bf16.msra.mxu0 %v5148
  %5618 = vmatpush.bf16.msra.mxu0 %v5144
  %5619 = vmatpush.bf16.msra.mxu0 %v5140
  %5620 = vmatpush.bf16.msra.mxu0 %v5136
  %5621 = vmatpush.bf16.msra.mxu0 %v5132
  %5622 = vmatpush.bf16.msra.mxu0 %v5128
  %5623 = vmatmul.bf16.gmra.mxu0 %v4707
  %v5624 = vpop.f32.mrf.mxu0
  %v5625 = vadd.f32 %v5596, %v5624
  %v5626 = vpop.f32.mrf.mxu0
  %v5627 = vadd.f32 %v5598, %v5626
  %5628 = vmatmul.bf16.gmra.mxu0 %v4711
  %v5629 = vpop.f32.mrf.mxu0
  %v5630 = vadd.f32 %v5601, %v5629
  %v5631 = vpop.f32.mrf.mxu0
  %v5632 = vadd.f32 %v5603, %v5631
  %5633 = vmatmul.bf16.gmra.mxu0 %v4715
  %v5634 = vpop.f32.mrf.mxu0
  %v5635 = vadd.f32 %v5606, %v5634
  %v5636 = vpop.f32.mrf.mxu0
  %v5637 = vadd.f32 %v5608, %v5636
  %5638 = vmatmul.bf16.gmra.mxu0 %v4719
  %v5639 = vpop.f32.mrf.mxu0
  %v5640 = vadd.f32 %v5611, %v5639
  %v5641 = vpop.f32.mrf.mxu0
  %v5642 = vadd.f32 %v5613, %v5641
  %5643 = vdwg.mxu0
  %5644 = vmatpush.bf16.msra.mxu0 %v5188
  %5645 = vmatpush.bf16.msra.mxu0 %v5184
  %5646 = vmatpush.bf16.msra.mxu0 %v5180
  %5647 = vmatpush.bf16.msra.mxu0 %v5176
  %5648 = vmatpush.bf16.msra.mxu0 %v5172
  %5649 = vmatpush.bf16.msra.mxu0 %v5168
  %5650 = vmatpush.bf16.msra.mxu0 %v5164
  %5651 = vmatpush.bf16.msra.mxu0 %v5160
  %5652 = vmatmul.bf16.gmra.mxu0 %v4708
  %v5653 = vpop.f32.mrf.mxu0
  %v5654 = vadd.f32 %v5625, %v5653
  %v5655 = vpop.f32.mrf.mxu0
  %v5656 = vadd.f32 %v5627, %v5655
  %5657 = vmatmul.bf16.gmra.mxu0 %v4712
  %v5658 = vpop.f32.mrf.mxu0
  %v5659 = vadd.f32 %v5630, %v5658
  %v5660 = vpop.f32.mrf.mxu0
  %v5661 = vadd.f32 %v5632, %v5660
  %5662 = vmatmul.bf16.gmra.mxu0 %v4716
  %v5663 = vpop.f32.mrf.mxu0
  %v5664 = vadd.f32 %v5635, %v5663
  %v5665 = vpop.f32.mrf.mxu0
  %v5666 = vadd.f32 %v5637, %v5665
  %5667 = vmatmul.bf16.gmra.mxu0 %v4720
  %v5668 = vpop.f32.mrf.mxu0
  %v5669 = vadd.f32 %v5640, %v5668
  %v5670 = vpop.f32.mrf.mxu0
  %v5671 = vadd.f32 %v5642, %v5670
  %5672 = vdwg.mxu0
  %5673 = vmatpush.bf16.msra.mxu0 0
  %5674 = vmatpush.bf16.msra.mxu0 0
  %5675 = vmatpush.bf16.msra.mxu0 %v5349
  %5676 = vmatpush.bf16.msra.mxu0 %v5208
  %5677 = vmatpush.bf16.msra.mxu0 %v5204
  %5678 = vmatpush.bf16.msra.mxu0 %v5200
  %5679 = vmatpush.bf16.msra.mxu0 %v5196
  %5680 = vmatpush.bf16.msra.mxu0 %v5192
  %5681 = vmatmul.bf16.gmra.mxu0 %v5331
  %v5682 = vpop.f32.mrf.mxu0
  %v5683 = vadd.f32 %v5654, %v5682
  %v5684 = vpop.f32.mrf.mxu0
  %v5685 = vadd.f32 %v5656, %v5684
  %5686 = vmatmul.bf16.gmra.mxu0 %v5334
  %v5687 = vpop.f32.mrf.mxu0
  %v5688 = vadd.f32 %v5659, %v5687
  %v5689 = vpop.f32.mrf.mxu0
  %v5690 = vadd.f32 %v5661, %v5689
  %5691 = vmatmul.bf16.gmra.mxu0 %v5337
  %v5692 = vpop.f32.mrf.mxu0
  %v5693 = vadd.f32 %v5664, %v5692
  %v5694 = vpop.f32.mrf.mxu0
  %v5695 = vadd.f32 %v5666, %v5694
  %5696 = vmatmul.bf16.gmra.mxu0 %v5340
  %v5697 = vpop.f32.mrf.mxu0
  %v5698 = vadd.f32 %v5669, %v5697
  %v5699 = vpop.f32.mrf.mxu0
  %v5700 = vadd.f32 %v5671, %v5699
  %5701 = vdwg.mxu0
  %5702 = vmatpush.bf16.msra.mxu0 %v5125
  %5703 = vmatpush.bf16.msra.mxu0 %v5121
  %5704 = vmatpush.bf16.msra.mxu0 %v5117
  %5705 = vmatpush.bf16.msra.mxu0 %v5113
  %5706 = vmatpush.bf16.msra.mxu0 %v5109
  %5707 = vmatpush.bf16.msra.mxu0 %v5105
  %5708 = vmatpush.bf16.msra.mxu0 %v5101
  %5709 = vmatpush.bf16.msra.mxu0 %v5097
  %5710 = vmatmul.bf16.gmra.mxu0 %v4706
  %v5711 = vpop.f32.mrf.mxu0
  %v5712 = vadd.f32 %v4681, %v5711
  %v5713 = vpop.f32.mrf.mxu0
  %v5714 = vadd.f32 %v4683, %v5713
  %5715 = vmatmul.bf16.gmra.mxu0 %v4710
  %v5716 = vpop.f32.mrf.mxu0
  %v5717 = vadd.f32 %v4686, %v5716
  %v5718 = vpop.f32.mrf.mxu0
  %v5719 = vadd.f32 %v4688, %v5718
  %5720 = vmatmul.bf16.gmra.mxu0 %v4714
  %v5721 = vpop.f32.mrf.mxu0
  %v5722 = vadd.f32 %v4691, %v5721
  %v5723 = vpop.f32.mrf.mxu0
  %v5724 = vadd.f32 %v4693, %v5723
  %5725 = vmatmul.bf16.gmra.mxu0 %v4718
  %v5726 = vpop.f32.mrf.mxu0
  %v5727 = vadd.f32 %v4696, %v5726
  %v5728 = vpop.f32.mrf.mxu0
  %v5729 = vadd.f32 %v4698, %v5728
  %5730 = vdwg.mxu0
  %5731 = vmatpush.bf16.msra.mxu0 %v5157
  %5732 = vmatpush.bf16.msra.mxu0 %v5153
  %5733 = vmatpush.bf16.msra.mxu0 %v5149
  %5734 = vmatpush.bf16.msra.mxu0 %v5145
  %5735 = vmatpush.bf16.msra.mxu0 %v5141
  %5736 = vmatpush.bf16.msra.mxu0 %v5137
  %5737 = vmatpush.bf16.msra.mxu0 %v5133
  %5738 = vmatpush.bf16.msra.mxu0 %v5129
  %5739 = vmatmul.bf16.gmra.mxu0 %v4707
  %v5740 = vpop.f32.mrf.mxu0
  %v5741 = vadd.f32 %v5712, %v5740
  %v5742 = vpop.f32.mrf.mxu0
  %v5743 = vadd.f32 %v5714, %v5742
  %5744 = vmatmul.bf16.gmra.mxu0 %v4711
  %v5745 = vpop.f32.mrf.mxu0
  %v5746 = vadd.f32 %v5717, %v5745
  %v5747 = vpop.f32.mrf.mxu0
  %v5748 = vadd.f32 %v5719, %v5747
  %5749 = vmatmul.bf16.gmra.mxu0 %v4715
  %v5750 = vpop.f32.mrf.mxu0
  %v5751 = vadd.f32 %v5722, %v5750
  %v5752 = vpop.f32.mrf.mxu0
  %v5753 = vadd.f32 %v5724, %v5752
  %5754 = vmatmul.bf16.gmra.mxu0 %v4719
  %v5755 = vpop.f32.mrf.mxu0
  %v5756 = vadd.f32 %v5727, %v5755
  %v5757 = vpop.f32.mrf.mxu0
  %v5758 = vadd.f32 %v5729, %v5757
  %5759 = vdwg.mxu0
  %5760 = vmatpush.bf16.msra.mxu0 %v5189
  %5761 = vmatpush.bf16.msra.mxu0 %v5185
  %5762 = vmatpush.bf16.msra.mxu0 %v5181
  %5763 = vmatpush.bf16.msra.mxu0 %v5177
  %5764 = vmatpush.bf16.msra.mxu0 %v5173
  %5765 = vmatpush.bf16.msra.mxu0 %v5169
  %5766 = vmatpush.bf16.msra.mxu0 %v5165
  %5767 = vmatpush.bf16.msra.mxu0 %v5161
  %5768 = vmatmul.bf16.gmra.mxu0 %v4708
  %v5769 = vpop.f32.mrf.mxu0
  %v5770 = vadd.f32 %v5741, %v5769
  %v5771 = vpop.f32.mrf.mxu0
  %v5772 = vadd.f32 %v5743, %v5771
  %5773 = vmatmul.bf16.gmra.mxu0 %v4712
  %v5774 = vpop.f32.mrf.mxu0
  %v5775 = vadd.f32 %v5746, %v5774
  %v5776 = vpop.f32.mrf.mxu0
  %v5777 = vadd.f32 %v5748, %v5776
  %5778 = vmatmul.bf16.gmra.mxu0 %v4716
  %v5779 = vpop.f32.mrf.mxu0
  %v5780 = vadd.f32 %v5751, %v5779
  %v5781 = vpop.f32.mrf.mxu0
  %v5782 = vadd.f32 %v5753, %v5781
  %5783 = vmatmul.bf16.gmra.mxu0 %v4720
  %v5784 = vpop.f32.mrf.mxu0
  %v5785 = vadd.f32 %v5756, %v5784
  %v5786 = vpop.f32.mrf.mxu0
  %v5787 = vadd.f32 %v5758, %v5786
  %5788 = vdwg.mxu0
  %5789 = vmatpush.bf16.msra.mxu0 0
  %5790 = vmatpush.bf16.msra.mxu0 0
  %5791 = vmatpush.bf16.msra.mxu0 %v5352
  %5792 = vmatpush.bf16.msra.mxu0 %v5209
  %5793 = vmatpush.bf16.msra.mxu0 %v5205
  %5794 = vmatpush.bf16.msra.mxu0 %v5201
  %5795 = vmatpush.bf16.msra.mxu0 %v5197
  %5796 = vmatpush.bf16.msra.mxu0 %v5193
  %5797 = vmatmul.bf16.gmra.mxu0 %v5331
  %v5798 = vpop.f32.mrf.mxu0
  %v5799 = vadd.f32 %v5770, %v5798
  %v5800 = vpop.f32.mrf.mxu0
  %v5801 = vadd.f32 %v5772, %v5800
  %5802 = vmatmul.bf16.gmra.mxu0 %v5334
  %v5803 = vpop.f32.mrf.mxu0
  %v5804 = vadd.f32 %v5775, %v5803
  %v5805 = vpop.f32.mrf.mxu0
  %v5806 = vadd.f32 %v5777, %v5805
  %5807 = vmatmul.bf16.gmra.mxu0 %v5337
  %v5808 = vpop.f32.mrf.mxu0
  %v5809 = vadd.f32 %v5780, %v5808
  %v5810 = vpop.f32.mrf.mxu0
  %v5811 = vadd.f32 %v5782, %v5810
  %5812 = vmatmul.bf16.gmra.mxu0 %v5340
  %v5813 = vpop.f32.mrf.mxu0
  %v5814 = vadd.f32 %v5785, %v5813
  %v5815 = vpop.f32.mrf.mxu0
  %v5816 = vadd.f32 %v5787, %v5815
  %5817 = vdwg.mxu0
  %s5818 = scalar_lea.vmem %s3, 1920
  %v5819 = vld [vmem:[%s5818] sm:$0xff]
  %v5820 = vld [vmem:[%s5818 + $0x8] sm:$0xff]
  %v5821 = vld [vmem:[%s5818 + $0x10] sm:$0xff]
  %v5822 = vld [vmem:[%s5818 + $0x18] sm:$0xff]
  %v5823 = vld [vmem:[%s5818 + $0x20] sm:$0xff]
  %v5824 = vld [vmem:[%s5818 + $0x28] sm:$0xff]
  %v5825 = vld [vmem:[%s5818 + $0x30] sm:$0xff]
  %v5826 = vld [vmem:[%s5818 + $0x38] sm:$0xff]
  %v5827 = vld [vmem:[%s5818 + $0x40] sm:$0xff]
  %v5828 = vld [vmem:[%s5818 + $0x48] sm:$0xff]
  %v5829 = vld [vmem:[%s5818 + $0x50] sm:$0xff]
  %v5830 = vld [vmem:[%s5818 + $0x58] sm:$0xff]
  %v5831 = vld [vmem:[%s5818 + $0x60] sm:$0xff]
  %v5832 = vld [vmem:[%s5818 + $0x68] sm:$0xff]
  %v5833 = vld [vmem:[%s5818 + $0x70] sm:$0xff]
  %v5834 = vld [vmem:[%s5818 + $0x78] sm:$0xff]
  %v5835 = vld [vmem:[%s5818 + $0x80] sm:$0xff]
  %v5836 = vld [vmem:[%s5818 + $0x88] sm:$0xff]
  %v5837 = vld [vmem:[%s5818 + $0x90] sm:$0xff]
  %v5838 = vld [vmem:[%s5818 + $0x98] sm:$0xff]
  %v5839 = vld [vmem:[%s5818 + $0xa0] sm:$0xff]
  %v5840 = vld [vmem:[%s5818 + $0xa8] sm:$0xff]
  %v5841 = vld [vmem:[%s5818 + $0xb0] sm:$0xff]
  %v5842 = vld [vmem:[%s5818 + $0xb8] sm:$0xff]
  %v5843 = vld [vmem:[%s5818 + $0xc0] sm:$0xff]
  %v5844 = vld [vmem:[%s5818 + $0xc8] sm:$0xff]
  %v5845 = vld [vmem:[%s5818 + $0xd0] sm:$0xff]
  %v5846 = vld [vmem:[%s5818 + $0xd8] sm:$0xff]
  %v5847 = vld [vmem:[%s5818 + $0xe0] sm:$0xff]
  %v5848 = vld [vmem:[%s5818 + $0xe8] sm:$0xff]
  %v5849 = vld [vmem:[%s5818 + $0xf0] sm:$0xff]
  %v5850 = vld [vmem:[%s5818 + $0xf8] sm:$0xff]
  %v5851 = vld [vmem:[%s5818 + $0x100] sm:$0xff]
  %v5852 = vld [vmem:[%s5818 + $0x108] sm:$0xff]
  %v5853 = vld [vmem:[%s5818 + $0x110] sm:$0xff]
  %v5854 = vld [vmem:[%s5818 + $0x118] sm:$0xff]
  %v5855 = vld [vmem:[%s5818 + $0x120] sm:$0xff]
  %v5856 = vld [vmem:[%s5818 + $0x128] sm:$0xff]
  %v5857 = vld [vmem:[%s5818 + $0x130] sm:$0xff]
  %v5858 = vld [vmem:[%s5818 + $0x138] sm:$0xff]
  %v5859 = vld [vmem:[%s5818 + $0x140] sm:$0xff]
  %v5860 = vld [vmem:[%s5818 + $0x148] sm:$0xff]
  %v5861 = vld [vmem:[%s5818 + $0x150] sm:$0xff]
  %v5862 = vld [vmem:[%s5818 + $0x158] sm:$0xff]
  %v5863 = vld [vmem:[%s5818 + $0x160] sm:$0xff]
  %v5864 = vld [vmem:[%s5818 + $0x168] sm:$0xff]
  %v5865 = vld [vmem:[%s5818 + $0x170] sm:$0xff]
  %v5866 = vld [vmem:[%s5818 + $0x178] sm:$0xff]
  %v5867 = vld [vmem:[%s5818 + $0x180] sm:$0xff]
  %v5868 = vld [vmem:[%s5818 + $0x188] sm:$0xff]
  %v5869 = vld [vmem:[%s5818 + $0x190] sm:$0xff]
  %v5870 = vld [vmem:[%s5818 + $0x198] sm:$0xff]
  %v5871 = vld [vmem:[%s5818 + $0x1a0] sm:$0xff]
  %v5872 = vld [vmem:[%s5818 + $0x1a8] sm:$0xff]
  %v5873 = vld [vmem:[%s5818 + $0x1b0] sm:$0xff]
  %v5874 = vld [vmem:[%s5818 + $0x1b8] sm:$0xff]
  %v5875 = vld [vmem:[%s5818 + $0x1c0] sm:$0xff]
  %v5876 = vld [vmem:[%s5818 + $0x1c8] sm:$0xff]
  %v5877 = vld [vmem:[%s5818 + $0x1d0] sm:$0xff]
  %v5878 = vld [vmem:[%s5818 + $0x1d8] sm:$0xff]
  %v5879 = vld [vmem:[%s5818 + $0x1e0] sm:$0xff]
  %v5880 = vld [vmem:[%s5818 + $0x1e8] sm:$0xff]
  %v5881 = vld [vmem:[%s5818 + $0x1f0] sm:$0xff]
  %v5882 = vld [vmem:[%s5818 + $0x1f8] sm:$0xff]
  %v5883 = vld [vmem:[%s5818 + $0x200] sm:$0xff]
  %v5884 = vld [vmem:[%s5818 + $0x208] sm:$0xff]
  %v5885 = vld [vmem:[%s5818 + $0x210] sm:$0xff]
  %v5886 = vld [vmem:[%s5818 + $0x218] sm:$0xff]
  %v5887 = vld [vmem:[%s5818 + $0x220] sm:$0xff]
  %v5888 = vld [vmem:[%s5818 + $0x228] sm:$0xff]
  %v5889 = vld [vmem:[%s5818 + $0x230] sm:$0xff]
  %v5890 = vld [vmem:[%s5818 + $0x238] sm:$0xff]
  %v5891 = vld [vmem:[%s5818 + $0x240] sm:$0xff]
  %v5892 = vld [vmem:[%s5818 + $0x248] sm:$0xff]
  %v5893 = vld [vmem:[%s5818 + $0x250] sm:$0xff]
  %v5894 = vld [vmem:[%s5818 + $0x258] sm:$0xff]
  %v5895 = vld [vmem:[%s5818 + $0x260] sm:$0xff]
  %v5896 = vld [vmem:[%s5818 + $0x268] sm:$0xff]
  %v5897 = vld [vmem:[%s5818 + $0x270] sm:$0xff]
  %v5898 = vld [vmem:[%s5818 + $0x278] sm:$0xff]
  %v5899 = vld [vmem:[%s5818 + $0x280] sm:$0xff]
  %v5900 = vld [vmem:[%s5818 + $0x288] sm:$0xff]
  %v5901 = vld [vmem:[%s5818 + $0x290] sm:$0xff]
  %v5902 = vld [vmem:[%s5818 + $0x298] sm:$0xff]
  %v5903 = vld [vmem:[%s5818 + $0x2a0] sm:$0xff]
  %v5904 = vld [vmem:[%s5818 + $0x2a8] sm:$0xff]
  %v5905 = vld [vmem:[%s5818 + $0x2b0] sm:$0xff]
  %v5906 = vld [vmem:[%s5818 + $0x2b8] sm:$0xff]
  %v5907 = vld [vmem:[%s5818 + $0x2c0] sm:$0xff]
  %v5908 = vld [vmem:[%s5818 + $0x2c8] sm:$0xff]
  %v5909 = vld [vmem:[%s5818 + $0x2d0] sm:$0xff]
  %v5910 = vld [vmem:[%s5818 + $0x2d8] sm:$0xff]
  %v5911 = vld [vmem:[%s5818 + $0x2e0] sm:$0xff]
  %v5912 = vld [vmem:[%s5818 + $0x2e8] sm:$0xff]
  %v5913 = vld [vmem:[%s5818 + $0x2f0] sm:$0xff]
  %v5914 = vld [vmem:[%s5818 + $0x2f8] sm:$0xff]
  %v5915 = vld [vmem:[%s5818 + $0x300] sm:$0xff]
  %v5916 = vld [vmem:[%s5818 + $0x308] sm:$0xff]
  %v5917 = vld [vmem:[%s5818 + $0x310] sm:$0xff]
  %v5918 = vld [vmem:[%s5818 + $0x318] sm:$0xff]
  %v5919 = vld [vmem:[%s5818 + $0x320] sm:$0xff]
  %v5920 = vld [vmem:[%s5818 + $0x328] sm:$0xff]
  %v5921 = vld [vmem:[%s5818 + $0x330] sm:$0xff]
  %v5922 = vld [vmem:[%s5818 + $0x338] sm:$0xff]
  %v5923 = vld [vmem:[%s5818 + $0x340] sm:$0xff]
  %v5924 = vld [vmem:[%s5818 + $0x348] sm:$0xff]
  %v5925 = vld [vmem:[%s5818 + $0x350] sm:$0xff]
  %v5926 = vld [vmem:[%s5818 + $0x358] sm:$0xff]
  %v5927 = vld [vmem:[%s5818 + $0x360] sm:$0xff]
  %v5928 = vld [vmem:[%s5818 + $0x368] sm:$0xff]
  %v5929 = vld [vmem:[%s5818 + $0x370] sm:$0xff]
  %v5930 = vld [vmem:[%s5818 + $0x378] sm:$0xff]
  %v5931 = vld [vmem:[%s5818 + $0x380] sm:$0xff]
  %v5932 = vld [vmem:[%s5818 + $0x388] sm:$0xff]
  %v5933 = vld [vmem:[%s5818 + $0x390] sm:$0xff]
  %v5934 = vld [vmem:[%s5818 + $0x398] sm:$0xff]
  %v5935 = vld [vmem:[%s5818 + $0x3a0] sm:$0xff]
  %v5936 = vld [vmem:[%s5818 + $0x3a8] sm:$0xff]
  %v5937 = vld [vmem:[%s5818 + $0x3b0] sm:$0xff]
  %v5938 = vld [vmem:[%s5818 + $0x3b8] sm:$0xff]
  %v5941 = vunpack.c.l.b16 %v3288
  %v5942 = vunpack.c.h.b16 %v3288
  %v5943 = vunpack.c.l.b16 %v3289
  %v5944 = vunpack.c.h.b16 %v3289
  %v5945 = vpack.c.b16 %v5941, %v3579
  %v5946 = vpack.c.b16 %v5942, %v3580
  %v5947 = vpack.c.b16 %v5943, %v3581
  %v5948 = vpack.c.b16 %v5944, %v3582
  %v6072 = vunpack.c.l.b16 %v5819
  %v6073 = vunpack.c.h.b16 %v5819
  %v6074 = vunpack.c.l.b16 %v5820
  %v6075 = vunpack.c.h.b16 %v5820
  %v6076 = vunpack.c.l.b16 %v5821
  %v6077 = vunpack.c.h.b16 %v5821
  %v6078 = vunpack.c.l.b16 %v5822
  %v6079 = vunpack.c.h.b16 %v5822
  %v6080 = vunpack.c.l.b16 %v5823
  %v6081 = vunpack.c.h.b16 %v5823
  %v6082 = vunpack.c.l.b16 %v5824
  %v6083 = vunpack.c.h.b16 %v5824
  %v6084 = vunpack.c.l.b16 %v5825
  %v6085 = vunpack.c.h.b16 %v5825
  %v6086 = vunpack.c.l.b16 %v5826
  %v6087 = vunpack.c.h.b16 %v5826
  %v6088 = vunpack.c.l.b16 %v5827
  %v6089 = vunpack.c.h.b16 %v5827
  %v6090 = vunpack.c.l.b16 %v5828
  %v6091 = vunpack.c.h.b16 %v5828
  %v6092 = vunpack.c.l.b16 %v5829
  %v6093 = vunpack.c.h.b16 %v5829
  %v6094 = vunpack.c.l.b16 %v5830
  %v6095 = vunpack.c.h.b16 %v5830
  %v6096 = vunpack.c.l.b16 %v5831
  %v6097 = vunpack.c.h.b16 %v5831
  %v6098 = vunpack.c.l.b16 %v5832
  %v6099 = vunpack.c.h.b16 %v5832
  %v6100 = vunpack.c.l.b16 %v5833
  %v6101 = vunpack.c.h.b16 %v5833
  %v6102 = vunpack.c.l.b16 %v5834
  %v6103 = vunpack.c.h.b16 %v5834
  %v6104 = vunpack.c.l.b16 %v5835
  %v6105 = vunpack.c.h.b16 %v5835
  %v6106 = vunpack.c.l.b16 %v5836
  %v6107 = vunpack.c.h.b16 %v5836
  %v6108 = vunpack.c.l.b16 %v5837
  %v6109 = vunpack.c.h.b16 %v5837
  %v6110 = vunpack.c.l.b16 %v5838
  %v6111 = vunpack.c.h.b16 %v5838
  %v6112 = vunpack.c.l.b16 %v5839
  %v6113 = vunpack.c.h.b16 %v5839
  %v6114 = vunpack.c.l.b16 %v5840
  %v6115 = vunpack.c.h.b16 %v5840
  %v6116 = vunpack.c.l.b16 %v5841
  %v6117 = vunpack.c.h.b16 %v5841
  %v6118 = vunpack.c.l.b16 %v5842
  %v6119 = vunpack.c.h.b16 %v5842
  %v6120 = vunpack.c.l.b16 %v5843
  %v6121 = vunpack.c.h.b16 %v5843
  %v6122 = vunpack.c.l.b16 %v5844
  %v6123 = vunpack.c.h.b16 %v5844
  %v6124 = vunpack.c.l.b16 %v5845
  %v6125 = vunpack.c.h.b16 %v5845
  %v6126 = vunpack.c.l.b16 %v5846
  %v6127 = vunpack.c.h.b16 %v5846
  %v6128 = vunpack.c.l.b16 %v5847
  %v6129 = vunpack.c.h.b16 %v5847
  %v6130 = vunpack.c.l.b16 %v5848
  %v6131 = vunpack.c.h.b16 %v5848
  %v6132 = vunpack.c.l.b16 %v5849
  %v6133 = vunpack.c.h.b16 %v5849
  %v6134 = vunpack.c.l.b16 %v5850
  %v6135 = vunpack.c.h.b16 %v5850
  %v6136 = vunpack.c.l.b16 %v5851
  %v6137 = vunpack.c.h.b16 %v5851
  %v6138 = vunpack.c.l.b16 %v5852
  %v6139 = vunpack.c.h.b16 %v5852
  %v6140 = vunpack.c.l.b16 %v5853
  %v6141 = vunpack.c.h.b16 %v5853
  %v6142 = vunpack.c.l.b16 %v5854
  %v6143 = vunpack.c.h.b16 %v5854
  %v6144 = vunpack.c.l.b16 %v5855
  %v6145 = vunpack.c.h.b16 %v5855
  %v6146 = vunpack.c.l.b16 %v5856
  %v6147 = vunpack.c.h.b16 %v5856
  %v6148 = vunpack.c.l.b16 %v5857
  %v6149 = vunpack.c.h.b16 %v5857
  %v6150 = vunpack.c.l.b16 %v5858
  %v6151 = vunpack.c.h.b16 %v5858
  %v6152 = vunpack.c.l.b16 %v5859
  %v6153 = vunpack.c.h.b16 %v5859
  %v6154 = vunpack.c.l.b16 %v5860
  %v6155 = vunpack.c.h.b16 %v5860
  %v6156 = vunpack.c.l.b16 %v5861
  %v6157 = vunpack.c.h.b16 %v5861
  %v6158 = vunpack.c.l.b16 %v5862
  %v6159 = vunpack.c.h.b16 %v5862
  %v6160 = vunpack.c.l.b16 %v5863
  %v6161 = vunpack.c.h.b16 %v5863
  %v6162 = vunpack.c.l.b16 %v5864
  %v6163 = vunpack.c.h.b16 %v5864
  %v6164 = vunpack.c.l.b16 %v5865
  %v6165 = vunpack.c.h.b16 %v5865
  %v6166 = vunpack.c.l.b16 %v5866
  %v6167 = vunpack.c.h.b16 %v5866
  %v6168 = vunpack.c.l.b16 %v5867
  %v6169 = vunpack.c.h.b16 %v5867
  %v6170 = vunpack.c.l.b16 %v5868
  %v6171 = vunpack.c.h.b16 %v5868
  %v6172 = vunpack.c.l.b16 %v5869
  %v6173 = vunpack.c.h.b16 %v5869
  %v6174 = vunpack.c.l.b16 %v5870
  %v6175 = vunpack.c.h.b16 %v5870
  %v6176 = vunpack.c.l.b16 %v5871
  %v6177 = vunpack.c.h.b16 %v5871
  %v6178 = vunpack.c.l.b16 %v5872
  %v6179 = vunpack.c.h.b16 %v5872
  %v6180 = vunpack.c.l.b16 %v5873
  %v6181 = vunpack.c.h.b16 %v5873
  %v6182 = vunpack.c.l.b16 %v5874
  %v6183 = vunpack.c.h.b16 %v5874
  %v6184 = vunpack.c.l.b16 %v5875
  %v6185 = vunpack.c.h.b16 %v5875
  %v6186 = vunpack.c.l.b16 %v5876
  %v6187 = vunpack.c.h.b16 %v5876
  %v6188 = vunpack.c.l.b16 %v5877
  %v6189 = vunpack.c.h.b16 %v5877
  %v6190 = vunpack.c.l.b16 %v5878
  %v6191 = vunpack.c.h.b16 %v5878
  %v6192 = vunpack.c.l.b16 %v5879
  %v6193 = vunpack.c.h.b16 %v5879
  %v6194 = vunpack.c.l.b16 %v5880
  %v6195 = vunpack.c.h.b16 %v5880
  %v6196 = vunpack.c.l.b16 %v5881
  %v6197 = vunpack.c.h.b16 %v5881
  %v6198 = vunpack.c.l.b16 %v5882
  %v6199 = vunpack.c.h.b16 %v5882
  %v6200 = vunpack.c.l.b16 %v5883
  %v6201 = vunpack.c.h.b16 %v5883
  %v6202 = vunpack.c.l.b16 %v5884
  %v6203 = vunpack.c.h.b16 %v5884
  %v6204 = vunpack.c.l.b16 %v5885
  %v6205 = vunpack.c.h.b16 %v5885
  %v6206 = vunpack.c.l.b16 %v5886
  %v6207 = vunpack.c.h.b16 %v5886
  %v6208 = vunpack.c.l.b16 %v5887
  %v6209 = vunpack.c.h.b16 %v5887
  %v6210 = vunpack.c.l.b16 %v5888
  %v6211 = vunpack.c.h.b16 %v5888
  %v6212 = vunpack.c.l.b16 %v5889
  %v6213 = vunpack.c.h.b16 %v5889
  %v6214 = vunpack.c.l.b16 %v5890
  %v6215 = vunpack.c.h.b16 %v5890
  %v6216 = vunpack.c.l.b16 %v5891
  %v6217 = vunpack.c.h.b16 %v5891
  %v6218 = vunpack.c.l.b16 %v5892
  %v6219 = vunpack.c.h.b16 %v5892
  %v6220 = vunpack.c.l.b16 %v5893
  %v6221 = vunpack.c.h.b16 %v5893
  %v6222 = vunpack.c.l.b16 %v5894
  %v6223 = vunpack.c.h.b16 %v5894
  %v6224 = vunpack.c.l.b16 %v5895
  %v6225 = vunpack.c.h.b16 %v5895
  %v6226 = vunpack.c.l.b16 %v5896
  %v6227 = vunpack.c.h.b16 %v5896
  %v6228 = vunpack.c.l.b16 %v5897
  %v6229 = vunpack.c.h.b16 %v5897
  %v6230 = vunpack.c.l.b16 %v5898
  %v6231 = vunpack.c.h.b16 %v5898
  %v6232 = vunpack.c.l.b16 %v5899
  %v6233 = vunpack.c.h.b16 %v5899
  %v6234 = vunpack.c.l.b16 %v5900
  %v6235 = vunpack.c.h.b16 %v5900
  %v6236 = vunpack.c.l.b16 %v5901
  %v6237 = vunpack.c.h.b16 %v5901
  %v6238 = vunpack.c.l.b16 %v5902
  %v6239 = vunpack.c.h.b16 %v5902
  %v6240 = vunpack.c.l.b16 %v5903
  %v6241 = vunpack.c.h.b16 %v5903
  %v6242 = vunpack.c.l.b16 %v5904
  %v6243 = vunpack.c.h.b16 %v5904
  %v6244 = vunpack.c.l.b16 %v5905
  %v6245 = vunpack.c.h.b16 %v5905
  %v6246 = vunpack.c.l.b16 %v5906
  %v6247 = vunpack.c.h.b16 %v5906
  %v6248 = vunpack.c.l.b16 %v5907
  %v6249 = vunpack.c.h.b16 %v5907
  %v6250 = vunpack.c.l.b16 %v5908
  %v6251 = vunpack.c.h.b16 %v5908
  %v6252 = vunpack.c.l.b16 %v5909
  %v6253 = vunpack.c.h.b16 %v5909
  %v6254 = vunpack.c.l.b16 %v5910
  %v6255 = vunpack.c.h.b16 %v5910
  %v6256 = vunpack.c.l.b16 %v5911
  %v6257 = vunpack.c.h.b16 %v5911
  %v6258 = vunpack.c.l.b16 %v5912
  %v6259 = vunpack.c.h.b16 %v5912
  %v6260 = vunpack.c.l.b16 %v5913
  %v6261 = vunpack.c.h.b16 %v5913
  %v6262 = vunpack.c.l.b16 %v5914
  %v6263 = vunpack.c.h.b16 %v5914
  %v6264 = vunpack.c.l.b16 %v5915
  %v6265 = vunpack.c.h.b16 %v5915
  %v6266 = vunpack.c.l.b16 %v5916
  %v6267 = vunpack.c.h.b16 %v5916
  %v6268 = vunpack.c.l.b16 %v5917
  %v6269 = vunpack.c.h.b16 %v5917
  %v6270 = vunpack.c.l.b16 %v5918
  %v6271 = vunpack.c.h.b16 %v5918
  %v6272 = vunpack.c.l.b16 %v5919
  %v6273 = vunpack.c.h.b16 %v5919
  %v6274 = vunpack.c.l.b16 %v5920
  %v6275 = vunpack.c.h.b16 %v5920
  %v6276 = vunpack.c.l.b16 %v5921
  %v6277 = vunpack.c.h.b16 %v5921
  %v6278 = vunpack.c.l.b16 %v5922
  %v6279 = vunpack.c.h.b16 %v5922
  %v6280 = vunpack.c.l.b16 %v5923
  %v6281 = vunpack.c.h.b16 %v5923
  %v6282 = vunpack.c.l.b16 %v5924
  %v6283 = vunpack.c.h.b16 %v5924
  %v6284 = vunpack.c.l.b16 %v5925
  %v6285 = vunpack.c.h.b16 %v5925
  %v6286 = vunpack.c.l.b16 %v5926
  %v6287 = vunpack.c.h.b16 %v5926
  %v6288 = vunpack.c.l.b16 %v5927
  %v6289 = vunpack.c.h.b16 %v5927
  %v6290 = vunpack.c.l.b16 %v5928
  %v6291 = vunpack.c.h.b16 %v5928
  %v6292 = vunpack.c.l.b16 %v5929
  %v6293 = vunpack.c.h.b16 %v5929
  %v6294 = vunpack.c.l.b16 %v5930
  %v6295 = vunpack.c.h.b16 %v5930
  %v6296 = vunpack.c.l.b16 %v5931
  %v6297 = vunpack.c.h.b16 %v5931
  %v6298 = vunpack.c.l.b16 %v5932
  %v6299 = vunpack.c.h.b16 %v5932
  %v6300 = vunpack.c.l.b16 %v5933
  %v6301 = vunpack.c.h.b16 %v5933
  %v6302 = vunpack.c.l.b16 %v5934
  %v6303 = vunpack.c.h.b16 %v5934
  %v6304 = vunpack.c.l.b16 %v5935
  %v6305 = vunpack.c.h.b16 %v5935
  %v6306 = vunpack.c.l.b16 %v5936
  %v6307 = vunpack.c.h.b16 %v5936
  %v6308 = vunpack.c.l.b16 %v5937
  %v6309 = vunpack.c.h.b16 %v5937
  %v6310 = vunpack.c.l.b16 %v5938
  %v6311 = vunpack.c.h.b16 %v5938
  %v6312 = vpack.c.b16 %v6076, %v6072
  %v6313 = vpack.c.b16 %v6077, %v6073
  %v6314 = vpack.c.b16 %v6078, %v6074
  %v6315 = vpack.c.b16 %v6079, %v6075
  %v6316 = vpack.c.b16 %v6084, %v6080
  %v6317 = vpack.c.b16 %v6085, %v6081
  %v6318 = vpack.c.b16 %v6086, %v6082
  %v6319 = vpack.c.b16 %v6087, %v6083
  %v6320 = vpack.c.b16 %v6092, %v6088
  %v6321 = vpack.c.b16 %v6093, %v6089
  %v6322 = vpack.c.b16 %v6094, %v6090
  %v6323 = vpack.c.b16 %v6095, %v6091
  %v6324 = vpack.c.b16 %v6100, %v6096
  %v6325 = vpack.c.b16 %v6101, %v6097
  %v6326 = vpack.c.b16 %v6102, %v6098
  %v6327 = vpack.c.b16 %v6103, %v6099
  %v6328 = vpack.c.b16 %v6108, %v6104
  %v6329 = vpack.c.b16 %v6109, %v6105
  %v6330 = vpack.c.b16 %v6110, %v6106
  %v6331 = vpack.c.b16 %v6111, %v6107
  %v6332 = vpack.c.b16 %v6116, %v6112
  %v6333 = vpack.c.b16 %v6117, %v6113
  %v6334 = vpack.c.b16 %v6118, %v6114
  %v6335 = vpack.c.b16 %v6119, %v6115
  %v6336 = vpack.c.b16 %v6124, %v6120
  %v6337 = vpack.c.b16 %v6125, %v6121
  %v6338 = vpack.c.b16 %v6126, %v6122
  %v6339 = vpack.c.b16 %v6127, %v6123
  %v6340 = vpack.c.b16 %v6132, %v6128
  %v6341 = vpack.c.b16 %v6133, %v6129
  %v6342 = vpack.c.b16 %v6134, %v6130
  %v6343 = vpack.c.b16 %v6135, %v6131
  %v6344 = vpack.c.b16 %v6140, %v6136
  %v6345 = vpack.c.b16 %v6141, %v6137
  %v6346 = vpack.c.b16 %v6142, %v6138
  %v6347 = vpack.c.b16 %v6143, %v6139
  %v6348 = vpack.c.b16 %v6148, %v6144
  %v6349 = vpack.c.b16 %v6149, %v6145
  %v6350 = vpack.c.b16 %v6150, %v6146
  %v6351 = vpack.c.b16 %v6151, %v6147
  %v6352 = vpack.c.b16 %v6156, %v6152
  %v6353 = vpack.c.b16 %v6157, %v6153
  %v6354 = vpack.c.b16 %v6158, %v6154
  %v6355 = vpack.c.b16 %v6159, %v6155
  %v6356 = vpack.c.b16 %v6164, %v6160
  %v6357 = vpack.c.b16 %v6165, %v6161
  %v6358 = vpack.c.b16 %v6166, %v6162
  %v6359 = vpack.c.b16 %v6167, %v6163
  %v6360 = vpack.c.b16 %v6172, %v6168
  %v6361 = vpack.c.b16 %v6173, %v6169
  %v6362 = vpack.c.b16 %v6174, %v6170
  %v6363 = vpack.c.b16 %v6175, %v6171
  %v6364 = vpack.c.b16 %v6180, %v6176
  %v6365 = vpack.c.b16 %v6181, %v6177
  %v6366 = vpack.c.b16 %v6182, %v6178
  %v6367 = vpack.c.b16 %v6183, %v6179
  %v6368 = vpack.c.b16 %v6188, %v6184
  %v6369 = vpack.c.b16 %v6189, %v6185
  %v6370 = vpack.c.b16 %v6190, %v6186
  %v6371 = vpack.c.b16 %v6191, %v6187
  %v6372 = vpack.c.b16 %v6196, %v6192
  %v6373 = vpack.c.b16 %v6197, %v6193
  %v6374 = vpack.c.b16 %v6198, %v6194
  %v6375 = vpack.c.b16 %v6199, %v6195
  %v6376 = vpack.c.b16 %v6204, %v6200
  %v6377 = vpack.c.b16 %v6205, %v6201
  %v6378 = vpack.c.b16 %v6206, %v6202
  %v6379 = vpack.c.b16 %v6207, %v6203
  %v6380 = vpack.c.b16 %v6212, %v6208
  %v6381 = vpack.c.b16 %v6213, %v6209
  %v6382 = vpack.c.b16 %v6214, %v6210
  %v6383 = vpack.c.b16 %v6215, %v6211
  %v6384 = vpack.c.b16 %v6220, %v6216
  %v6385 = vpack.c.b16 %v6221, %v6217
  %v6386 = vpack.c.b16 %v6222, %v6218
  %v6387 = vpack.c.b16 %v6223, %v6219
  %v6388 = vpack.c.b16 %v6228, %v6224
  %v6389 = vpack.c.b16 %v6229, %v6225
  %v6390 = vpack.c.b16 %v6230, %v6226
  %v6391 = vpack.c.b16 %v6231, %v6227
  %v6392 = vpack.c.b16 %v6236, %v6232
  %v6393 = vpack.c.b16 %v6237, %v6233
  %v6394 = vpack.c.b16 %v6238, %v6234
  %v6395 = vpack.c.b16 %v6239, %v6235
  %v6396 = vpack.c.b16 %v6244, %v6240
  %v6397 = vpack.c.b16 %v6245, %v6241
  %v6398 = vpack.c.b16 %v6246, %v6242
  %v6399 = vpack.c.b16 %v6247, %v6243
  %v6400 = vpack.c.b16 %v6252, %v6248
  %v6401 = vpack.c.b16 %v6253, %v6249
  %v6402 = vpack.c.b16 %v6254, %v6250
  %v6403 = vpack.c.b16 %v6255, %v6251
  %v6404 = vpack.c.b16 %v6260, %v6256
  %v6405 = vpack.c.b16 %v6261, %v6257
  %v6406 = vpack.c.b16 %v6262, %v6258
  %v6407 = vpack.c.b16 %v6263, %v6259
  %v6408 = vpack.c.b16 %v6268, %v6264
  %v6409 = vpack.c.b16 %v6269, %v6265
  %v6410 = vpack.c.b16 %v6270, %v6266
  %v6411 = vpack.c.b16 %v6271, %v6267
  %v6412 = vpack.c.b16 %v6276, %v6272
  %v6413 = vpack.c.b16 %v6277, %v6273
  %v6414 = vpack.c.b16 %v6278, %v6274
  %v6415 = vpack.c.b16 %v6279, %v6275
  %v6416 = vpack.c.b16 %v6284, %v6280
  %v6417 = vpack.c.b16 %v6285, %v6281
  %v6418 = vpack.c.b16 %v6286, %v6282
  %v6419 = vpack.c.b16 %v6287, %v6283
  %v6420 = vpack.c.b16 %v6292, %v6288
  %v6421 = vpack.c.b16 %v6293, %v6289
  %v6422 = vpack.c.b16 %v6294, %v6290
  %v6423 = vpack.c.b16 %v6295, %v6291
  %v6424 = vpack.c.b16 %v6300, %v6296
  %v6425 = vpack.c.b16 %v6301, %v6297
  %v6426 = vpack.c.b16 %v6302, %v6298
  %v6427 = vpack.c.b16 %v6303, %v6299
  %v6428 = vpack.c.b16 %v6308, %v6304
  %v6429 = vpack.c.b16 %v6309, %v6305
  %v6430 = vpack.c.b16 %v6310, %v6306
  %v6431 = vpack.c.b16 %v6311, %v6307
  %v6549 = vsel %vm4207, %v5948, 0
  %v6552 = vand.u32 %v6428, %v4223
  %v6555 = vand.u32 %v6429, %v4223
  %v6558 = vand.u32 %v6430, %v4223
  %v6561 = vand.u32 %v6431, %v4223
  %6563 = vmatpush.bf16.msra.mxu0 %v6340
  %6564 = vmatpush.bf16.msra.mxu0 %v6336
  %6565 = vmatpush.bf16.msra.mxu0 %v6332
  %6566 = vmatpush.bf16.msra.mxu0 %v6328
  %6567 = vmatpush.bf16.msra.mxu0 %v6324
  %6568 = vmatpush.bf16.msra.mxu0 %v6320
  %6569 = vmatpush.bf16.msra.mxu0 %v6316
  %6570 = vmatpush.bf16.msra.mxu0 %v6312
  %6571 = vmatmul.bf16.gmra.mxu0 %v4710
  %v6572 = vpop.f32.mrf.mxu0
  %v6573 = vadd.f32 0.0, %v6572
  %v6574 = vpop.f32.mrf.mxu0
  %v6575 = vadd.f32 0.0, %v6574
  %6576 = vmatmul.bf16.gmra.mxu0 %v4714
  %v6577 = vpop.f32.mrf.mxu0
  %v6578 = vadd.f32 0.0, %v6577
  %v6579 = vpop.f32.mrf.mxu0
  %v6580 = vadd.f32 0.0, %v6579
  %6581 = vmatmul.bf16.gmra.mxu0 %v4718
  %v6582 = vpop.f32.mrf.mxu0
  %v6583 = vadd.f32 0.0, %v6582
  %v6584 = vpop.f32.mrf.mxu0
  %v6585 = vadd.f32 0.0, %v6584
  %6586 = vmatmul.bf16.gmra.mxu0 %v5945
  %v6587 = vpop.f32.mrf.mxu0
  %v6588 = vadd.f32 0.0, %v6587
  %v6589 = vpop.f32.mrf.mxu0
  %v6590 = vadd.f32 0.0, %v6589
  %6591 = vdwg.mxu0
  %6592 = vmatpush.bf16.msra.mxu0 %v6372
  %6593 = vmatpush.bf16.msra.mxu0 %v6368
  %6594 = vmatpush.bf16.msra.mxu0 %v6364
  %6595 = vmatpush.bf16.msra.mxu0 %v6360
  %6596 = vmatpush.bf16.msra.mxu0 %v6356
  %6597 = vmatpush.bf16.msra.mxu0 %v6352
  %6598 = vmatpush.bf16.msra.mxu0 %v6348
  %6599 = vmatpush.bf16.msra.mxu0 %v6344
  %6600 = vmatmul.bf16.gmra.mxu0 %v4711
  %v6601 = vpop.f32.mrf.mxu0
  %v6602 = vadd.f32 %v6573, %v6601
  %v6603 = vpop.f32.mrf.mxu0
  %v6604 = vadd.f32 %v6575, %v6603
  %6605 = vmatmul.bf16.gmra.mxu0 %v4715
  %v6606 = vpop.f32.mrf.mxu0
  %v6607 = vadd.f32 %v6578, %v6606
  %v6608 = vpop.f32.mrf.mxu0
  %v6609 = vadd.f32 %v6580, %v6608
  %6610 = vmatmul.bf16.gmra.mxu0 %v4719
  %v6611 = vpop.f32.mrf.mxu0
  %v6612 = vadd.f32 %v6583, %v6611
  %v6613 = vpop.f32.mrf.mxu0
  %v6614 = vadd.f32 %v6585, %v6613
  %6615 = vmatmul.bf16.gmra.mxu0 %v5946
  %v6616 = vpop.f32.mrf.mxu0
  %v6617 = vadd.f32 %v6588, %v6616
  %v6618 = vpop.f32.mrf.mxu0
  %v6619 = vadd.f32 %v6590, %v6618
  %6620 = vdwg.mxu0
  %6621 = vmatpush.bf16.msra.mxu0 %v6404
  %6622 = vmatpush.bf16.msra.mxu0 %v6400
  %6623 = vmatpush.bf16.msra.mxu0 %v6396
  %6624 = vmatpush.bf16.msra.mxu0 %v6392
  %6625 = vmatpush.bf16.msra.mxu0 %v6388
  %6626 = vmatpush.bf16.msra.mxu0 %v6384
  %6627 = vmatpush.bf16.msra.mxu0 %v6380
  %6628 = vmatpush.bf16.msra.mxu0 %v6376
  %6629 = vmatmul.bf16.gmra.mxu0 %v4712
  %v6630 = vpop.f32.mrf.mxu0
  %v6631 = vadd.f32 %v6602, %v6630
  %v6632 = vpop.f32.mrf.mxu0
  %v6633 = vadd.f32 %v6604, %v6632
  %6634 = vmatmul.bf16.gmra.mxu0 %v4716
  %v6635 = vpop.f32.mrf.mxu0
  %v6636 = vadd.f32 %v6607, %v6635
  %v6637 = vpop.f32.mrf.mxu0
  %v6638 = vadd.f32 %v6609, %v6637
  %6639 = vmatmul.bf16.gmra.mxu0 %v4720
  %v6640 = vpop.f32.mrf.mxu0
  %v6641 = vadd.f32 %v6612, %v6640
  %v6642 = vpop.f32.mrf.mxu0
  %v6643 = vadd.f32 %v6614, %v6642
  %6644 = vmatmul.bf16.gmra.mxu0 %v5947
  %v6645 = vpop.f32.mrf.mxu0
  %v6646 = vadd.f32 %v6617, %v6645
  %v6647 = vpop.f32.mrf.mxu0
  %v6648 = vadd.f32 %v6619, %v6647
  %6649 = vdwg.mxu0
  %6650 = vmatpush.bf16.msra.mxu0 0
  %6651 = vmatpush.bf16.msra.mxu0 0
  %6652 = vmatpush.bf16.msra.mxu0 %v6552
  %6653 = vmatpush.bf16.msra.mxu0 %v6424
  %6654 = vmatpush.bf16.msra.mxu0 %v6420
  %6655 = vmatpush.bf16.msra.mxu0 %v6416
  %6656 = vmatpush.bf16.msra.mxu0 %v6412
  %6657 = vmatpush.bf16.msra.mxu0 %v6408
  %6658 = vmatmul.bf16.gmra.mxu0 %v5334
  %v6659 = vpop.f32.mrf.mxu0
  %v6660 = vadd.f32 %v6631, %v6659
  %v6661 = vpop.f32.mrf.mxu0
  %v6662 = vadd.f32 %v6633, %v6661
  %6663 = vmatmul.bf16.gmra.mxu0 %v5337
  %v6664 = vpop.f32.mrf.mxu0
  %v6665 = vadd.f32 %v6636, %v6664
  %v6666 = vpop.f32.mrf.mxu0
  %v6667 = vadd.f32 %v6638, %v6666
  %6668 = vmatmul.bf16.gmra.mxu0 %v5340
  %v6669 = vpop.f32.mrf.mxu0
  %v6670 = vadd.f32 %v6641, %v6669
  %v6671 = vpop.f32.mrf.mxu0
  %v6672 = vadd.f32 %v6643, %v6671
  %6673 = vmatmul.bf16.gmra.mxu0 %v6549
  %v6674 = vpop.f32.mrf.mxu0
  %v6675 = vadd.f32 %v6646, %v6674
  %v6676 = vpop.f32.mrf.mxu0
  %v6677 = vadd.f32 %v6648, %v6676
  %6678 = vdwg.mxu0
  %6679 = vmatpush.bf16.msra.mxu0 %v6341
  %6680 = vmatpush.bf16.msra.mxu0 %v6337
  %6681 = vmatpush.bf16.msra.mxu0 %v6333
  %6682 = vmatpush.bf16.msra.mxu0 %v6329
  %6683 = vmatpush.bf16.msra.mxu0 %v6325
  %6684 = vmatpush.bf16.msra.mxu0 %v6321
  %6685 = vmatpush.bf16.msra.mxu0 %v6317
  %6686 = vmatpush.bf16.msra.mxu0 %v6313
  %6687 = vmatmul.bf16.gmra.mxu0 %v4710
  %v6688 = vpop.f32.mrf.mxu0
  %v6689 = vadd.f32 0.0, %v6688
  %v6690 = vpop.f32.mrf.mxu0
  %v6691 = vadd.f32 0.0, %v6690
  %6692 = vmatmul.bf16.gmra.mxu0 %v4714
  %v6693 = vpop.f32.mrf.mxu0
  %v6694 = vadd.f32 0.0, %v6693
  %v6695 = vpop.f32.mrf.mxu0
  %v6696 = vadd.f32 0.0, %v6695
  %6697 = vmatmul.bf16.gmra.mxu0 %v4718
  %v6698 = vpop.f32.mrf.mxu0
  %v6699 = vadd.f32 0.0, %v6698
  %v6700 = vpop.f32.mrf.mxu0
  %v6701 = vadd.f32 0.0, %v6700
  %6702 = vmatmul.bf16.gmra.mxu0 %v5945
  %v6703 = vpop.f32.mrf.mxu0
  %v6704 = vadd.f32 0.0, %v6703
  %v6705 = vpop.f32.mrf.mxu0
  %v6706 = vadd.f32 0.0, %v6705
  %6707 = vdwg.mxu0
  %6708 = vmatpush.bf16.msra.mxu0 %v6373
  %6709 = vmatpush.bf16.msra.mxu0 %v6369
  %6710 = vmatpush.bf16.msra.mxu0 %v6365
  %6711 = vmatpush.bf16.msra.mxu0 %v6361
  %6712 = vmatpush.bf16.msra.mxu0 %v6357
  %6713 = vmatpush.bf16.msra.mxu0 %v6353
  %6714 = vmatpush.bf16.msra.mxu0 %v6349
  %6715 = vmatpush.bf16.msra.mxu0 %v6345
  %6716 = vmatmul.bf16.gmra.mxu0 %v4711
  %v6717 = vpop.f32.mrf.mxu0
  %v6718 = vadd.f32 %v6689, %v6717
  %v6719 = vpop.f32.mrf.mxu0
  %v6720 = vadd.f32 %v6691, %v6719
  %6721 = vmatmul.bf16.gmra.mxu0 %v4715
  %v6722 = vpop.f32.mrf.mxu0
  %v6723 = vadd.f32 %v6694, %v6722
  %v6724 = vpop.f32.mrf.mxu0
  %v6725 = vadd.f32 %v6696, %v6724
  %6726 = vmatmul.bf16.gmra.mxu0 %v4719
  %v6727 = vpop.f32.mrf.mxu0
  %v6728 = vadd.f32 %v6699, %v6727
  %v6729 = vpop.f32.mrf.mxu0
  %v6730 = vadd.f32 %v6701, %v6729
  %6731 = vmatmul.bf16.gmra.mxu0 %v5946
  %v6732 = vpop.f32.mrf.mxu0
  %v6733 = vadd.f32 %v6704, %v6732
  %v6734 = vpop.f32.mrf.mxu0
  %v6735 = vadd.f32 %v6706, %v6734
  %6736 = vdwg.mxu0
  %6737 = vmatpush.bf16.msra.mxu0 %v6405
  %6738 = vmatpush.bf16.msra.mxu0 %v6401
  %6739 = vmatpush.bf16.msra.mxu0 %v6397
  %6740 = vmatpush.bf16.msra.mxu0 %v6393
  %6741 = vmatpush.bf16.msra.mxu0 %v6389
  %6742 = vmatpush.bf16.msra.mxu0 %v6385
  %6743 = vmatpush.bf16.msra.mxu0 %v6381
  %6744 = vmatpush.bf16.msra.mxu0 %v6377
  %6745 = vmatmul.bf16.gmra.mxu0 %v4712
  %v6746 = vpop.f32.mrf.mxu0
  %v6747 = vadd.f32 %v6718, %v6746
  %v6748 = vpop.f32.mrf.mxu0
  %v6749 = vadd.f32 %v6720, %v6748
  %6750 = vmatmul.bf16.gmra.mxu0 %v4716
  %v6751 = vpop.f32.mrf.mxu0
  %v6752 = vadd.f32 %v6723, %v6751
  %v6753 = vpop.f32.mrf.mxu0
  %v6754 = vadd.f32 %v6725, %v6753
  %6755 = vmatmul.bf16.gmra.mxu0 %v4720
  %v6756 = vpop.f32.mrf.mxu0
  %v6757 = vadd.f32 %v6728, %v6756
  %v6758 = vpop.f32.mrf.mxu0
  %v6759 = vadd.f32 %v6730, %v6758
  %6760 = vmatmul.bf16.gmra.mxu0 %v5947
  %v6761 = vpop.f32.mrf.mxu0
  %v6762 = vadd.f32 %v6733, %v6761
  %v6763 = vpop.f32.mrf.mxu0
  %v6764 = vadd.f32 %v6735, %v6763
  %6765 = vdwg.mxu0
  %6766 = vmatpush.bf16.msra.mxu0 0
  %6767 = vmatpush.bf16.msra.mxu0 0
  %6768 = vmatpush.bf16.msra.mxu0 %v6555
  %6769 = vmatpush.bf16.msra.mxu0 %v6425
  %6770 = vmatpush.bf16.msra.mxu0 %v6421
  %6771 = vmatpush.bf16.msra.mxu0 %v6417
  %6772 = vmatpush.bf16.msra.mxu0 %v6413
  %6773 = vmatpush.bf16.msra.mxu0 %v6409
  %6774 = vmatmul.bf16.gmra.mxu0 %v5334
  %v6775 = vpop.f32.mrf.mxu0
  %v6776 = vadd.f32 %v6747, %v6775
  %v6777 = vpop.f32.mrf.mxu0
  %v6778 = vadd.f32 %v6749, %v6777
  %6779 = vmatmul.bf16.gmra.mxu0 %v5337
  %v6780 = vpop.f32.mrf.mxu0
  %v6781 = vadd.f32 %v6752, %v6780
  %v6782 = vpop.f32.mrf.mxu0
  %v6783 = vadd.f32 %v6754, %v6782
  %6784 = vmatmul.bf16.gmra.mxu0 %v5340
  %v6785 = vpop.f32.mrf.mxu0
  %v6786 = vadd.f32 %v6757, %v6785
  %v6787 = vpop.f32.mrf.mxu0
  %v6788 = vadd.f32 %v6759, %v6787
  %6789 = vmatmul.bf16.gmra.mxu0 %v6549
  %v6790 = vpop.f32.mrf.mxu0
  %v6791 = vadd.f32 %v6762, %v6790
  %v6792 = vpop.f32.mrf.mxu0
  %v6793 = vadd.f32 %v6764, %v6792
  %6794 = vdwg.mxu0
  %6795 = vmatpush.bf16.msra.mxu0 %v6342
  %6796 = vmatpush.bf16.msra.mxu0 %v6338
  %6797 = vmatpush.bf16.msra.mxu0 %v6334
  %6798 = vmatpush.bf16.msra.mxu0 %v6330
  %6799 = vmatpush.bf16.msra.mxu0 %v6326
  %6800 = vmatpush.bf16.msra.mxu0 %v6322
  %6801 = vmatpush.bf16.msra.mxu0 %v6318
  %6802 = vmatpush.bf16.msra.mxu0 %v6314
  %6803 = vmatmul.bf16.gmra.mxu0 %v4710
  %v6804 = vpop.f32.mrf.mxu0
  %v6805 = vadd.f32 0.0, %v6804
  %v6806 = vpop.f32.mrf.mxu0
  %v6807 = vadd.f32 0.0, %v6806
  %6808 = vmatmul.bf16.gmra.mxu0 %v4714
  %v6809 = vpop.f32.mrf.mxu0
  %v6810 = vadd.f32 0.0, %v6809
  %v6811 = vpop.f32.mrf.mxu0
  %v6812 = vadd.f32 0.0, %v6811
  %6813 = vmatmul.bf16.gmra.mxu0 %v4718
  %v6814 = vpop.f32.mrf.mxu0
  %v6815 = vadd.f32 0.0, %v6814
  %v6816 = vpop.f32.mrf.mxu0
  %v6817 = vadd.f32 0.0, %v6816
  %6818 = vmatmul.bf16.gmra.mxu0 %v5945
  %v6819 = vpop.f32.mrf.mxu0
  %v6820 = vadd.f32 0.0, %v6819
  %v6821 = vpop.f32.mrf.mxu0
  %v6822 = vadd.f32 0.0, %v6821
  %6823 = vdwg.mxu0
  %6824 = vmatpush.bf16.msra.mxu0 %v6374
  %6825 = vmatpush.bf16.msra.mxu0 %v6370
  %6826 = vmatpush.bf16.msra.mxu0 %v6366
  %6827 = vmatpush.bf16.msra.mxu0 %v6362
  %6828 = vmatpush.bf16.msra.mxu0 %v6358
  %6829 = vmatpush.bf16.msra.mxu0 %v6354
  %6830 = vmatpush.bf16.msra.mxu0 %v6350
  %6831 = vmatpush.bf16.msra.mxu0 %v6346
  %6832 = vmatmul.bf16.gmra.mxu0 %v4711
  %v6833 = vpop.f32.mrf.mxu0
  %v6834 = vadd.f32 %v6805, %v6833
  %v6835 = vpop.f32.mrf.mxu0
  %v6836 = vadd.f32 %v6807, %v6835
  %6837 = vmatmul.bf16.gmra.mxu0 %v4715
  %v6838 = vpop.f32.mrf.mxu0
  %v6839 = vadd.f32 %v6810, %v6838
  %v6840 = vpop.f32.mrf.mxu0
  %v6841 = vadd.f32 %v6812, %v6840
  %6842 = vmatmul.bf16.gmra.mxu0 %v4719
  %v6843 = vpop.f32.mrf.mxu0
  %v6844 = vadd.f32 %v6815, %v6843
  %v6845 = vpop.f32.mrf.mxu0
  %v6846 = vadd.f32 %v6817, %v6845
  %6847 = vmatmul.bf16.gmra.mxu0 %v5946
  %v6848 = vpop.f32.mrf.mxu0
  %v6849 = vadd.f32 %v6820, %v6848
  %v6850 = vpop.f32.mrf.mxu0
  %v6851 = vadd.f32 %v6822, %v6850
  %6852 = vdwg.mxu0
  %6853 = vmatpush.bf16.msra.mxu0 %v6406
  %6854 = vmatpush.bf16.msra.mxu0 %v6402
  %6855 = vmatpush.bf16.msra.mxu0 %v6398
  %6856 = vmatpush.bf16.msra.mxu0 %v6394
  %6857 = vmatpush.bf16.msra.mxu0 %v6390
  %6858 = vmatpush.bf16.msra.mxu0 %v6386
  %6859 = vmatpush.bf16.msra.mxu0 %v6382
  %6860 = vmatpush.bf16.msra.mxu0 %v6378
  %6861 = vmatmul.bf16.gmra.mxu0 %v4712
  %v6862 = vpop.f32.mrf.mxu0
  %v6863 = vadd.f32 %v6834, %v6862
  %v6864 = vpop.f32.mrf.mxu0
  %v6865 = vadd.f32 %v6836, %v6864
  %6866 = vmatmul.bf16.gmra.mxu0 %v4716
  %v6867 = vpop.f32.mrf.mxu0
  %v6868 = vadd.f32 %v6839, %v6867
  %v6869 = vpop.f32.mrf.mxu0
  %v6870 = vadd.f32 %v6841, %v6869
  %6871 = vmatmul.bf16.gmra.mxu0 %v4720
  %v6872 = vpop.f32.mrf.mxu0
  %v6873 = vadd.f32 %v6844, %v6872
  %v6874 = vpop.f32.mrf.mxu0
  %v6875 = vadd.f32 %v6846, %v6874
  %6876 = vmatmul.bf16.gmra.mxu0 %v5947
  %v6877 = vpop.f32.mrf.mxu0
  %v6878 = vadd.f32 %v6849, %v6877
  %v6879 = vpop.f32.mrf.mxu0
  %v6880 = vadd.f32 %v6851, %v6879
  %6881 = vdwg.mxu0
  %6882 = vmatpush.bf16.msra.mxu0 0
  %6883 = vmatpush.bf16.msra.mxu0 0
  %6884 = vmatpush.bf16.msra.mxu0 %v6558
  %6885 = vmatpush.bf16.msra.mxu0 %v6426
  %6886 = vmatpush.bf16.msra.mxu0 %v6422
  %6887 = vmatpush.bf16.msra.mxu0 %v6418
  %6888 = vmatpush.bf16.msra.mxu0 %v6414
  %6889 = vmatpush.bf16.msra.mxu0 %v6410
  %6890 = vmatmul.bf16.gmra.mxu0 %v5334
  %v6891 = vpop.f32.mrf.mxu0
  %v6892 = vadd.f32 %v6863, %v6891
  %v6893 = vpop.f32.mrf.mxu0
  %v6894 = vadd.f32 %v6865, %v6893
  %6895 = vmatmul.bf16.gmra.mxu0 %v5337
  %v6896 = vpop.f32.mrf.mxu0
  %v6897 = vadd.f32 %v6868, %v6896
  %v6898 = vpop.f32.mrf.mxu0
  %v6899 = vadd.f32 %v6870, %v6898
  %6900 = vmatmul.bf16.gmra.mxu0 %v5340
  %v6901 = vpop.f32.mrf.mxu0
  %v6902 = vadd.f32 %v6873, %v6901
  %v6903 = vpop.f32.mrf.mxu0
  %v6904 = vadd.f32 %v6875, %v6903
  %6905 = vmatmul.bf16.gmra.mxu0 %v6549
  %v6906 = vpop.f32.mrf.mxu0
  %v6907 = vadd.f32 %v6878, %v6906
  %v6908 = vpop.f32.mrf.mxu0
  %v6909 = vadd.f32 %v6880, %v6908
  %6910 = vdwg.mxu0
  %6911 = vmatpush.bf16.msra.mxu0 %v6343
  %6912 = vmatpush.bf16.msra.mxu0 %v6339
  %6913 = vmatpush.bf16.msra.mxu0 %v6335
  %6914 = vmatpush.bf16.msra.mxu0 %v6331
  %6915 = vmatpush.bf16.msra.mxu0 %v6327
  %6916 = vmatpush.bf16.msra.mxu0 %v6323
  %6917 = vmatpush.bf16.msra.mxu0 %v6319
  %6918 = vmatpush.bf16.msra.mxu0 %v6315
  %6919 = vmatmul.bf16.gmra.mxu0 %v4710
  %v6920 = vpop.f32.mrf.mxu0
  %v6921 = vadd.f32 0.0, %v6920
  %v6922 = vpop.f32.mrf.mxu0
  %v6923 = vadd.f32 0.0, %v6922
  %6924 = vmatmul.bf16.gmra.mxu0 %v4714
  %v6925 = vpop.f32.mrf.mxu0
  %v6926 = vadd.f32 0.0, %v6925
  %v6927 = vpop.f32.mrf.mxu0
  %v6928 = vadd.f32 0.0, %v6927
  %6929 = vmatmul.bf16.gmra.mxu0 %v4718
  %v6930 = vpop.f32.mrf.mxu0
  %v6931 = vadd.f32 0.0, %v6930
  %v6932 = vpop.f32.mrf.mxu0
  %v6933 = vadd.f32 0.0, %v6932
  %6934 = vmatmul.bf16.gmra.mxu0 %v5945
  %v6935 = vpop.f32.mrf.mxu0
  %v6936 = vadd.f32 0.0, %v6935
  %v6937 = vpop.f32.mrf.mxu0
  %v6938 = vadd.f32 0.0, %v6937
  %6939 = vdwg.mxu0
  %6940 = vmatpush.bf16.msra.mxu0 %v6375
  %6941 = vmatpush.bf16.msra.mxu0 %v6371
  %6942 = vmatpush.bf16.msra.mxu0 %v6367
  %6943 = vmatpush.bf16.msra.mxu0 %v6363
  %6944 = vmatpush.bf16.msra.mxu0 %v6359
  %6945 = vmatpush.bf16.msra.mxu0 %v6355
  %6946 = vmatpush.bf16.msra.mxu0 %v6351
  %6947 = vmatpush.bf16.msra.mxu0 %v6347
  %6948 = vmatmul.bf16.gmra.mxu0 %v4711
  %v6949 = vpop.f32.mrf.mxu0
  %v6950 = vadd.f32 %v6921, %v6949
  %v6951 = vpop.f32.mrf.mxu0
  %v6952 = vadd.f32 %v6923, %v6951
  %6953 = vmatmul.bf16.gmra.mxu0 %v4715
  %v6954 = vpop.f32.mrf.mxu0
  %v6955 = vadd.f32 %v6926, %v6954
  %v6956 = vpop.f32.mrf.mxu0
  %v6957 = vadd.f32 %v6928, %v6956
  %6958 = vmatmul.bf16.gmra.mxu0 %v4719
  %v6959 = vpop.f32.mrf.mxu0
  %v6960 = vadd.f32 %v6931, %v6959
  %v6961 = vpop.f32.mrf.mxu0
  %v6962 = vadd.f32 %v6933, %v6961
  %6963 = vmatmul.bf16.gmra.mxu0 %v5946
  %v6964 = vpop.f32.mrf.mxu0
  %v6965 = vadd.f32 %v6936, %v6964
  %v6966 = vpop.f32.mrf.mxu0
  %v6967 = vadd.f32 %v6938, %v6966
  %6968 = vdwg.mxu0
  %6969 = vmatpush.bf16.msra.mxu0 %v6407
  %6970 = vmatpush.bf16.msra.mxu0 %v6403
  %6971 = vmatpush.bf16.msra.mxu0 %v6399
  %6972 = vmatpush.bf16.msra.mxu0 %v6395
  %6973 = vmatpush.bf16.msra.mxu0 %v6391
  %6974 = vmatpush.bf16.msra.mxu0 %v6387
  %6975 = vmatpush.bf16.msra.mxu0 %v6383
  %6976 = vmatpush.bf16.msra.mxu0 %v6379
  %6977 = vmatmul.bf16.gmra.mxu0 %v4712
  %v6978 = vpop.f32.mrf.mxu0
  %v6979 = vadd.f32 %v6950, %v6978
  %v6980 = vpop.f32.mrf.mxu0
  %v6981 = vadd.f32 %v6952, %v6980
  %6982 = vmatmul.bf16.gmra.mxu0 %v4716
  %v6983 = vpop.f32.mrf.mxu0
  %v6984 = vadd.f32 %v6955, %v6983
  %v6985 = vpop.f32.mrf.mxu0
  %v6986 = vadd.f32 %v6957, %v6985
  %6987 = vmatmul.bf16.gmra.mxu0 %v4720
  %v6988 = vpop.f32.mrf.mxu0
  %v6989 = vadd.f32 %v6960, %v6988
  %v6990 = vpop.f32.mrf.mxu0
  %v6991 = vadd.f32 %v6962, %v6990
  %6992 = vmatmul.bf16.gmra.mxu0 %v5947
  %v6993 = vpop.f32.mrf.mxu0
  %v6994 = vadd.f32 %v6965, %v6993
  %v6995 = vpop.f32.mrf.mxu0
  %v6996 = vadd.f32 %v6967, %v6995
  %6997 = vdwg.mxu0
  %6998 = vmatpush.bf16.msra.mxu0 0
  %6999 = vmatpush.bf16.msra.mxu0 0
  %7000 = vmatpush.bf16.msra.mxu0 %v6561
  %7001 = vmatpush.bf16.msra.mxu0 %v6427
  %7002 = vmatpush.bf16.msra.mxu0 %v6423
  %7003 = vmatpush.bf16.msra.mxu0 %v6419
  %7004 = vmatpush.bf16.msra.mxu0 %v6415
  %7005 = vmatpush.bf16.msra.mxu0 %v6411
  %7006 = vmatmul.bf16.gmra.mxu0 %v5334
  %v7007 = vpop.f32.mrf.mxu0
  %v7008 = vadd.f32 %v6979, %v7007
  %v7009 = vpop.f32.mrf.mxu0
  %v7010 = vadd.f32 %v6981, %v7009
  %7011 = vmatmul.bf16.gmra.mxu0 %v5337
  %v7012 = vpop.f32.mrf.mxu0
  %v7013 = vadd.f32 %v6984, %v7012
  %v7014 = vpop.f32.mrf.mxu0
  %v7015 = vadd.f32 %v6986, %v7014
  %7016 = vmatmul.bf16.gmra.mxu0 %v5340
  %v7017 = vpop.f32.mrf.mxu0
  %v7018 = vadd.f32 %v6989, %v7017
  %v7019 = vpop.f32.mrf.mxu0
  %v7020 = vadd.f32 %v6991, %v7019
  %7021 = vmatmul.bf16.gmra.mxu0 %v6549
  %v7022 = vpop.f32.mrf.mxu0
  %v7023 = vadd.f32 %v6994, %v7022
  %v7024 = vpop.f32.mrf.mxu0
  %v7025 = vadd.f32 %v6996, %v7024
  %7026 = vdwg.mxu0
  %v7027 = vadd.f32 %v5451, %v6660
  %v7028 = vadd.f32 %v5567, %v6776
  %v7029 = vadd.f32 %v5683, %v6892
  %v7030 = vadd.f32 %v5799, %v7008
  %v7031 = vadd.f32 %v5453, %v6662
  %v7032 = vadd.f32 %v5569, %v6778
  %v7033 = vadd.f32 %v5685, %v6894
  %v7034 = vadd.f32 %v5801, %v7010
  %v7035 = vadd.f32 %v5456, %v6665
  %v7036 = vadd.f32 %v5572, %v6781
  %v7037 = vadd.f32 %v5688, %v6897
  %v7038 = vadd.f32 %v5804, %v7013
  %v7039 = vadd.f32 %v5458, %v6667
  %v7040 = vadd.f32 %v5574, %v6783
  %v7041 = vadd.f32 %v5690, %v6899
  %v7042 = vadd.f32 %v5806, %v7015
  %v7043 = vadd.f32 %v5461, %v6670
  %v7044 = vadd.f32 %v5577, %v6786
  %v7045 = vadd.f32 %v5693, %v6902
  %v7046 = vadd.f32 %v5809, %v7018
  %v7047 = vadd.f32 %v5463, %v6672
  %v7048 = vadd.f32 %v5579, %v6788
  %v7049 = vadd.f32 %v5695, %v6904
  %v7050 = vadd.f32 %v5811, %v7020
  %v7051 = vadd.f32 %v5466, %v6675
  %v7052 = vadd.f32 %v5582, %v6791
  %v7053 = vadd.f32 %v5698, %v6907
  %v7054 = vadd.f32 %v5814, %v7023
  %v7055 = vadd.f32 %v5468, %v6677
  %v7056 = vadd.f32 %v5584, %v6793
  %v7057 = vadd.f32 %v5700, %v6909
  %v7058 = vadd.f32 %v5816, %v7025
  %s7059 = scalar_lea.vmem %s3, 2880
  %v7060 = vld [vmem:[%s7059] sm:$0xff]
  %v7061 = vld [vmem:[%s7059 + $0x8] sm:$0xff]
  %v7062 = vld [vmem:[%s7059 + $0x10] sm:$0xff]
  %v7063 = vld [vmem:[%s7059 + $0x18] sm:$0xff]
  %v7064 = vld [vmem:[%s7059 + $0x20] sm:$0xff]
  %v7065 = vld [vmem:[%s7059 + $0x28] sm:$0xff]
  %v7066 = vld [vmem:[%s7059 + $0x30] sm:$0xff]
  %v7067 = vld [vmem:[%s7059 + $0x38] sm:$0xff]
  %v7068 = vld [vmem:[%s7059 + $0x40] sm:$0xff]
  %v7069 = vld [vmem:[%s7059 + $0x48] sm:$0xff]
  %v7070 = vld [vmem:[%s7059 + $0x50] sm:$0xff]
  %v7071 = vld [vmem:[%s7059 + $0x58] sm:$0xff]
  %v7072 = vld [vmem:[%s7059 + $0x60] sm:$0xff]
  %v7073 = vld [vmem:[%s7059 + $0x68] sm:$0xff]
  %v7074 = vld [vmem:[%s7059 + $0x70] sm:$0xff]
  %v7075 = vld [vmem:[%s7059 + $0x78] sm:$0xff]
  %v7076 = vld [vmem:[%s7059 + $0x80] sm:$0xff]
  %v7077 = vld [vmem:[%s7059 + $0x88] sm:$0xff]
  %v7078 = vld [vmem:[%s7059 + $0x90] sm:$0xff]
  %v7079 = vld [vmem:[%s7059 + $0x98] sm:$0xff]
  %v7080 = vld [vmem:[%s7059 + $0xa0] sm:$0xff]
  %v7081 = vld [vmem:[%s7059 + $0xa8] sm:$0xff]
  %v7082 = vld [vmem:[%s7059 + $0xb0] sm:$0xff]
  %v7083 = vld [vmem:[%s7059 + $0xb8] sm:$0xff]
  %v7084 = vld [vmem:[%s7059 + $0xc0] sm:$0xff]
  %v7085 = vld [vmem:[%s7059 + $0xc8] sm:$0xff]
  %v7086 = vld [vmem:[%s7059 + $0xd0] sm:$0xff]
  %v7087 = vld [vmem:[%s7059 + $0xd8] sm:$0xff]
  %v7088 = vld [vmem:[%s7059 + $0xe0] sm:$0xff]
  %v7089 = vld [vmem:[%s7059 + $0xe8] sm:$0xff]
  %v7090 = vld [vmem:[%s7059 + $0xf0] sm:$0xff]
  %v7091 = vld [vmem:[%s7059 + $0xf8] sm:$0xff]
  %v7092 = vld [vmem:[%s7059 + $0x100] sm:$0xff]
  %v7093 = vld [vmem:[%s7059 + $0x108] sm:$0xff]
  %v7094 = vld [vmem:[%s7059 + $0x110] sm:$0xff]
  %v7095 = vld [vmem:[%s7059 + $0x118] sm:$0xff]
  %v7096 = vld [vmem:[%s7059 + $0x120] sm:$0xff]
  %v7097 = vld [vmem:[%s7059 + $0x128] sm:$0xff]
  %v7098 = vld [vmem:[%s7059 + $0x130] sm:$0xff]
  %v7099 = vld [vmem:[%s7059 + $0x138] sm:$0xff]
  %v7100 = vld [vmem:[%s7059 + $0x140] sm:$0xff]
  %v7101 = vld [vmem:[%s7059 + $0x148] sm:$0xff]
  %v7102 = vld [vmem:[%s7059 + $0x150] sm:$0xff]
  %v7103 = vld [vmem:[%s7059 + $0x158] sm:$0xff]
  %v7104 = vld [vmem:[%s7059 + $0x160] sm:$0xff]
  %v7105 = vld [vmem:[%s7059 + $0x168] sm:$0xff]
  %v7106 = vld [vmem:[%s7059 + $0x170] sm:$0xff]
  %v7107 = vld [vmem:[%s7059 + $0x178] sm:$0xff]
  %v7108 = vld [vmem:[%s7059 + $0x180] sm:$0xff]
  %v7109 = vld [vmem:[%s7059 + $0x188] sm:$0xff]
  %v7110 = vld [vmem:[%s7059 + $0x190] sm:$0xff]
  %v7111 = vld [vmem:[%s7059 + $0x198] sm:$0xff]
  %v7112 = vld [vmem:[%s7059 + $0x1a0] sm:$0xff]
  %v7113 = vld [vmem:[%s7059 + $0x1a8] sm:$0xff]
  %v7114 = vld [vmem:[%s7059 + $0x1b0] sm:$0xff]
  %v7115 = vld [vmem:[%s7059 + $0x1b8] sm:$0xff]
  %v7116 = vld [vmem:[%s7059 + $0x1c0] sm:$0xff]
  %v7117 = vld [vmem:[%s7059 + $0x1c8] sm:$0xff]
  %v7118 = vld [vmem:[%s7059 + $0x1d0] sm:$0xff]
  %v7119 = vld [vmem:[%s7059 + $0x1d8] sm:$0xff]
  %v7120 = vld [vmem:[%s7059 + $0x1e0] sm:$0xff]
  %v7121 = vld [vmem:[%s7059 + $0x1e8] sm:$0xff]
  %v7122 = vld [vmem:[%s7059 + $0x1f0] sm:$0xff]
  %v7123 = vld [vmem:[%s7059 + $0x1f8] sm:$0xff]
  %v7124 = vld [vmem:[%s7059 + $0x200] sm:$0xff]
  %v7125 = vld [vmem:[%s7059 + $0x208] sm:$0xff]
  %v7126 = vld [vmem:[%s7059 + $0x210] sm:$0xff]
  %v7127 = vld [vmem:[%s7059 + $0x218] sm:$0xff]
  %v7128 = vld [vmem:[%s7059 + $0x220] sm:$0xff]
  %v7129 = vld [vmem:[%s7059 + $0x228] sm:$0xff]
  %v7130 = vld [vmem:[%s7059 + $0x230] sm:$0xff]
  %v7131 = vld [vmem:[%s7059 + $0x238] sm:$0xff]
  %v7132 = vld [vmem:[%s7059 + $0x240] sm:$0xff]
  %v7133 = vld [vmem:[%s7059 + $0x248] sm:$0xff]
  %v7134 = vld [vmem:[%s7059 + $0x250] sm:$0xff]
  %v7135 = vld [vmem:[%s7059 + $0x258] sm:$0xff]
  %v7136 = vld [vmem:[%s7059 + $0x260] sm:$0xff]
  %v7137 = vld [vmem:[%s7059 + $0x268] sm:$0xff]
  %v7138 = vld [vmem:[%s7059 + $0x270] sm:$0xff]
  %v7139 = vld [vmem:[%s7059 + $0x278] sm:$0xff]
  %v7140 = vld [vmem:[%s7059 + $0x280] sm:$0xff]
  %v7141 = vld [vmem:[%s7059 + $0x288] sm:$0xff]
  %v7142 = vld [vmem:[%s7059 + $0x290] sm:$0xff]
  %v7143 = vld [vmem:[%s7059 + $0x298] sm:$0xff]
  %v7144 = vld [vmem:[%s7059 + $0x2a0] sm:$0xff]
  %v7145 = vld [vmem:[%s7059 + $0x2a8] sm:$0xff]
  %v7146 = vld [vmem:[%s7059 + $0x2b0] sm:$0xff]
  %v7147 = vld [vmem:[%s7059 + $0x2b8] sm:$0xff]
  %v7148 = vld [vmem:[%s7059 + $0x2c0] sm:$0xff]
  %v7149 = vld [vmem:[%s7059 + $0x2c8] sm:$0xff]
  %v7150 = vld [vmem:[%s7059 + $0x2d0] sm:$0xff]
  %v7151 = vld [vmem:[%s7059 + $0x2d8] sm:$0xff]
  %v7152 = vld [vmem:[%s7059 + $0x2e0] sm:$0xff]
  %v7153 = vld [vmem:[%s7059 + $0x2e8] sm:$0xff]
  %v7154 = vld [vmem:[%s7059 + $0x2f0] sm:$0xff]
  %v7155 = vld [vmem:[%s7059 + $0x2f8] sm:$0xff]
  %v7156 = vld [vmem:[%s7059 + $0x300] sm:$0xff]
  %v7157 = vld [vmem:[%s7059 + $0x308] sm:$0xff]
  %v7158 = vld [vmem:[%s7059 + $0x310] sm:$0xff]
  %v7159 = vld [vmem:[%s7059 + $0x318] sm:$0xff]
  %v7160 = vld [vmem:[%s7059 + $0x320] sm:$0xff]
  %v7161 = vld [vmem:[%s7059 + $0x328] sm:$0xff]
  %v7162 = vld [vmem:[%s7059 + $0x330] sm:$0xff]
  %v7163 = vld [vmem:[%s7059 + $0x338] sm:$0xff]
  %v7164 = vld [vmem:[%s7059 + $0x340] sm:$0xff]
  %v7165 = vld [vmem:[%s7059 + $0x348] sm:$0xff]
  %v7166 = vld [vmem:[%s7059 + $0x350] sm:$0xff]
  %v7167 = vld [vmem:[%s7059 + $0x358] sm:$0xff]
  %v7168 = vld [vmem:[%s7059 + $0x360] sm:$0xff]
  %v7169 = vld [vmem:[%s7059 + $0x368] sm:$0xff]
  %v7170 = vld [vmem:[%s7059 + $0x370] sm:$0xff]
  %v7171 = vld [vmem:[%s7059 + $0x378] sm:$0xff]
  %v7172 = vld [vmem:[%s7059 + $0x380] sm:$0xff]
  %v7173 = vld [vmem:[%s7059 + $0x388] sm:$0xff]
  %v7174 = vld [vmem:[%s7059 + $0x390] sm:$0xff]
  %v7175 = vld [vmem:[%s7059 + $0x398] sm:$0xff]
  %v7176 = vld [vmem:[%s7059 + $0x3a0] sm:$0xff]
  %v7177 = vld [vmem:[%s7059 + $0x3a8] sm:$0xff]
  %v7178 = vld [vmem:[%s7059 + $0x3b0] sm:$0xff]
  %v7179 = vld [vmem:[%s7059 + $0x3b8] sm:$0xff]
  %v7182 = vunpack.c.l.b16 %v3290
  %v7183 = vunpack.c.h.b16 %v3290
  %v7184 = vunpack.c.l.b16 %v3291
  %v7185 = vunpack.c.h.b16 %v3291
  %v7186 = vpack.c.b16 %v7182, %v5941
  %v7187 = vpack.c.b16 %v7183, %v5942
  %v7188 = vpack.c.b16 %v7184, %v5943
  %v7189 = vpack.c.b16 %v7185, %v5944
  %v7313 = vunpack.c.l.b16 %v7060
  %v7314 = vunpack.c.h.b16 %v7060
  %v7315 = vunpack.c.l.b16 %v7061
  %v7316 = vunpack.c.h.b16 %v7061
  %v7317 = vunpack.c.l.b16 %v7062
  %v7318 = vunpack.c.h.b16 %v7062
  %v7319 = vunpack.c.l.b16 %v7063
  %v7320 = vunpack.c.h.b16 %v7063
  %v7321 = vunpack.c.l.b16 %v7064
  %v7322 = vunpack.c.h.b16 %v7064
  %v7323 = vunpack.c.l.b16 %v7065
  %v7324 = vunpack.c.h.b16 %v7065
  %v7325 = vunpack.c.l.b16 %v7066
  %v7326 = vunpack.c.h.b16 %v7066
  %v7327 = vunpack.c.l.b16 %v7067
  %v7328 = vunpack.c.h.b16 %v7067
  %v7329 = vunpack.c.l.b16 %v7068
  %v7330 = vunpack.c.h.b16 %v7068
  %v7331 = vunpack.c.l.b16 %v7069
  %v7332 = vunpack.c.h.b16 %v7069
  %v7333 = vunpack.c.l.b16 %v7070
  %v7334 = vunpack.c.h.b16 %v7070
  %v7335 = vunpack.c.l.b16 %v7071
  %v7336 = vunpack.c.h.b16 %v7071
  %v7337 = vunpack.c.l.b16 %v7072
  %v7338 = vunpack.c.h.b16 %v7072
  %v7339 = vunpack.c.l.b16 %v7073
  %v7340 = vunpack.c.h.b16 %v7073
  %v7341 = vunpack.c.l.b16 %v7074
  %v7342 = vunpack.c.h.b16 %v7074
  %v7343 = vunpack.c.l.b16 %v7075
  %v7344 = vunpack.c.h.b16 %v7075
  %v7345 = vunpack.c.l.b16 %v7076
  %v7346 = vunpack.c.h.b16 %v7076
  %v7347 = vunpack.c.l.b16 %v7077
  %v7348 = vunpack.c.h.b16 %v7077
  %v7349 = vunpack.c.l.b16 %v7078
  %v7350 = vunpack.c.h.b16 %v7078
  %v7351 = vunpack.c.l.b16 %v7079
  %v7352 = vunpack.c.h.b16 %v7079
  %v7353 = vunpack.c.l.b16 %v7080
  %v7354 = vunpack.c.h.b16 %v7080
  %v7355 = vunpack.c.l.b16 %v7081
  %v7356 = vunpack.c.h.b16 %v7081
  %v7357 = vunpack.c.l.b16 %v7082
  %v7358 = vunpack.c.h.b16 %v7082
  %v7359 = vunpack.c.l.b16 %v7083
  %v7360 = vunpack.c.h.b16 %v7083
  %v7361 = vunpack.c.l.b16 %v7084
  %v7362 = vunpack.c.h.b16 %v7084
  %v7363 = vunpack.c.l.b16 %v7085
  %v7364 = vunpack.c.h.b16 %v7085
  %v7365 = vunpack.c.l.b16 %v7086
  %v7366 = vunpack.c.h.b16 %v7086
  %v7367 = vunpack.c.l.b16 %v7087
  %v7368 = vunpack.c.h.b16 %v7087
  %v7369 = vunpack.c.l.b16 %v7088
  %v7370 = vunpack.c.h.b16 %v7088
  %v7371 = vunpack.c.l.b16 %v7089
  %v7372 = vunpack.c.h.b16 %v7089
  %v7373 = vunpack.c.l.b16 %v7090
  %v7374 = vunpack.c.h.b16 %v7090
  %v7375 = vunpack.c.l.b16 %v7091
  %v7376 = vunpack.c.h.b16 %v7091
  %v7377 = vunpack.c.l.b16 %v7092
  %v7378 = vunpack.c.h.b16 %v7092
  %v7379 = vunpack.c.l.b16 %v7093
  %v7380 = vunpack.c.h.b16 %v7093
  %v7381 = vunpack.c.l.b16 %v7094
  %v7382 = vunpack.c.h.b16 %v7094
  %v7383 = vunpack.c.l.b16 %v7095
  %v7384 = vunpack.c.h.b16 %v7095
  %v7385 = vunpack.c.l.b16 %v7096
  %v7386 = vunpack.c.h.b16 %v7096
  %v7387 = vunpack.c.l.b16 %v7097
  %v7388 = vunpack.c.h.b16 %v7097
  %v7389 = vunpack.c.l.b16 %v7098
  %v7390 = vunpack.c.h.b16 %v7098
  %v7391 = vunpack.c.l.b16 %v7099
  %v7392 = vunpack.c.h.b16 %v7099
  %v7393 = vunpack.c.l.b16 %v7100
  %v7394 = vunpack.c.h.b16 %v7100
  %v7395 = vunpack.c.l.b16 %v7101
  %v7396 = vunpack.c.h.b16 %v7101
  %v7397 = vunpack.c.l.b16 %v7102
  %v7398 = vunpack.c.h.b16 %v7102
  %v7399 = vunpack.c.l.b16 %v7103
  %v7400 = vunpack.c.h.b16 %v7103
  %v7401 = vunpack.c.l.b16 %v7104
  %v7402 = vunpack.c.h.b16 %v7104
  %v7403 = vunpack.c.l.b16 %v7105
  %v7404 = vunpack.c.h.b16 %v7105
  %v7405 = vunpack.c.l.b16 %v7106
  %v7406 = vunpack.c.h.b16 %v7106
  %v7407 = vunpack.c.l.b16 %v7107
  %v7408 = vunpack.c.h.b16 %v7107
  %v7409 = vunpack.c.l.b16 %v7108
  %v7410 = vunpack.c.h.b16 %v7108
  %v7411 = vunpack.c.l.b16 %v7109
  %v7412 = vunpack.c.h.b16 %v7109
  %v7413 = vunpack.c.l.b16 %v7110
  %v7414 = vunpack.c.h.b16 %v7110
  %v7415 = vunpack.c.l.b16 %v7111
  %v7416 = vunpack.c.h.b16 %v7111
  %v7417 = vunpack.c.l.b16 %v7112
  %v7418 = vunpack.c.h.b16 %v7112
  %v7419 = vunpack.c.l.b16 %v7113
  %v7420 = vunpack.c.h.b16 %v7113
  %v7421 = vunpack.c.l.b16 %v7114
  %v7422 = vunpack.c.h.b16 %v7114
  %v7423 = vunpack.c.l.b16 %v7115
  %v7424 = vunpack.c.h.b16 %v7115
  %v7425 = vunpack.c.l.b16 %v7116
  %v7426 = vunpack.c.h.b16 %v7116
  %v7427 = vunpack.c.l.b16 %v7117
  %v7428 = vunpack.c.h.b16 %v7117
  %v7429 = vunpack.c.l.b16 %v7118
  %v7430 = vunpack.c.h.b16 %v7118
  %v7431 = vunpack.c.l.b16 %v7119
  %v7432 = vunpack.c.h.b16 %v7119
  %v7433 = vunpack.c.l.b16 %v7120
  %v7434 = vunpack.c.h.b16 %v7120
  %v7435 = vunpack.c.l.b16 %v7121
  %v7436 = vunpack.c.h.b16 %v7121
  %v7437 = vunpack.c.l.b16 %v7122
  %v7438 = vunpack.c.h.b16 %v7122
  %v7439 = vunpack.c.l.b16 %v7123
  %v7440 = vunpack.c.h.b16 %v7123
  %v7441 = vunpack.c.l.b16 %v7124
  %v7442 = vunpack.c.h.b16 %v7124
  %v7443 = vunpack.c.l.b16 %v7125
  %v7444 = vunpack.c.h.b16 %v7125
  %v7445 = vunpack.c.l.b16 %v7126
  %v7446 = vunpack.c.h.b16 %v7126
  %v7447 = vunpack.c.l.b16 %v7127
  %v7448 = vunpack.c.h.b16 %v7127
  %v7449 = vunpack.c.l.b16 %v7128
  %v7450 = vunpack.c.h.b16 %v7128
  %v7451 = vunpack.c.l.b16 %v7129
  %v7452 = vunpack.c.h.b16 %v7129
  %v7453 = vunpack.c.l.b16 %v7130
  %v7454 = vunpack.c.h.b16 %v7130
  %v7455 = vunpack.c.l.b16 %v7131
  %v7456 = vunpack.c.h.b16 %v7131
  %v7457 = vunpack.c.l.b16 %v7132
  %v7458 = vunpack.c.h.b16 %v7132
  %v7459 = vunpack.c.l.b16 %v7133
  %v7460 = vunpack.c.h.b16 %v7133
  %v7461 = vunpack.c.l.b16 %v7134
  %v7462 = vunpack.c.h.b16 %v7134
  %v7463 = vunpack.c.l.b16 %v7135
  %v7464 = vunpack.c.h.b16 %v7135
  %v7465 = vunpack.c.l.b16 %v7136
  %v7466 = vunpack.c.h.b16 %v7136
  %v7467 = vunpack.c.l.b16 %v7137
  %v7468 = vunpack.c.h.b16 %v7137
  %v7469 = vunpack.c.l.b16 %v7138
  %v7470 = vunpack.c.h.b16 %v7138
  %v7471 = vunpack.c.l.b16 %v7139
  %v7472 = vunpack.c.h.b16 %v7139
  %v7473 = vunpack.c.l.b16 %v7140
  %v7474 = vunpack.c.h.b16 %v7140
  %v7475 = vunpack.c.l.b16 %v7141
  %v7476 = vunpack.c.h.b16 %v7141
  %v7477 = vunpack.c.l.b16 %v7142
  %v7478 = vunpack.c.h.b16 %v7142
  %v7479 = vunpack.c.l.b16 %v7143
  %v7480 = vunpack.c.h.b16 %v7143
  %v7481 = vunpack.c.l.b16 %v7144
  %v7482 = vunpack.c.h.b16 %v7144
  %v7483 = vunpack.c.l.b16 %v7145
  %v7484 = vunpack.c.h.b16 %v7145
  %v7485 = vunpack.c.l.b16 %v7146
  %v7486 = vunpack.c.h.b16 %v7146
  %v7487 = vunpack.c.l.b16 %v7147
  %v7488 = vunpack.c.h.b16 %v7147
  %v7489 = vunpack.c.l.b16 %v7148
  %v7490 = vunpack.c.h.b16 %v7148
  %v7491 = vunpack.c.l.b16 %v7149
  %v7492 = vunpack.c.h.b16 %v7149
  %v7493 = vunpack.c.l.b16 %v7150
  %v7494 = vunpack.c.h.b16 %v7150
  %v7495 = vunpack.c.l.b16 %v7151
  %v7496 = vunpack.c.h.b16 %v7151
  %v7497 = vunpack.c.l.b16 %v7152
  %v7498 = vunpack.c.h.b16 %v7152
  %v7499 = vunpack.c.l.b16 %v7153
  %v7500 = vunpack.c.h.b16 %v7153
  %v7501 = vunpack.c.l.b16 %v7154
  %v7502 = vunpack.c.h.b16 %v7154
  %v7503 = vunpack.c.l.b16 %v7155
  %v7504 = vunpack.c.h.b16 %v7155
  %v7505 = vunpack.c.l.b16 %v7156
  %v7506 = vunpack.c.h.b16 %v7156
  %v7507 = vunpack.c.l.b16 %v7157
  %v7508 = vunpack.c.h.b16 %v7157
  %v7509 = vunpack.c.l.b16 %v7158
  %v7510 = vunpack.c.h.b16 %v7158
  %v7511 = vunpack.c.l.b16 %v7159
  %v7512 = vunpack.c.h.b16 %v7159
  %v7513 = vunpack.c.l.b16 %v7160
  %v7514 = vunpack.c.h.b16 %v7160
  %v7515 = vunpack.c.l.b16 %v7161
  %v7516 = vunpack.c.h.b16 %v7161
  %v7517 = vunpack.c.l.b16 %v7162
  %v7518 = vunpack.c.h.b16 %v7162
  %v7519 = vunpack.c.l.b16 %v7163
  %v7520 = vunpack.c.h.b16 %v7163
  %v7521 = vunpack.c.l.b16 %v7164
  %v7522 = vunpack.c.h.b16 %v7164
  %v7523 = vunpack.c.l.b16 %v7165
  %v7524 = vunpack.c.h.b16 %v7165
  %v7525 = vunpack.c.l.b16 %v7166
  %v7526 = vunpack.c.h.b16 %v7166
  %v7527 = vunpack.c.l.b16 %v7167
  %v7528 = vunpack.c.h.b16 %v7167
  %v7529 = vunpack.c.l.b16 %v7168
  %v7530 = vunpack.c.h.b16 %v7168
  %v7531 = vunpack.c.l.b16 %v7169
  %v7532 = vunpack.c.h.b16 %v7169
  %v7533 = vunpack.c.l.b16 %v7170
  %v7534 = vunpack.c.h.b16 %v7170
  %v7535 = vunpack.c.l.b16 %v7171
  %v7536 = vunpack.c.h.b16 %v7171
  %v7537 = vunpack.c.l.b16 %v7172
  %v7538 = vunpack.c.h.b16 %v7172
  %v7539 = vunpack.c.l.b16 %v7173
  %v7540 = vunpack.c.h.b16 %v7173
  %v7541 = vunpack.c.l.b16 %v7174
  %v7542 = vunpack.c.h.b16 %v7174
  %v7543 = vunpack.c.l.b16 %v7175
  %v7544 = vunpack.c.h.b16 %v7175
  %v7545 = vunpack.c.l.b16 %v7176
  %v7546 = vunpack.c.h.b16 %v7176
  %v7547 = vunpack.c.l.b16 %v7177
  %v7548 = vunpack.c.h.b16 %v7177
  %v7549 = vunpack.c.l.b16 %v7178
  %v7550 = vunpack.c.h.b16 %v7178
  %v7551 = vunpack.c.l.b16 %v7179
  %v7552 = vunpack.c.h.b16 %v7179
  %v7553 = vpack.c.b16 %v7317, %v7313
  %v7554 = vpack.c.b16 %v7318, %v7314
  %v7555 = vpack.c.b16 %v7319, %v7315
  %v7556 = vpack.c.b16 %v7320, %v7316
  %v7557 = vpack.c.b16 %v7325, %v7321
  %v7558 = vpack.c.b16 %v7326, %v7322
  %v7559 = vpack.c.b16 %v7327, %v7323
  %v7560 = vpack.c.b16 %v7328, %v7324
  %v7561 = vpack.c.b16 %v7333, %v7329
  %v7562 = vpack.c.b16 %v7334, %v7330
  %v7563 = vpack.c.b16 %v7335, %v7331
  %v7564 = vpack.c.b16 %v7336, %v7332
  %v7565 = vpack.c.b16 %v7341, %v7337
  %v7566 = vpack.c.b16 %v7342, %v7338
  %v7567 = vpack.c.b16 %v7343, %v7339
  %v7568 = vpack.c.b16 %v7344, %v7340
  %v7569 = vpack.c.b16 %v7349, %v7345
  %v7570 = vpack.c.b16 %v7350, %v7346
  %v7571 = vpack.c.b16 %v7351, %v7347
  %v7572 = vpack.c.b16 %v7352, %v7348
  %v7573 = vpack.c.b16 %v7357, %v7353
  %v7574 = vpack.c.b16 %v7358, %v7354
  %v7575 = vpack.c.b16 %v7359, %v7355
  %v7576 = vpack.c.b16 %v7360, %v7356
  %v7577 = vpack.c.b16 %v7365, %v7361
  %v7578 = vpack.c.b16 %v7366, %v7362
  %v7579 = vpack.c.b16 %v7367, %v7363
  %v7580 = vpack.c.b16 %v7368, %v7364
  %v7581 = vpack.c.b16 %v7373, %v7369
  %v7582 = vpack.c.b16 %v7374, %v7370
  %v7583 = vpack.c.b16 %v7375, %v7371
  %v7584 = vpack.c.b16 %v7376, %v7372
  %v7585 = vpack.c.b16 %v7381, %v7377
  %v7586 = vpack.c.b16 %v7382, %v7378
  %v7587 = vpack.c.b16 %v7383, %v7379
  %v7588 = vpack.c.b16 %v7384, %v7380
  %v7589 = vpack.c.b16 %v7389, %v7385
  %v7590 = vpack.c.b16 %v7390, %v7386
  %v7591 = vpack.c.b16 %v7391, %v7387
  %v7592 = vpack.c.b16 %v7392, %v7388
  %v7593 = vpack.c.b16 %v7397, %v7393
  %v7594 = vpack.c.b16 %v7398, %v7394
  %v7595 = vpack.c.b16 %v7399, %v7395
  %v7596 = vpack.c.b16 %v7400, %v7396
  %v7597 = vpack.c.b16 %v7405, %v7401
  %v7598 = vpack.c.b16 %v7406, %v7402
  %v7599 = vpack.c.b16 %v7407, %v7403
  %v7600 = vpack.c.b16 %v7408, %v7404
  %v7601 = vpack.c.b16 %v7413, %v7409
  %v7602 = vpack.c.b16 %v7414, %v7410
  %v7603 = vpack.c.b16 %v7415, %v7411
  %v7604 = vpack.c.b16 %v7416, %v7412
  %v7605 = vpack.c.b16 %v7421, %v7417
  %v7606 = vpack.c.b16 %v7422, %v7418
  %v7607 = vpack.c.b16 %v7423, %v7419
  %v7608 = vpack.c.b16 %v7424, %v7420
  %v7609 = vpack.c.b16 %v7429, %v7425
  %v7610 = vpack.c.b16 %v7430, %v7426
  %v7611 = vpack.c.b16 %v7431, %v7427
  %v7612 = vpack.c.b16 %v7432, %v7428
  %v7613 = vpack.c.b16 %v7437, %v7433
  %v7614 = vpack.c.b16 %v7438, %v7434
  %v7615 = vpack.c.b16 %v7439, %v7435
  %v7616 = vpack.c.b16 %v7440, %v7436
  %v7617 = vpack.c.b16 %v7445, %v7441
  %v7618 = vpack.c.b16 %v7446, %v7442
  %v7619 = vpack.c.b16 %v7447, %v7443
  %v7620 = vpack.c.b16 %v7448, %v7444
  %v7621 = vpack.c.b16 %v7453, %v7449
  %v7622 = vpack.c.b16 %v7454, %v7450
  %v7623 = vpack.c.b16 %v7455, %v7451
  %v7624 = vpack.c.b16 %v7456, %v7452
  %v7625 = vpack.c.b16 %v7461, %v7457
  %v7626 = vpack.c.b16 %v7462, %v7458
  %v7627 = vpack.c.b16 %v7463, %v7459
  %v7628 = vpack.c.b16 %v7464, %v7460
  %v7629 = vpack.c.b16 %v7469, %v7465
  %v7630 = vpack.c.b16 %v7470, %v7466
  %v7631 = vpack.c.b16 %v7471, %v7467
  %v7632 = vpack.c.b16 %v7472, %v7468
  %v7633 = vpack.c.b16 %v7477, %v7473
  %v7634 = vpack.c.b16 %v7478, %v7474
  %v7635 = vpack.c.b16 %v7479, %v7475
  %v7636 = vpack.c.b16 %v7480, %v7476
  %v7637 = vpack.c.b16 %v7485, %v7481
  %v7638 = vpack.c.b16 %v7486, %v7482
  %v7639 = vpack.c.b16 %v7487, %v7483
  %v7640 = vpack.c.b16 %v7488, %v7484
  %v7641 = vpack.c.b16 %v7493, %v7489
  %v7642 = vpack.c.b16 %v7494, %v7490
  %v7643 = vpack.c.b16 %v7495, %v7491
  %v7644 = vpack.c.b16 %v7496, %v7492
  %v7645 = vpack.c.b16 %v7501, %v7497
  %v7646 = vpack.c.b16 %v7502, %v7498
  %v7647 = vpack.c.b16 %v7503, %v7499
  %v7648 = vpack.c.b16 %v7504, %v7500
  %v7649 = vpack.c.b16 %v7509, %v7505
  %v7650 = vpack.c.b16 %v7510, %v7506
  %v7651 = vpack.c.b16 %v7511, %v7507
  %v7652 = vpack.c.b16 %v7512, %v7508
  %v7653 = vpack.c.b16 %v7517, %v7513
  %v7654 = vpack.c.b16 %v7518, %v7514
  %v7655 = vpack.c.b16 %v7519, %v7515
  %v7656 = vpack.c.b16 %v7520, %v7516
  %v7657 = vpack.c.b16 %v7525, %v7521
  %v7658 = vpack.c.b16 %v7526, %v7522
  %v7659 = vpack.c.b16 %v7527, %v7523
  %v7660 = vpack.c.b16 %v7528, %v7524
  %v7661 = vpack.c.b16 %v7533, %v7529
  %v7662 = vpack.c.b16 %v7534, %v7530
  %v7663 = vpack.c.b16 %v7535, %v7531
  %v7664 = vpack.c.b16 %v7536, %v7532
  %v7665 = vpack.c.b16 %v7541, %v7537
  %v7666 = vpack.c.b16 %v7542, %v7538
  %v7667 = vpack.c.b16 %v7543, %v7539
  %v7668 = vpack.c.b16 %v7544, %v7540
  %v7669 = vpack.c.b16 %v7549, %v7545
  %v7670 = vpack.c.b16 %v7550, %v7546
  %v7671 = vpack.c.b16 %v7551, %v7547
  %v7672 = vpack.c.b16 %v7552, %v7548
  %v7790 = vsel %vm4207, %v7189, 0
  %v7793 = vand.u32 %v7669, %v4223
  %v7796 = vand.u32 %v7670, %v4223
  %v7799 = vand.u32 %v7671, %v4223
  %v7802 = vand.u32 %v7672, %v4223
  %7804 = vmatpush.bf16.msra.mxu0 %v7581
  %7805 = vmatpush.bf16.msra.mxu0 %v7577
  %7806 = vmatpush.bf16.msra.mxu0 %v7573
  %7807 = vmatpush.bf16.msra.mxu0 %v7569
  %7808 = vmatpush.bf16.msra.mxu0 %v7565
  %7809 = vmatpush.bf16.msra.mxu0 %v7561
  %7810 = vmatpush.bf16.msra.mxu0 %v7557
  %7811 = vmatpush.bf16.msra.mxu0 %v7553
  %7812 = vmatmul.bf16.gmra.mxu0 %v3587
  %v7813 = vpop.f32.mrf.mxu0
  %v7814 = vadd.f32 0.0, %v7813
  %v7815 = vpop.f32.mrf.mxu0
  %v7816 = vadd.f32 0.0, %v7815
  %7817 = vmatmul.bf16.gmra.mxu0 %v3591
  %v7818 = vpop.f32.mrf.mxu0
  %v7819 = vadd.f32 0.0, %v7818
  %v7820 = vpop.f32.mrf.mxu0
  %v7821 = vadd.f32 0.0, %v7820
  %7822 = vmatmul.bf16.gmra.mxu0 %v3595
  %v7823 = vpop.f32.mrf.mxu0
  %v7824 = vadd.f32 0.0, %v7823
  %v7825 = vpop.f32.mrf.mxu0
  %v7826 = vadd.f32 0.0, %v7825
  %7827 = vmatmul.bf16.gmra.mxu0 %v7186
  %v7828 = vpop.f32.mrf.mxu0
  %v7829 = vadd.f32 0.0, %v7828
  %v7830 = vpop.f32.mrf.mxu0
  %v7831 = vadd.f32 0.0, %v7830
  %7832 = vdwg.mxu0
  %7833 = vmatpush.bf16.msra.mxu0 %v7613
  %7834 = vmatpush.bf16.msra.mxu0 %v7609
  %7835 = vmatpush.bf16.msra.mxu0 %v7605
  %7836 = vmatpush.bf16.msra.mxu0 %v7601
  %7837 = vmatpush.bf16.msra.mxu0 %v7597
  %7838 = vmatpush.bf16.msra.mxu0 %v7593
  %7839 = vmatpush.bf16.msra.mxu0 %v7589
  %7840 = vmatpush.bf16.msra.mxu0 %v7585
  %7841 = vmatmul.bf16.gmra.mxu0 %v3588
  %v7842 = vpop.f32.mrf.mxu0
  %v7843 = vadd.f32 %v7814, %v7842
  %v7844 = vpop.f32.mrf.mxu0
  %v7845 = vadd.f32 %v7816, %v7844
  %7846 = vmatmul.bf16.gmra.mxu0 %v3592
  %v7847 = vpop.f32.mrf.mxu0
  %v7848 = vadd.f32 %v7819, %v7847
  %v7849 = vpop.f32.mrf.mxu0
  %v7850 = vadd.f32 %v7821, %v7849
  %7851 = vmatmul.bf16.gmra.mxu0 %v3596
  %v7852 = vpop.f32.mrf.mxu0
  %v7853 = vadd.f32 %v7824, %v7852
  %v7854 = vpop.f32.mrf.mxu0
  %v7855 = vadd.f32 %v7826, %v7854
  %7856 = vmatmul.bf16.gmra.mxu0 %v7187
  %v7857 = vpop.f32.mrf.mxu0
  %v7858 = vadd.f32 %v7829, %v7857
  %v7859 = vpop.f32.mrf.mxu0
  %v7860 = vadd.f32 %v7831, %v7859
  %7861 = vdwg.mxu0
  %7862 = vmatpush.bf16.msra.mxu0 %v7645
  %7863 = vmatpush.bf16.msra.mxu0 %v7641
  %7864 = vmatpush.bf16.msra.mxu0 %v7637
  %7865 = vmatpush.bf16.msra.mxu0 %v7633
  %7866 = vmatpush.bf16.msra.mxu0 %v7629
  %7867 = vmatpush.bf16.msra.mxu0 %v7625
  %7868 = vmatpush.bf16.msra.mxu0 %v7621
  %7869 = vmatpush.bf16.msra.mxu0 %v7617
  %7870 = vmatmul.bf16.gmra.mxu0 %v3589
  %v7871 = vpop.f32.mrf.mxu0
  %v7872 = vadd.f32 %v7843, %v7871
  %v7873 = vpop.f32.mrf.mxu0
  %v7874 = vadd.f32 %v7845, %v7873
  %7875 = vmatmul.bf16.gmra.mxu0 %v3593
  %v7876 = vpop.f32.mrf.mxu0
  %v7877 = vadd.f32 %v7848, %v7876
  %v7878 = vpop.f32.mrf.mxu0
  %v7879 = vadd.f32 %v7850, %v7878
  %7880 = vmatmul.bf16.gmra.mxu0 %v3597
  %v7881 = vpop.f32.mrf.mxu0
  %v7882 = vadd.f32 %v7853, %v7881
  %v7883 = vpop.f32.mrf.mxu0
  %v7884 = vadd.f32 %v7855, %v7883
  %7885 = vmatmul.bf16.gmra.mxu0 %v7188
  %v7886 = vpop.f32.mrf.mxu0
  %v7887 = vadd.f32 %v7858, %v7886
  %v7888 = vpop.f32.mrf.mxu0
  %v7889 = vadd.f32 %v7860, %v7888
  %7890 = vdwg.mxu0
  %7891 = vmatpush.bf16.msra.mxu0 0
  %7892 = vmatpush.bf16.msra.mxu0 0
  %7893 = vmatpush.bf16.msra.mxu0 %v7793
  %7894 = vmatpush.bf16.msra.mxu0 %v7665
  %7895 = vmatpush.bf16.msra.mxu0 %v7661
  %7896 = vmatpush.bf16.msra.mxu0 %v7657
  %7897 = vmatpush.bf16.msra.mxu0 %v7653
  %7898 = vmatpush.bf16.msra.mxu0 %v7649
  %7899 = vmatmul.bf16.gmra.mxu0 %v4212
  %v7900 = vpop.f32.mrf.mxu0
  %v7901 = vadd.f32 %v7872, %v7900
  %v7902 = vpop.f32.mrf.mxu0
  %v7903 = vadd.f32 %v7874, %v7902
  %7904 = vmatmul.bf16.gmra.mxu0 %v4215
  %v7905 = vpop.f32.mrf.mxu0
  %v7906 = vadd.f32 %v7877, %v7905
  %v7907 = vpop.f32.mrf.mxu0
  %v7908 = vadd.f32 %v7879, %v7907
  %7909 = vmatmul.bf16.gmra.mxu0 %v4218
  %v7910 = vpop.f32.mrf.mxu0
  %v7911 = vadd.f32 %v7882, %v7910
  %v7912 = vpop.f32.mrf.mxu0
  %v7913 = vadd.f32 %v7884, %v7912
  %7914 = vmatmul.bf16.gmra.mxu0 %v7790
  %v7915 = vpop.f32.mrf.mxu0
  %v7916 = vadd.f32 %v7887, %v7915
  %v7917 = vpop.f32.mrf.mxu0
  %v7918 = vadd.f32 %v7889, %v7917
  %7919 = vdwg.mxu0
  %7920 = vmatpush.bf16.msra.mxu0 %v7582
  %7921 = vmatpush.bf16.msra.mxu0 %v7578
  %7922 = vmatpush.bf16.msra.mxu0 %v7574
  %7923 = vmatpush.bf16.msra.mxu0 %v7570
  %7924 = vmatpush.bf16.msra.mxu0 %v7566
  %7925 = vmatpush.bf16.msra.mxu0 %v7562
  %7926 = vmatpush.bf16.msra.mxu0 %v7558
  %7927 = vmatpush.bf16.msra.mxu0 %v7554
  %7928 = vmatmul.bf16.gmra.mxu0 %v3587
  %v7929 = vpop.f32.mrf.mxu0
  %v7930 = vadd.f32 0.0, %v7929
  %v7931 = vpop.f32.mrf.mxu0
  %v7932 = vadd.f32 0.0, %v7931
  %7933 = vmatmul.bf16.gmra.mxu0 %v3591
  %v7934 = vpop.f32.mrf.mxu0
  %v7935 = vadd.f32 0.0, %v7934
  %v7936 = vpop.f32.mrf.mxu0
  %v7937 = vadd.f32 0.0, %v7936
  %7938 = vmatmul.bf16.gmra.mxu0 %v3595
  %v7939 = vpop.f32.mrf.mxu0
  %v7940 = vadd.f32 0.0, %v7939
  %v7941 = vpop.f32.mrf.mxu0
  %v7942 = vadd.f32 0.0, %v7941
  %7943 = vmatmul.bf16.gmra.mxu0 %v7186
  %v7944 = vpop.f32.mrf.mxu0
  %v7945 = vadd.f32 0.0, %v7944
  %v7946 = vpop.f32.mrf.mxu0
  %v7947 = vadd.f32 0.0, %v7946
  %7948 = vdwg.mxu0
  %7949 = vmatpush.bf16.msra.mxu0 %v7614
  %7950 = vmatpush.bf16.msra.mxu0 %v7610
  %7951 = vmatpush.bf16.msra.mxu0 %v7606
  %7952 = vmatpush.bf16.msra.mxu0 %v7602
  %7953 = vmatpush.bf16.msra.mxu0 %v7598
  %7954 = vmatpush.bf16.msra.mxu0 %v7594
  %7955 = vmatpush.bf16.msra.mxu0 %v7590
  %7956 = vmatpush.bf16.msra.mxu0 %v7586
  %7957 = vmatmul.bf16.gmra.mxu0 %v3588
  %v7958 = vpop.f32.mrf.mxu0
  %v7959 = vadd.f32 %v7930, %v7958
  %v7960 = vpop.f32.mrf.mxu0
  %v7961 = vadd.f32 %v7932, %v7960
  %7962 = vmatmul.bf16.gmra.mxu0 %v3592
  %v7963 = vpop.f32.mrf.mxu0
  %v7964 = vadd.f32 %v7935, %v7963
  %v7965 = vpop.f32.mrf.mxu0
  %v7966 = vadd.f32 %v7937, %v7965
  %7967 = vmatmul.bf16.gmra.mxu0 %v3596
  %v7968 = vpop.f32.mrf.mxu0
  %v7969 = vadd.f32 %v7940, %v7968
  %v7970 = vpop.f32.mrf.mxu0
  %v7971 = vadd.f32 %v7942, %v7970
  %7972 = vmatmul.bf16.gmra.mxu0 %v7187
  %v7973 = vpop.f32.mrf.mxu0
  %v7974 = vadd.f32 %v7945, %v7973
  %v7975 = vpop.f32.mrf.mxu0
  %v7976 = vadd.f32 %v7947, %v7975
  %7977 = vdwg.mxu0
  %7978 = vmatpush.bf16.msra.mxu0 %v7646
  %7979 = vmatpush.bf16.msra.mxu0 %v7642
  %7980 = vmatpush.bf16.msra.mxu0 %v7638
  %7981 = vmatpush.bf16.msra.mxu0 %v7634
  %7982 = vmatpush.bf16.msra.mxu0 %v7630
  %7983 = vmatpush.bf16.msra.mxu0 %v7626
  %7984 = vmatpush.bf16.msra.mxu0 %v7622
  %7985 = vmatpush.bf16.msra.mxu0 %v7618
  %7986 = vmatmul.bf16.gmra.mxu0 %v3589
  %v7987 = vpop.f32.mrf.mxu0
  %v7988 = vadd.f32 %v7959, %v7987
  %v7989 = vpop.f32.mrf.mxu0
  %v7990 = vadd.f32 %v7961, %v7989
  %7991 = vmatmul.bf16.gmra.mxu0 %v3593
  %v7992 = vpop.f32.mrf.mxu0
  %v7993 = vadd.f32 %v7964, %v7992
  %v7994 = vpop.f32.mrf.mxu0
  %v7995 = vadd.f32 %v7966, %v7994
  %7996 = vmatmul.bf16.gmra.mxu0 %v3597
  %v7997 = vpop.f32.mrf.mxu0
  %v7998 = vadd.f32 %v7969, %v7997
  %v7999 = vpop.f32.mrf.mxu0
  %v8000 = vadd.f32 %v7971, %v7999
  %8001 = vmatmul.bf16.gmra.mxu0 %v7188
  %v8002 = vpop.f32.mrf.mxu0
  %v8003 = vadd.f32 %v7974, %v8002
  %v8004 = vpop.f32.mrf.mxu0
  %v8005 = vadd.f32 %v7976, %v8004
  %8006 = vdwg.mxu0
  %8007 = vmatpush.bf16.msra.mxu0 0
  %8008 = vmatpush.bf16.msra.mxu0 0
  %8009 = vmatpush.bf16.msra.mxu0 %v7796
  %8010 = vmatpush.bf16.msra.mxu0 %v7666
  %8011 = vmatpush.bf16.msra.mxu0 %v7662
  %8012 = vmatpush.bf16.msra.mxu0 %v7658
  %8013 = vmatpush.bf16.msra.mxu0 %v7654
  %8014 = vmatpush.bf16.msra.mxu0 %v7650
  %8015 = vmatmul.bf16.gmra.mxu0 %v4212
  %v8016 = vpop.f32.mrf.mxu0
  %v8017 = vadd.f32 %v7988, %v8016
  %v8018 = vpop.f32.mrf.mxu0
  %v8019 = vadd.f32 %v7990, %v8018
  %8020 = vmatmul.bf16.gmra.mxu0 %v4215
  %v8021 = vpop.f32.mrf.mxu0
  %v8022 = vadd.f32 %v7993, %v8021
  %v8023 = vpop.f32.mrf.mxu0
  %v8024 = vadd.f32 %v7995, %v8023
  %8025 = vmatmul.bf16.gmra.mxu0 %v4218
  %v8026 = vpop.f32.mrf.mxu0
  %v8027 = vadd.f32 %v7998, %v8026
  %v8028 = vpop.f32.mrf.mxu0
  %v8029 = vadd.f32 %v8000, %v8028
  %8030 = vmatmul.bf16.gmra.mxu0 %v7790
  %v8031 = vpop.f32.mrf.mxu0
  %v8032 = vadd.f32 %v8003, %v8031
  %v8033 = vpop.f32.mrf.mxu0
  %v8034 = vadd.f32 %v8005, %v8033
  %8035 = vdwg.mxu0
  %8036 = vmatpush.bf16.msra.mxu0 %v7583
  %8037 = vmatpush.bf16.msra.mxu0 %v7579
  %8038 = vmatpush.bf16.msra.mxu0 %v7575
  %8039 = vmatpush.bf16.msra.mxu0 %v7571
  %8040 = vmatpush.bf16.msra.mxu0 %v7567
  %8041 = vmatpush.bf16.msra.mxu0 %v7563
  %8042 = vmatpush.bf16.msra.mxu0 %v7559
  %8043 = vmatpush.bf16.msra.mxu0 %v7555
  %8044 = vmatmul.bf16.gmra.mxu0 %v3587
  %v8045 = vpop.f32.mrf.mxu0
  %v8046 = vadd.f32 0.0, %v8045
  %v8047 = vpop.f32.mrf.mxu0
  %v8048 = vadd.f32 0.0, %v8047
  %8049 = vmatmul.bf16.gmra.mxu0 %v3591
  %v8050 = vpop.f32.mrf.mxu0
  %v8051 = vadd.f32 0.0, %v8050
  %v8052 = vpop.f32.mrf.mxu0
  %v8053 = vadd.f32 0.0, %v8052
  %8054 = vmatmul.bf16.gmra.mxu0 %v3595
  %v8055 = vpop.f32.mrf.mxu0
  %v8056 = vadd.f32 0.0, %v8055
  %v8057 = vpop.f32.mrf.mxu0
  %v8058 = vadd.f32 0.0, %v8057
  %8059 = vmatmul.bf16.gmra.mxu0 %v7186
  %v8060 = vpop.f32.mrf.mxu0
  %v8061 = vadd.f32 0.0, %v8060
  %v8062 = vpop.f32.mrf.mxu0
  %v8063 = vadd.f32 0.0, %v8062
  %8064 = vdwg.mxu0
  %8065 = vmatpush.bf16.msra.mxu0 %v7615
  %8066 = vmatpush.bf16.msra.mxu0 %v7611
  %8067 = vmatpush.bf16.msra.mxu0 %v7607
  %8068 = vmatpush.bf16.msra.mxu0 %v7603
  %8069 = vmatpush.bf16.msra.mxu0 %v7599
  %8070 = vmatpush.bf16.msra.mxu0 %v7595
  %8071 = vmatpush.bf16.msra.mxu0 %v7591
  %8072 = vmatpush.bf16.msra.mxu0 %v7587
  %8073 = vmatmul.bf16.gmra.mxu0 %v3588
  %v8074 = vpop.f32.mrf.mxu0
  %v8075 = vadd.f32 %v8046, %v8074
  %v8076 = vpop.f32.mrf.mxu0
  %v8077 = vadd.f32 %v8048, %v8076
  %8078 = vmatmul.bf16.gmra.mxu0 %v3592
  %v8079 = vpop.f32.mrf.mxu0
  %v8080 = vadd.f32 %v8051, %v8079
  %v8081 = vpop.f32.mrf.mxu0
  %v8082 = vadd.f32 %v8053, %v8081
  %8083 = vmatmul.bf16.gmra.mxu0 %v3596
  %v8084 = vpop.f32.mrf.mxu0
  %v8085 = vadd.f32 %v8056, %v8084
  %v8086 = vpop.f32.mrf.mxu0
  %v8087 = vadd.f32 %v8058, %v8086
  %8088 = vmatmul.bf16.gmra.mxu0 %v7187
  %v8089 = vpop.f32.mrf.mxu0
  %v8090 = vadd.f32 %v8061, %v8089
  %v8091 = vpop.f32.mrf.mxu0
  %v8092 = vadd.f32 %v8063, %v8091
  %8093 = vdwg.mxu0
  %8094 = vmatpush.bf16.msra.mxu0 %v7647
  %8095 = vmatpush.bf16.msra.mxu0 %v7643
  %8096 = vmatpush.bf16.msra.mxu0 %v7639
  %8097 = vmatpush.bf16.msra.mxu0 %v7635
  %8098 = vmatpush.bf16.msra.mxu0 %v7631
  %8099 = vmatpush.bf16.msra.mxu0 %v7627
  %8100 = vmatpush.bf16.msra.mxu0 %v7623
  %8101 = vmatpush.bf16.msra.mxu0 %v7619
  %8102 = vmatmul.bf16.gmra.mxu0 %v3589
  %v8103 = vpop.f32.mrf.mxu0
  %v8104 = vadd.f32 %v8075, %v8103
  %v8105 = vpop.f32.mrf.mxu0
  %v8106 = vadd.f32 %v8077, %v8105
  %8107 = vmatmul.bf16.gmra.mxu0 %v3593
  %v8108 = vpop.f32.mrf.mxu0
  %v8109 = vadd.f32 %v8080, %v8108
  %v8110 = vpop.f32.mrf.mxu0
  %v8111 = vadd.f32 %v8082, %v8110
  %8112 = vmatmul.bf16.gmra.mxu0 %v3597
  %v8113 = vpop.f32.mrf.mxu0
  %v8114 = vadd.f32 %v8085, %v8113
  %v8115 = vpop.f32.mrf.mxu0
  %v8116 = vadd.f32 %v8087, %v8115
  %8117 = vmatmul.bf16.gmra.mxu0 %v7188
  %v8118 = vpop.f32.mrf.mxu0
  %v8119 = vadd.f32 %v8090, %v8118
  %v8120 = vpop.f32.mrf.mxu0
  %v8121 = vadd.f32 %v8092, %v8120
  %8122 = vdwg.mxu0
  %8123 = vmatpush.bf16.msra.mxu0 0
  %8124 = vmatpush.bf16.msra.mxu0 0
  %8125 = vmatpush.bf16.msra.mxu0 %v7799
  %8126 = vmatpush.bf16.msra.mxu0 %v7667
  %8127 = vmatpush.bf16.msra.mxu0 %v7663
  %8128 = vmatpush.bf16.msra.mxu0 %v7659
  %8129 = vmatpush.bf16.msra.mxu0 %v7655
  %8130 = vmatpush.bf16.msra.mxu0 %v7651
  %8131 = vmatmul.bf16.gmra.mxu0 %v4212
  %v8132 = vpop.f32.mrf.mxu0
  %v8133 = vadd.f32 %v8104, %v8132
  %v8134 = vpop.f32.mrf.mxu0
  %v8135 = vadd.f32 %v8106, %v8134
  %8136 = vmatmul.bf16.gmra.mxu0 %v4215
  %v8137 = vpop.f32.mrf.mxu0
  %v8138 = vadd.f32 %v8109, %v8137
  %v8139 = vpop.f32.mrf.mxu0
  %v8140 = vadd.f32 %v8111, %v8139
  %8141 = vmatmul.bf16.gmra.mxu0 %v4218
  %v8142 = vpop.f32.mrf.mxu0
  %v8143 = vadd.f32 %v8114, %v8142
  %v8144 = vpop.f32.mrf.mxu0
  %v8145 = vadd.f32 %v8116, %v8144
  %8146 = vmatmul.bf16.gmra.mxu0 %v7790
  %v8147 = vpop.f32.mrf.mxu0
  %v8148 = vadd.f32 %v8119, %v8147
  %v8149 = vpop.f32.mrf.mxu0
  %v8150 = vadd.f32 %v8121, %v8149
  %8151 = vdwg.mxu0
  %8152 = vmatpush.bf16.msra.mxu0 %v7584
  %8153 = vmatpush.bf16.msra.mxu0 %v7580
  %8154 = vmatpush.bf16.msra.mxu0 %v7576
  %8155 = vmatpush.bf16.msra.mxu0 %v7572
  %8156 = vmatpush.bf16.msra.mxu0 %v7568
  %8157 = vmatpush.bf16.msra.mxu0 %v7564
  %8158 = vmatpush.bf16.msra.mxu0 %v7560
  %8159 = vmatpush.bf16.msra.mxu0 %v7556
  %8160 = vmatmul.bf16.gmra.mxu0 %v3587
  %v8161 = vpop.f32.mrf.mxu0
  %v8162 = vadd.f32 0.0, %v8161
  %v8163 = vpop.f32.mrf.mxu0
  %v8164 = vadd.f32 0.0, %v8163
  %8165 = vmatmul.bf16.gmra.mxu0 %v3591
  %v8166 = vpop.f32.mrf.mxu0
  %v8167 = vadd.f32 0.0, %v8166
  %v8168 = vpop.f32.mrf.mxu0
  %v8169 = vadd.f32 0.0, %v8168
  %8170 = vmatmul.bf16.gmra.mxu0 %v3595
  %v8171 = vpop.f32.mrf.mxu0
  %v8172 = vadd.f32 0.0, %v8171
  %v8173 = vpop.f32.mrf.mxu0
  %v8174 = vadd.f32 0.0, %v8173
  %8175 = vmatmul.bf16.gmra.mxu0 %v7186
  %v8176 = vpop.f32.mrf.mxu0
  %v8177 = vadd.f32 0.0, %v8176
  %v8178 = vpop.f32.mrf.mxu0
  %v8179 = vadd.f32 0.0, %v8178
  %8180 = vdwg.mxu0
  %8181 = vmatpush.bf16.msra.mxu0 %v7616
  %8182 = vmatpush.bf16.msra.mxu0 %v7612
  %8183 = vmatpush.bf16.msra.mxu0 %v7608
  %8184 = vmatpush.bf16.msra.mxu0 %v7604
  %8185 = vmatpush.bf16.msra.mxu0 %v7600
  %8186 = vmatpush.bf16.msra.mxu0 %v7596
  %8187 = vmatpush.bf16.msra.mxu0 %v7592
  %8188 = vmatpush.bf16.msra.mxu0 %v7588
  %8189 = vmatmul.bf16.gmra.mxu0 %v3588
  %v8190 = vpop.f32.mrf.mxu0
  %v8191 = vadd.f32 %v8162, %v8190
  %v8192 = vpop.f32.mrf.mxu0
  %v8193 = vadd.f32 %v8164, %v8192
  %8194 = vmatmul.bf16.gmra.mxu0 %v3592
  %v8195 = vpop.f32.mrf.mxu0
  %v8196 = vadd.f32 %v8167, %v8195
  %v8197 = vpop.f32.mrf.mxu0
  %v8198 = vadd.f32 %v8169, %v8197
  %8199 = vmatmul.bf16.gmra.mxu0 %v3596
  %v8200 = vpop.f32.mrf.mxu0
  %v8201 = vadd.f32 %v8172, %v8200
  %v8202 = vpop.f32.mrf.mxu0
  %v8203 = vadd.f32 %v8174, %v8202
  %8204 = vmatmul.bf16.gmra.mxu0 %v7187
  %v8205 = vpop.f32.mrf.mxu0
  %v8206 = vadd.f32 %v8177, %v8205
  %v8207 = vpop.f32.mrf.mxu0
  %v8208 = vadd.f32 %v8179, %v8207
  %8209 = vdwg.mxu0
  %8210 = vmatpush.bf16.msra.mxu0 %v7648
  %8211 = vmatpush.bf16.msra.mxu0 %v7644
  %8212 = vmatpush.bf16.msra.mxu0 %v7640
  %8213 = vmatpush.bf16.msra.mxu0 %v7636
  %8214 = vmatpush.bf16.msra.mxu0 %v7632
  %8215 = vmatpush.bf16.msra.mxu0 %v7628
  %8216 = vmatpush.bf16.msra.mxu0 %v7624
  %8217 = vmatpush.bf16.msra.mxu0 %v7620
  %8218 = vmatmul.bf16.gmra.mxu0 %v3589
  %v8219 = vpop.f32.mrf.mxu0
  %v8220 = vadd.f32 %v8191, %v8219
  %v8221 = vpop.f32.mrf.mxu0
  %v8222 = vadd.f32 %v8193, %v8221
  %8223 = vmatmul.bf16.gmra.mxu0 %v3593
  %v8224 = vpop.f32.mrf.mxu0
  %v8225 = vadd.f32 %v8196, %v8224
  %v8226 = vpop.f32.mrf.mxu0
  %v8227 = vadd.f32 %v8198, %v8226
  %8228 = vmatmul.bf16.gmra.mxu0 %v3597
  %v8229 = vpop.f32.mrf.mxu0
  %v8230 = vadd.f32 %v8201, %v8229
  %v8231 = vpop.f32.mrf.mxu0
  %v8232 = vadd.f32 %v8203, %v8231
  %8233 = vmatmul.bf16.gmra.mxu0 %v7188
  %v8234 = vpop.f32.mrf.mxu0
  %v8235 = vadd.f32 %v8206, %v8234
  %v8236 = vpop.f32.mrf.mxu0
  %v8237 = vadd.f32 %v8208, %v8236
  %8238 = vdwg.mxu0
  %8239 = vmatpush.bf16.msra.mxu0 0
  %8240 = vmatpush.bf16.msra.mxu0 0
  %8241 = vmatpush.bf16.msra.mxu0 %v7802
  %8242 = vmatpush.bf16.msra.mxu0 %v7668
  %8243 = vmatpush.bf16.msra.mxu0 %v7664
  %8244 = vmatpush.bf16.msra.mxu0 %v7660
  %8245 = vmatpush.bf16.msra.mxu0 %v7656
  %8246 = vmatpush.bf16.msra.mxu0 %v7652
  %8247 = vmatmul.bf16.gmra.mxu0 %v4212
  %v8248 = vpop.f32.mrf.mxu0
  %v8249 = vadd.f32 %v8220, %v8248
  %v8250 = vpop.f32.mrf.mxu0
  %v8251 = vadd.f32 %v8222, %v8250
  %8252 = vmatmul.bf16.gmra.mxu0 %v4215
  %v8253 = vpop.f32.mrf.mxu0
  %v8254 = vadd.f32 %v8225, %v8253
  %v8255 = vpop.f32.mrf.mxu0
  %v8256 = vadd.f32 %v8227, %v8255
  %8257 = vmatmul.bf16.gmra.mxu0 %v4218
  %v8258 = vpop.f32.mrf.mxu0
  %v8259 = vadd.f32 %v8230, %v8258
  %v8260 = vpop.f32.mrf.mxu0
  %v8261 = vadd.f32 %v8232, %v8260
  %8262 = vmatmul.bf16.gmra.mxu0 %v7790
  %v8263 = vpop.f32.mrf.mxu0
  %v8264 = vadd.f32 %v8235, %v8263
  %v8265 = vpop.f32.mrf.mxu0
  %v8266 = vadd.f32 %v8237, %v8265
  %8267 = vdwg.mxu0
  %v8268 = vadd.f32 %v7027, %v7901
  %v8269 = vadd.f32 %v7028, %v8017
  %v8270 = vadd.f32 %v7029, %v8133
  %v8271 = vadd.f32 %v7030, %v8249
  %v8272 = vadd.f32 %v7031, %v7903
  %v8273 = vadd.f32 %v7032, %v8019
  %v8274 = vadd.f32 %v7033, %v8135
  %v8275 = vadd.f32 %v7034, %v8251
  %v8276 = vadd.f32 %v7035, %v7906
  %v8277 = vadd.f32 %v7036, %v8022
  %v8278 = vadd.f32 %v7037, %v8138
  %v8279 = vadd.f32 %v7038, %v8254
  %v8280 = vadd.f32 %v7039, %v7908
  %v8281 = vadd.f32 %v7040, %v8024
  %v8282 = vadd.f32 %v7041, %v8140
  %v8283 = vadd.f32 %v7042, %v8256
  %v8284 = vadd.f32 %v7043, %v7911
  %v8285 = vadd.f32 %v7044, %v8027
  %v8286 = vadd.f32 %v7045, %v8143
  %v8287 = vadd.f32 %v7046, %v8259
  %v8288 = vadd.f32 %v7047, %v7913
  %v8289 = vadd.f32 %v7048, %v8029
  %v8290 = vadd.f32 %v7049, %v8145
  %v8291 = vadd.f32 %v7050, %v8261
  %v8292 = vadd.f32 %v7051, %v7916
  %v8293 = vadd.f32 %v7052, %v8032
  %v8294 = vadd.f32 %v7053, %v8148
  %v8295 = vadd.f32 %v7054, %v8264
  %v8296 = vadd.f32 %v7055, %v7918
  %v8297 = vadd.f32 %v7056, %v8034
  %v8298 = vadd.f32 %v7057, %v8150
  %v8299 = vadd.f32 %v7058, %v8266
  %s8300 = scalar_lea.vmem %s3, 3840
  %v8301 = vld [vmem:[%s8300] sm:$0xff]
  %v8302 = vld [vmem:[%s8300 + $0x8] sm:$0xff]
  %v8303 = vld [vmem:[%s8300 + $0x10] sm:$0xff]
  %v8304 = vld [vmem:[%s8300 + $0x18] sm:$0xff]
  %v8305 = vld [vmem:[%s8300 + $0x20] sm:$0xff]
  %v8306 = vld [vmem:[%s8300 + $0x28] sm:$0xff]
  %v8307 = vld [vmem:[%s8300 + $0x30] sm:$0xff]
  %v8308 = vld [vmem:[%s8300 + $0x38] sm:$0xff]
  %v8309 = vld [vmem:[%s8300 + $0x40] sm:$0xff]
  %v8310 = vld [vmem:[%s8300 + $0x48] sm:$0xff]
  %v8311 = vld [vmem:[%s8300 + $0x50] sm:$0xff]
  %v8312 = vld [vmem:[%s8300 + $0x58] sm:$0xff]
  %v8313 = vld [vmem:[%s8300 + $0x60] sm:$0xff]
  %v8314 = vld [vmem:[%s8300 + $0x68] sm:$0xff]
  %v8315 = vld [vmem:[%s8300 + $0x70] sm:$0xff]
  %v8316 = vld [vmem:[%s8300 + $0x78] sm:$0xff]
  %v8317 = vld [vmem:[%s8300 + $0x80] sm:$0xff]
  %v8318 = vld [vmem:[%s8300 + $0x88] sm:$0xff]
  %v8319 = vld [vmem:[%s8300 + $0x90] sm:$0xff]
  %v8320 = vld [vmem:[%s8300 + $0x98] sm:$0xff]
  %v8321 = vld [vmem:[%s8300 + $0xa0] sm:$0xff]
  %v8322 = vld [vmem:[%s8300 + $0xa8] sm:$0xff]
  %v8323 = vld [vmem:[%s8300 + $0xb0] sm:$0xff]
  %v8324 = vld [vmem:[%s8300 + $0xb8] sm:$0xff]
  %v8325 = vld [vmem:[%s8300 + $0xc0] sm:$0xff]
  %v8326 = vld [vmem:[%s8300 + $0xc8] sm:$0xff]
  %v8327 = vld [vmem:[%s8300 + $0xd0] sm:$0xff]
  %v8328 = vld [vmem:[%s8300 + $0xd8] sm:$0xff]
  %v8329 = vld [vmem:[%s8300 + $0xe0] sm:$0xff]
  %v8330 = vld [vmem:[%s8300 + $0xe8] sm:$0xff]
  %v8331 = vld [vmem:[%s8300 + $0xf0] sm:$0xff]
  %v8332 = vld [vmem:[%s8300 + $0xf8] sm:$0xff]
  %v8333 = vld [vmem:[%s8300 + $0x100] sm:$0xff]
  %v8334 = vld [vmem:[%s8300 + $0x108] sm:$0xff]
  %v8335 = vld [vmem:[%s8300 + $0x110] sm:$0xff]
  %v8336 = vld [vmem:[%s8300 + $0x118] sm:$0xff]
  %v8337 = vld [vmem:[%s8300 + $0x120] sm:$0xff]
  %v8338 = vld [vmem:[%s8300 + $0x128] sm:$0xff]
  %v8339 = vld [vmem:[%s8300 + $0x130] sm:$0xff]
  %v8340 = vld [vmem:[%s8300 + $0x138] sm:$0xff]
  %v8341 = vld [vmem:[%s8300 + $0x140] sm:$0xff]
  %v8342 = vld [vmem:[%s8300 + $0x148] sm:$0xff]
  %v8343 = vld [vmem:[%s8300 + $0x150] sm:$0xff]
  %v8344 = vld [vmem:[%s8300 + $0x158] sm:$0xff]
  %v8345 = vld [vmem:[%s8300 + $0x160] sm:$0xff]
  %v8346 = vld [vmem:[%s8300 + $0x168] sm:$0xff]
  %v8347 = vld [vmem:[%s8300 + $0x170] sm:$0xff]
  %v8348 = vld [vmem:[%s8300 + $0x178] sm:$0xff]
  %v8349 = vld [vmem:[%s8300 + $0x180] sm:$0xff]
  %v8350 = vld [vmem:[%s8300 + $0x188] sm:$0xff]
  %v8351 = vld [vmem:[%s8300 + $0x190] sm:$0xff]
  %v8352 = vld [vmem:[%s8300 + $0x198] sm:$0xff]
  %v8353 = vld [vmem:[%s8300 + $0x1a0] sm:$0xff]
  %v8354 = vld [vmem:[%s8300 + $0x1a8] sm:$0xff]
  %v8355 = vld [vmem:[%s8300 + $0x1b0] sm:$0xff]
  %v8356 = vld [vmem:[%s8300 + $0x1b8] sm:$0xff]
  %v8357 = vld [vmem:[%s8300 + $0x1c0] sm:$0xff]
  %v8358 = vld [vmem:[%s8300 + $0x1c8] sm:$0xff]
  %v8359 = vld [vmem:[%s8300 + $0x1d0] sm:$0xff]
  %v8360 = vld [vmem:[%s8300 + $0x1d8] sm:$0xff]
  %v8361 = vld [vmem:[%s8300 + $0x1e0] sm:$0xff]
  %v8362 = vld [vmem:[%s8300 + $0x1e8] sm:$0xff]
  %v8363 = vld [vmem:[%s8300 + $0x1f0] sm:$0xff]
  %v8364 = vld [vmem:[%s8300 + $0x1f8] sm:$0xff]
  %v8365 = vld [vmem:[%s8300 + $0x200] sm:$0xff]
  %v8366 = vld [vmem:[%s8300 + $0x208] sm:$0xff]
  %v8367 = vld [vmem:[%s8300 + $0x210] sm:$0xff]
  %v8368 = vld [vmem:[%s8300 + $0x218] sm:$0xff]
  %v8369 = vld [vmem:[%s8300 + $0x220] sm:$0xff]
  %v8370 = vld [vmem:[%s8300 + $0x228] sm:$0xff]
  %v8371 = vld [vmem:[%s8300 + $0x230] sm:$0xff]
  %v8372 = vld [vmem:[%s8300 + $0x238] sm:$0xff]
  %v8373 = vld [vmem:[%s8300 + $0x240] sm:$0xff]
  %v8374 = vld [vmem:[%s8300 + $0x248] sm:$0xff]
  %v8375 = vld [vmem:[%s8300 + $0x250] sm:$0xff]
  %v8376 = vld [vmem:[%s8300 + $0x258] sm:$0xff]
  %v8377 = vld [vmem:[%s8300 + $0x260] sm:$0xff]
  %v8378 = vld [vmem:[%s8300 + $0x268] sm:$0xff]
  %v8379 = vld [vmem:[%s8300 + $0x270] sm:$0xff]
  %v8380 = vld [vmem:[%s8300 + $0x278] sm:$0xff]
  %v8381 = vld [vmem:[%s8300 + $0x280] sm:$0xff]
  %v8382 = vld [vmem:[%s8300 + $0x288] sm:$0xff]
  %v8383 = vld [vmem:[%s8300 + $0x290] sm:$0xff]
  %v8384 = vld [vmem:[%s8300 + $0x298] sm:$0xff]
  %v8385 = vld [vmem:[%s8300 + $0x2a0] sm:$0xff]
  %v8386 = vld [vmem:[%s8300 + $0x2a8] sm:$0xff]
  %v8387 = vld [vmem:[%s8300 + $0x2b0] sm:$0xff]
  %v8388 = vld [vmem:[%s8300 + $0x2b8] sm:$0xff]
  %v8389 = vld [vmem:[%s8300 + $0x2c0] sm:$0xff]
  %v8390 = vld [vmem:[%s8300 + $0x2c8] sm:$0xff]
  %v8391 = vld [vmem:[%s8300 + $0x2d0] sm:$0xff]
  %v8392 = vld [vmem:[%s8300 + $0x2d8] sm:$0xff]
  %v8393 = vld [vmem:[%s8300 + $0x2e0] sm:$0xff]
  %v8394 = vld [vmem:[%s8300 + $0x2e8] sm:$0xff]
  %v8395 = vld [vmem:[%s8300 + $0x2f0] sm:$0xff]
  %v8396 = vld [vmem:[%s8300 + $0x2f8] sm:$0xff]
  %v8397 = vld [vmem:[%s8300 + $0x300] sm:$0xff]
  %v8398 = vld [vmem:[%s8300 + $0x308] sm:$0xff]
  %v8399 = vld [vmem:[%s8300 + $0x310] sm:$0xff]
  %v8400 = vld [vmem:[%s8300 + $0x318] sm:$0xff]
  %v8401 = vld [vmem:[%s8300 + $0x320] sm:$0xff]
  %v8402 = vld [vmem:[%s8300 + $0x328] sm:$0xff]
  %v8403 = vld [vmem:[%s8300 + $0x330] sm:$0xff]
  %v8404 = vld [vmem:[%s8300 + $0x338] sm:$0xff]
  %v8405 = vld [vmem:[%s8300 + $0x340] sm:$0xff]
  %v8406 = vld [vmem:[%s8300 + $0x348] sm:$0xff]
  %v8407 = vld [vmem:[%s8300 + $0x350] sm:$0xff]
  %v8408 = vld [vmem:[%s8300 + $0x358] sm:$0xff]
  %v8409 = vld [vmem:[%s8300 + $0x360] sm:$0xff]
  %v8410 = vld [vmem:[%s8300 + $0x368] sm:$0xff]
  %v8411 = vld [vmem:[%s8300 + $0x370] sm:$0xff]
  %v8412 = vld [vmem:[%s8300 + $0x378] sm:$0xff]
  %v8413 = vld [vmem:[%s8300 + $0x380] sm:$0xff]
  %v8414 = vld [vmem:[%s8300 + $0x388] sm:$0xff]
  %v8415 = vld [vmem:[%s8300 + $0x390] sm:$0xff]
  %v8416 = vld [vmem:[%s8300 + $0x398] sm:$0xff]
  %v8417 = vld [vmem:[%s8300 + $0x3a0] sm:$0xff]
  %v8418 = vld [vmem:[%s8300 + $0x3a8] sm:$0xff]
  %v8419 = vld [vmem:[%s8300 + $0x3b0] sm:$0xff]
  %v8420 = vld [vmem:[%s8300 + $0x3b8] sm:$0xff]
  %v8423 = vunpack.c.l.b16 %v3292
  %v8424 = vunpack.c.h.b16 %v3292
  %v8425 = vunpack.c.l.b16 %v3293
  %v8426 = vunpack.c.h.b16 %v3293
  %v8427 = vpack.c.b16 %v8423, %v7182
  %v8428 = vpack.c.b16 %v8424, %v7183
  %v8429 = vpack.c.b16 %v8425, %v7184
  %v8430 = vpack.c.b16 %v8426, %v7185
  %v8554 = vunpack.c.l.b16 %v8301
  %v8555 = vunpack.c.h.b16 %v8301
  %v8556 = vunpack.c.l.b16 %v8302
  %v8557 = vunpack.c.h.b16 %v8302
  %v8558 = vunpack.c.l.b16 %v8303
  %v8559 = vunpack.c.h.b16 %v8303
  %v8560 = vunpack.c.l.b16 %v8304
  %v8561 = vunpack.c.h.b16 %v8304
  %v8562 = vunpack.c.l.b16 %v8305
  %v8563 = vunpack.c.h.b16 %v8305
  %v8564 = vunpack.c.l.b16 %v8306
  %v8565 = vunpack.c.h.b16 %v8306
  %v8566 = vunpack.c.l.b16 %v8307
  %v8567 = vunpack.c.h.b16 %v8307
  %v8568 = vunpack.c.l.b16 %v8308
  %v8569 = vunpack.c.h.b16 %v8308
  %v8570 = vunpack.c.l.b16 %v8309
  %v8571 = vunpack.c.h.b16 %v8309
  %v8572 = vunpack.c.l.b16 %v8310
  %v8573 = vunpack.c.h.b16 %v8310
  %v8574 = vunpack.c.l.b16 %v8311
  %v8575 = vunpack.c.h.b16 %v8311
  %v8576 = vunpack.c.l.b16 %v8312
  %v8577 = vunpack.c.h.b16 %v8312
  %v8578 = vunpack.c.l.b16 %v8313
  %v8579 = vunpack.c.h.b16 %v8313
  %v8580 = vunpack.c.l.b16 %v8314
  %v8581 = vunpack.c.h.b16 %v8314
  %v8582 = vunpack.c.l.b16 %v8315
  %v8583 = vunpack.c.h.b16 %v8315
  %v8584 = vunpack.c.l.b16 %v8316
  %v8585 = vunpack.c.h.b16 %v8316
  %v8586 = vunpack.c.l.b16 %v8317
  %v8587 = vunpack.c.h.b16 %v8317
  %v8588 = vunpack.c.l.b16 %v8318
  %v8589 = vunpack.c.h.b16 %v8318
  %v8590 = vunpack.c.l.b16 %v8319
  %v8591 = vunpack.c.h.b16 %v8319
  %v8592 = vunpack.c.l.b16 %v8320
  %v8593 = vunpack.c.h.b16 %v8320
  %v8594 = vunpack.c.l.b16 %v8321
  %v8595 = vunpack.c.h.b16 %v8321
  %v8596 = vunpack.c.l.b16 %v8322
  %v8597 = vunpack.c.h.b16 %v8322
  %v8598 = vunpack.c.l.b16 %v8323
  %v8599 = vunpack.c.h.b16 %v8323
  %v8600 = vunpack.c.l.b16 %v8324
  %v8601 = vunpack.c.h.b16 %v8324
  %v8602 = vunpack.c.l.b16 %v8325
  %v8603 = vunpack.c.h.b16 %v8325
  %v8604 = vunpack.c.l.b16 %v8326
  %v8605 = vunpack.c.h.b16 %v8326
  %v8606 = vunpack.c.l.b16 %v8327
  %v8607 = vunpack.c.h.b16 %v8327
  %v8608 = vunpack.c.l.b16 %v8328
  %v8609 = vunpack.c.h.b16 %v8328
  %v8610 = vunpack.c.l.b16 %v8329
  %v8611 = vunpack.c.h.b16 %v8329
  %v8612 = vunpack.c.l.b16 %v8330
  %v8613 = vunpack.c.h.b16 %v8330
  %v8614 = vunpack.c.l.b16 %v8331
  %v8615 = vunpack.c.h.b16 %v8331
  %v8616 = vunpack.c.l.b16 %v8332
  %v8617 = vunpack.c.h.b16 %v8332
  %v8618 = vunpack.c.l.b16 %v8333
  %v8619 = vunpack.c.h.b16 %v8333
  %v8620 = vunpack.c.l.b16 %v8334
  %v8621 = vunpack.c.h.b16 %v8334
  %v8622 = vunpack.c.l.b16 %v8335
  %v8623 = vunpack.c.h.b16 %v8335
  %v8624 = vunpack.c.l.b16 %v8336
  %v8625 = vunpack.c.h.b16 %v8336
  %v8626 = vunpack.c.l.b16 %v8337
  %v8627 = vunpack.c.h.b16 %v8337
  %v8628 = vunpack.c.l.b16 %v8338
  %v8629 = vunpack.c.h.b16 %v8338
  %v8630 = vunpack.c.l.b16 %v8339
  %v8631 = vunpack.c.h.b16 %v8339
  %v8632 = vunpack.c.l.b16 %v8340
  %v8633 = vunpack.c.h.b16 %v8340
  %v8634 = vunpack.c.l.b16 %v8341
  %v8635 = vunpack.c.h.b16 %v8341
  %v8636 = vunpack.c.l.b16 %v8342
  %v8637 = vunpack.c.h.b16 %v8342
  %v8638 = vunpack.c.l.b16 %v8343
  %v8639 = vunpack.c.h.b16 %v8343
  %v8640 = vunpack.c.l.b16 %v8344
  %v8641 = vunpack.c.h.b16 %v8344
  %v8642 = vunpack.c.l.b16 %v8345
  %v8643 = vunpack.c.h.b16 %v8345
  %v8644 = vunpack.c.l.b16 %v8346
  %v8645 = vunpack.c.h.b16 %v8346
  %v8646 = vunpack.c.l.b16 %v8347
  %v8647 = vunpack.c.h.b16 %v8347
  %v8648 = vunpack.c.l.b16 %v8348
  %v8649 = vunpack.c.h.b16 %v8348
  %v8650 = vunpack.c.l.b16 %v8349
  %v8651 = vunpack.c.h.b16 %v8349
  %v8652 = vunpack.c.l.b16 %v8350
  %v8653 = vunpack.c.h.b16 %v8350
  %v8654 = vunpack.c.l.b16 %v8351
  %v8655 = vunpack.c.h.b16 %v8351
  %v8656 = vunpack.c.l.b16 %v8352
  %v8657 = vunpack.c.h.b16 %v8352
  %v8658 = vunpack.c.l.b16 %v8353
  %v8659 = vunpack.c.h.b16 %v8353
  %v8660 = vunpack.c.l.b16 %v8354
  %v8661 = vunpack.c.h.b16 %v8354
  %v8662 = vunpack.c.l.b16 %v8355
  %v8663 = vunpack.c.h.b16 %v8355
  %v8664 = vunpack.c.l.b16 %v8356
  %v8665 = vunpack.c.h.b16 %v8356
  %v8666 = vunpack.c.l.b16 %v8357
  %v8667 = vunpack.c.h.b16 %v8357
  %v8668 = vunpack.c.l.b16 %v8358
  %v8669 = vunpack.c.h.b16 %v8358
  %v8670 = vunpack.c.l.b16 %v8359
  %v8671 = vunpack.c.h.b16 %v8359
  %v8672 = vunpack.c.l.b16 %v8360
  %v8673 = vunpack.c.h.b16 %v8360
  %v8674 = vunpack.c.l.b16 %v8361
  %v8675 = vunpack.c.h.b16 %v8361
  %v8676 = vunpack.c.l.b16 %v8362
  %v8677 = vunpack.c.h.b16 %v8362
  %v8678 = vunpack.c.l.b16 %v8363
  %v8679 = vunpack.c.h.b16 %v8363
  %v8680 = vunpack.c.l.b16 %v8364
  %v8681 = vunpack.c.h.b16 %v8364
  %v8682 = vunpack.c.l.b16 %v8365
  %v8683 = vunpack.c.h.b16 %v8365
  %v8684 = vunpack.c.l.b16 %v8366
  %v8685 = vunpack.c.h.b16 %v8366
  %v8686 = vunpack.c.l.b16 %v8367
  %v8687 = vunpack.c.h.b16 %v8367
  %v8688 = vunpack.c.l.b16 %v8368
  %v8689 = vunpack.c.h.b16 %v8368
  %v8690 = vunpack.c.l.b16 %v8369
  %v8691 = vunpack.c.h.b16 %v8369
  %v8692 = vunpack.c.l.b16 %v8370
  %v8693 = vunpack.c.h.b16 %v8370
  %v8694 = vunpack.c.l.b16 %v8371
  %v8695 = vunpack.c.h.b16 %v8371
  %v8696 = vunpack.c.l.b16 %v8372
  %v8697 = vunpack.c.h.b16 %v8372
  %v8698 = vunpack.c.l.b16 %v8373
  %v8699 = vunpack.c.h.b16 %v8373
  %v8700 = vunpack.c.l.b16 %v8374
  %v8701 = vunpack.c.h.b16 %v8374
  %v8702 = vunpack.c.l.b16 %v8375
  %v8703 = vunpack.c.h.b16 %v8375
  %v8704 = vunpack.c.l.b16 %v8376
  %v8705 = vunpack.c.h.b16 %v8376
  %v8706 = vunpack.c.l.b16 %v8377
  %v8707 = vunpack.c.h.b16 %v8377
  %v8708 = vunpack.c.l.b16 %v8378
  %v8709 = vunpack.c.h.b16 %v8378
  %v8710 = vunpack.c.l.b16 %v8379
  %v8711 = vunpack.c.h.b16 %v8379
  %v8712 = vunpack.c.l.b16 %v8380
  %v8713 = vunpack.c.h.b16 %v8380
  %v8714 = vunpack.c.l.b16 %v8381
  %v8715 = vunpack.c.h.b16 %v8381
  %v8716 = vunpack.c.l.b16 %v8382
  %v8717 = vunpack.c.h.b16 %v8382
  %v8718 = vunpack.c.l.b16 %v8383
  %v8719 = vunpack.c.h.b16 %v8383
  %v8720 = vunpack.c.l.b16 %v8384
  %v8721 = vunpack.c.h.b16 %v8384
  %v8722 = vunpack.c.l.b16 %v8385
  %v8723 = vunpack.c.h.b16 %v8385
  %v8724 = vunpack.c.l.b16 %v8386
  %v8725 = vunpack.c.h.b16 %v8386
  %v8726 = vunpack.c.l.b16 %v8387
  %v8727 = vunpack.c.h.b16 %v8387
  %v8728 = vunpack.c.l.b16 %v8388
  %v8729 = vunpack.c.h.b16 %v8388
  %v8730 = vunpack.c.l.b16 %v8389
  %v8731 = vunpack.c.h.b16 %v8389
  %v8732 = vunpack.c.l.b16 %v8390
  %v8733 = vunpack.c.h.b16 %v8390
  %v8734 = vunpack.c.l.b16 %v8391
  %v8735 = vunpack.c.h.b16 %v8391
  %v8736 = vunpack.c.l.b16 %v8392
  %v8737 = vunpack.c.h.b16 %v8392
  %v8738 = vunpack.c.l.b16 %v8393
  %v8739 = vunpack.c.h.b16 %v8393
  %v8740 = vunpack.c.l.b16 %v8394
  %v8741 = vunpack.c.h.b16 %v8394
  %v8742 = vunpack.c.l.b16 %v8395
  %v8743 = vunpack.c.h.b16 %v8395
  %v8744 = vunpack.c.l.b16 %v8396
  %v8745 = vunpack.c.h.b16 %v8396
  %v8746 = vunpack.c.l.b16 %v8397
  %v8747 = vunpack.c.h.b16 %v8397
  %v8748 = vunpack.c.l.b16 %v8398
  %v8749 = vunpack.c.h.b16 %v8398
  %v8750 = vunpack.c.l.b16 %v8399
  %v8751 = vunpack.c.h.b16 %v8399
  %v8752 = vunpack.c.l.b16 %v8400
  %v8753 = vunpack.c.h.b16 %v8400
  %v8754 = vunpack.c.l.b16 %v8401
  %v8755 = vunpack.c.h.b16 %v8401
  %v8756 = vunpack.c.l.b16 %v8402
  %v8757 = vunpack.c.h.b16 %v8402
  %v8758 = vunpack.c.l.b16 %v8403
  %v8759 = vunpack.c.h.b16 %v8403
  %v8760 = vunpack.c.l.b16 %v8404
  %v8761 = vunpack.c.h.b16 %v8404
  %v8762 = vunpack.c.l.b16 %v8405
  %v8763 = vunpack.c.h.b16 %v8405
  %v8764 = vunpack.c.l.b16 %v8406
  %v8765 = vunpack.c.h.b16 %v8406
  %v8766 = vunpack.c.l.b16 %v8407
  %v8767 = vunpack.c.h.b16 %v8407
  %v8768 = vunpack.c.l.b16 %v8408
  %v8769 = vunpack.c.h.b16 %v8408
  %v8770 = vunpack.c.l.b16 %v8409
  %v8771 = vunpack.c.h.b16 %v8409
  %v8772 = vunpack.c.l.b16 %v8410
  %v8773 = vunpack.c.h.b16 %v8410
  %v8774 = vunpack.c.l.b16 %v8411
  %v8775 = vunpack.c.h.b16 %v8411
  %v8776 = vunpack.c.l.b16 %v8412
  %v8777 = vunpack.c.h.b16 %v8412
  %v8778 = vunpack.c.l.b16 %v8413
  %v8779 = vunpack.c.h.b16 %v8413
  %v8780 = vunpack.c.l.b16 %v8414
  %v8781 = vunpack.c.h.b16 %v8414
  %v8782 = vunpack.c.l.b16 %v8415
  %v8783 = vunpack.c.h.b16 %v8415
  %v8784 = vunpack.c.l.b16 %v8416
  %v8785 = vunpack.c.h.b16 %v8416
  %v8786 = vunpack.c.l.b16 %v8417
  %v8787 = vunpack.c.h.b16 %v8417
  %v8788 = vunpack.c.l.b16 %v8418
  %v8789 = vunpack.c.h.b16 %v8418
  %v8790 = vunpack.c.l.b16 %v8419
  %v8791 = vunpack.c.h.b16 %v8419
  %v8792 = vunpack.c.l.b16 %v8420
  %v8793 = vunpack.c.h.b16 %v8420
  %v8794 = vpack.c.b16 %v8558, %v8554
  %v8795 = vpack.c.b16 %v8559, %v8555
  %v8796 = vpack.c.b16 %v8560, %v8556
  %v8797 = vpack.c.b16 %v8561, %v8557
  %v8798 = vpack.c.b16 %v8566, %v8562
  %v8799 = vpack.c.b16 %v8567, %v8563
  %v8800 = vpack.c.b16 %v8568, %v8564
  %v8801 = vpack.c.b16 %v8569, %v8565
  %v8802 = vpack.c.b16 %v8574, %v8570
  %v8803 = vpack.c.b16 %v8575, %v8571
  %v8804 = vpack.c.b16 %v8576, %v8572
  %v8805 = vpack.c.b16 %v8577, %v8573
  %v8806 = vpack.c.b16 %v8582, %v8578
  %v8807 = vpack.c.b16 %v8583, %v8579
  %v8808 = vpack.c.b16 %v8584, %v8580
  %v8809 = vpack.c.b16 %v8585, %v8581
  %v8810 = vpack.c.b16 %v8590, %v8586
  %v8811 = vpack.c.b16 %v8591, %v8587
  %v8812 = vpack.c.b16 %v8592, %v8588
  %v8813 = vpack.c.b16 %v8593, %v8589
  %v8814 = vpack.c.b16 %v8598, %v8594
  %v8815 = vpack.c.b16 %v8599, %v8595
  %v8816 = vpack.c.b16 %v8600, %v8596
  %v8817 = vpack.c.b16 %v8601, %v8597
  %v8818 = vpack.c.b16 %v8606, %v8602
  %v8819 = vpack.c.b16 %v8607, %v8603
  %v8820 = vpack.c.b16 %v8608, %v8604
  %v8821 = vpack.c.b16 %v8609, %v8605
  %v8822 = vpack.c.b16 %v8614, %v8610
  %v8823 = vpack.c.b16 %v8615, %v8611
  %v8824 = vpack.c.b16 %v8616, %v8612
  %v8825 = vpack.c.b16 %v8617, %v8613
  %v8826 = vpack.c.b16 %v8622, %v8618
  %v8827 = vpack.c.b16 %v8623, %v8619
  %v8828 = vpack.c.b16 %v8624, %v8620
  %v8829 = vpack.c.b16 %v8625, %v8621
  %v8830 = vpack.c.b16 %v8630, %v8626
  %v8831 = vpack.c.b16 %v8631, %v8627
  %v8832 = vpack.c.b16 %v8632, %v8628
  %v8833 = vpack.c.b16 %v8633, %v8629
  %v8834 = vpack.c.b16 %v8638, %v8634
  %v8835 = vpack.c.b16 %v8639, %v8635
  %v8836 = vpack.c.b16 %v8640, %v8636
  %v8837 = vpack.c.b16 %v8641, %v8637
  %v8838 = vpack.c.b16 %v8646, %v8642
  %v8839 = vpack.c.b16 %v8647, %v8643
  %v8840 = vpack.c.b16 %v8648, %v8644
  %v8841 = vpack.c.b16 %v8649, %v8645
  %v8842 = vpack.c.b16 %v8654, %v8650
  %v8843 = vpack.c.b16 %v8655, %v8651
  %v8844 = vpack.c.b16 %v8656, %v8652
  %v8845 = vpack.c.b16 %v8657, %v8653
  %v8846 = vpack.c.b16 %v8662, %v8658
  %v8847 = vpack.c.b16 %v8663, %v8659
  %v8848 = vpack.c.b16 %v8664, %v8660
  %v8849 = vpack.c.b16 %v8665, %v8661
  %v8850 = vpack.c.b16 %v8670, %v8666
  %v8851 = vpack.c.b16 %v8671, %v8667
  %v8852 = vpack.c.b16 %v8672, %v8668
  %v8853 = vpack.c.b16 %v8673, %v8669
  %v8854 = vpack.c.b16 %v8678, %v8674
  %v8855 = vpack.c.b16 %v8679, %v8675
  %v8856 = vpack.c.b16 %v8680, %v8676
  %v8857 = vpack.c.b16 %v8681, %v8677
  %v8858 = vpack.c.b16 %v8686, %v8682
  %v8859 = vpack.c.b16 %v8687, %v8683
  %v8860 = vpack.c.b16 %v8688, %v8684
  %v8861 = vpack.c.b16 %v8689, %v8685
  %v8862 = vpack.c.b16 %v8694, %v8690
  %v8863 = vpack.c.b16 %v8695, %v8691
  %v8864 = vpack.c.b16 %v8696, %v8692
  %v8865 = vpack.c.b16 %v8697, %v8693
  %v8866 = vpack.c.b16 %v8702, %v8698
  %v8867 = vpack.c.b16 %v8703, %v8699
  %v8868 = vpack.c.b16 %v8704, %v8700
  %v8869 = vpack.c.b16 %v8705, %v8701
  %v8870 = vpack.c.b16 %v8710, %v8706
  %v8871 = vpack.c.b16 %v8711, %v8707
  %v8872 = vpack.c.b16 %v8712, %v8708
  %v8873 = vpack.c.b16 %v8713, %v8709
  %v8874 = vpack.c.b16 %v8718, %v8714
  %v8875 = vpack.c.b16 %v8719, %v8715
  %v8876 = vpack.c.b16 %v8720, %v8716
  %v8877 = vpack.c.b16 %v8721, %v8717
  %v8878 = vpack.c.b16 %v8726, %v8722
  %v8879 = vpack.c.b16 %v8727, %v8723
  %v8880 = vpack.c.b16 %v8728, %v8724
  %v8881 = vpack.c.b16 %v8729, %v8725
  %v8882 = vpack.c.b16 %v8734, %v8730
  %v8883 = vpack.c.b16 %v8735, %v8731
  %v8884 = vpack.c.b16 %v8736, %v8732
  %v8885 = vpack.c.b16 %v8737, %v8733
  %v8886 = vpack.c.b16 %v8742, %v8738
  %v8887 = vpack.c.b16 %v8743, %v8739
  %v8888 = vpack.c.b16 %v8744, %v8740
  %v8889 = vpack.c.b16 %v8745, %v8741
  %v8890 = vpack.c.b16 %v8750, %v8746
  %v8891 = vpack.c.b16 %v8751, %v8747
  %v8892 = vpack.c.b16 %v8752, %v8748
  %v8893 = vpack.c.b16 %v8753, %v8749
  %v8894 = vpack.c.b16 %v8758, %v8754
  %v8895 = vpack.c.b16 %v8759, %v8755
  %v8896 = vpack.c.b16 %v8760, %v8756
  %v8897 = vpack.c.b16 %v8761, %v8757
  %v8898 = vpack.c.b16 %v8766, %v8762
  %v8899 = vpack.c.b16 %v8767, %v8763
  %v8900 = vpack.c.b16 %v8768, %v8764
  %v8901 = vpack.c.b16 %v8769, %v8765
  %v8902 = vpack.c.b16 %v8774, %v8770
  %v8903 = vpack.c.b16 %v8775, %v8771
  %v8904 = vpack.c.b16 %v8776, %v8772
  %v8905 = vpack.c.b16 %v8777, %v8773
  %v8906 = vpack.c.b16 %v8782, %v8778
  %v8907 = vpack.c.b16 %v8783, %v8779
  %v8908 = vpack.c.b16 %v8784, %v8780
  %v8909 = vpack.c.b16 %v8785, %v8781
  %v8910 = vpack.c.b16 %v8790, %v8786
  %v8911 = vpack.c.b16 %v8791, %v8787
  %v8912 = vpack.c.b16 %v8792, %v8788
  %v8913 = vpack.c.b16 %v8793, %v8789
  %v9031 = vsel %vm4207, %v8430, 0
  %v9034 = vand.u32 %v8910, %v4223
  %v9037 = vand.u32 %v8911, %v4223
  %v9040 = vand.u32 %v8912, %v4223
  %v9043 = vand.u32 %v8913, %v4223
  %9045 = vmatpush.bf16.msra.mxu0 %v8822
  %9046 = vmatpush.bf16.msra.mxu0 %v8818
  %9047 = vmatpush.bf16.msra.mxu0 %v8814
  %9048 = vmatpush.bf16.msra.mxu0 %v8810
  %9049 = vmatpush.bf16.msra.mxu0 %v8806
  %9050 = vmatpush.bf16.msra.mxu0 %v8802
  %9051 = vmatpush.bf16.msra.mxu0 %v8798
  %9052 = vmatpush.bf16.msra.mxu0 %v8794
  %9053 = vmatmul.bf16.gmra.mxu0 %v4714
  %v9054 = vpop.f32.mrf.mxu0
  %v9055 = vadd.f32 0.0, %v9054
  %v9056 = vpop.f32.mrf.mxu0
  %v9057 = vadd.f32 0.0, %v9056
  %9058 = vmatmul.bf16.gmra.mxu0 %v4718
  %v9059 = vpop.f32.mrf.mxu0
  %v9060 = vadd.f32 0.0, %v9059
  %v9061 = vpop.f32.mrf.mxu0
  %v9062 = vadd.f32 0.0, %v9061
  %9063 = vmatmul.bf16.gmra.mxu0 %v5945
  %v9064 = vpop.f32.mrf.mxu0
  %v9065 = vadd.f32 0.0, %v9064
  %v9066 = vpop.f32.mrf.mxu0
  %v9067 = vadd.f32 0.0, %v9066
  %9068 = vmatmul.bf16.gmra.mxu0 %v8427
  %v9069 = vpop.f32.mrf.mxu0
  %v9070 = vadd.f32 0.0, %v9069
  %v9071 = vpop.f32.mrf.mxu0
  %v9072 = vadd.f32 0.0, %v9071
  %9073 = vdwg.mxu0
  %9074 = vmatpush.bf16.msra.mxu0 %v8854
  %9075 = vmatpush.bf16.msra.mxu0 %v8850
  %9076 = vmatpush.bf16.msra.mxu0 %v8846
  %9077 = vmatpush.bf16.msra.mxu0 %v8842
  %9078 = vmatpush.bf16.msra.mxu0 %v8838
  %9079 = vmatpush.bf16.msra.mxu0 %v8834
  %9080 = vmatpush.bf16.msra.mxu0 %v8830
  %9081 = vmatpush.bf16.msra.mxu0 %v8826
  %9082 = vmatmul.bf16.gmra.mxu0 %v4715
  %v9083 = vpop.f32.mrf.mxu0
  %v9084 = vadd.f32 %v9055, %v9083
  %v9085 = vpop.f32.mrf.mxu0
  %v9086 = vadd.f32 %v9057, %v9085
  %9087 = vmatmul.bf16.gmra.mxu0 %v4719
  %v9088 = vpop.f32.mrf.mxu0
  %v9089 = vadd.f32 %v9060, %v9088
  %v9090 = vpop.f32.mrf.mxu0
  %v9091 = vadd.f32 %v9062, %v9090
  %9092 = vmatmul.bf16.gmra.mxu0 %v5946
  %v9093 = vpop.f32.mrf.mxu0
  %v9094 = vadd.f32 %v9065, %v9093
  %v9095 = vpop.f32.mrf.mxu0
  %v9096 = vadd.f32 %v9067, %v9095
  %9097 = vmatmul.bf16.gmra.mxu0 %v8428
  %v9098 = vpop.f32.mrf.mxu0
  %v9099 = vadd.f32 %v9070, %v9098
  %v9100 = vpop.f32.mrf.mxu0
  %v9101 = vadd.f32 %v9072, %v9100
  %9102 = vdwg.mxu0
  %9103 = vmatpush.bf16.msra.mxu0 %v8886
  %9104 = vmatpush.bf16.msra.mxu0 %v8882
  %9105 = vmatpush.bf16.msra.mxu0 %v8878
  %9106 = vmatpush.bf16.msra.mxu0 %v8874
  %9107 = vmatpush.bf16.msra.mxu0 %v8870
  %9108 = vmatpush.bf16.msra.mxu0 %v8866
  %9109 = vmatpush.bf16.msra.mxu0 %v8862
  %9110 = vmatpush.bf16.msra.mxu0 %v8858
  %9111 = vmatmul.bf16.gmra.mxu0 %v4716
  %v9112 = vpop.f32.mrf.mxu0
  %v9113 = vadd.f32 %v9084, %v9112
  %v9114 = vpop.f32.mrf.mxu0
  %v9115 = vadd.f32 %v9086, %v9114
  %9116 = vmatmul.bf16.gmra.mxu0 %v4720
  %v9117 = vpop.f32.mrf.mxu0
  %v9118 = vadd.f32 %v9089, %v9117
  %v9119 = vpop.f32.mrf.mxu0
  %v9120 = vadd.f32 %v9091, %v9119
  %9121 = vmatmul.bf16.gmra.mxu0 %v5947
  %v9122 = vpop.f32.mrf.mxu0
  %v9123 = vadd.f32 %v9094, %v9122
  %v9124 = vpop.f32.mrf.mxu0
  %v9125 = vadd.f32 %v9096, %v9124
  %9126 = vmatmul.bf16.gmra.mxu0 %v8429
  %v9127 = vpop.f32.mrf.mxu0
  %v9128 = vadd.f32 %v9099, %v9127
  %v9129 = vpop.f32.mrf.mxu0
  %v9130 = vadd.f32 %v9101, %v9129
  %9131 = vdwg.mxu0
  %9132 = vmatpush.bf16.msra.mxu0 0
  %9133 = vmatpush.bf16.msra.mxu0 0
  %9134 = vmatpush.bf16.msra.mxu0 %v9034
  %9135 = vmatpush.bf16.msra.mxu0 %v8906
  %9136 = vmatpush.bf16.msra.mxu0 %v8902
  %9137 = vmatpush.bf16.msra.mxu0 %v8898
  %9138 = vmatpush.bf16.msra.mxu0 %v8894
  %9139 = vmatpush.bf16.msra.mxu0 %v8890
  %9140 = vmatmul.bf16.gmra.mxu0 %v5337
  %v9141 = vpop.f32.mrf.mxu0
  %v9142 = vadd.f32 %v9113, %v9141
  %v9143 = vpop.f32.mrf.mxu0
  %v9144 = vadd.f32 %v9115, %v9143
  %9145 = vmatmul.bf16.gmra.mxu0 %v5340
  %v9146 = vpop.f32.mrf.mxu0
  %v9147 = vadd.f32 %v9118, %v9146
  %v9148 = vpop.f32.mrf.mxu0
  %v9149 = vadd.f32 %v9120, %v9148
  %9150 = vmatmul.bf16.gmra.mxu0 %v6549
  %v9151 = vpop.f32.mrf.mxu0
  %v9152 = vadd.f32 %v9123, %v9151
  %v9153 = vpop.f32.mrf.mxu0
  %v9154 = vadd.f32 %v9125, %v9153
  %9155 = vmatmul.bf16.gmra.mxu0 %v9031
  %v9156 = vpop.f32.mrf.mxu0
  %v9157 = vadd.f32 %v9128, %v9156
  %v9158 = vpop.f32.mrf.mxu0
  %v9159 = vadd.f32 %v9130, %v9158
  %9160 = vdwg.mxu0
  %9161 = vmatpush.bf16.msra.mxu0 %v8823
  %9162 = vmatpush.bf16.msra.mxu0 %v8819
  %9163 = vmatpush.bf16.msra.mxu0 %v8815
  %9164 = vmatpush.bf16.msra.mxu0 %v8811
  %9165 = vmatpush.bf16.msra.mxu0 %v8807
  %9166 = vmatpush.bf16.msra.mxu0 %v8803
  %9167 = vmatpush.bf16.msra.mxu0 %v8799
  %9168 = vmatpush.bf16.msra.mxu0 %v8795
  %9169 = vmatmul.bf16.gmra.mxu0 %v4714
  %v9170 = vpop.f32.mrf.mxu0
  %v9171 = vadd.f32 0.0, %v9170
  %v9172 = vpop.f32.mrf.mxu0
  %v9173 = vadd.f32 0.0, %v9172
  %9174 = vmatmul.bf16.gmra.mxu0 %v4718
  %v9175 = vpop.f32.mrf.mxu0
  %v9176 = vadd.f32 0.0, %v9175
  %v9177 = vpop.f32.mrf.mxu0
  %v9178 = vadd.f32 0.0, %v9177
  %9179 = vmatmul.bf16.gmra.mxu0 %v5945
  %v9180 = vpop.f32.mrf.mxu0
  %v9181 = vadd.f32 0.0, %v9180
  %v9182 = vpop.f32.mrf.mxu0
  %v9183 = vadd.f32 0.0, %v9182
  %9184 = vmatmul.bf16.gmra.mxu0 %v8427
  %v9185 = vpop.f32.mrf.mxu0
  %v9186 = vadd.f32 0.0, %v9185
  %v9187 = vpop.f32.mrf.mxu0
  %v9188 = vadd.f32 0.0, %v9187
  %9189 = vdwg.mxu0
  %9190 = vmatpush.bf16.msra.mxu0 %v8855
  %9191 = vmatpush.bf16.msra.mxu0 %v8851
  %9192 = vmatpush.bf16.msra.mxu0 %v8847
  %9193 = vmatpush.bf16.msra.mxu0 %v8843
  %9194 = vmatpush.bf16.msra.mxu0 %v8839
  %9195 = vmatpush.bf16.msra.mxu0 %v8835
  %9196 = vmatpush.bf16.msra.mxu0 %v8831
  %9197 = vmatpush.bf16.msra.mxu0 %v8827
  %9198 = vmatmul.bf16.gmra.mxu0 %v4715
  %v9199 = vpop.f32.mrf.mxu0
  %v9200 = vadd.f32 %v9171, %v9199
  %v9201 = vpop.f32.mrf.mxu0
  %v9202 = vadd.f32 %v9173, %v9201
  %9203 = vmatmul.bf16.gmra.mxu0 %v4719
  %v9204 = vpop.f32.mrf.mxu0
  %v9205 = vadd.f32 %v9176, %v9204
  %v9206 = vpop.f32.mrf.mxu0
  %v9207 = vadd.f32 %v9178, %v9206
  %9208 = vmatmul.bf16.gmra.mxu0 %v5946
  %v9209 = vpop.f32.mrf.mxu0
  %v9210 = vadd.f32 %v9181, %v9209
  %v9211 = vpop.f32.mrf.mxu0
  %v9212 = vadd.f32 %v9183, %v9211
  %9213 = vmatmul.bf16.gmra.mxu0 %v8428
  %v9214 = vpop.f32.mrf.mxu0
  %v9215 = vadd.f32 %v9186, %v9214
  %v9216 = vpop.f32.mrf.mxu0
  %v9217 = vadd.f32 %v9188, %v9216
  %9218 = vdwg.mxu0
  %9219 = vmatpush.bf16.msra.mxu0 %v8887
  %9220 = vmatpush.bf16.msra.mxu0 %v8883
  %9221 = vmatpush.bf16.msra.mxu0 %v8879
  %9222 = vmatpush.bf16.msra.mxu0 %v8875
  %9223 = vmatpush.bf16.msra.mxu0 %v8871
  %9224 = vmatpush.bf16.msra.mxu0 %v8867
  %9225 = vmatpush.bf16.msra.mxu0 %v8863
  %9226 = vmatpush.bf16.msra.mxu0 %v8859
  %9227 = vmatmul.bf16.gmra.mxu0 %v4716
  %v9228 = vpop.f32.mrf.mxu0
  %v9229 = vadd.f32 %v9200, %v9228
  %v9230 = vpop.f32.mrf.mxu0
  %v9231 = vadd.f32 %v9202, %v9230
  %9232 = vmatmul.bf16.gmra.mxu0 %v4720
  %v9233 = vpop.f32.mrf.mxu0
  %v9234 = vadd.f32 %v9205, %v9233
  %v9235 = vpop.f32.mrf.mxu0
  %v9236 = vadd.f32 %v9207, %v9235
  %9237 = vmatmul.bf16.gmra.mxu0 %v5947
  %v9238 = vpop.f32.mrf.mxu0
  %v9239 = vadd.f32 %v9210, %v9238
  %v9240 = vpop.f32.mrf.mxu0
  %v9241 = vadd.f32 %v9212, %v9240
  %9242 = vmatmul.bf16.gmra.mxu0 %v8429
  %v9243 = vpop.f32.mrf.mxu0
  %v9244 = vadd.f32 %v9215, %v9243
  %v9245 = vpop.f32.mrf.mxu0
  %v9246 = vadd.f32 %v9217, %v9245
  %9247 = vdwg.mxu0
  %9248 = vmatpush.bf16.msra.mxu0 0
  %9249 = vmatpush.bf16.msra.mxu0 0
  %9250 = vmatpush.bf16.msra.mxu0 %v9037
  %9251 = vmatpush.bf16.msra.mxu0 %v8907
  %9252 = vmatpush.bf16.msra.mxu0 %v8903
  %9253 = vmatpush.bf16.msra.mxu0 %v8899
  %9254 = vmatpush.bf16.msra.mxu0 %v8895
  %9255 = vmatpush.bf16.msra.mxu0 %v8891
  %9256 = vmatmul.bf16.gmra.mxu0 %v5337
  %v9257 = vpop.f32.mrf.mxu0
  %v9258 = vadd.f32 %v9229, %v9257
  %v9259 = vpop.f32.mrf.mxu0
  %v9260 = vadd.f32 %v9231, %v9259
  %9261 = vmatmul.bf16.gmra.mxu0 %v5340
  %v9262 = vpop.f32.mrf.mxu0
  %v9263 = vadd.f32 %v9234, %v9262
  %v9264 = vpop.f32.mrf.mxu0
  %v9265 = vadd.f32 %v9236, %v9264
  %9266 = vmatmul.bf16.gmra.mxu0 %v6549
  %v9267 = vpop.f32.mrf.mxu0
  %v9268 = vadd.f32 %v9239, %v9267
  %v9269 = vpop.f32.mrf.mxu0
  %v9270 = vadd.f32 %v9241, %v9269
  %9271 = vmatmul.bf16.gmra.mxu0 %v9031
  %v9272 = vpop.f32.mrf.mxu0
  %v9273 = vadd.f32 %v9244, %v9272
  %v9274 = vpop.f32.mrf.mxu0
  %v9275 = vadd.f32 %v9246, %v9274
  %9276 = vdwg.mxu0
  %9277 = vmatpush.bf16.msra.mxu0 %v8824
  %9278 = vmatpush.bf16.msra.mxu0 %v8820
  %9279 = vmatpush.bf16.msra.mxu0 %v8816
  %9280 = vmatpush.bf16.msra.mxu0 %v8812
  %9281 = vmatpush.bf16.msra.mxu0 %v8808
  %9282 = vmatpush.bf16.msra.mxu0 %v8804
  %9283 = vmatpush.bf16.msra.mxu0 %v8800
  %9284 = vmatpush.bf16.msra.mxu0 %v8796
  %9285 = vmatmul.bf16.gmra.mxu0 %v4714
  %v9286 = vpop.f32.mrf.mxu0
  %v9287 = vadd.f32 0.0, %v9286
  %v9288 = vpop.f32.mrf.mxu0
  %v9289 = vadd.f32 0.0, %v9288
  %9290 = vmatmul.bf16.gmra.mxu0 %v4718
  %v9291 = vpop.f32.mrf.mxu0
  %v9292 = vadd.f32 0.0, %v9291
  %v9293 = vpop.f32.mrf.mxu0
  %v9294 = vadd.f32 0.0, %v9293
  %9295 = vmatmul.bf16.gmra.mxu0 %v5945
  %v9296 = vpop.f32.mrf.mxu0
  %v9297 = vadd.f32 0.0, %v9296
  %v9298 = vpop.f32.mrf.mxu0
  %v9299 = vadd.f32 0.0, %v9298
  %9300 = vmatmul.bf16.gmra.mxu0 %v8427
  %v9301 = vpop.f32.mrf.mxu0
  %v9302 = vadd.f32 0.0, %v9301
  %v9303 = vpop.f32.mrf.mxu0
  %v9304 = vadd.f32 0.0, %v9303
  %9305 = vdwg.mxu0
  %9306 = vmatpush.bf16.msra.mxu0 %v8856
  %9307 = vmatpush.bf16.msra.mxu0 %v8852
  %9308 = vmatpush.bf16.msra.mxu0 %v8848
  %9309 = vmatpush.bf16.msra.mxu0 %v8844
  %9310 = vmatpush.bf16.msra.mxu0 %v8840
  %9311 = vmatpush.bf16.msra.mxu0 %v8836
  %9312 = vmatpush.bf16.msra.mxu0 %v8832
  %9313 = vmatpush.bf16.msra.mxu0 %v8828
  %9314 = vmatmul.bf16.gmra.mxu0 %v4715
  %v9315 = vpop.f32.mrf.mxu0
  %v9316 = vadd.f32 %v9287, %v9315
  %v9317 = vpop.f32.mrf.mxu0
  %v9318 = vadd.f32 %v9289, %v9317
  %9319 = vmatmul.bf16.gmra.mxu0 %v4719
  %v9320 = vpop.f32.mrf.mxu0
  %v9321 = vadd.f32 %v9292, %v9320
  %v9322 = vpop.f32.mrf.mxu0
  %v9323 = vadd.f32 %v9294, %v9322
  %9324 = vmatmul.bf16.gmra.mxu0 %v5946
  %v9325 = vpop.f32.mrf.mxu0
  %v9326 = vadd.f32 %v9297, %v9325
  %v9327 = vpop.f32.mrf.mxu0
  %v9328 = vadd.f32 %v9299, %v9327
  %9329 = vmatmul.bf16.gmra.mxu0 %v8428
  %v9330 = vpop.f32.mrf.mxu0
  %v9331 = vadd.f32 %v9302, %v9330
  %v9332 = vpop.f32.mrf.mxu0
  %v9333 = vadd.f32 %v9304, %v9332
  %9334 = vdwg.mxu0
  %9335 = vmatpush.bf16.msra.mxu0 %v8888
  %9336 = vmatpush.bf16.msra.mxu0 %v8884
  %9337 = vmatpush.bf16.msra.mxu0 %v8880
  %9338 = vmatpush.bf16.msra.mxu0 %v8876
  %9339 = vmatpush.bf16.msra.mxu0 %v8872
  %9340 = vmatpush.bf16.msra.mxu0 %v8868
  %9341 = vmatpush.bf16.msra.mxu0 %v8864
  %9342 = vmatpush.bf16.msra.mxu0 %v8860
  %9343 = vmatmul.bf16.gmra.mxu0 %v4716
  %v9344 = vpop.f32.mrf.mxu0
  %v9345 = vadd.f32 %v9316, %v9344
  %v9346 = vpop.f32.mrf.mxu0
  %v9347 = vadd.f32 %v9318, %v9346
  %9348 = vmatmul.bf16.gmra.mxu0 %v4720
  %v9349 = vpop.f32.mrf.mxu0
  %v9350 = vadd.f32 %v9321, %v9349
  %v9351 = vpop.f32.mrf.mxu0
  %v9352 = vadd.f32 %v9323, %v9351
  %9353 = vmatmul.bf16.gmra.mxu0 %v5947
  %v9354 = vpop.f32.mrf.mxu0
  %v9355 = vadd.f32 %v9326, %v9354
  %v9356 = vpop.f32.mrf.mxu0
  %v9357 = vadd.f32 %v9328, %v9356
  %9358 = vmatmul.bf16.gmra.mxu0 %v8429
  %v9359 = vpop.f32.mrf.mxu0
  %v9360 = vadd.f32 %v9331, %v9359
  %v9361 = vpop.f32.mrf.mxu0
  %v9362 = vadd.f32 %v9333, %v9361
  %9363 = vdwg.mxu0
  %9364 = vmatpush.bf16.msra.mxu0 0
  %9365 = vmatpush.bf16.msra.mxu0 0
  %9366 = vmatpush.bf16.msra.mxu0 %v9040
  %9367 = vmatpush.bf16.msra.mxu0 %v8908
  %9368 = vmatpush.bf16.msra.mxu0 %v8904
  %9369 = vmatpush.bf16.msra.mxu0 %v8900
  %9370 = vmatpush.bf16.msra.mxu0 %v8896
  %9371 = vmatpush.bf16.msra.mxu0 %v8892
  %9372 = vmatmul.bf16.gmra.mxu0 %v5337
  %v9373 = vpop.f32.mrf.mxu0
  %v9374 = vadd.f32 %v9345, %v9373
  %v9375 = vpop.f32.mrf.mxu0
  %v9376 = vadd.f32 %v9347, %v9375
  %9377 = vmatmul.bf16.gmra.mxu0 %v5340
  %v9378 = vpop.f32.mrf.mxu0
  %v9379 = vadd.f32 %v9350, %v9378
  %v9380 = vpop.f32.mrf.mxu0
  %v9381 = vadd.f32 %v9352, %v9380
  %9382 = vmatmul.bf16.gmra.mxu0 %v6549
  %v9383 = vpop.f32.mrf.mxu0
  %v9384 = vadd.f32 %v9355, %v9383
  %v9385 = vpop.f32.mrf.mxu0
  %v9386 = vadd.f32 %v9357, %v9385
  %9387 = vmatmul.bf16.gmra.mxu0 %v9031
  %v9388 = vpop.f32.mrf.mxu0
  %v9389 = vadd.f32 %v9360, %v9388
  %v9390 = vpop.f32.mrf.mxu0
  %v9391 = vadd.f32 %v9362, %v9390
  %9392 = vdwg.mxu0
  %9393 = vmatpush.bf16.msra.mxu0 %v8825
  %9394 = vmatpush.bf16.msra.mxu0 %v8821
  %9395 = vmatpush.bf16.msra.mxu0 %v8817
  %9396 = vmatpush.bf16.msra.mxu0 %v8813
  %9397 = vmatpush.bf16.msra.mxu0 %v8809
  %9398 = vmatpush.bf16.msra.mxu0 %v8805
  %9399 = vmatpush.bf16.msra.mxu0 %v8801
  %9400 = vmatpush.bf16.msra.mxu0 %v8797
  %9401 = vmatmul.bf16.gmra.mxu0 %v4714
  %v9402 = vpop.f32.mrf.mxu0
  %v9403 = vadd.f32 0.0, %v9402
  %v9404 = vpop.f32.mrf.mxu0
  %v9405 = vadd.f32 0.0, %v9404
  %9406 = vmatmul.bf16.gmra.mxu0 %v4718
  %v9407 = vpop.f32.mrf.mxu0
  %v9408 = vadd.f32 0.0, %v9407
  %v9409 = vpop.f32.mrf.mxu0
  %v9410 = vadd.f32 0.0, %v9409
  %9411 = vmatmul.bf16.gmra.mxu0 %v5945
  %v9412 = vpop.f32.mrf.mxu0
  %v9413 = vadd.f32 0.0, %v9412
  %v9414 = vpop.f32.mrf.mxu0
  %v9415 = vadd.f32 0.0, %v9414
  %9416 = vmatmul.bf16.gmra.mxu0 %v8427
  %v9417 = vpop.f32.mrf.mxu0
  %v9418 = vadd.f32 0.0, %v9417
  %v9419 = vpop.f32.mrf.mxu0
  %v9420 = vadd.f32 0.0, %v9419
  %9421 = vdwg.mxu0
  %9422 = vmatpush.bf16.msra.mxu0 %v8857
  %9423 = vmatpush.bf16.msra.mxu0 %v8853
  %9424 = vmatpush.bf16.msra.mxu0 %v8849
  %9425 = vmatpush.bf16.msra.mxu0 %v8845
  %9426 = vmatpush.bf16.msra.mxu0 %v8841
  %9427 = vmatpush.bf16.msra.mxu0 %v8837
  %9428 = vmatpush.bf16.msra.mxu0 %v8833
  %9429 = vmatpush.bf16.msra.mxu0 %v8829
  %9430 = vmatmul.bf16.gmra.mxu0 %v4715
  %v9431 = vpop.f32.mrf.mxu0
  %v9432 = vadd.f32 %v9403, %v9431
  %v9433 = vpop.f32.mrf.mxu0
  %v9434 = vadd.f32 %v9405, %v9433
  %9435 = vmatmul.bf16.gmra.mxu0 %v4719
  %v9436 = vpop.f32.mrf.mxu0
  %v9437 = vadd.f32 %v9408, %v9436
  %v9438 = vpop.f32.mrf.mxu0
  %v9439 = vadd.f32 %v9410, %v9438
  %9440 = vmatmul.bf16.gmra.mxu0 %v5946
  %v9441 = vpop.f32.mrf.mxu0
  %v9442 = vadd.f32 %v9413, %v9441
  %v9443 = vpop.f32.mrf.mxu0
  %v9444 = vadd.f32 %v9415, %v9443
  %9445 = vmatmul.bf16.gmra.mxu0 %v8428
  %v9446 = vpop.f32.mrf.mxu0
  %v9447 = vadd.f32 %v9418, %v9446
  %v9448 = vpop.f32.mrf.mxu0
  %v9449 = vadd.f32 %v9420, %v9448
  %9450 = vdwg.mxu0
  %9451 = vmatpush.bf16.msra.mxu0 %v8889
  %9452 = vmatpush.bf16.msra.mxu0 %v8885
  %9453 = vmatpush.bf16.msra.mxu0 %v8881
  %9454 = vmatpush.bf16.msra.mxu0 %v8877
  %9455 = vmatpush.bf16.msra.mxu0 %v8873
  %9456 = vmatpush.bf16.msra.mxu0 %v8869
  %9457 = vmatpush.bf16.msra.mxu0 %v8865
  %9458 = vmatpush.bf16.msra.mxu0 %v8861
  %9459 = vmatmul.bf16.gmra.mxu0 %v4716
  %v9460 = vpop.f32.mrf.mxu0
  %v9461 = vadd.f32 %v9432, %v9460
  %v9462 = vpop.f32.mrf.mxu0
  %v9463 = vadd.f32 %v9434, %v9462
  %9464 = vmatmul.bf16.gmra.mxu0 %v4720
  %v9465 = vpop.f32.mrf.mxu0
  %v9466 = vadd.f32 %v9437, %v9465
  %v9467 = vpop.f32.mrf.mxu0
  %v9468 = vadd.f32 %v9439, %v9467
  %9469 = vmatmul.bf16.gmra.mxu0 %v5947
  %v9470 = vpop.f32.mrf.mxu0
  %v9471 = vadd.f32 %v9442, %v9470
  %v9472 = vpop.f32.mrf.mxu0
  %v9473 = vadd.f32 %v9444, %v9472
  %9474 = vmatmul.bf16.gmra.mxu0 %v8429
  %v9475 = vpop.f32.mrf.mxu0
  %v9476 = vadd.f32 %v9447, %v9475
  %v9477 = vpop.f32.mrf.mxu0
  %v9478 = vadd.f32 %v9449, %v9477
  %9479 = vdwg.mxu0
  %9480 = vmatpush.bf16.msra.mxu0 0
  %9481 = vmatpush.bf16.msra.mxu0 0
  %9482 = vmatpush.bf16.msra.mxu0 %v9043
  %9483 = vmatpush.bf16.msra.mxu0 %v8909
  %9484 = vmatpush.bf16.msra.mxu0 %v8905
  %9485 = vmatpush.bf16.msra.mxu0 %v8901
  %9486 = vmatpush.bf16.msra.mxu0 %v8897
  %9487 = vmatpush.bf16.msra.mxu0 %v8893
  %9488 = vmatmul.bf16.gmra.mxu0 %v5337
  %v9489 = vpop.f32.mrf.mxu0
  %v9490 = vadd.f32 %v9461, %v9489
  %v9491 = vpop.f32.mrf.mxu0
  %v9492 = vadd.f32 %v9463, %v9491
  %9493 = vmatmul.bf16.gmra.mxu0 %v5340
  %v9494 = vpop.f32.mrf.mxu0
  %v9495 = vadd.f32 %v9466, %v9494
  %v9496 = vpop.f32.mrf.mxu0
  %v9497 = vadd.f32 %v9468, %v9496
  %9498 = vmatmul.bf16.gmra.mxu0 %v6549
  %v9499 = vpop.f32.mrf.mxu0
  %v9500 = vadd.f32 %v9471, %v9499
  %v9501 = vpop.f32.mrf.mxu0
  %v9502 = vadd.f32 %v9473, %v9501
  %9503 = vmatmul.bf16.gmra.mxu0 %v9031
  %v9504 = vpop.f32.mrf.mxu0
  %v9505 = vadd.f32 %v9476, %v9504
  %v9506 = vpop.f32.mrf.mxu0
  %v9507 = vadd.f32 %v9478, %v9506
  %9508 = vdwg.mxu0
  %v9509 = vadd.f32 %v8268, %v9142
  %v9510 = vadd.f32 %v8269, %v9258
  %v9511 = vadd.f32 %v8270, %v9374
  %v9512 = vadd.f32 %v8271, %v9490
  %v9513 = vadd.f32 %v8272, %v9144
  %v9514 = vadd.f32 %v8273, %v9260
  %v9515 = vadd.f32 %v8274, %v9376
  %v9516 = vadd.f32 %v8275, %v9492
  %v9517 = vadd.f32 %v8276, %v9147
  %v9518 = vadd.f32 %v8277, %v9263
  %v9519 = vadd.f32 %v8278, %v9379
  %v9520 = vadd.f32 %v8279, %v9495
  %v9521 = vadd.f32 %v8280, %v9149
  %v9522 = vadd.f32 %v8281, %v9265
  %v9523 = vadd.f32 %v8282, %v9381
  %v9524 = vadd.f32 %v8283, %v9497
  %v9525 = vadd.f32 %v8284, %v9152
  %v9526 = vadd.f32 %v8285, %v9268
  %v9527 = vadd.f32 %v8286, %v9384
  %v9528 = vadd.f32 %v8287, %v9500
  %v9529 = vadd.f32 %v8288, %v9154
  %v9530 = vadd.f32 %v8289, %v9270
  %v9531 = vadd.f32 %v8290, %v9386
  %v9532 = vadd.f32 %v8291, %v9502
  %v9533 = vadd.f32 %v8292, %v9157
  %v9534 = vadd.f32 %v8293, %v9273
  %v9535 = vadd.f32 %v8294, %v9389
  %v9536 = vadd.f32 %v8295, %v9505
  %v9537 = vadd.f32 %v8296, %v9159
  %v9538 = vadd.f32 %v8297, %v9275
  %v9539 = vadd.f32 %v8298, %v9391
  %v9540 = vadd.f32 %v8299, %v9507
  %v9541 = vld [vmem:[%s4] sm:$0xf]
  %v9543 = vperm.slane %v9541, 0
  %v9544 = vperm.slane %v9541, 1
  %v9545 = vperm.slane %v9541, 2
  %v9546 = vperm.slane %v9541, 3
  %v9551 = vadd.f32 %v9509, %v9543
  %v9552 = vadd.f32 %v9510, %v9544
  %v9553 = vadd.f32 %v9511, %v9545
  %v9554 = vadd.f32 %v9512, %v9546
  %v9555 = vadd.f32 %v9513, %v9543
  %v9556 = vadd.f32 %v9514, %v9544
  %v9557 = vadd.f32 %v9515, %v9545
  %v9558 = vadd.f32 %v9516, %v9546
  %v9559 = vadd.f32 %v9517, %v9543
  %v9560 = vadd.f32 %v9518, %v9544
  %v9561 = vadd.f32 %v9519, %v9545
  %v9562 = vadd.f32 %v9520, %v9546
  %v9563 = vadd.f32 %v9521, %v9543
  %v9564 = vadd.f32 %v9522, %v9544
  %v9565 = vadd.f32 %v9523, %v9545
  %v9566 = vadd.f32 %v9524, %v9546
  %v9567 = vadd.f32 %v9525, %v9543
  %v9568 = vadd.f32 %v9526, %v9544
  %v9569 = vadd.f32 %v9527, %v9545
  %v9570 = vadd.f32 %v9528, %v9546
  %v9571 = vadd.f32 %v9529, %v9543
  %v9572 = vadd.f32 %v9530, %v9544
  %v9573 = vadd.f32 %v9531, %v9545
  %v9574 = vadd.f32 %v9532, %v9546
  %v9575 = vadd.f32 %v9533, %v9543
  %v9576 = vadd.f32 %v9534, %v9544
  %v9577 = vadd.f32 %v9535, %v9545
  %v9578 = vadd.f32 %v9536, %v9546
  %v9579 = vadd.f32 %v9537, %v9543
  %v9580 = vadd.f32 %v9538, %v9544
  %v9581 = vadd.f32 %v9539, %v9545
  %v9582 = vadd.f32 %v9540, %v9546
  %v9583 = vmax.f32 %v9551, 0.0
  %v9584 = vmax.f32 %v9552, 0.0
  %v9585 = vmax.f32 %v9553, 0.0
  %v9586 = vmax.f32 %v9554, 0.0
  %v9587 = vmax.f32 %v9555, 0.0
  %v9588 = vmax.f32 %v9556, 0.0
  %v9589 = vmax.f32 %v9557, 0.0
  %v9590 = vmax.f32 %v9558, 0.0
  %v9591 = vmax.f32 %v9559, 0.0
  %v9592 = vmax.f32 %v9560, 0.0
  %v9593 = vmax.f32 %v9561, 0.0
  %v9594 = vmax.f32 %v9562, 0.0
  %v9595 = vmax.f32 %v9563, 0.0
  %v9596 = vmax.f32 %v9564, 0.0
  %v9597 = vmax.f32 %v9565, 0.0
  %v9598 = vmax.f32 %v9566, 0.0
  %v9599 = vmax.f32 %v9567, 0.0
  %v9600 = vmax.f32 %v9568, 0.0
  %v9601 = vmax.f32 %v9569, 0.0
  %v9602 = vmax.f32 %v9570, 0.0
  %v9603 = vmax.f32 %v9571, 0.0
  %v9604 = vmax.f32 %v9572, 0.0
  %v9605 = vmax.f32 %v9573, 0.0
  %v9606 = vmax.f32 %v9574, 0.0
  %v9607 = vmax.f32 %v9575, 0.0
  %v9608 = vmax.f32 %v9576, 0.0
  %v9609 = vmax.f32 %v9577, 0.0
  %v9610 = vmax.f32 %v9578, 0.0
  %v9611 = vmax.f32 %v9579, 0.0
  %v9612 = vmax.f32 %v9580, 0.0
  %v9613 = vmax.f32 %v9581, 0.0
  %v9614 = vmax.f32 %v9582, 0.0
  %v9615 = vpack.c.bf16 %v9584, %v9583
  %v9616 = vpack.c.bf16 %v9586, %v9585
  %v9617 = vpack.c.bf16 %v9588, %v9587
  %v9618 = vpack.c.bf16 %v9590, %v9589
  %v9619 = vpack.c.bf16 %v9592, %v9591
  %v9620 = vpack.c.bf16 %v9594, %v9593
  %v9621 = vpack.c.bf16 %v9596, %v9595
  %v9622 = vpack.c.bf16 %v9598, %v9597
  %v9623 = vpack.c.bf16 %v9600, %v9599
  %v9624 = vpack.c.bf16 %v9602, %v9601
  %v9625 = vpack.c.bf16 %v9604, %v9603
  %v9626 = vpack.c.bf16 %v9606, %v9605
  %v9627 = vpack.c.bf16 %v9608, %v9607
  %v9628 = vpack.c.bf16 %v9610, %v9609
  %v9629 = vpack.c.bf16 %v9612, %v9611
  %v9630 = vpack.c.bf16 %v9614, %v9613
  %v9631 = vunpack.c.l.bf16 %v9615
  %v9632 = vunpack.c.h.bf16 %v9615
  %v9633 = vunpack.c.l.bf16 %v9616
  %v9634 = vunpack.c.h.bf16 %v9616
  %v9635 = vunpack.c.l.bf16 %v9617
  %v9636 = vunpack.c.h.bf16 %v9617
  %v9637 = vunpack.c.l.bf16 %v9618
  %v9638 = vunpack.c.h.bf16 %v9618
  %v9639 = vunpack.c.l.bf16 %v9619
  %v9640 = vunpack.c.h.bf16 %v9619
  %v9641 = vunpack.c.l.bf16 %v9620
  %v9642 = vunpack.c.h.bf16 %v9620
  %v9643 = vunpack.c.l.bf16 %v9621
  %v9644 = vunpack.c.h.bf16 %v9621
  %v9645 = vunpack.c.l.bf16 %v9622
  %v9646 = vunpack.c.h.bf16 %v9622
  %v9647 = vunpack.c.l.bf16 %v9623
  %v9648 = vunpack.c.h.bf16 %v9623
  %v9649 = vunpack.c.l.bf16 %v9624
  %v9650 = vunpack.c.h.bf16 %v9624
  %v9651 = vunpack.c.l.bf16 %v9625
  %v9652 = vunpack.c.h.bf16 %v9625
  %v9653 = vunpack.c.l.bf16 %v9626
  %v9654 = vunpack.c.h.bf16 %v9626
  %v9655 = vunpack.c.l.bf16 %v9627
  %v9656 = vunpack.c.h.bf16 %v9627
  %v9657 = vunpack.c.l.bf16 %v9628
  %v9658 = vunpack.c.h.bf16 %v9628
  %v9659 = vunpack.c.l.bf16 %v9629
  %v9660 = vunpack.c.h.bf16 %v9629
  %v9661 = vunpack.c.l.bf16 %v9630
  %v9662 = vunpack.c.h.bf16 %v9630
  %9695 = vrot.lane.b32.xlu0 %v9631, 127
  %v9696 = vpop.permute.xlu0 %9695
  %9697 = vrot.lane.b32.xlu0 %v9632, 127
  %v9698 = vpop.permute.xlu0 %9697
  %9699 = vrot.lane.b32.xlu0 %v9633, 127
  %v9700 = vpop.permute.xlu0 %9699
  %9701 = vrot.lane.b32.xlu0 %v9634, 127
  %v9702 = vpop.permute.xlu0 %9701
  %9703 = vrot.lane.b32.xlu0 %v9635, 127
  %v9704 = vpop.permute.xlu0 %9703
  %9705 = vrot.lane.b32.xlu0 %v9636, 127
  %v9706 = vpop.permute.xlu0 %9705
  %9707 = vrot.lane.b32.xlu0 %v9637, 127
  %v9708 = vpop.permute.xlu0 %9707
  %9709 = vrot.lane.b32.xlu0 %v9638, 127
  %v9710 = vpop.permute.xlu0 %9709
  %9711 = vrot.lane.b32.xlu0 %v9639, 127
  %v9712 = vpop.permute.xlu0 %9711
  %9713 = vrot.lane.b32.xlu0 %v9640, 127
  %v9714 = vpop.permute.xlu0 %9713
  %9715 = vrot.lane.b32.xlu0 %v9641, 127
  %v9716 = vpop.permute.xlu0 %9715
  %9717 = vrot.lane.b32.xlu0 %v9642, 127
  %v9718 = vpop.permute.xlu0 %9717
  %9719 = vrot.lane.b32.xlu0 %v9643, 127
  %v9720 = vpop.permute.xlu0 %9719
  %9721 = vrot.lane.b32.xlu0 %v9644, 127
  %v9722 = vpop.permute.xlu0 %9721
  %9723 = vrot.lane.b32.xlu0 %v9645, 127
  %v9724 = vpop.permute.xlu0 %9723
  %9725 = vrot.lane.b32.xlu0 %v9646, 127
  %v9726 = vpop.permute.xlu0 %9725
  %9727 = vrot.lane.b32.xlu0 %v9647, 127
  %v9728 = vpop.permute.xlu0 %9727
  %9729 = vrot.lane.b32.xlu0 %v9648, 127
  %v9730 = vpop.permute.xlu0 %9729
  %9731 = vrot.lane.b32.xlu0 %v9649, 127
  %v9732 = vpop.permute.xlu0 %9731
  %9733 = vrot.lane.b32.xlu0 %v9650, 127
  %v9734 = vpop.permute.xlu0 %9733
  %9735 = vrot.lane.b32.xlu0 %v9651, 127
  %v9736 = vpop.permute.xlu0 %9735
  %9737 = vrot.lane.b32.xlu0 %v9652, 127
  %v9738 = vpop.permute.xlu0 %9737
  %9739 = vrot.lane.b32.xlu0 %v9653, 127
  %v9740 = vpop.permute.xlu0 %9739
  %9741 = vrot.lane.b32.xlu0 %v9654, 127
  %v9742 = vpop.permute.xlu0 %9741
  %9743 = vrot.lane.b32.xlu0 %v9655, 127
  %v9744 = vpop.permute.xlu0 %9743
  %9745 = vrot.lane.b32.xlu0 %v9656, 127
  %v9746 = vpop.permute.xlu0 %9745
  %9747 = vrot.lane.b32.xlu0 %v9657, 127
  %v9748 = vpop.permute.xlu0 %9747
  %9749 = vrot.lane.b32.xlu0 %v9658, 127
  %v9750 = vpop.permute.xlu0 %9749
  %9751 = vrot.lane.b32.xlu0 %v9659, 127
  %v9752 = vpop.permute.xlu0 %9751
  %9753 = vrot.lane.b32.xlu0 %v9660, 127
  %v9754 = vpop.permute.xlu0 %9753
  %9755 = vrot.lane.b32.xlu0 %v9661, 127
  %v9756 = vpop.permute.xlu0 %9755
  %9757 = vrot.lane.b32.xlu0 %v9662, 127
  %v9758 = vpop.permute.xlu0 %9757
  %v9759 = vsel %vm2813, %v9696, %v9698
  %v9760 = vsel %vm2813, %v9698, %v9700
  %v9761 = vsel %vm2813, %v9700, %v9702
  %v9762 = vsel %vm2813, %v9704, %v9706
  %v9763 = vsel %vm2813, %v9706, %v9708
  %v9764 = vsel %vm2813, %v9708, %v9710
  %v9765 = vsel %vm2813, %v9712, %v9714
  %v9766 = vsel %vm2813, %v9714, %v9716
  %v9767 = vsel %vm2813, %v9716, %v9718
  %v9768 = vsel %vm2813, %v9720, %v9722
  %v9769 = vsel %vm2813, %v9722, %v9724
  %v9770 = vsel %vm2813, %v9724, %v9726
  %v9771 = vsel %vm2813, %v9728, %v9730
  %v9772 = vsel %vm2813, %v9730, %v9732
  %v9773 = vsel %vm2813, %v9732, %v9734
  %v9774 = vsel %vm2813, %v9736, %v9738
  %v9775 = vsel %vm2813, %v9738, %v9740
  %v9776 = vsel %vm2813, %v9740, %v9742
  %v9777 = vsel %vm2813, %v9744, %v9746
  %v9778 = vsel %vm2813, %v9746, %v9748
  %v9779 = vsel %vm2813, %v9748, %v9750
  %v9780 = vsel %vm2813, %v9752, %v9754
  %v9781 = vsel %vm2813, %v9754, %v9756
  %v9782 = vsel %vm2813, %v9756, %v9758
  %v9815 = vmax.f32 %v9631, %v9759
  %v9816 = vmax.f32 %v9632, %v9760
  %v9817 = vmax.f32 %v9633, %v9761
  %v9818 = vmax.f32 %v9634, %v9702
  %v9819 = vmax.f32 %v9635, %v9762
  %v9820 = vmax.f32 %v9636, %v9763
  %v9821 = vmax.f32 %v9637, %v9764
  %v9822 = vmax.f32 %v9638, %v9710
  %v9823 = vmax.f32 %v9639, %v9765
  %v9824 = vmax.f32 %v9640, %v9766
  %v9825 = vmax.f32 %v9641, %v9767
  %v9826 = vmax.f32 %v9642, %v9718
  %v9827 = vmax.f32 %v9643, %v9768
  %v9828 = vmax.f32 %v9644, %v9769
  %v9829 = vmax.f32 %v9645, %v9770
  %v9830 = vmax.f32 %v9646, %v9726
  %v9831 = vmax.f32 %v9647, %v9771
  %v9832 = vmax.f32 %v9648, %v9772
  %v9833 = vmax.f32 %v9649, %v9773
  %v9834 = vmax.f32 %v9650, %v9734
  %v9835 = vmax.f32 %v9651, %v9774
  %v9836 = vmax.f32 %v9652, %v9775
  %v9837 = vmax.f32 %v9653, %v9776
  %v9838 = vmax.f32 %v9654, %v9742
  %v9839 = vmax.f32 %v9655, %v9777
  %v9840 = vmax.f32 %v9656, %v9778
  %v9841 = vmax.f32 %v9657, %v9779
  %v9842 = vmax.f32 %v9658, %v9750
  %v9843 = vmax.f32 %v9659, %v9780
  %v9844 = vmax.f32 %v9660, %v9781
  %v9845 = vmax.f32 %v9661, %v9782
  %v9846 = vmax.f32 %v9662, %v9758
  %v9847 = vpack.c.bf16 %v9816, %v9815
  %v9848 = vpack.c.bf16 %v9818, %v9817
  %v9849 = vpack.c.bf16 %v9820, %v9819
  %v9850 = vpack.c.bf16 %v9822, %v9821
  %v9851 = vpack.c.bf16 %v9824, %v9823
  %v9852 = vpack.c.bf16 %v9826, %v9825
  %v9853 = vpack.c.bf16 %v9828, %v9827
  %v9854 = vpack.c.bf16 %v9830, %v9829
  %v9855 = vpack.c.bf16 %v9832, %v9831
  %v9856 = vpack.c.bf16 %v9834, %v9833
  %v9857 = vpack.c.bf16 %v9836, %v9835
  %v9858 = vpack.c.bf16 %v9838, %v9837
  %v9859 = vpack.c.bf16 %v9840, %v9839
  %v9860 = vpack.c.bf16 %v9842, %v9841
  %v9861 = vpack.c.bf16 %v9844, %v9843
  %v9862 = vpack.c.bf16 %v9846, %v9845
  %v9863 = vunpack.c.l.bf16 %v9847
  %v9864 = vunpack.c.h.bf16 %v9847
  %v9865 = vunpack.c.l.bf16 %v9848
  %v9866 = vunpack.c.h.bf16 %v9848
  %v9867 = vunpack.c.l.bf16 %v9851
  %v9868 = vunpack.c.h.bf16 %v9851
  %v9869 = vunpack.c.l.bf16 %v9852
  %v9870 = vunpack.c.h.bf16 %v9852
  %v9871 = vunpack.c.l.bf16 %v9855
  %v9872 = vunpack.c.h.bf16 %v9855
  %v9873 = vunpack.c.l.bf16 %v9856
  %v9874 = vunpack.c.h.bf16 %v9856
  %v9875 = vunpack.c.l.bf16 %v9859
  %v9876 = vunpack.c.h.bf16 %v9859
  %v9877 = vunpack.c.l.bf16 %v9860
  %v9878 = vunpack.c.h.bf16 %v9860
  %v9879 = vunpack.c.l.bf16 %v9849
  %v9880 = vunpack.c.h.bf16 %v9849
  %v9881 = vunpack.c.l.bf16 %v9850
  %v9882 = vunpack.c.h.bf16 %v9850
  %v9883 = vunpack.c.l.bf16 %v9853
  %v9884 = vunpack.c.h.bf16 %v9853
  %v9885 = vunpack.c.l.bf16 %v9854
  %v9886 = vunpack.c.h.bf16 %v9854
  %v9887 = vunpack.c.l.bf16 %v9857
  %v9888 = vunpack.c.h.bf16 %v9857
  %v9889 = vunpack.c.l.bf16 %v9858
  %v9890 = vunpack.c.h.bf16 %v9858
  %v9891 = vunpack.c.l.bf16 %v9861
  %v9892 = vunpack.c.h.bf16 %v9861
  %v9893 = vunpack.c.l.bf16 %v9862
  %v9894 = vunpack.c.h.bf16 %v9862
  %v9895 = vmax.f32 %v9863, %v9879
  %v9896 = vmax.f32 %v9864, %v9880
  %v9897 = vmax.f32 %v9865, %v9881
  %v9898 = vmax.f32 %v9866, %v9882
  %v9899 = vmax.f32 %v9867, %v9883
  %v9900 = vmax.f32 %v9868, %v9884
  %v9901 = vmax.f32 %v9869, %v9885
  %v9902 = vmax.f32 %v9870, %v9886
  %v9903 = vmax.f32 %v9871, %v9887
  %v9904 = vmax.f32 %v9872, %v9888
  %v9905 = vmax.f32 %v9873, %v9889
  %v9906 = vmax.f32 %v9874, %v9890
  %v9907 = vmax.f32 %v9875, %v9891
  %v9908 = vmax.f32 %v9876, %v9892
  %v9909 = vmax.f32 %v9877, %v9893
  %v9910 = vmax.f32 %v9878, %v9894
  %v9911 = vpack.c.bf16 %v9896, %v9895
  %v9912 = vpack.c.bf16 %v9898, %v9897
  %v9913 = vpack.c.bf16 %v9900, %v9899
  %v9914 = vpack.c.bf16 %v9902, %v9901
  %v9915 = vpack.c.bf16 %v9904, %v9903
  %v9916 = vpack.c.bf16 %v9906, %v9905
  %v9917 = vpack.c.bf16 %v9908, %v9907
  %v9918 = vpack.c.bf16 %v9910, %v9909
  %v9919 = vld [vmem:[%s5] sm:$0xff]
  %v9920 = vld [vmem:[%s5 + $0x8] sm:$0xff]
  %v9921 = vld [vmem:[%s5 + $0x10] sm:$0xff]
  %v9922 = vld [vmem:[%s5 + $0x18] sm:$0xff]
  %v9923 = vld [vmem:[%s5 + $0x20] sm:$0xff]
  %v9924 = vld [vmem:[%s5 + $0x28] sm:$0xff]
  %v9925 = vld [vmem:[%s5 + $0x30] sm:$0xff]
  %v9926 = vld [vmem:[%s5 + $0x38] sm:$0xff]
  %v9927 = vld [vmem:[%s5 + $0x40] sm:$0xff]
  %v9928 = vld [vmem:[%s5 + $0x48] sm:$0xff]
  %v9929 = vld [vmem:[%s5 + $0x50] sm:$0xff]
  %v9930 = vld [vmem:[%s5 + $0x58] sm:$0xff]
  %v9931 = vld [vmem:[%s5 + $0x60] sm:$0xff]
  %v9932 = vld [vmem:[%s5 + $0x68] sm:$0xff]
  %v9933 = vld [vmem:[%s5 + $0x70] sm:$0xff]
  %v9934 = vld [vmem:[%s5 + $0x78] sm:$0xff]
  %v9935 = vld [vmem:[%s5 + $0x80] sm:$0xff]
  %v9936 = vld [vmem:[%s5 + $0x88] sm:$0xff]
  %v9937 = vld [vmem:[%s5 + $0x90] sm:$0xff]
  %v9938 = vld [vmem:[%s5 + $0x98] sm:$0xff]
  %v9939 = vld [vmem:[%s5 + $0xa0] sm:$0xff]
  %v9940 = vld [vmem:[%s5 + $0xa8] sm:$0xff]
  %v9941 = vld [vmem:[%s5 + $0xb0] sm:$0xff]
  %v9942 = vld [vmem:[%s5 + $0xb8] sm:$0xff]
  %v9943 = vld [vmem:[%s5 + $0xc0] sm:$0xff]
  %v9944 = vld [vmem:[%s5 + $0xc8] sm:$0xff]
  %v9945 = vld [vmem:[%s5 + $0xd0] sm:$0xff]
  %v9946 = vld [vmem:[%s5 + $0xd8] sm:$0xff]
  %v9947 = vld [vmem:[%s5 + $0xe0] sm:$0xff]
  %v9948 = vld [vmem:[%s5 + $0xe8] sm:$0xff]
  %v9949 = vld [vmem:[%s5 + $0xf0] sm:$0xff]
  %v9950 = vld [vmem:[%s5 + $0xf8] sm:$0xff]
  %v9951 = vld [vmem:[%s5 + $0x100] sm:$0xff]
  %v9952 = vld [vmem:[%s5 + $0x108] sm:$0xff]
  %v9953 = vld [vmem:[%s5 + $0x110] sm:$0xff]
  %v9954 = vld [vmem:[%s5 + $0x118] sm:$0xff]
  %v9955 = vld [vmem:[%s5 + $0x120] sm:$0xff]
  %v9956 = vld [vmem:[%s5 + $0x128] sm:$0xff]
  %v9957 = vld [vmem:[%s5 + $0x130] sm:$0xff]
  %v9958 = vld [vmem:[%s5 + $0x138] sm:$0xff]
  %v9959 = vld [vmem:[%s5 + $0x140] sm:$0xff]
  %v9960 = vld [vmem:[%s5 + $0x148] sm:$0xff]
  %v9961 = vld [vmem:[%s5 + $0x150] sm:$0xff]
  %v9962 = vld [vmem:[%s5 + $0x158] sm:$0xff]
  %v9963 = vld [vmem:[%s5 + $0x160] sm:$0xff]
  %v9964 = vld [vmem:[%s5 + $0x168] sm:$0xff]
  %v9965 = vld [vmem:[%s5 + $0x170] sm:$0xff]
  %v9966 = vld [vmem:[%s5 + $0x178] sm:$0xff]
  %v9967 = vld [vmem:[%s5 + $0x180] sm:$0xff]
  %v9968 = vld [vmem:[%s5 + $0x188] sm:$0xff]
  %v9969 = vld [vmem:[%s5 + $0x190] sm:$0xff]
  %v9970 = vld [vmem:[%s5 + $0x198] sm:$0xff]
  %v9971 = vld [vmem:[%s5 + $0x1a0] sm:$0xff]
  %v9972 = vld [vmem:[%s5 + $0x1a8] sm:$0xff]
  %v9973 = vld [vmem:[%s5 + $0x1b0] sm:$0xff]
  %v9974 = vld [vmem:[%s5 + $0x1b8] sm:$0xff]
  %v9975 = vld [vmem:[%s5 + $0x1c0] sm:$0xff]
  %v9976 = vld [vmem:[%s5 + $0x1c8] sm:$0xff]
  %v9977 = vld [vmem:[%s5 + $0x1d0] sm:$0xff]
  %v9978 = vld [vmem:[%s5 + $0x1d8] sm:$0xff]
  %v9979 = vld [vmem:[%s5 + $0x1e0] sm:$0xff]
  %v9980 = vld [vmem:[%s5 + $0x1e8] sm:$0xff]
  %v9981 = vld [vmem:[%s5 + $0x1f0] sm:$0xff]
  %v9982 = vld [vmem:[%s5 + $0x1f8] sm:$0xff]
  %v9983 = vld [vmem:[%s5 + $0x200] sm:$0xff]
  %v9984 = vld [vmem:[%s5 + $0x208] sm:$0xff]
  %v9985 = vld [vmem:[%s5 + $0x210] sm:$0xff]
  %v9986 = vld [vmem:[%s5 + $0x218] sm:$0xff]
  %v9987 = vld [vmem:[%s5 + $0x220] sm:$0xff]
  %v9988 = vld [vmem:[%s5 + $0x228] sm:$0xff]
  %v9989 = vld [vmem:[%s5 + $0x230] sm:$0xff]
  %v9990 = vld [vmem:[%s5 + $0x238] sm:$0xff]
  %v9991 = vld [vmem:[%s5 + $0x240] sm:$0xff]
  %v9992 = vld [vmem:[%s5 + $0x248] sm:$0xff]
  %v9993 = vld [vmem:[%s5 + $0x250] sm:$0xff]
  %v9994 = vld [vmem:[%s5 + $0x258] sm:$0xff]
  %v9995 = vld [vmem:[%s5 + $0x260] sm:$0xff]
  %v9996 = vld [vmem:[%s5 + $0x268] sm:$0xff]
  %v9997 = vld [vmem:[%s5 + $0x270] sm:$0xff]
  %v9998 = vld [vmem:[%s5 + $0x278] sm:$0xff]
  %v9999 = vld [vmem:[%s5 + $0x280] sm:$0xff]
  %v10000 = vld [vmem:[%s5 + $0x288] sm:$0xff]
  %v10001 = vld [vmem:[%s5 + $0x290] sm:$0xff]
  %v10002 = vld [vmem:[%s5 + $0x298] sm:$0xff]
  %v10003 = vld [vmem:[%s5 + $0x2a0] sm:$0xff]
  %v10004 = vld [vmem:[%s5 + $0x2a8] sm:$0xff]
  %v10005 = vld [vmem:[%s5 + $0x2b0] sm:$0xff]
  %v10006 = vld [vmem:[%s5 + $0x2b8] sm:$0xff]
  %v10007 = vld [vmem:[%s5 + $0x2c0] sm:$0xff]
  %v10008 = vld [vmem:[%s5 + $0x2c8] sm:$0xff]
  %v10009 = vld [vmem:[%s5 + $0x2d0] sm:$0xff]
  %v10010 = vld [vmem:[%s5 + $0x2d8] sm:$0xff]
  %v10011 = vld [vmem:[%s5 + $0x2e0] sm:$0xff]
  %v10012 = vld [vmem:[%s5 + $0x2e8] sm:$0xff]
  %v10013 = vld [vmem:[%s5 + $0x2f0] sm:$0xff]
  %v10014 = vld [vmem:[%s5 + $0x2f8] sm:$0xff]
  %v10015 = vld [vmem:[%s5 + $0x300] sm:$0xff]
  %v10016 = vld [vmem:[%s5 + $0x308] sm:$0xff]
  %v10017 = vld [vmem:[%s5 + $0x310] sm:$0xff]
  %v10018 = vld [vmem:[%s5 + $0x318] sm:$0xff]
  %s10019 = scalar_lea.vmem %s5, 800
  %v10020 = vld [vmem:[%s10019] sm:$0xff]
  %v10021 = vld [vmem:[%s10019 + $0x8] sm:$0xff]
  %v10022 = vld [vmem:[%s10019 + $0x10] sm:$0xff]
  %v10023 = vld [vmem:[%s10019 + $0x18] sm:$0xff]
  %v10024 = vld [vmem:[%s10019 + $0x20] sm:$0xff]
  %v10025 = vld [vmem:[%s10019 + $0x28] sm:$0xff]
  %v10026 = vld [vmem:[%s10019 + $0x30] sm:$0xff]
  %v10027 = vld [vmem:[%s10019 + $0x38] sm:$0xff]
  %v10028 = vld [vmem:[%s10019 + $0x40] sm:$0xff]
  %v10029 = vld [vmem:[%s10019 + $0x48] sm:$0xff]
  %v10030 = vld [vmem:[%s10019 + $0x50] sm:$0xff]
  %v10031 = vld [vmem:[%s10019 + $0x58] sm:$0xff]
  %v10032 = vld [vmem:[%s10019 + $0x60] sm:$0xff]
  %v10033 = vld [vmem:[%s10019 + $0x68] sm:$0xff]
  %v10034 = vld [vmem:[%s10019 + $0x70] sm:$0xff]
  %v10035 = vld [vmem:[%s10019 + $0x78] sm:$0xff]
  %v10036 = vld [vmem:[%s10019 + $0x80] sm:$0xff]
  %v10037 = vld [vmem:[%s10019 + $0x88] sm:$0xff]
  %v10038 = vld [vmem:[%s10019 + $0x90] sm:$0xff]
  %v10039 = vld [vmem:[%s10019 + $0x98] sm:$0xff]
  %v10040 = vld [vmem:[%s10019 + $0xa0] sm:$0xff]
  %v10041 = vld [vmem:[%s10019 + $0xa8] sm:$0xff]
  %v10042 = vld [vmem:[%s10019 + $0xb0] sm:$0xff]
  %v10043 = vld [vmem:[%s10019 + $0xb8] sm:$0xff]
  %v10044 = vld [vmem:[%s10019 + $0xc0] sm:$0xff]
  %v10045 = vld [vmem:[%s10019 + $0xc8] sm:$0xff]
  %v10046 = vld [vmem:[%s10019 + $0xd0] sm:$0xff]
  %v10047 = vld [vmem:[%s10019 + $0xd8] sm:$0xff]
  %v10048 = vld [vmem:[%s10019 + $0xe0] sm:$0xff]
  %v10049 = vld [vmem:[%s10019 + $0xe8] sm:$0xff]
  %v10050 = vld [vmem:[%s10019 + $0xf0] sm:$0xff]
  %v10051 = vld [vmem:[%s10019 + $0xf8] sm:$0xff]
  %v10052 = vld [vmem:[%s10019 + $0x100] sm:$0xff]
  %v10053 = vld [vmem:[%s10019 + $0x108] sm:$0xff]
  %v10054 = vld [vmem:[%s10019 + $0x110] sm:$0xff]
  %v10055 = vld [vmem:[%s10019 + $0x118] sm:$0xff]
  %v10056 = vld [vmem:[%s10019 + $0x120] sm:$0xff]
  %v10057 = vld [vmem:[%s10019 + $0x128] sm:$0xff]
  %v10058 = vld [vmem:[%s10019 + $0x130] sm:$0xff]
  %v10059 = vld [vmem:[%s10019 + $0x138] sm:$0xff]
  %v10060 = vld [vmem:[%s10019 + $0x140] sm:$0xff]
  %v10061 = vld [vmem:[%s10019 + $0x148] sm:$0xff]
  %v10062 = vld [vmem:[%s10019 + $0x150] sm:$0xff]
  %v10063 = vld [vmem:[%s10019 + $0x158] sm:$0xff]
  %v10064 = vld [vmem:[%s10019 + $0x160] sm:$0xff]
  %v10065 = vld [vmem:[%s10019 + $0x168] sm:$0xff]
  %v10066 = vld [vmem:[%s10019 + $0x170] sm:$0xff]
  %v10067 = vld [vmem:[%s10019 + $0x178] sm:$0xff]
  %v10068 = vld [vmem:[%s10019 + $0x180] sm:$0xff]
  %v10069 = vld [vmem:[%s10019 + $0x188] sm:$0xff]
  %v10070 = vld [vmem:[%s10019 + $0x190] sm:$0xff]
  %v10071 = vld [vmem:[%s10019 + $0x198] sm:$0xff]
  %v10072 = vld [vmem:[%s10019 + $0x1a0] sm:$0xff]
  %v10073 = vld [vmem:[%s10019 + $0x1a8] sm:$0xff]
  %v10074 = vld [vmem:[%s10019 + $0x1b0] sm:$0xff]
  %v10075 = vld [vmem:[%s10019 + $0x1b8] sm:$0xff]
  %v10076 = vld [vmem:[%s10019 + $0x1c0] sm:$0xff]
  %v10077 = vld [vmem:[%s10019 + $0x1c8] sm:$0xff]
  %v10078 = vld [vmem:[%s10019 + $0x1d0] sm:$0xff]
  %v10079 = vld [vmem:[%s10019 + $0x1d8] sm:$0xff]
  %v10080 = vld [vmem:[%s10019 + $0x1e0] sm:$0xff]
  %v10081 = vld [vmem:[%s10019 + $0x1e8] sm:$0xff]
  %v10082 = vld [vmem:[%s10019 + $0x1f0] sm:$0xff]
  %v10083 = vld [vmem:[%s10019 + $0x1f8] sm:$0xff]
  %v10084 = vld [vmem:[%s10019 + $0x200] sm:$0xff]
  %v10085 = vld [vmem:[%s10019 + $0x208] sm:$0xff]
  %v10086 = vld [vmem:[%s10019 + $0x210] sm:$0xff]
  %v10087 = vld [vmem:[%s10019 + $0x218] sm:$0xff]
  %v10088 = vld [vmem:[%s10019 + $0x220] sm:$0xff]
  %v10089 = vld [vmem:[%s10019 + $0x228] sm:$0xff]
  %v10090 = vld [vmem:[%s10019 + $0x230] sm:$0xff]
  %v10091 = vld [vmem:[%s10019 + $0x238] sm:$0xff]
  %v10092 = vld [vmem:[%s10019 + $0x240] sm:$0xff]
  %v10093 = vld [vmem:[%s10019 + $0x248] sm:$0xff]
  %v10094 = vld [vmem:[%s10019 + $0x250] sm:$0xff]
  %v10095 = vld [vmem:[%s10019 + $0x258] sm:$0xff]
  %v10096 = vld [vmem:[%s10019 + $0x260] sm:$0xff]
  %v10097 = vld [vmem:[%s10019 + $0x268] sm:$0xff]
  %v10098 = vld [vmem:[%s10019 + $0x270] sm:$0xff]
  %v10099 = vld [vmem:[%s10019 + $0x278] sm:$0xff]
  %v10100 = vld [vmem:[%s10019 + $0x280] sm:$0xff]
  %v10101 = vld [vmem:[%s10019 + $0x288] sm:$0xff]
  %v10102 = vld [vmem:[%s10019 + $0x290] sm:$0xff]
  %v10103 = vld [vmem:[%s10019 + $0x298] sm:$0xff]
  %v10104 = vld [vmem:[%s10019 + $0x2a0] sm:$0xff]
  %v10105 = vld [vmem:[%s10019 + $0x2a8] sm:$0xff]
  %v10106 = vld [vmem:[%s10019 + $0x2b0] sm:$0xff]
  %v10107 = vld [vmem:[%s10019 + $0x2b8] sm:$0xff]
  %v10108 = vld [vmem:[%s10019 + $0x2c0] sm:$0xff]
  %v10109 = vld [vmem:[%s10019 + $0x2c8] sm:$0xff]
  %v10110 = vld [vmem:[%s10019 + $0x2d0] sm:$0xff]
  %v10111 = vld [vmem:[%s10019 + $0x2d8] sm:$0xff]
  %v10112 = vld [vmem:[%s10019 + $0x2e0] sm:$0xff]
  %v10113 = vld [vmem:[%s10019 + $0x2e8] sm:$0xff]
  %v10114 = vld [vmem:[%s10019 + $0x2f0] sm:$0xff]
  %v10115 = vld [vmem:[%s10019 + $0x2f8] sm:$0xff]
  %v10116 = vld [vmem:[%s10019 + $0x300] sm:$0xff]
  %v10117 = vld [vmem:[%s10019 + $0x308] sm:$0xff]
  %v10118 = vld [vmem:[%s10019 + $0x310] sm:$0xff]
  %v10119 = vld [vmem:[%s10019 + $0x318] sm:$0xff]
  %v10122 = vunpack.c.l.b16 %v9913
  %v10123 = vunpack.c.h.b16 %v9913
  %v10124 = vunpack.c.l.b16 %v9914
  %v10125 = vunpack.c.h.b16 %v9914
  %v10126 = vpack.c.b16 %v10122, %v10122
  %v10127 = vpack.c.b16 %v10123, %v10123
  %v10128 = vpack.c.b16 %v10124, %v10124
  %v10129 = vpack.c.b16 %v10125, %v10125
  %v10233 = vunpack.c.l.b16 %v10020
  %v10234 = vunpack.c.h.b16 %v10020
  %v10235 = vunpack.c.l.b16 %v10021
  %v10236 = vunpack.c.h.b16 %v10021
  %v10237 = vunpack.c.l.b16 %v10022
  %v10238 = vunpack.c.h.b16 %v10022
  %v10239 = vunpack.c.l.b16 %v10023
  %v10240 = vunpack.c.h.b16 %v10023
  %v10241 = vunpack.c.l.b16 %v10024
  %v10242 = vunpack.c.h.b16 %v10024
  %v10243 = vunpack.c.l.b16 %v10025
  %v10244 = vunpack.c.h.b16 %v10025
  %v10245 = vunpack.c.l.b16 %v10026
  %v10246 = vunpack.c.h.b16 %v10026
  %v10247 = vunpack.c.l.b16 %v10027
  %v10248 = vunpack.c.h.b16 %v10027
  %v10249 = vunpack.c.l.b16 %v10028
  %v10250 = vunpack.c.h.b16 %v10028
  %v10251 = vunpack.c.l.b16 %v10029
  %v10252 = vunpack.c.h.b16 %v10029
  %v10253 = vunpack.c.l.b16 %v10030
  %v10254 = vunpack.c.h.b16 %v10030
  %v10255 = vunpack.c.l.b16 %v10031
  %v10256 = vunpack.c.h.b16 %v10031
  %v10257 = vunpack.c.l.b16 %v10032
  %v10258 = vunpack.c.h.b16 %v10032
  %v10259 = vunpack.c.l.b16 %v10033
  %v10260 = vunpack.c.h.b16 %v10033
  %v10261 = vunpack.c.l.b16 %v10034
  %v10262 = vunpack.c.h.b16 %v10034
  %v10263 = vunpack.c.l.b16 %v10035
  %v10264 = vunpack.c.h.b16 %v10035
  %v10265 = vunpack.c.l.b16 %v10036
  %v10266 = vunpack.c.h.b16 %v10036
  %v10267 = vunpack.c.l.b16 %v10037
  %v10268 = vunpack.c.h.b16 %v10037
  %v10269 = vunpack.c.l.b16 %v10038
  %v10270 = vunpack.c.h.b16 %v10038
  %v10271 = vunpack.c.l.b16 %v10039
  %v10272 = vunpack.c.h.b16 %v10039
  %v10273 = vunpack.c.l.b16 %v10040
  %v10274 = vunpack.c.h.b16 %v10040
  %v10275 = vunpack.c.l.b16 %v10041
  %v10276 = vunpack.c.h.b16 %v10041
  %v10277 = vunpack.c.l.b16 %v10042
  %v10278 = vunpack.c.h.b16 %v10042
  %v10279 = vunpack.c.l.b16 %v10043
  %v10280 = vunpack.c.h.b16 %v10043
  %v10281 = vunpack.c.l.b16 %v10044
  %v10282 = vunpack.c.h.b16 %v10044
  %v10283 = vunpack.c.l.b16 %v10045
  %v10284 = vunpack.c.h.b16 %v10045
  %v10285 = vunpack.c.l.b16 %v10046
  %v10286 = vunpack.c.h.b16 %v10046
  %v10287 = vunpack.c.l.b16 %v10047
  %v10288 = vunpack.c.h.b16 %v10047
  %v10289 = vunpack.c.l.b16 %v10048
  %v10290 = vunpack.c.h.b16 %v10048
  %v10291 = vunpack.c.l.b16 %v10049
  %v10292 = vunpack.c.h.b16 %v10049
  %v10293 = vunpack.c.l.b16 %v10050
  %v10294 = vunpack.c.h.b16 %v10050
  %v10295 = vunpack.c.l.b16 %v10051
  %v10296 = vunpack.c.h.b16 %v10051
  %v10297 = vunpack.c.l.b16 %v10052
  %v10298 = vunpack.c.h.b16 %v10052
  %v10299 = vunpack.c.l.b16 %v10053
  %v10300 = vunpack.c.h.b16 %v10053
  %v10301 = vunpack.c.l.b16 %v10054
  %v10302 = vunpack.c.h.b16 %v10054
  %v10303 = vunpack.c.l.b16 %v10055
  %v10304 = vunpack.c.h.b16 %v10055
  %v10305 = vunpack.c.l.b16 %v10056
  %v10306 = vunpack.c.h.b16 %v10056
  %v10307 = vunpack.c.l.b16 %v10057
  %v10308 = vunpack.c.h.b16 %v10057
  %v10309 = vunpack.c.l.b16 %v10058
  %v10310 = vunpack.c.h.b16 %v10058
  %v10311 = vunpack.c.l.b16 %v10059
  %v10312 = vunpack.c.h.b16 %v10059
  %v10313 = vunpack.c.l.b16 %v10060
  %v10314 = vunpack.c.h.b16 %v10060
  %v10315 = vunpack.c.l.b16 %v10061
  %v10316 = vunpack.c.h.b16 %v10061
  %v10317 = vunpack.c.l.b16 %v10062
  %v10318 = vunpack.c.h.b16 %v10062
  %v10319 = vunpack.c.l.b16 %v10063
  %v10320 = vunpack.c.h.b16 %v10063
  %v10321 = vunpack.c.l.b16 %v10064
  %v10322 = vunpack.c.h.b16 %v10064
  %v10323 = vunpack.c.l.b16 %v10065
  %v10324 = vunpack.c.h.b16 %v10065
  %v10325 = vunpack.c.l.b16 %v10066
  %v10326 = vunpack.c.h.b16 %v10066
  %v10327 = vunpack.c.l.b16 %v10067
  %v10328 = vunpack.c.h.b16 %v10067
  %v10329 = vunpack.c.l.b16 %v10068
  %v10330 = vunpack.c.h.b16 %v10068
  %v10331 = vunpack.c.l.b16 %v10069
  %v10332 = vunpack.c.h.b16 %v10069
  %v10333 = vunpack.c.l.b16 %v10070
  %v10334 = vunpack.c.h.b16 %v10070
  %v10335 = vunpack.c.l.b16 %v10071
  %v10336 = vunpack.c.h.b16 %v10071
  %v10337 = vunpack.c.l.b16 %v10072
  %v10338 = vunpack.c.h.b16 %v10072
  %v10339 = vunpack.c.l.b16 %v10073
  %v10340 = vunpack.c.h.b16 %v10073
  %v10341 = vunpack.c.l.b16 %v10074
  %v10342 = vunpack.c.h.b16 %v10074
  %v10343 = vunpack.c.l.b16 %v10075
  %v10344 = vunpack.c.h.b16 %v10075
  %v10345 = vunpack.c.l.b16 %v10076
  %v10346 = vunpack.c.h.b16 %v10076
  %v10347 = vunpack.c.l.b16 %v10077
  %v10348 = vunpack.c.h.b16 %v10077
  %v10349 = vunpack.c.l.b16 %v10078
  %v10350 = vunpack.c.h.b16 %v10078
  %v10351 = vunpack.c.l.b16 %v10079
  %v10352 = vunpack.c.h.b16 %v10079
  %v10353 = vunpack.c.l.b16 %v10080
  %v10354 = vunpack.c.h.b16 %v10080
  %v10355 = vunpack.c.l.b16 %v10081
  %v10356 = vunpack.c.h.b16 %v10081
  %v10357 = vunpack.c.l.b16 %v10082
  %v10358 = vunpack.c.h.b16 %v10082
  %v10359 = vunpack.c.l.b16 %v10083
  %v10360 = vunpack.c.h.b16 %v10083
  %v10361 = vunpack.c.l.b16 %v10084
  %v10362 = vunpack.c.h.b16 %v10084
  %v10363 = vunpack.c.l.b16 %v10085
  %v10364 = vunpack.c.h.b16 %v10085
  %v10365 = vunpack.c.l.b16 %v10086
  %v10366 = vunpack.c.h.b16 %v10086
  %v10367 = vunpack.c.l.b16 %v10087
  %v10368 = vunpack.c.h.b16 %v10087
  %v10369 = vunpack.c.l.b16 %v10088
  %v10370 = vunpack.c.h.b16 %v10088
  %v10371 = vunpack.c.l.b16 %v10089
  %v10372 = vunpack.c.h.b16 %v10089
  %v10373 = vunpack.c.l.b16 %v10090
  %v10374 = vunpack.c.h.b16 %v10090
  %v10375 = vunpack.c.l.b16 %v10091
  %v10376 = vunpack.c.h.b16 %v10091
  %v10377 = vunpack.c.l.b16 %v10092
  %v10378 = vunpack.c.h.b16 %v10092
  %v10379 = vunpack.c.l.b16 %v10093
  %v10380 = vunpack.c.h.b16 %v10093
  %v10381 = vunpack.c.l.b16 %v10094
  %v10382 = vunpack.c.h.b16 %v10094
  %v10383 = vunpack.c.l.b16 %v10095
  %v10384 = vunpack.c.h.b16 %v10095
  %v10385 = vunpack.c.l.b16 %v10096
  %v10386 = vunpack.c.h.b16 %v10096
  %v10387 = vunpack.c.l.b16 %v10097
  %v10388 = vunpack.c.h.b16 %v10097
  %v10389 = vunpack.c.l.b16 %v10098
  %v10390 = vunpack.c.h.b16 %v10098
  %v10391 = vunpack.c.l.b16 %v10099
  %v10392 = vunpack.c.h.b16 %v10099
  %v10393 = vunpack.c.l.b16 %v10100
  %v10394 = vunpack.c.h.b16 %v10100
  %v10395 = vunpack.c.l.b16 %v10101
  %v10396 = vunpack.c.h.b16 %v10101
  %v10397 = vunpack.c.l.b16 %v10102
  %v10398 = vunpack.c.h.b16 %v10102
  %v10399 = vunpack.c.l.b16 %v10103
  %v10400 = vunpack.c.h.b16 %v10103
  %v10401 = vunpack.c.l.b16 %v10104
  %v10402 = vunpack.c.h.b16 %v10104
  %v10403 = vunpack.c.l.b16 %v10105
  %v10404 = vunpack.c.h.b16 %v10105
  %v10405 = vunpack.c.l.b16 %v10106
  %v10406 = vunpack.c.h.b16 %v10106
  %v10407 = vunpack.c.l.b16 %v10107
  %v10408 = vunpack.c.h.b16 %v10107
  %v10409 = vunpack.c.l.b16 %v10108
  %v10410 = vunpack.c.h.b16 %v10108
  %v10411 = vunpack.c.l.b16 %v10109
  %v10412 = vunpack.c.h.b16 %v10109
  %v10413 = vunpack.c.l.b16 %v10110
  %v10414 = vunpack.c.h.b16 %v10110
  %v10415 = vunpack.c.l.b16 %v10111
  %v10416 = vunpack.c.h.b16 %v10111
  %v10417 = vunpack.c.l.b16 %v10112
  %v10418 = vunpack.c.h.b16 %v10112
  %v10419 = vunpack.c.l.b16 %v10113
  %v10420 = vunpack.c.h.b16 %v10113
  %v10421 = vunpack.c.l.b16 %v10114
  %v10422 = vunpack.c.h.b16 %v10114
  %v10423 = vunpack.c.l.b16 %v10115
  %v10424 = vunpack.c.h.b16 %v10115
  %v10425 = vunpack.c.l.b16 %v10116
  %v10426 = vunpack.c.h.b16 %v10116
  %v10427 = vunpack.c.l.b16 %v10117
  %v10428 = vunpack.c.h.b16 %v10117
  %v10429 = vunpack.c.l.b16 %v10118
  %v10430 = vunpack.c.h.b16 %v10118
  %v10431 = vunpack.c.l.b16 %v10119
  %v10432 = vunpack.c.h.b16 %v10119
  %v10433 = vpack.c.b16 %v10237, %v10233
  %v10434 = vpack.c.b16 %v10238, %v10234
  %v10435 = vpack.c.b16 %v10239, %v10235
  %v10436 = vpack.c.b16 %v10240, %v10236
  %v10437 = vpack.c.b16 %v10245, %v10241
  %v10438 = vpack.c.b16 %v10246, %v10242
  %v10439 = vpack.c.b16 %v10247, %v10243
  %v10440 = vpack.c.b16 %v10248, %v10244
  %v10441 = vpack.c.b16 %v10253, %v10249
  %v10442 = vpack.c.b16 %v10254, %v10250
  %v10443 = vpack.c.b16 %v10255, %v10251
  %v10444 = vpack.c.b16 %v10256, %v10252
  %v10445 = vpack.c.b16 %v10261, %v10257
  %v10446 = vpack.c.b16 %v10262, %v10258
  %v10447 = vpack.c.b16 %v10263, %v10259
  %v10448 = vpack.c.b16 %v10264, %v10260
  %v10449 = vpack.c.b16 %v10269, %v10265
  %v10450 = vpack.c.b16 %v10270, %v10266
  %v10451 = vpack.c.b16 %v10271, %v10267
  %v10452 = vpack.c.b16 %v10272, %v10268
  %v10453 = vpack.c.b16 %v10277, %v10273
  %v10454 = vpack.c.b16 %v10278, %v10274
  %v10455 = vpack.c.b16 %v10279, %v10275
  %v10456 = vpack.c.b16 %v10280, %v10276
  %v10457 = vpack.c.b16 %v10285, %v10281
  %v10458 = vpack.c.b16 %v10286, %v10282
  %v10459 = vpack.c.b16 %v10287, %v10283
  %v10460 = vpack.c.b16 %v10288, %v10284
  %v10461 = vpack.c.b16 %v10293, %v10289
  %v10462 = vpack.c.b16 %v10294, %v10290
  %v10463 = vpack.c.b16 %v10295, %v10291
  %v10464 = vpack.c.b16 %v10296, %v10292
  %v10465 = vpack.c.b16 %v10301, %v10297
  %v10466 = vpack.c.b16 %v10302, %v10298
  %v10467 = vpack.c.b16 %v10303, %v10299
  %v10468 = vpack.c.b16 %v10304, %v10300
  %v10469 = vpack.c.b16 %v10309, %v10305
  %v10470 = vpack.c.b16 %v10310, %v10306
  %v10471 = vpack.c.b16 %v10311, %v10307
  %v10472 = vpack.c.b16 %v10312, %v10308
  %v10473 = vpack.c.b16 %v10317, %v10313
  %v10474 = vpack.c.b16 %v10318, %v10314
  %v10475 = vpack.c.b16 %v10319, %v10315
  %v10476 = vpack.c.b16 %v10320, %v10316
  %v10477 = vpack.c.b16 %v10325, %v10321
  %v10478 = vpack.c.b16 %v10326, %v10322
  %v10479 = vpack.c.b16 %v10327, %v10323
  %v10480 = vpack.c.b16 %v10328, %v10324
  %v10481 = vpack.c.b16 %v10333, %v10329
  %v10482 = vpack.c.b16 %v10334, %v10330
  %v10483 = vpack.c.b16 %v10335, %v10331
  %v10484 = vpack.c.b16 %v10336, %v10332
  %v10485 = vpack.c.b16 %v10341, %v10337
  %v10486 = vpack.c.b16 %v10342, %v10338
  %v10487 = vpack.c.b16 %v10343, %v10339
  %v10488 = vpack.c.b16 %v10344, %v10340
  %v10489 = vpack.c.b16 %v10349, %v10345
  %v10490 = vpack.c.b16 %v10350, %v10346
  %v10491 = vpack.c.b16 %v10351, %v10347
  %v10492 = vpack.c.b16 %v10352, %v10348
  %v10493 = vpack.c.b16 %v10357, %v10353
  %v10494 = vpack.c.b16 %v10358, %v10354
  %v10495 = vpack.c.b16 %v10359, %v10355
  %v10496 = vpack.c.b16 %v10360, %v10356
  %v10497 = vpack.c.b16 %v10365, %v10361
  %v10498 = vpack.c.b16 %v10366, %v10362
  %v10499 = vpack.c.b16 %v10367, %v10363
  %v10500 = vpack.c.b16 %v10368, %v10364
  %v10501 = vpack.c.b16 %v10373, %v10369
  %v10502 = vpack.c.b16 %v10374, %v10370
  %v10503 = vpack.c.b16 %v10375, %v10371
  %v10504 = vpack.c.b16 %v10376, %v10372
  %v10505 = vpack.c.b16 %v10381, %v10377
  %v10506 = vpack.c.b16 %v10382, %v10378
  %v10507 = vpack.c.b16 %v10383, %v10379
  %v10508 = vpack.c.b16 %v10384, %v10380
  %v10509 = vpack.c.b16 %v10389, %v10385
  %v10510 = vpack.c.b16 %v10390, %v10386
  %v10511 = vpack.c.b16 %v10391, %v10387
  %v10512 = vpack.c.b16 %v10392, %v10388
  %v10513 = vpack.c.b16 %v10397, %v10393
  %v10514 = vpack.c.b16 %v10398, %v10394
  %v10515 = vpack.c.b16 %v10399, %v10395
  %v10516 = vpack.c.b16 %v10400, %v10396
  %v10517 = vpack.c.b16 %v10405, %v10401
  %v10518 = vpack.c.b16 %v10406, %v10402
  %v10519 = vpack.c.b16 %v10407, %v10403
  %v10520 = vpack.c.b16 %v10408, %v10404
  %v10521 = vpack.c.b16 %v10413, %v10409
  %v10522 = vpack.c.b16 %v10414, %v10410
  %v10523 = vpack.c.b16 %v10415, %v10411
  %v10524 = vpack.c.b16 %v10416, %v10412
  %v10525 = vpack.c.b16 %v10421, %v10417
  %v10526 = vpack.c.b16 %v10422, %v10418
  %v10527 = vpack.c.b16 %v10423, %v10419
  %v10528 = vpack.c.b16 %v10424, %v10420
  %v10529 = vpack.c.b16 %v10429, %v10425
  %v10530 = vpack.c.b16 %v10430, %v10426
  %v10531 = vpack.c.b16 %v10431, %v10427
  %v10532 = vpack.c.b16 %v10432, %v10428
  %vm10629 = vcmask 121856
  %v10631 = vsel %vm10629, %v10129, 0
  %v10634 = vand.u32 %v10529, %v4223
  %v10637 = vand.u32 %v10530, %v4223
  %v10640 = vand.u32 %v10531, %v4223
  %v10643 = vand.u32 %v10532, %v4223
  %10645 = vmatpush.bf16.msra.mxu0 %v10461
  %10646 = vmatpush.bf16.msra.mxu0 %v10457
  %10647 = vmatpush.bf16.msra.mxu0 %v10453
  %10648 = vmatpush.bf16.msra.mxu0 %v10449
  %10649 = vmatpush.bf16.msra.mxu0 %v10445
  %10650 = vmatpush.bf16.msra.mxu0 %v10441
  %10651 = vmatpush.bf16.msra.mxu0 %v10437
  %10652 = vmatpush.bf16.msra.mxu0 %v10433
  %10653 = vmatmul.bf16.gmra.mxu0 %v10126
  %v10654 = vpop.f32.mrf.mxu0
  %v10655 = vadd.f32 0.0, %v10654
  %v10656 = vpop.f32.mrf.mxu0
  %10657 = vdwg.mxu0
  %10658 = vmatpush.bf16.msra.mxu0 %v10493
  %10659 = vmatpush.bf16.msra.mxu0 %v10489
  %10660 = vmatpush.bf16.msra.mxu0 %v10485
  %10661 = vmatpush.bf16.msra.mxu0 %v10481
  %10662 = vmatpush.bf16.msra.mxu0 %v10477
  %10663 = vmatpush.bf16.msra.mxu0 %v10473
  %10664 = vmatpush.bf16.msra.mxu0 %v10469
  %10665 = vmatpush.bf16.msra.mxu0 %v10465
  %10666 = vmatmul.bf16.gmra.mxu0 %v10127
  %v10667 = vpop.f32.mrf.mxu0
  %v10668 = vadd.f32 %v10655, %v10667
  %v10669 = vpop.f32.mrf.mxu0
  %10670 = vdwg.mxu0
  %10671 = vmatpush.bf16.msra.mxu0 %v10525
  %10672 = vmatpush.bf16.msra.mxu0 %v10521
  %10673 = vmatpush.bf16.msra.mxu0 %v10517
  %10674 = vmatpush.bf16.msra.mxu0 %v10513
  %10675 = vmatpush.bf16.msra.mxu0 %v10509
  %10676 = vmatpush.bf16.msra.mxu0 %v10505
  %10677 = vmatpush.bf16.msra.mxu0 %v10501
  %10678 = vmatpush.bf16.msra.mxu0 %v10497
  %10679 = vmatmul.bf16.gmra.mxu0 %v10128
  %v10680 = vpop.f32.mrf.mxu0
  %v10681 = vadd.f32 %v10668, %v10680
  %v10682 = vpop.f32.mrf.mxu0
  %10683 = vdwg.mxu0
  %10684 = vmatpush.bf16.msra.mxu0 0
  %10685 = vmatpush.bf16.msra.mxu0 0
  %10686 = vmatpush.bf16.msra.mxu0 0
  %10687 = vmatpush.bf16.msra.mxu0 0
  %10688 = vmatpush.bf16.msra.mxu0 0
  %10689 = vmatpush.bf16.msra.mxu0 0
  %10690 = vmatpush.bf16.msra.mxu0 0
  %10691 = vmatpush.bf16.msra.mxu0 %v10634
  %10692 = vmatmul.bf16.gmra.mxu0 %v10631
  %v10693 = vpop.f32.mrf.mxu0
  %v10694 = vadd.f32 %v10681, %v10693
  %v10695 = vpop.f32.mrf.mxu0
  %10696 = vdwg.mxu0
  %10697 = vmatpush.bf16.msra.mxu0 %v10462
  %10698 = vmatpush.bf16.msra.mxu0 %v10458
  %10699 = vmatpush.bf16.msra.mxu0 %v10454
  %10700 = vmatpush.bf16.msra.mxu0 %v10450
  %10701 = vmatpush.bf16.msra.mxu0 %v10446
  %10702 = vmatpush.bf16.msra.mxu0 %v10442
  %10703 = vmatpush.bf16.msra.mxu0 %v10438
  %10704 = vmatpush.bf16.msra.mxu0 %v10434
  %10705 = vmatmul.bf16.gmra.mxu0 %v10126
  %v10706 = vpop.f32.mrf.mxu0
  %v10707 = vadd.f32 0.0, %v10706
  %v10708 = vpop.f32.mrf.mxu0
  %10709 = vdwg.mxu0
  %10710 = vmatpush.bf16.msra.mxu0 %v10494
  %10711 = vmatpush.bf16.msra.mxu0 %v10490
  %10712 = vmatpush.bf16.msra.mxu0 %v10486
  %10713 = vmatpush.bf16.msra.mxu0 %v10482
  %10714 = vmatpush.bf16.msra.mxu0 %v10478
  %10715 = vmatpush.bf16.msra.mxu0 %v10474
  %10716 = vmatpush.bf16.msra.mxu0 %v10470
  %10717 = vmatpush.bf16.msra.mxu0 %v10466
  %10718 = vmatmul.bf16.gmra.mxu0 %v10127
  %v10719 = vpop.f32.mrf.mxu0
  %v10720 = vadd.f32 %v10707, %v10719
  %v10721 = vpop.f32.mrf.mxu0
  %10722 = vdwg.mxu0
  %10723 = vmatpush.bf16.msra.mxu0 %v10526
  %10724 = vmatpush.bf16.msra.mxu0 %v10522
  %10725 = vmatpush.bf16.msra.mxu0 %v10518
  %10726 = vmatpush.bf16.msra.mxu0 %v10514
  %10727 = vmatpush.bf16.msra.mxu0 %v10510
  %10728 = vmatpush.bf16.msra.mxu0 %v10506
  %10729 = vmatpush.bf16.msra.mxu0 %v10502
  %10730 = vmatpush.bf16.msra.mxu0 %v10498
  %10731 = vmatmul.bf16.gmra.mxu0 %v10128
  %v10732 = vpop.f32.mrf.mxu0
  %v10733 = vadd.f32 %v10720, %v10732
  %v10734 = vpop.f32.mrf.mxu0
  %10735 = vdwg.mxu0
  %10736 = vmatpush.bf16.msra.mxu0 0
  %10737 = vmatpush.bf16.msra.mxu0 0
  %10738 = vmatpush.bf16.msra.mxu0 0
  %10739 = vmatpush.bf16.msra.mxu0 0
  %10740 = vmatpush.bf16.msra.mxu0 0
  %10741 = vmatpush.bf16.msra.mxu0 0
  %10742 = vmatpush.bf16.msra.mxu0 0
  %10743 = vmatpush.bf16.msra.mxu0 %v10637
  %10744 = vmatmul.bf16.gmra.mxu0 %v10631
  %v10745 = vpop.f32.mrf.mxu0
  %v10746 = vadd.f32 %v10733, %v10745
  %v10747 = vpop.f32.mrf.mxu0
  %10748 = vdwg.mxu0
  %10749 = vmatpush.bf16.msra.mxu0 %v10463
  %10750 = vmatpush.bf16.msra.mxu0 %v10459
  %10751 = vmatpush.bf16.msra.mxu0 %v10455
  %10752 = vmatpush.bf16.msra.mxu0 %v10451
  %10753 = vmatpush.bf16.msra.mxu0 %v10447
  %10754 = vmatpush.bf16.msra.mxu0 %v10443
  %10755 = vmatpush.bf16.msra.mxu0 %v10439
  %10756 = vmatpush.bf16.msra.mxu0 %v10435
  %10757 = vmatmul.bf16.gmra.mxu0 %v10126
  %v10758 = vpop.f32.mrf.mxu0
  %v10759 = vadd.f32 0.0, %v10758
  %v10760 = vpop.f32.mrf.mxu0
  %10761 = vdwg.mxu0
  %10762 = vmatpush.bf16.msra.mxu0 %v10495
  %10763 = vmatpush.bf16.msra.mxu0 %v10491
  %10764 = vmatpush.bf16.msra.mxu0 %v10487
  %10765 = vmatpush.bf16.msra.mxu0 %v10483
  %10766 = vmatpush.bf16.msra.mxu0 %v10479
  %10767 = vmatpush.bf16.msra.mxu0 %v10475
  %10768 = vmatpush.bf16.msra.mxu0 %v10471
  %10769 = vmatpush.bf16.msra.mxu0 %v10467
  %10770 = vmatmul.bf16.gmra.mxu0 %v10127
  %v10771 = vpop.f32.mrf.mxu0
  %v10772 = vadd.f32 %v10759, %v10771
  %v10773 = vpop.f32.mrf.mxu0
  %10774 = vdwg.mxu0
  %10775 = vmatpush.bf16.msra.mxu0 %v10527
  %10776 = vmatpush.bf16.msra.mxu0 %v10523
  %10777 = vmatpush.bf16.msra.mxu0 %v10519
  %10778 = vmatpush.bf16.msra.mxu0 %v10515
  %10779 = vmatpush.bf16.msra.mxu0 %v10511
  %10780 = vmatpush.bf16.msra.mxu0 %v10507
  %10781 = vmatpush.bf16.msra.mxu0 %v10503
  %10782 = vmatpush.bf16.msra.mxu0 %v10499
  %10783 = vmatmul.bf16.gmra.mxu0 %v10128
  %v10784 = vpop.f32.mrf.mxu0
  %v10785 = vadd.f32 %v10772, %v10784
  %v10786 = vpop.f32.mrf.mxu0
  %10787 = vdwg.mxu0
  %10788 = vmatpush.bf16.msra.mxu0 0
  %10789 = vmatpush.bf16.msra.mxu0 0
  %10790 = vmatpush.bf16.msra.mxu0 0
  %10791 = vmatpush.bf16.msra.mxu0 0
  %10792 = vmatpush.bf16.msra.mxu0 0
  %10793 = vmatpush.bf16.msra.mxu0 0
  %10794 = vmatpush.bf16.msra.mxu0 0
  %10795 = vmatpush.bf16.msra.mxu0 %v10640
  %10796 = vmatmul.bf16.gmra.mxu0 %v10631
  %v10797 = vpop.f32.mrf.mxu0
  %v10798 = vadd.f32 %v10785, %v10797
  %v10799 = vpop.f32.mrf.mxu0
  %10800 = vdwg.mxu0
  %10801 = vmatpush.bf16.msra.mxu0 %v10464
  %10802 = vmatpush.bf16.msra.mxu0 %v10460
  %10803 = vmatpush.bf16.msra.mxu0 %v10456
  %10804 = vmatpush.bf16.msra.mxu0 %v10452
  %10805 = vmatpush.bf16.msra.mxu0 %v10448
  %10806 = vmatpush.bf16.msra.mxu0 %v10444
  %10807 = vmatpush.bf16.msra.mxu0 %v10440
  %10808 = vmatpush.bf16.msra.mxu0 %v10436
  %10809 = vmatmul.bf16.gmra.mxu0 %v10126
  %v10810 = vpop.f32.mrf.mxu0
  %v10811 = vadd.f32 0.0, %v10810
  %v10812 = vpop.f32.mrf.mxu0
  %10813 = vdwg.mxu0
  %10814 = vmatpush.bf16.msra.mxu0 %v10496
  %10815 = vmatpush.bf16.msra.mxu0 %v10492
  %10816 = vmatpush.bf16.msra.mxu0 %v10488
  %10817 = vmatpush.bf16.msra.mxu0 %v10484
  %10818 = vmatpush.bf16.msra.mxu0 %v10480
  %10819 = vmatpush.bf16.msra.mxu0 %v10476
  %10820 = vmatpush.bf16.msra.mxu0 %v10472
  %10821 = vmatpush.bf16.msra.mxu0 %v10468
  %10822 = vmatmul.bf16.gmra.mxu0 %v10127
  %v10823 = vpop.f32.mrf.mxu0
  %v10824 = vadd.f32 %v10811, %v10823
  %v10825 = vpop.f32.mrf.mxu0
  %10826 = vdwg.mxu0
  %10827 = vmatpush.bf16.msra.mxu0 %v10528
  %10828 = vmatpush.bf16.msra.mxu0 %v10524
  %10829 = vmatpush.bf16.msra.mxu0 %v10520
  %10830 = vmatpush.bf16.msra.mxu0 %v10516
  %10831 = vmatpush.bf16.msra.mxu0 %v10512
  %10832 = vmatpush.bf16.msra.mxu0 %v10508
  %10833 = vmatpush.bf16.msra.mxu0 %v10504
  %10834 = vmatpush.bf16.msra.mxu0 %v10500
  %10835 = vmatmul.bf16.gmra.mxu0 %v10128
  %v10836 = vpop.f32.mrf.mxu0
  %v10837 = vadd.f32 %v10824, %v10836
  %v10838 = vpop.f32.mrf.mxu0
  %10839 = vdwg.mxu0
  %10840 = vmatpush.bf16.msra.mxu0 0
  %10841 = vmatpush.bf16.msra.mxu0 0
  %10842 = vmatpush.bf16.msra.mxu0 0
  %10843 = vmatpush.bf16.msra.mxu0 0
  %10844 = vmatpush.bf16.msra.mxu0 0
  %10845 = vmatpush.bf16.msra.mxu0 0
  %10846 = vmatpush.bf16.msra.mxu0 0
  %10847 = vmatpush.bf16.msra.mxu0 %v10643
  %10848 = vmatmul.bf16.gmra.mxu0 %v10631
  %v10849 = vpop.f32.mrf.mxu0
  %v10850 = vadd.f32 %v10837, %v10849
  %v10851 = vpop.f32.mrf.mxu0
  %10852 = vdwg.mxu0
  %v10855 = vunpack.c.l.b16 %v9911
  %v10856 = vunpack.c.h.b16 %v9911
  %v10857 = vunpack.c.l.b16 %v9912
  %v10858 = vunpack.c.h.b16 %v9912
  %v10859 = vpack.c.b16 %v10855, %v10855
  %v10860 = vpack.c.b16 %v10856, %v10856
  %v10861 = vpack.c.b16 %v10857, %v10857
  %v10862 = vpack.c.b16 %v10858, %v10858
  %v10966 = vunpack.c.l.b16 %v9919
  %v10967 = vunpack.c.h.b16 %v9919
  %v10968 = vunpack.c.l.b16 %v9920
  %v10969 = vunpack.c.h.b16 %v9920
  %v10970 = vunpack.c.l.b16 %v9921
  %v10971 = vunpack.c.h.b16 %v9921
  %v10972 = vunpack.c.l.b16 %v9922
  %v10973 = vunpack.c.h.b16 %v9922
  %v10974 = vunpack.c.l.b16 %v9923
  %v10975 = vunpack.c.h.b16 %v9923
  %v10976 = vunpack.c.l.b16 %v9924
  %v10977 = vunpack.c.h.b16 %v9924
  %v10978 = vunpack.c.l.b16 %v9925
  %v10979 = vunpack.c.h.b16 %v9925
  %v10980 = vunpack.c.l.b16 %v9926
  %v10981 = vunpack.c.h.b16 %v9926
  %v10982 = vunpack.c.l.b16 %v9927
  %v10983 = vunpack.c.h.b16 %v9927
  %v10984 = vunpack.c.l.b16 %v9928
  %v10985 = vunpack.c.h.b16 %v9928
  %v10986 = vunpack.c.l.b16 %v9929
  %v10987 = vunpack.c.h.b16 %v9929
  %v10988 = vunpack.c.l.b16 %v9930
  %v10989 = vunpack.c.h.b16 %v9930
  %v10990 = vunpack.c.l.b16 %v9931
  %v10991 = vunpack.c.h.b16 %v9931
  %v10992 = vunpack.c.l.b16 %v9932
  %v10993 = vunpack.c.h.b16 %v9932
  %v10994 = vunpack.c.l.b16 %v9933
  %v10995 = vunpack.c.h.b16 %v9933
  %v10996 = vunpack.c.l.b16 %v9934
  %v10997 = vunpack.c.h.b16 %v9934
  %v10998 = vunpack.c.l.b16 %v9935
  %v10999 = vunpack.c.h.b16 %v9935
  %v11000 = vunpack.c.l.b16 %v9936
  %v11001 = vunpack.c.h.b16 %v9936
  %v11002 = vunpack.c.l.b16 %v9937
  %v11003 = vunpack.c.h.b16 %v9937
  %v11004 = vunpack.c.l.b16 %v9938
  %v11005 = vunpack.c.h.b16 %v9938
  %v11006 = vunpack.c.l.b16 %v9939
  %v11007 = vunpack.c.h.b16 %v9939
  %v11008 = vunpack.c.l.b16 %v9940
  %v11009 = vunpack.c.h.b16 %v9940
  %v11010 = vunpack.c.l.b16 %v9941
  %v11011 = vunpack.c.h.b16 %v9941
  %v11012 = vunpack.c.l.b16 %v9942
  %v11013 = vunpack.c.h.b16 %v9942
  %v11014 = vunpack.c.l.b16 %v9943
  %v11015 = vunpack.c.h.b16 %v9943
  %v11016 = vunpack.c.l.b16 %v9944
  %v11017 = vunpack.c.h.b16 %v9944
  %v11018 = vunpack.c.l.b16 %v9945
  %v11019 = vunpack.c.h.b16 %v9945
  %v11020 = vunpack.c.l.b16 %v9946
  %v11021 = vunpack.c.h.b16 %v9946
  %v11022 = vunpack.c.l.b16 %v9947
  %v11023 = vunpack.c.h.b16 %v9947
  %v11024 = vunpack.c.l.b16 %v9948
  %v11025 = vunpack.c.h.b16 %v9948
  %v11026 = vunpack.c.l.b16 %v9949
  %v11027 = vunpack.c.h.b16 %v9949
  %v11028 = vunpack.c.l.b16 %v9950
  %v11029 = vunpack.c.h.b16 %v9950
  %v11030 = vunpack.c.l.b16 %v9951
  %v11031 = vunpack.c.h.b16 %v9951
  %v11032 = vunpack.c.l.b16 %v9952
  %v11033 = vunpack.c.h.b16 %v9952
  %v11034 = vunpack.c.l.b16 %v9953
  %v11035 = vunpack.c.h.b16 %v9953
  %v11036 = vunpack.c.l.b16 %v9954
  %v11037 = vunpack.c.h.b16 %v9954
  %v11038 = vunpack.c.l.b16 %v9955
  %v11039 = vunpack.c.h.b16 %v9955
  %v11040 = vunpack.c.l.b16 %v9956
  %v11041 = vunpack.c.h.b16 %v9956
  %v11042 = vunpack.c.l.b16 %v9957
  %v11043 = vunpack.c.h.b16 %v9957
  %v11044 = vunpack.c.l.b16 %v9958
  %v11045 = vunpack.c.h.b16 %v9958
  %v11046 = vunpack.c.l.b16 %v9959
  %v11047 = vunpack.c.h.b16 %v9959
  %v11048 = vunpack.c.l.b16 %v9960
  %v11049 = vunpack.c.h.b16 %v9960
  %v11050 = vunpack.c.l.b16 %v9961
  %v11051 = vunpack.c.h.b16 %v9961
  %v11052 = vunpack.c.l.b16 %v9962
  %v11053 = vunpack.c.h.b16 %v9962
  %v11054 = vunpack.c.l.b16 %v9963
  %v11055 = vunpack.c.h.b16 %v9963
  %v11056 = vunpack.c.l.b16 %v9964
  %v11057 = vunpack.c.h.b16 %v9964
  %v11058 = vunpack.c.l.b16 %v9965
  %v11059 = vunpack.c.h.b16 %v9965
  %v11060 = vunpack.c.l.b16 %v9966
  %v11061 = vunpack.c.h.b16 %v9966
  %v11062 = vunpack.c.l.b16 %v9967
  %v11063 = vunpack.c.h.b16 %v9967
  %v11064 = vunpack.c.l.b16 %v9968
  %v11065 = vunpack.c.h.b16 %v9968
  %v11066 = vunpack.c.l.b16 %v9969
  %v11067 = vunpack.c.h.b16 %v9969
  %v11068 = vunpack.c.l.b16 %v9970
  %v11069 = vunpack.c.h.b16 %v9970
  %v11070 = vunpack.c.l.b16 %v9971
  %v11071 = vunpack.c.h.b16 %v9971
  %v11072 = vunpack.c.l.b16 %v9972
  %v11073 = vunpack.c.h.b16 %v9972
  %v11074 = vunpack.c.l.b16 %v9973
  %v11075 = vunpack.c.h.b16 %v9973
  %v11076 = vunpack.c.l.b16 %v9974
  %v11077 = vunpack.c.h.b16 %v9974
  %v11078 = vunpack.c.l.b16 %v9975
  %v11079 = vunpack.c.h.b16 %v9975
  %v11080 = vunpack.c.l.b16 %v9976
  %v11081 = vunpack.c.h.b16 %v9976
  %v11082 = vunpack.c.l.b16 %v9977
  %v11083 = vunpack.c.h.b16 %v9977
  %v11084 = vunpack.c.l.b16 %v9978
  %v11085 = vunpack.c.h.b16 %v9978
  %v11086 = vunpack.c.l.b16 %v9979
  %v11087 = vunpack.c.h.b16 %v9979
  %v11088 = vunpack.c.l.b16 %v9980
  %v11089 = vunpack.c.h.b16 %v9980
  %v11090 = vunpack.c.l.b16 %v9981
  %v11091 = vunpack.c.h.b16 %v9981
  %v11092 = vunpack.c.l.b16 %v9982
  %v11093 = vunpack.c.h.b16 %v9982
  %v11094 = vunpack.c.l.b16 %v9983
  %v11095 = vunpack.c.h.b16 %v9983
  %v11096 = vunpack.c.l.b16 %v9984
  %v11097 = vunpack.c.h.b16 %v9984
  %v11098 = vunpack.c.l.b16 %v9985
  %v11099 = vunpack.c.h.b16 %v9985
  %v11100 = vunpack.c.l.b16 %v9986
  %v11101 = vunpack.c.h.b16 %v9986
  %v11102 = vunpack.c.l.b16 %v9987
  %v11103 = vunpack.c.h.b16 %v9987
  %v11104 = vunpack.c.l.b16 %v9988
  %v11105 = vunpack.c.h.b16 %v9988
  %v11106 = vunpack.c.l.b16 %v9989
  %v11107 = vunpack.c.h.b16 %v9989
  %v11108 = vunpack.c.l.b16 %v9990
  %v11109 = vunpack.c.h.b16 %v9990
  %v11110 = vunpack.c.l.b16 %v9991
  %v11111 = vunpack.c.h.b16 %v9991
  %v11112 = vunpack.c.l.b16 %v9992
  %v11113 = vunpack.c.h.b16 %v9992
  %v11114 = vunpack.c.l.b16 %v9993
  %v11115 = vunpack.c.h.b16 %v9993
  %v11116 = vunpack.c.l.b16 %v9994
  %v11117 = vunpack.c.h.b16 %v9994
  %v11118 = vunpack.c.l.b16 %v9995
  %v11119 = vunpack.c.h.b16 %v9995
  %v11120 = vunpack.c.l.b16 %v9996
  %v11121 = vunpack.c.h.b16 %v9996
  %v11122 = vunpack.c.l.b16 %v9997
  %v11123 = vunpack.c.h.b16 %v9997
  %v11124 = vunpack.c.l.b16 %v9998
  %v11125 = vunpack.c.h.b16 %v9998
  %v11126 = vunpack.c.l.b16 %v9999
  %v11127 = vunpack.c.h.b16 %v9999
  %v11128 = vunpack.c.l.b16 %v10000
  %v11129 = vunpack.c.h.b16 %v10000
  %v11130 = vunpack.c.l.b16 %v10001
  %v11131 = vunpack.c.h.b16 %v10001
  %v11132 = vunpack.c.l.b16 %v10002
  %v11133 = vunpack.c.h.b16 %v10002
  %v11134 = vunpack.c.l.b16 %v10003
  %v11135 = vunpack.c.h.b16 %v10003
  %v11136 = vunpack.c.l.b16 %v10004
  %v11137 = vunpack.c.h.b16 %v10004
  %v11138 = vunpack.c.l.b16 %v10005
  %v11139 = vunpack.c.h.b16 %v10005
  %v11140 = vunpack.c.l.b16 %v10006
  %v11141 = vunpack.c.h.b16 %v10006
  %v11142 = vunpack.c.l.b16 %v10007
  %v11143 = vunpack.c.h.b16 %v10007
  %v11144 = vunpack.c.l.b16 %v10008
  %v11145 = vunpack.c.h.b16 %v10008
  %v11146 = vunpack.c.l.b16 %v10009
  %v11147 = vunpack.c.h.b16 %v10009
  %v11148 = vunpack.c.l.b16 %v10010
  %v11149 = vunpack.c.h.b16 %v10010
  %v11150 = vunpack.c.l.b16 %v10011
  %v11151 = vunpack.c.h.b16 %v10011
  %v11152 = vunpack.c.l.b16 %v10012
  %v11153 = vunpack.c.h.b16 %v10012
  %v11154 = vunpack.c.l.b16 %v10013
  %v11155 = vunpack.c.h.b16 %v10013
  %v11156 = vunpack.c.l.b16 %v10014
  %v11157 = vunpack.c.h.b16 %v10014
  %v11158 = vunpack.c.l.b16 %v10015
  %v11159 = vunpack.c.h.b16 %v10015
  %v11160 = vunpack.c.l.b16 %v10016
  %v11161 = vunpack.c.h.b16 %v10016
  %v11162 = vunpack.c.l.b16 %v10017
  %v11163 = vunpack.c.h.b16 %v10017
  %v11164 = vunpack.c.l.b16 %v10018
  %v11165 = vunpack.c.h.b16 %v10018
  %v11166 = vpack.c.b16 %v10970, %v10966
  %v11167 = vpack.c.b16 %v10971, %v10967
  %v11168 = vpack.c.b16 %v10972, %v10968
  %v11169 = vpack.c.b16 %v10973, %v10969
  %v11170 = vpack.c.b16 %v10978, %v10974
  %v11171 = vpack.c.b16 %v10979, %v10975
  %v11172 = vpack.c.b16 %v10980, %v10976
  %v11173 = vpack.c.b16 %v10981, %v10977
  %v11174 = vpack.c.b16 %v10986, %v10982
  %v11175 = vpack.c.b16 %v10987, %v10983
  %v11176 = vpack.c.b16 %v10988, %v10984
  %v11177 = vpack.c.b16 %v10989, %v10985
  %v11178 = vpack.c.b16 %v10994, %v10990
  %v11179 = vpack.c.b16 %v10995, %v10991
  %v11180 = vpack.c.b16 %v10996, %v10992
  %v11181 = vpack.c.b16 %v10997, %v10993
  %v11182 = vpack.c.b16 %v11002, %v10998
  %v11183 = vpack.c.b16 %v11003, %v10999
  %v11184 = vpack.c.b16 %v11004, %v11000
  %v11185 = vpack.c.b16 %v11005, %v11001
  %v11186 = vpack.c.b16 %v11010, %v11006
  %v11187 = vpack.c.b16 %v11011, %v11007
  %v11188 = vpack.c.b16 %v11012, %v11008
  %v11189 = vpack.c.b16 %v11013, %v11009
  %v11190 = vpack.c.b16 %v11018, %v11014
  %v11191 = vpack.c.b16 %v11019, %v11015
  %v11192 = vpack.c.b16 %v11020, %v11016
  %v11193 = vpack.c.b16 %v11021, %v11017
  %v11194 = vpack.c.b16 %v11026, %v11022
  %v11195 = vpack.c.b16 %v11027, %v11023
  %v11196 = vpack.c.b16 %v11028, %v11024
  %v11197 = vpack.c.b16 %v11029, %v11025
  %v11198 = vpack.c.b16 %v11034, %v11030
  %v11199 = vpack.c.b16 %v11035, %v11031
  %v11200 = vpack.c.b16 %v11036, %v11032
  %v11201 = vpack.c.b16 %v11037, %v11033
  %v11202 = vpack.c.b16 %v11042, %v11038
  %v11203 = vpack.c.b16 %v11043, %v11039
  %v11204 = vpack.c.b16 %v11044, %v11040
  %v11205 = vpack.c.b16 %v11045, %v11041
  %v11206 = vpack.c.b16 %v11050, %v11046
  %v11207 = vpack.c.b16 %v11051, %v11047
  %v11208 = vpack.c.b16 %v11052, %v11048
  %v11209 = vpack.c.b16 %v11053, %v11049
  %v11210 = vpack.c.b16 %v11058, %v11054
  %v11211 = vpack.c.b16 %v11059, %v11055
  %v11212 = vpack.c.b16 %v11060, %v11056
  %v11213 = vpack.c.b16 %v11061, %v11057
  %v11214 = vpack.c.b16 %v11066, %v11062
  %v11215 = vpack.c.b16 %v11067, %v11063
  %v11216 = vpack.c.b16 %v11068, %v11064
  %v11217 = vpack.c.b16 %v11069, %v11065
  %v11218 = vpack.c.b16 %v11074, %v11070
  %v11219 = vpack.c.b16 %v11075, %v11071
  %v11220 = vpack.c.b16 %v11076, %v11072
  %v11221 = vpack.c.b16 %v11077, %v11073
  %v11222 = vpack.c.b16 %v11082, %v11078
  %v11223 = vpack.c.b16 %v11083, %v11079
  %v11224 = vpack.c.b16 %v11084, %v11080
  %v11225 = vpack.c.b16 %v11085, %v11081
  %v11226 = vpack.c.b16 %v11090, %v11086
  %v11227 = vpack.c.b16 %v11091, %v11087
  %v11228 = vpack.c.b16 %v11092, %v11088
  %v11229 = vpack.c.b16 %v11093, %v11089
  %v11230 = vpack.c.b16 %v11098, %v11094
  %v11231 = vpack.c.b16 %v11099, %v11095
  %v11232 = vpack.c.b16 %v11100, %v11096
  %v11233 = vpack.c.b16 %v11101, %v11097
  %v11234 = vpack.c.b16 %v11106, %v11102
  %v11235 = vpack.c.b16 %v11107, %v11103
  %v11236 = vpack.c.b16 %v11108, %v11104
  %v11237 = vpack.c.b16 %v11109, %v11105
  %v11238 = vpack.c.b16 %v11114, %v11110
  %v11239 = vpack.c.b16 %v11115, %v11111
  %v11240 = vpack.c.b16 %v11116, %v11112
  %v11241 = vpack.c.b16 %v11117, %v11113
  %v11242 = vpack.c.b16 %v11122, %v11118
  %v11243 = vpack.c.b16 %v11123, %v11119
  %v11244 = vpack.c.b16 %v11124, %v11120
  %v11245 = vpack.c.b16 %v11125, %v11121
  %v11246 = vpack.c.b16 %v11130, %v11126
  %v11247 = vpack.c.b16 %v11131, %v11127
  %v11248 = vpack.c.b16 %v11132, %v11128
  %v11249 = vpack.c.b16 %v11133, %v11129
  %v11250 = vpack.c.b16 %v11138, %v11134
  %v11251 = vpack.c.b16 %v11139, %v11135
  %v11252 = vpack.c.b16 %v11140, %v11136
  %v11253 = vpack.c.b16 %v11141, %v11137
  %v11254 = vpack.c.b16 %v11146, %v11142
  %v11255 = vpack.c.b16 %v11147, %v11143
  %v11256 = vpack.c.b16 %v11148, %v11144
  %v11257 = vpack.c.b16 %v11149, %v11145
  %v11258 = vpack.c.b16 %v11154, %v11150
  %v11259 = vpack.c.b16 %v11155, %v11151
  %v11260 = vpack.c.b16 %v11156, %v11152
  %v11261 = vpack.c.b16 %v11157, %v11153
  %v11262 = vpack.c.b16 %v11162, %v11158
  %v11263 = vpack.c.b16 %v11163, %v11159
  %v11264 = vpack.c.b16 %v11164, %v11160
  %v11265 = vpack.c.b16 %v11165, %v11161
  %v11363 = vsel %vm10629, %v10862, 0
  %v11366 = vand.u32 %v11262, %v4223
  %v11369 = vand.u32 %v11263, %v4223
  %v11372 = vand.u32 %v11264, %v4223
  %v11375 = vand.u32 %v11265, %v4223
  %11377 = vmatpush.bf16.msra.mxu0 %v11194
  %11378 = vmatpush.bf16.msra.mxu0 %v11190
  %11379 = vmatpush.bf16.msra.mxu0 %v11186
  %11380 = vmatpush.bf16.msra.mxu0 %v11182
  %11381 = vmatpush.bf16.msra.mxu0 %v11178
  %11382 = vmatpush.bf16.msra.mxu0 %v11174
  %11383 = vmatpush.bf16.msra.mxu0 %v11170
  %11384 = vmatpush.bf16.msra.mxu0 %v11166
  %11385 = vmatmul.bf16.gmra.mxu0 %v10859
  %v11386 = vpop.f32.mrf.mxu0
  %v11387 = vadd.f32 %v10694, %v11386
  %v11388 = vpop.f32.mrf.mxu0
  %11389 = vdwg.mxu0
  %11390 = vmatpush.bf16.msra.mxu0 %v11226
  %11391 = vmatpush.bf16.msra.mxu0 %v11222
  %11392 = vmatpush.bf16.msra.mxu0 %v11218
  %11393 = vmatpush.bf16.msra.mxu0 %v11214
  %11394 = vmatpush.bf16.msra.mxu0 %v11210
  %11395 = vmatpush.bf16.msra.mxu0 %v11206
  %11396 = vmatpush.bf16.msra.mxu0 %v11202
  %11397 = vmatpush.bf16.msra.mxu0 %v11198
  %11398 = vmatmul.bf16.gmra.mxu0 %v10860
  %v11399 = vpop.f32.mrf.mxu0
  %v11400 = vadd.f32 %v11387, %v11399
  %v11401 = vpop.f32.mrf.mxu0
  %11402 = vdwg.mxu0
  %11403 = vmatpush.bf16.msra.mxu0 %v11258
  %11404 = vmatpush.bf16.msra.mxu0 %v11254
  %11405 = vmatpush.bf16.msra.mxu0 %v11250
  %11406 = vmatpush.bf16.msra.mxu0 %v11246
  %11407 = vmatpush.bf16.msra.mxu0 %v11242
  %11408 = vmatpush.bf16.msra.mxu0 %v11238
  %11409 = vmatpush.bf16.msra.mxu0 %v11234
  %11410 = vmatpush.bf16.msra.mxu0 %v11230
  %11411 = vmatmul.bf16.gmra.mxu0 %v10861
  %v11412 = vpop.f32.mrf.mxu0
  %v11413 = vadd.f32 %v11400, %v11412
  %v11414 = vpop.f32.mrf.mxu0
  %11415 = vdwg.mxu0
  %11416 = vmatpush.bf16.msra.mxu0 0
  %11417 = vmatpush.bf16.msra.mxu0 0
  %11418 = vmatpush.bf16.msra.mxu0 0
  %11419 = vmatpush.bf16.msra.mxu0 0
  %11420 = vmatpush.bf16.msra.mxu0 0
  %11421 = vmatpush.bf16.msra.mxu0 0
  %11422 = vmatpush.bf16.msra.mxu0 0
  %11423 = vmatpush.bf16.msra.mxu0 %v11366
  %11424 = vmatmul.bf16.gmra.mxu0 %v11363
  %v11425 = vpop.f32.mrf.mxu0
  %v11426 = vadd.f32 %v11413, %v11425
  %v11427 = vpop.f32.mrf.mxu0
  %11428 = vdwg.mxu0
  %11429 = vmatpush.bf16.msra.mxu0 %v11195
  %11430 = vmatpush.bf16.msra.mxu0 %v11191
  %11431 = vmatpush.bf16.msra.mxu0 %v11187
  %11432 = vmatpush.bf16.msra.mxu0 %v11183
  %11433 = vmatpush.bf16.msra.mxu0 %v11179
  %11434 = vmatpush.bf16.msra.mxu0 %v11175
  %11435 = vmatpush.bf16.msra.mxu0 %v11171
  %11436 = vmatpush.bf16.msra.mxu0 %v11167
  %11437 = vmatmul.bf16.gmra.mxu0 %v10859
  %v11438 = vpop.f32.mrf.mxu0
  %v11439 = vadd.f32 %v10746, %v11438
  %v11440 = vpop.f32.mrf.mxu0
  %11441 = vdwg.mxu0
  %11442 = vmatpush.bf16.msra.mxu0 %v11227
  %11443 = vmatpush.bf16.msra.mxu0 %v11223
  %11444 = vmatpush.bf16.msra.mxu0 %v11219
  %11445 = vmatpush.bf16.msra.mxu0 %v11215
  %11446 = vmatpush.bf16.msra.mxu0 %v11211
  %11447 = vmatpush.bf16.msra.mxu0 %v11207
  %11448 = vmatpush.bf16.msra.mxu0 %v11203
  %11449 = vmatpush.bf16.msra.mxu0 %v11199
  %11450 = vmatmul.bf16.gmra.mxu0 %v10860
  %v11451 = vpop.f32.mrf.mxu0
  %v11452 = vadd.f32 %v11439, %v11451
  %v11453 = vpop.f32.mrf.mxu0
  %11454 = vdwg.mxu0
  %11455 = vmatpush.bf16.msra.mxu0 %v11259
  %11456 = vmatpush.bf16.msra.mxu0 %v11255
  %11457 = vmatpush.bf16.msra.mxu0 %v11251
  %11458 = vmatpush.bf16.msra.mxu0 %v11247
  %11459 = vmatpush.bf16.msra.mxu0 %v11243
  %11460 = vmatpush.bf16.msra.mxu0 %v11239
  %11461 = vmatpush.bf16.msra.mxu0 %v11235
  %11462 = vmatpush.bf16.msra.mxu0 %v11231
  %11463 = vmatmul.bf16.gmra.mxu0 %v10861
  %v11464 = vpop.f32.mrf.mxu0
  %v11465 = vadd.f32 %v11452, %v11464
  %v11466 = vpop.f32.mrf.mxu0
  %11467 = vdwg.mxu0
  %11468 = vmatpush.bf16.msra.mxu0 0
  %11469 = vmatpush.bf16.msra.mxu0 0
  %11470 = vmatpush.bf16.msra.mxu0 0
  %11471 = vmatpush.bf16.msra.mxu0 0
  %11472 = vmatpush.bf16.msra.mxu0 0
  %11473 = vmatpush.bf16.msra.mxu0 0
  %11474 = vmatpush.bf16.msra.mxu0 0
  %11475 = vmatpush.bf16.msra.mxu0 %v11369
  %11476 = vmatmul.bf16.gmra.mxu0 %v11363
  %v11477 = vpop.f32.mrf.mxu0
  %v11478 = vadd.f32 %v11465, %v11477
  %v11479 = vpop.f32.mrf.mxu0
  %11480 = vdwg.mxu0
  %11481 = vmatpush.bf16.msra.mxu0 %v11196
  %11482 = vmatpush.bf16.msra.mxu0 %v11192
  %11483 = vmatpush.bf16.msra.mxu0 %v11188
  %11484 = vmatpush.bf16.msra.mxu0 %v11184
  %11485 = vmatpush.bf16.msra.mxu0 %v11180
  %11486 = vmatpush.bf16.msra.mxu0 %v11176
  %11487 = vmatpush.bf16.msra.mxu0 %v11172
  %11488 = vmatpush.bf16.msra.mxu0 %v11168
  %11489 = vmatmul.bf16.gmra.mxu0 %v10859
  %v11490 = vpop.f32.mrf.mxu0
  %v11491 = vadd.f32 %v10798, %v11490
  %v11492 = vpop.f32.mrf.mxu0
  %11493 = vdwg.mxu0
  %11494 = vmatpush.bf16.msra.mxu0 %v11228
  %11495 = vmatpush.bf16.msra.mxu0 %v11224
  %11496 = vmatpush.bf16.msra.mxu0 %v11220
  %11497 = vmatpush.bf16.msra.mxu0 %v11216
  %11498 = vmatpush.bf16.msra.mxu0 %v11212
  %11499 = vmatpush.bf16.msra.mxu0 %v11208
  %11500 = vmatpush.bf16.msra.mxu0 %v11204
  %11501 = vmatpush.bf16.msra.mxu0 %v11200
  %11502 = vmatmul.bf16.gmra.mxu0 %v10860
  %v11503 = vpop.f32.mrf.mxu0
  %v11504 = vadd.f32 %v11491, %v11503
  %v11505 = vpop.f32.mrf.mxu0
  %11506 = vdwg.mxu0
  %11507 = vmatpush.bf16.msra.mxu0 %v11260
  %11508 = vmatpush.bf16.msra.mxu0 %v11256
  %11509 = vmatpush.bf16.msra.mxu0 %v11252
  %11510 = vmatpush.bf16.msra.mxu0 %v11248
  %11511 = vmatpush.bf16.msra.mxu0 %v11244
  %11512 = vmatpush.bf16.msra.mxu0 %v11240
  %11513 = vmatpush.bf16.msra.mxu0 %v11236
  %11514 = vmatpush.bf16.msra.mxu0 %v11232
  %11515 = vmatmul.bf16.gmra.mxu0 %v10861
  %v11516 = vpop.f32.mrf.mxu0
  %v11517 = vadd.f32 %v11504, %v11516
  %v11518 = vpop.f32.mrf.mxu0
  %11519 = vdwg.mxu0
  %11520 = vmatpush.bf16.msra.mxu0 0
  %11521 = vmatpush.bf16.msra.mxu0 0
  %11522 = vmatpush.bf16.msra.mxu0 0
  %11523 = vmatpush.bf16.msra.mxu0 0
  %11524 = vmatpush.bf16.msra.mxu0 0
  %11525 = vmatpush.bf16.msra.mxu0 0
  %11526 = vmatpush.bf16.msra.mxu0 0
  %11527 = vmatpush.bf16.msra.mxu0 %v11372
  %11528 = vmatmul.bf16.gmra.mxu0 %v11363
  %v11529 = vpop.f32.mrf.mxu0
  %v11530 = vadd.f32 %v11517, %v11529
  %v11531 = vpop.f32.mrf.mxu0
  %11532 = vdwg.mxu0
  %11533 = vmatpush.bf16.msra.mxu0 %v11197
  %11534 = vmatpush.bf16.msra.mxu0 %v11193
  %11535 = vmatpush.bf16.msra.mxu0 %v11189
  %11536 = vmatpush.bf16.msra.mxu0 %v11185
  %11537 = vmatpush.bf16.msra.mxu0 %v11181
  %11538 = vmatpush.bf16.msra.mxu0 %v11177
  %11539 = vmatpush.bf16.msra.mxu0 %v11173
  %11540 = vmatpush.bf16.msra.mxu0 %v11169
  %11541 = vmatmul.bf16.gmra.mxu0 %v10859
  %v11542 = vpop.f32.mrf.mxu0
  %v11543 = vadd.f32 %v10850, %v11542
  %v11544 = vpop.f32.mrf.mxu0
  %11545 = vdwg.mxu0
  %11546 = vmatpush.bf16.msra.mxu0 %v11229
  %11547 = vmatpush.bf16.msra.mxu0 %v11225
  %11548 = vmatpush.bf16.msra.mxu0 %v11221
  %11549 = vmatpush.bf16.msra.mxu0 %v11217
  %11550 = vmatpush.bf16.msra.mxu0 %v11213
  %11551 = vmatpush.bf16.msra.mxu0 %v11209
  %11552 = vmatpush.bf16.msra.mxu0 %v11205
  %11553 = vmatpush.bf16.msra.mxu0 %v11201
  %11554 = vmatmul.bf16.gmra.mxu0 %v10860
  %v11555 = vpop.f32.mrf.mxu0
  %v11556 = vadd.f32 %v11543, %v11555
  %v11557 = vpop.f32.mrf.mxu0
  %11558 = vdwg.mxu0
  %11559 = vmatpush.bf16.msra.mxu0 %v11261
  %11560 = vmatpush.bf16.msra.mxu0 %v11257
  %11561 = vmatpush.bf16.msra.mxu0 %v11253
  %11562 = vmatpush.bf16.msra.mxu0 %v11249
  %11563 = vmatpush.bf16.msra.mxu0 %v11245
  %11564 = vmatpush.bf16.msra.mxu0 %v11241
  %11565 = vmatpush.bf16.msra.mxu0 %v11237
  %11566 = vmatpush.bf16.msra.mxu0 %v11233
  %11567 = vmatmul.bf16.gmra.mxu0 %v10861
  %v11568 = vpop.f32.mrf.mxu0
  %v11569 = vadd.f32 %v11556, %v11568
  %v11570 = vpop.f32.mrf.mxu0
  %11571 = vdwg.mxu0
  %11572 = vmatpush.bf16.msra.mxu0 0
  %11573 = vmatpush.bf16.msra.mxu0 0
  %11574 = vmatpush.bf16.msra.mxu0 0
  %11575 = vmatpush.bf16.msra.mxu0 0
  %11576 = vmatpush.bf16.msra.mxu0 0
  %11577 = vmatpush.bf16.msra.mxu0 0
  %11578 = vmatpush.bf16.msra.mxu0 0
  %11579 = vmatpush.bf16.msra.mxu0 %v11375
  %11580 = vmatmul.bf16.gmra.mxu0 %v11363
  %v11581 = vpop.f32.mrf.mxu0
  %v11582 = vadd.f32 %v11569, %v11581
  %v11583 = vpop.f32.mrf.mxu0
  %11584 = vdwg.mxu0
  %s11585 = scalar_lea.vmem %s5, 1600
  %v11586 = vld [vmem:[%s11585] sm:$0xff]
  %v11587 = vld [vmem:[%s11585 + $0x8] sm:$0xff]
  %v11588 = vld [vmem:[%s11585 + $0x10] sm:$0xff]
  %v11589 = vld [vmem:[%s11585 + $0x18] sm:$0xff]
  %v11590 = vld [vmem:[%s11585 + $0x20] sm:$0xff]
  %v11591 = vld [vmem:[%s11585 + $0x28] sm:$0xff]
  %v11592 = vld [vmem:[%s11585 + $0x30] sm:$0xff]
  %v11593 = vld [vmem:[%s11585 + $0x38] sm:$0xff]
  %v11594 = vld [vmem:[%s11585 + $0x40] sm:$0xff]
  %v11595 = vld [vmem:[%s11585 + $0x48] sm:$0xff]
  %v11596 = vld [vmem:[%s11585 + $0x50] sm:$0xff]
  %v11597 = vld [vmem:[%s11585 + $0x58] sm:$0xff]
  %v11598 = vld [vmem:[%s11585 + $0x60] sm:$0xff]
  %v11599 = vld [vmem:[%s11585 + $0x68] sm:$0xff]
  %v11600 = vld [vmem:[%s11585 + $0x70] sm:$0xff]
  %v11601 = vld [vmem:[%s11585 + $0x78] sm:$0xff]
  %v11602 = vld [vmem:[%s11585 + $0x80] sm:$0xff]
  %v11603 = vld [vmem:[%s11585 + $0x88] sm:$0xff]
  %v11604 = vld [vmem:[%s11585 + $0x90] sm:$0xff]
  %v11605 = vld [vmem:[%s11585 + $0x98] sm:$0xff]
  %v11606 = vld [vmem:[%s11585 + $0xa0] sm:$0xff]
  %v11607 = vld [vmem:[%s11585 + $0xa8] sm:$0xff]
  %v11608 = vld [vmem:[%s11585 + $0xb0] sm:$0xff]
  %v11609 = vld [vmem:[%s11585 + $0xb8] sm:$0xff]
  %v11610 = vld [vmem:[%s11585 + $0xc0] sm:$0xff]
  %v11611 = vld [vmem:[%s11585 + $0xc8] sm:$0xff]
  %v11612 = vld [vmem:[%s11585 + $0xd0] sm:$0xff]
  %v11613 = vld [vmem:[%s11585 + $0xd8] sm:$0xff]
  %v11614 = vld [vmem:[%s11585 + $0xe0] sm:$0xff]
  %v11615 = vld [vmem:[%s11585 + $0xe8] sm:$0xff]
  %v11616 = vld [vmem:[%s11585 + $0xf0] sm:$0xff]
  %v11617 = vld [vmem:[%s11585 + $0xf8] sm:$0xff]
  %v11618 = vld [vmem:[%s11585 + $0x100] sm:$0xff]
  %v11619 = vld [vmem:[%s11585 + $0x108] sm:$0xff]
  %v11620 = vld [vmem:[%s11585 + $0x110] sm:$0xff]
  %v11621 = vld [vmem:[%s11585 + $0x118] sm:$0xff]
  %v11622 = vld [vmem:[%s11585 + $0x120] sm:$0xff]
  %v11623 = vld [vmem:[%s11585 + $0x128] sm:$0xff]
  %v11624 = vld [vmem:[%s11585 + $0x130] sm:$0xff]
  %v11625 = vld [vmem:[%s11585 + $0x138] sm:$0xff]
  %v11626 = vld [vmem:[%s11585 + $0x140] sm:$0xff]
  %v11627 = vld [vmem:[%s11585 + $0x148] sm:$0xff]
  %v11628 = vld [vmem:[%s11585 + $0x150] sm:$0xff]
  %v11629 = vld [vmem:[%s11585 + $0x158] sm:$0xff]
  %v11630 = vld [vmem:[%s11585 + $0x160] sm:$0xff]
  %v11631 = vld [vmem:[%s11585 + $0x168] sm:$0xff]
  %v11632 = vld [vmem:[%s11585 + $0x170] sm:$0xff]
  %v11633 = vld [vmem:[%s11585 + $0x178] sm:$0xff]
  %v11634 = vld [vmem:[%s11585 + $0x180] sm:$0xff]
  %v11635 = vld [vmem:[%s11585 + $0x188] sm:$0xff]
  %v11636 = vld [vmem:[%s11585 + $0x190] sm:$0xff]
  %v11637 = vld [vmem:[%s11585 + $0x198] sm:$0xff]
  %v11638 = vld [vmem:[%s11585 + $0x1a0] sm:$0xff]
  %v11639 = vld [vmem:[%s11585 + $0x1a8] sm:$0xff]
  %v11640 = vld [vmem:[%s11585 + $0x1b0] sm:$0xff]
  %v11641 = vld [vmem:[%s11585 + $0x1b8] sm:$0xff]
  %v11642 = vld [vmem:[%s11585 + $0x1c0] sm:$0xff]
  %v11643 = vld [vmem:[%s11585 + $0x1c8] sm:$0xff]
  %v11644 = vld [vmem:[%s11585 + $0x1d0] sm:$0xff]
  %v11645 = vld [vmem:[%s11585 + $0x1d8] sm:$0xff]
  %v11646 = vld [vmem:[%s11585 + $0x1e0] sm:$0xff]
  %v11647 = vld [vmem:[%s11585 + $0x1e8] sm:$0xff]
  %v11648 = vld [vmem:[%s11585 + $0x1f0] sm:$0xff]
  %v11649 = vld [vmem:[%s11585 + $0x1f8] sm:$0xff]
  %v11650 = vld [vmem:[%s11585 + $0x200] sm:$0xff]
  %v11651 = vld [vmem:[%s11585 + $0x208] sm:$0xff]
  %v11652 = vld [vmem:[%s11585 + $0x210] sm:$0xff]
  %v11653 = vld [vmem:[%s11585 + $0x218] sm:$0xff]
  %v11654 = vld [vmem:[%s11585 + $0x220] sm:$0xff]
  %v11655 = vld [vmem:[%s11585 + $0x228] sm:$0xff]
  %v11656 = vld [vmem:[%s11585 + $0x230] sm:$0xff]
  %v11657 = vld [vmem:[%s11585 + $0x238] sm:$0xff]
  %v11658 = vld [vmem:[%s11585 + $0x240] sm:$0xff]
  %v11659 = vld [vmem:[%s11585 + $0x248] sm:$0xff]
  %v11660 = vld [vmem:[%s11585 + $0x250] sm:$0xff]
  %v11661 = vld [vmem:[%s11585 + $0x258] sm:$0xff]
  %v11662 = vld [vmem:[%s11585 + $0x260] sm:$0xff]
  %v11663 = vld [vmem:[%s11585 + $0x268] sm:$0xff]
  %v11664 = vld [vmem:[%s11585 + $0x270] sm:$0xff]
  %v11665 = vld [vmem:[%s11585 + $0x278] sm:$0xff]
  %v11666 = vld [vmem:[%s11585 + $0x280] sm:$0xff]
  %v11667 = vld [vmem:[%s11585 + $0x288] sm:$0xff]
  %v11668 = vld [vmem:[%s11585 + $0x290] sm:$0xff]
  %v11669 = vld [vmem:[%s11585 + $0x298] sm:$0xff]
  %v11670 = vld [vmem:[%s11585 + $0x2a0] sm:$0xff]
  %v11671 = vld [vmem:[%s11585 + $0x2a8] sm:$0xff]
  %v11672 = vld [vmem:[%s11585 + $0x2b0] sm:$0xff]
  %v11673 = vld [vmem:[%s11585 + $0x2b8] sm:$0xff]
  %v11674 = vld [vmem:[%s11585 + $0x2c0] sm:$0xff]
  %v11675 = vld [vmem:[%s11585 + $0x2c8] sm:$0xff]
  %v11676 = vld [vmem:[%s11585 + $0x2d0] sm:$0xff]
  %v11677 = vld [vmem:[%s11585 + $0x2d8] sm:$0xff]
  %v11678 = vld [vmem:[%s11585 + $0x2e0] sm:$0xff]
  %v11679 = vld [vmem:[%s11585 + $0x2e8] sm:$0xff]
  %v11680 = vld [vmem:[%s11585 + $0x2f0] sm:$0xff]
  %v11681 = vld [vmem:[%s11585 + $0x2f8] sm:$0xff]
  %v11682 = vld [vmem:[%s11585 + $0x300] sm:$0xff]
  %v11683 = vld [vmem:[%s11585 + $0x308] sm:$0xff]
  %v11684 = vld [vmem:[%s11585 + $0x310] sm:$0xff]
  %v11685 = vld [vmem:[%s11585 + $0x318] sm:$0xff]
  %v11688 = vunpack.c.l.b16 %v9915
  %v11689 = vunpack.c.h.b16 %v9915
  %v11690 = vunpack.c.l.b16 %v9916
  %v11691 = vunpack.c.h.b16 %v9916
  %v11692 = vpack.c.b16 %v11688, %v11688
  %v11693 = vpack.c.b16 %v11689, %v11689
  %v11694 = vpack.c.b16 %v11690, %v11690
  %v11695 = vpack.c.b16 %v11691, %v11691
  %v11799 = vunpack.c.l.b16 %v11586
  %v11800 = vunpack.c.h.b16 %v11586
  %v11801 = vunpack.c.l.b16 %v11587
  %v11802 = vunpack.c.h.b16 %v11587
  %v11803 = vunpack.c.l.b16 %v11588
  %v11804 = vunpack.c.h.b16 %v11588
  %v11805 = vunpack.c.l.b16 %v11589
  %v11806 = vunpack.c.h.b16 %v11589
  %v11807 = vunpack.c.l.b16 %v11590
  %v11808 = vunpack.c.h.b16 %v11590
  %v11809 = vunpack.c.l.b16 %v11591
  %v11810 = vunpack.c.h.b16 %v11591
  %v11811 = vunpack.c.l.b16 %v11592
  %v11812 = vunpack.c.h.b16 %v11592
  %v11813 = vunpack.c.l.b16 %v11593
  %v11814 = vunpack.c.h.b16 %v11593
  %v11815 = vunpack.c.l.b16 %v11594
  %v11816 = vunpack.c.h.b16 %v11594
  %v11817 = vunpack.c.l.b16 %v11595
  %v11818 = vunpack.c.h.b16 %v11595
  %v11819 = vunpack.c.l.b16 %v11596
  %v11820 = vunpack.c.h.b16 %v11596
  %v11821 = vunpack.c.l.b16 %v11597
  %v11822 = vunpack.c.h.b16 %v11597
  %v11823 = vunpack.c.l.b16 %v11598
  %v11824 = vunpack.c.h.b16 %v11598
  %v11825 = vunpack.c.l.b16 %v11599
  %v11826 = vunpack.c.h.b16 %v11599
  %v11827 = vunpack.c.l.b16 %v11600
  %v11828 = vunpack.c.h.b16 %v11600
  %v11829 = vunpack.c.l.b16 %v11601
  %v11830 = vunpack.c.h.b16 %v11601
  %v11831 = vunpack.c.l.b16 %v11602
  %v11832 = vunpack.c.h.b16 %v11602
  %v11833 = vunpack.c.l.b16 %v11603
  %v11834 = vunpack.c.h.b16 %v11603
  %v11835 = vunpack.c.l.b16 %v11604
  %v11836 = vunpack.c.h.b16 %v11604
  %v11837 = vunpack.c.l.b16 %v11605
  %v11838 = vunpack.c.h.b16 %v11605
  %v11839 = vunpack.c.l.b16 %v11606
  %v11840 = vunpack.c.h.b16 %v11606
  %v11841 = vunpack.c.l.b16 %v11607
  %v11842 = vunpack.c.h.b16 %v11607
  %v11843 = vunpack.c.l.b16 %v11608
  %v11844 = vunpack.c.h.b16 %v11608
  %v11845 = vunpack.c.l.b16 %v11609
  %v11846 = vunpack.c.h.b16 %v11609
  %v11847 = vunpack.c.l.b16 %v11610
  %v11848 = vunpack.c.h.b16 %v11610
  %v11849 = vunpack.c.l.b16 %v11611
  %v11850 = vunpack.c.h.b16 %v11611
  %v11851 = vunpack.c.l.b16 %v11612
  %v11852 = vunpack.c.h.b16 %v11612
  %v11853 = vunpack.c.l.b16 %v11613
  %v11854 = vunpack.c.h.b16 %v11613
  %v11855 = vunpack.c.l.b16 %v11614
  %v11856 = vunpack.c.h.b16 %v11614
  %v11857 = vunpack.c.l.b16 %v11615
  %v11858 = vunpack.c.h.b16 %v11615
  %v11859 = vunpack.c.l.b16 %v11616
  %v11860 = vunpack.c.h.b16 %v11616
  %v11861 = vunpack.c.l.b16 %v11617
  %v11862 = vunpack.c.h.b16 %v11617
  %v11863 = vunpack.c.l.b16 %v11618
  %v11864 = vunpack.c.h.b16 %v11618
  %v11865 = vunpack.c.l.b16 %v11619
  %v11866 = vunpack.c.h.b16 %v11619
  %v11867 = vunpack.c.l.b16 %v11620
  %v11868 = vunpack.c.h.b16 %v11620
  %v11869 = vunpack.c.l.b16 %v11621
  %v11870 = vunpack.c.h.b16 %v11621
  %v11871 = vunpack.c.l.b16 %v11622
  %v11872 = vunpack.c.h.b16 %v11622
  %v11873 = vunpack.c.l.b16 %v11623
  %v11874 = vunpack.c.h.b16 %v11623
  %v11875 = vunpack.c.l.b16 %v11624
  %v11876 = vunpack.c.h.b16 %v11624
  %v11877 = vunpack.c.l.b16 %v11625
  %v11878 = vunpack.c.h.b16 %v11625
  %v11879 = vunpack.c.l.b16 %v11626
  %v11880 = vunpack.c.h.b16 %v11626
  %v11881 = vunpack.c.l.b16 %v11627
  %v11882 = vunpack.c.h.b16 %v11627
  %v11883 = vunpack.c.l.b16 %v11628
  %v11884 = vunpack.c.h.b16 %v11628
  %v11885 = vunpack.c.l.b16 %v11629
  %v11886 = vunpack.c.h.b16 %v11629
  %v11887 = vunpack.c.l.b16 %v11630
  %v11888 = vunpack.c.h.b16 %v11630
  %v11889 = vunpack.c.l.b16 %v11631
  %v11890 = vunpack.c.h.b16 %v11631
  %v11891 = vunpack.c.l.b16 %v11632
  %v11892 = vunpack.c.h.b16 %v11632
  %v11893 = vunpack.c.l.b16 %v11633
  %v11894 = vunpack.c.h.b16 %v11633
  %v11895 = vunpack.c.l.b16 %v11634
  %v11896 = vunpack.c.h.b16 %v11634
  %v11897 = vunpack.c.l.b16 %v11635
  %v11898 = vunpack.c.h.b16 %v11635
  %v11899 = vunpack.c.l.b16 %v11636
  %v11900 = vunpack.c.h.b16 %v11636
  %v11901 = vunpack.c.l.b16 %v11637
  %v11902 = vunpack.c.h.b16 %v11637
  %v11903 = vunpack.c.l.b16 %v11638
  %v11904 = vunpack.c.h.b16 %v11638
  %v11905 = vunpack.c.l.b16 %v11639
  %v11906 = vunpack.c.h.b16 %v11639
  %v11907 = vunpack.c.l.b16 %v11640
  %v11908 = vunpack.c.h.b16 %v11640
  %v11909 = vunpack.c.l.b16 %v11641
  %v11910 = vunpack.c.h.b16 %v11641
  %v11911 = vunpack.c.l.b16 %v11642
  %v11912 = vunpack.c.h.b16 %v11642
  %v11913 = vunpack.c.l.b16 %v11643
  %v11914 = vunpack.c.h.b16 %v11643
  %v11915 = vunpack.c.l.b16 %v11644
  %v11916 = vunpack.c.h.b16 %v11644
  %v11917 = vunpack.c.l.b16 %v11645
  %v11918 = vunpack.c.h.b16 %v11645
  %v11919 = vunpack.c.l.b16 %v11646
  %v11920 = vunpack.c.h.b16 %v11646
  %v11921 = vunpack.c.l.b16 %v11647
  %v11922 = vunpack.c.h.b16 %v11647
  %v11923 = vunpack.c.l.b16 %v11648
  %v11924 = vunpack.c.h.b16 %v11648
  %v11925 = vunpack.c.l.b16 %v11649
  %v11926 = vunpack.c.h.b16 %v11649
  %v11927 = vunpack.c.l.b16 %v11650
  %v11928 = vunpack.c.h.b16 %v11650
  %v11929 = vunpack.c.l.b16 %v11651
  %v11930 = vunpack.c.h.b16 %v11651
  %v11931 = vunpack.c.l.b16 %v11652
  %v11932 = vunpack.c.h.b16 %v11652
  %v11933 = vunpack.c.l.b16 %v11653
  %v11934 = vunpack.c.h.b16 %v11653
  %v11935 = vunpack.c.l.b16 %v11654
  %v11936 = vunpack.c.h.b16 %v11654
  %v11937 = vunpack.c.l.b16 %v11655
  %v11938 = vunpack.c.h.b16 %v11655
  %v11939 = vunpack.c.l.b16 %v11656
  %v11940 = vunpack.c.h.b16 %v11656
  %v11941 = vunpack.c.l.b16 %v11657
  %v11942 = vunpack.c.h.b16 %v11657
  %v11943 = vunpack.c.l.b16 %v11658
  %v11944 = vunpack.c.h.b16 %v11658
  %v11945 = vunpack.c.l.b16 %v11659
  %v11946 = vunpack.c.h.b16 %v11659
  %v11947 = vunpack.c.l.b16 %v11660
  %v11948 = vunpack.c.h.b16 %v11660
  %v11949 = vunpack.c.l.b16 %v11661
  %v11950 = vunpack.c.h.b16 %v11661
  %v11951 = vunpack.c.l.b16 %v11662
  %v11952 = vunpack.c.h.b16 %v11662
  %v11953 = vunpack.c.l.b16 %v11663
  %v11954 = vunpack.c.h.b16 %v11663
  %v11955 = vunpack.c.l.b16 %v11664
  %v11956 = vunpack.c.h.b16 %v11664
  %v11957 = vunpack.c.l.b16 %v11665
  %v11958 = vunpack.c.h.b16 %v11665
  %v11959 = vunpack.c.l.b16 %v11666
  %v11960 = vunpack.c.h.b16 %v11666
  %v11961 = vunpack.c.l.b16 %v11667
  %v11962 = vunpack.c.h.b16 %v11667
  %v11963 = vunpack.c.l.b16 %v11668
  %v11964 = vunpack.c.h.b16 %v11668
  %v11965 = vunpack.c.l.b16 %v11669
  %v11966 = vunpack.c.h.b16 %v11669
  %v11967 = vunpack.c.l.b16 %v11670
  %v11968 = vunpack.c.h.b16 %v11670
  %v11969 = vunpack.c.l.b16 %v11671
  %v11970 = vunpack.c.h.b16 %v11671
  %v11971 = vunpack.c.l.b16 %v11672
  %v11972 = vunpack.c.h.b16 %v11672
  %v11973 = vunpack.c.l.b16 %v11673
  %v11974 = vunpack.c.h.b16 %v11673
  %v11975 = vunpack.c.l.b16 %v11674
  %v11976 = vunpack.c.h.b16 %v11674
  %v11977 = vunpack.c.l.b16 %v11675
  %v11978 = vunpack.c.h.b16 %v11675
  %v11979 = vunpack.c.l.b16 %v11676
  %v11980 = vunpack.c.h.b16 %v11676
  %v11981 = vunpack.c.l.b16 %v11677
  %v11982 = vunpack.c.h.b16 %v11677
  %v11983 = vunpack.c.l.b16 %v11678
  %v11984 = vunpack.c.h.b16 %v11678
  %v11985 = vunpack.c.l.b16 %v11679
  %v11986 = vunpack.c.h.b16 %v11679
  %v11987 = vunpack.c.l.b16 %v11680
  %v11988 = vunpack.c.h.b16 %v11680
  %v11989 = vunpack.c.l.b16 %v11681
  %v11990 = vunpack.c.h.b16 %v11681
  %v11991 = vunpack.c.l.b16 %v11682
  %v11992 = vunpack.c.h.b16 %v11682
  %v11993 = vunpack.c.l.b16 %v11683
  %v11994 = vunpack.c.h.b16 %v11683
  %v11995 = vunpack.c.l.b16 %v11684
  %v11996 = vunpack.c.h.b16 %v11684
  %v11997 = vunpack.c.l.b16 %v11685
  %v11998 = vunpack.c.h.b16 %v11685
  %v11999 = vpack.c.b16 %v11803, %v11799
  %v12000 = vpack.c.b16 %v11804, %v11800
  %v12001 = vpack.c.b16 %v11805, %v11801
  %v12002 = vpack.c.b16 %v11806, %v11802
  %v12003 = vpack.c.b16 %v11811, %v11807
  %v12004 = vpack.c.b16 %v11812, %v11808
  %v12005 = vpack.c.b16 %v11813, %v11809
  %v12006 = vpack.c.b16 %v11814, %v11810
  %v12007 = vpack.c.b16 %v11819, %v11815
  %v12008 = vpack.c.b16 %v11820, %v11816
  %v12009 = vpack.c.b16 %v11821, %v11817
  %v12010 = vpack.c.b16 %v11822, %v11818
  %v12011 = vpack.c.b16 %v11827, %v11823
  %v12012 = vpack.c.b16 %v11828, %v11824
  %v12013 = vpack.c.b16 %v11829, %v11825
  %v12014 = vpack.c.b16 %v11830, %v11826
  %v12015 = vpack.c.b16 %v11835, %v11831
  %v12016 = vpack.c.b16 %v11836, %v11832
  %v12017 = vpack.c.b16 %v11837, %v11833
  %v12018 = vpack.c.b16 %v11838, %v11834
  %v12019 = vpack.c.b16 %v11843, %v11839
  %v12020 = vpack.c.b16 %v11844, %v11840
  %v12021 = vpack.c.b16 %v11845, %v11841
  %v12022 = vpack.c.b16 %v11846, %v11842
  %v12023 = vpack.c.b16 %v11851, %v11847
  %v12024 = vpack.c.b16 %v11852, %v11848
  %v12025 = vpack.c.b16 %v11853, %v11849
  %v12026 = vpack.c.b16 %v11854, %v11850
  %v12027 = vpack.c.b16 %v11859, %v11855
  %v12028 = vpack.c.b16 %v11860, %v11856
  %v12029 = vpack.c.b16 %v11861, %v11857
  %v12030 = vpack.c.b16 %v11862, %v11858
  %v12031 = vpack.c.b16 %v11867, %v11863
  %v12032 = vpack.c.b16 %v11868, %v11864
  %v12033 = vpack.c.b16 %v11869, %v11865
  %v12034 = vpack.c.b16 %v11870, %v11866
  %v12035 = vpack.c.b16 %v11875, %v11871
  %v12036 = vpack.c.b16 %v11876, %v11872
  %v12037 = vpack.c.b16 %v11877, %v11873
  %v12038 = vpack.c.b16 %v11878, %v11874
  %v12039 = vpack.c.b16 %v11883, %v11879
  %v12040 = vpack.c.b16 %v11884, %v11880
  %v12041 = vpack.c.b16 %v11885, %v11881
  %v12042 = vpack.c.b16 %v11886, %v11882
  %v12043 = vpack.c.b16 %v11891, %v11887
  %v12044 = vpack.c.b16 %v11892, %v11888
  %v12045 = vpack.c.b16 %v11893, %v11889
  %v12046 = vpack.c.b16 %v11894, %v11890
  %v12047 = vpack.c.b16 %v11899, %v11895
  %v12048 = vpack.c.b16 %v11900, %v11896
  %v12049 = vpack.c.b16 %v11901, %v11897
  %v12050 = vpack.c.b16 %v11902, %v11898
  %v12051 = vpack.c.b16 %v11907, %v11903
  %v12052 = vpack.c.b16 %v11908, %v11904
  %v12053 = vpack.c.b16 %v11909, %v11905
  %v12054 = vpack.c.b16 %v11910, %v11906
  %v12055 = vpack.c.b16 %v11915, %v11911
  %v12056 = vpack.c.b16 %v11916, %v11912
  %v12057 = vpack.c.b16 %v11917, %v11913
  %v12058 = vpack.c.b16 %v11918, %v11914
  %v12059 = vpack.c.b16 %v11923, %v11919
  %v12060 = vpack.c.b16 %v11924, %v11920
  %v12061 = vpack.c.b16 %v11925, %v11921
  %v12062 = vpack.c.b16 %v11926, %v11922
  %v12063 = vpack.c.b16 %v11931, %v11927
  %v12064 = vpack.c.b16 %v11932, %v11928
  %v12065 = vpack.c.b16 %v11933, %v11929
  %v12066 = vpack.c.b16 %v11934, %v11930
  %v12067 = vpack.c.b16 %v11939, %v11935
  %v12068 = vpack.c.b16 %v11940, %v11936
  %v12069 = vpack.c.b16 %v11941, %v11937
  %v12070 = vpack.c.b16 %v11942, %v11938
  %v12071 = vpack.c.b16 %v11947, %v11943
  %v12072 = vpack.c.b16 %v11948, %v11944
  %v12073 = vpack.c.b16 %v11949, %v11945
  %v12074 = vpack.c.b16 %v11950, %v11946
  %v12075 = vpack.c.b16 %v11955, %v11951
  %v12076 = vpack.c.b16 %v11956, %v11952
  %v12077 = vpack.c.b16 %v11957, %v11953
  %v12078 = vpack.c.b16 %v11958, %v11954
  %v12079 = vpack.c.b16 %v11963, %v11959
  %v12080 = vpack.c.b16 %v11964, %v11960
  %v12081 = vpack.c.b16 %v11965, %v11961
  %v12082 = vpack.c.b16 %v11966, %v11962
  %v12083 = vpack.c.b16 %v11971, %v11967
  %v12084 = vpack.c.b16 %v11972, %v11968
  %v12085 = vpack.c.b16 %v11973, %v11969
  %v12086 = vpack.c.b16 %v11974, %v11970
  %v12087 = vpack.c.b16 %v11979, %v11975
  %v12088 = vpack.c.b16 %v11980, %v11976
  %v12089 = vpack.c.b16 %v11981, %v11977
  %v12090 = vpack.c.b16 %v11982, %v11978
  %v12091 = vpack.c.b16 %v11987, %v11983
  %v12092 = vpack.c.b16 %v11988, %v11984
  %v12093 = vpack.c.b16 %v11989, %v11985
  %v12094 = vpack.c.b16 %v11990, %v11986
  %v12095 = vpack.c.b16 %v11995, %v11991
  %v12096 = vpack.c.b16 %v11996, %v11992
  %v12097 = vpack.c.b16 %v11997, %v11993
  %v12098 = vpack.c.b16 %v11998, %v11994
  %v12196 = vsel %vm10629, %v11695, 0
  %v12199 = vand.u32 %v12095, %v4223
  %v12202 = vand.u32 %v12096, %v4223
  %v12205 = vand.u32 %v12097, %v4223
  %v12208 = vand.u32 %v12098, %v4223
  %12210 = vmatpush.bf16.msra.mxu0 %v12027
  %12211 = vmatpush.bf16.msra.mxu0 %v12023
  %12212 = vmatpush.bf16.msra.mxu0 %v12019
  %12213 = vmatpush.bf16.msra.mxu0 %v12015
  %12214 = vmatpush.bf16.msra.mxu0 %v12011
  %12215 = vmatpush.bf16.msra.mxu0 %v12007
  %12216 = vmatpush.bf16.msra.mxu0 %v12003
  %12217 = vmatpush.bf16.msra.mxu0 %v11999
  %12218 = vmatmul.bf16.gmra.mxu0 %v11692
  %v12219 = vpop.f32.mrf.mxu0
  %v12220 = vadd.f32 0.0, %v12219
  %v12221 = vpop.f32.mrf.mxu0
  %12222 = vdwg.mxu0
  %12223 = vmatpush.bf16.msra.mxu0 %v12059
  %12224 = vmatpush.bf16.msra.mxu0 %v12055
  %12225 = vmatpush.bf16.msra.mxu0 %v12051
  %12226 = vmatpush.bf16.msra.mxu0 %v12047
  %12227 = vmatpush.bf16.msra.mxu0 %v12043
  %12228 = vmatpush.bf16.msra.mxu0 %v12039
  %12229 = vmatpush.bf16.msra.mxu0 %v12035
  %12230 = vmatpush.bf16.msra.mxu0 %v12031
  %12231 = vmatmul.bf16.gmra.mxu0 %v11693
  %v12232 = vpop.f32.mrf.mxu0
  %v12233 = vadd.f32 %v12220, %v12232
  %v12234 = vpop.f32.mrf.mxu0
  %12235 = vdwg.mxu0
  %12236 = vmatpush.bf16.msra.mxu0 %v12091
  %12237 = vmatpush.bf16.msra.mxu0 %v12087
  %12238 = vmatpush.bf16.msra.mxu0 %v12083
  %12239 = vmatpush.bf16.msra.mxu0 %v12079
  %12240 = vmatpush.bf16.msra.mxu0 %v12075
  %12241 = vmatpush.bf16.msra.mxu0 %v12071
  %12242 = vmatpush.bf16.msra.mxu0 %v12067
  %12243 = vmatpush.bf16.msra.mxu0 %v12063
  %12244 = vmatmul.bf16.gmra.mxu0 %v11694
  %v12245 = vpop.f32.mrf.mxu0
  %v12246 = vadd.f32 %v12233, %v12245
  %v12247 = vpop.f32.mrf.mxu0
  %12248 = vdwg.mxu0
  %12249 = vmatpush.bf16.msra.mxu0 0
  %12250 = vmatpush.bf16.msra.mxu0 0
  %12251 = vmatpush.bf16.msra.mxu0 0
  %12252 = vmatpush.bf16.msra.mxu0 0
  %12253 = vmatpush.bf16.msra.mxu0 0
  %12254 = vmatpush.bf16.msra.mxu0 0
  %12255 = vmatpush.bf16.msra.mxu0 0
  %12256 = vmatpush.bf16.msra.mxu0 %v12199
  %12257 = vmatmul.bf16.gmra.mxu0 %v12196
  %v12258 = vpop.f32.mrf.mxu0
  %v12259 = vadd.f32 %v12246, %v12258
  %v12260 = vpop.f32.mrf.mxu0
  %12261 = vdwg.mxu0
  %12262 = vmatpush.bf16.msra.mxu0 %v12028
  %12263 = vmatpush.bf16.msra.mxu0 %v12024
  %12264 = vmatpush.bf16.msra.mxu0 %v12020
  %12265 = vmatpush.bf16.msra.mxu0 %v12016
  %12266 = vmatpush.bf16.msra.mxu0 %v12012
  %12267 = vmatpush.bf16.msra.mxu0 %v12008
  %12268 = vmatpush.bf16.msra.mxu0 %v12004
  %12269 = vmatpush.bf16.msra.mxu0 %v12000
  %12270 = vmatmul.bf16.gmra.mxu0 %v11692
  %v12271 = vpop.f32.mrf.mxu0
  %v12272 = vadd.f32 0.0, %v12271
  %v12273 = vpop.f32.mrf.mxu0
  %12274 = vdwg.mxu0
  %12275 = vmatpush.bf16.msra.mxu0 %v12060
  %12276 = vmatpush.bf16.msra.mxu0 %v12056
  %12277 = vmatpush.bf16.msra.mxu0 %v12052
  %12278 = vmatpush.bf16.msra.mxu0 %v12048
  %12279 = vmatpush.bf16.msra.mxu0 %v12044
  %12280 = vmatpush.bf16.msra.mxu0 %v12040
  %12281 = vmatpush.bf16.msra.mxu0 %v12036
  %12282 = vmatpush.bf16.msra.mxu0 %v12032
  %12283 = vmatmul.bf16.gmra.mxu0 %v11693
  %v12284 = vpop.f32.mrf.mxu0
  %v12285 = vadd.f32 %v12272, %v12284
  %v12286 = vpop.f32.mrf.mxu0
  %12287 = vdwg.mxu0
  %12288 = vmatpush.bf16.msra.mxu0 %v12092
  %12289 = vmatpush.bf16.msra.mxu0 %v12088
  %12290 = vmatpush.bf16.msra.mxu0 %v12084
  %12291 = vmatpush.bf16.msra.mxu0 %v12080
  %12292 = vmatpush.bf16.msra.mxu0 %v12076
  %12293 = vmatpush.bf16.msra.mxu0 %v12072
  %12294 = vmatpush.bf16.msra.mxu0 %v12068
  %12295 = vmatpush.bf16.msra.mxu0 %v12064
  %12296 = vmatmul.bf16.gmra.mxu0 %v11694
  %v12297 = vpop.f32.mrf.mxu0
  %v12298 = vadd.f32 %v12285, %v12297
  %v12299 = vpop.f32.mrf.mxu0
  %12300 = vdwg.mxu0
  %12301 = vmatpush.bf16.msra.mxu0 0
  %12302 = vmatpush.bf16.msra.mxu0 0
  %12303 = vmatpush.bf16.msra.mxu0 0
  %12304 = vmatpush.bf16.msra.mxu0 0
  %12305 = vmatpush.bf16.msra.mxu0 0
  %12306 = vmatpush.bf16.msra.mxu0 0
  %12307 = vmatpush.bf16.msra.mxu0 0
  %12308 = vmatpush.bf16.msra.mxu0 %v12202
  %12309 = vmatmul.bf16.gmra.mxu0 %v12196
  %v12310 = vpop.f32.mrf.mxu0
  %v12311 = vadd.f32 %v12298, %v12310
  %v12312 = vpop.f32.mrf.mxu0
  %12313 = vdwg.mxu0
  %12314 = vmatpush.bf16.msra.mxu0 %v12029
  %12315 = vmatpush.bf16.msra.mxu0 %v12025
  %12316 = vmatpush.bf16.msra.mxu0 %v12021
  %12317 = vmatpush.bf16.msra.mxu0 %v12017
  %12318 = vmatpush.bf16.msra.mxu0 %v12013
  %12319 = vmatpush.bf16.msra.mxu0 %v12009
  %12320 = vmatpush.bf16.msra.mxu0 %v12005
  %12321 = vmatpush.bf16.msra.mxu0 %v12001
  %12322 = vmatmul.bf16.gmra.mxu0 %v11692
  %v12323 = vpop.f32.mrf.mxu0
  %v12324 = vadd.f32 0.0, %v12323
  %v12325 = vpop.f32.mrf.mxu0
  %12326 = vdwg.mxu0
  %12327 = vmatpush.bf16.msra.mxu0 %v12061
  %12328 = vmatpush.bf16.msra.mxu0 %v12057
  %12329 = vmatpush.bf16.msra.mxu0 %v12053
  %12330 = vmatpush.bf16.msra.mxu0 %v12049
  %12331 = vmatpush.bf16.msra.mxu0 %v12045
  %12332 = vmatpush.bf16.msra.mxu0 %v12041
  %12333 = vmatpush.bf16.msra.mxu0 %v12037
  %12334 = vmatpush.bf16.msra.mxu0 %v12033
  %12335 = vmatmul.bf16.gmra.mxu0 %v11693
  %v12336 = vpop.f32.mrf.mxu0
  %v12337 = vadd.f32 %v12324, %v12336
  %v12338 = vpop.f32.mrf.mxu0
  %12339 = vdwg.mxu0
  %12340 = vmatpush.bf16.msra.mxu0 %v12093
  %12341 = vmatpush.bf16.msra.mxu0 %v12089
  %12342 = vmatpush.bf16.msra.mxu0 %v12085
  %12343 = vmatpush.bf16.msra.mxu0 %v12081
  %12344 = vmatpush.bf16.msra.mxu0 %v12077
  %12345 = vmatpush.bf16.msra.mxu0 %v12073
  %12346 = vmatpush.bf16.msra.mxu0 %v12069
  %12347 = vmatpush.bf16.msra.mxu0 %v12065
  %12348 = vmatmul.bf16.gmra.mxu0 %v11694
  %v12349 = vpop.f32.mrf.mxu0
  %v12350 = vadd.f32 %v12337, %v12349
  %v12351 = vpop.f32.mrf.mxu0
  %12352 = vdwg.mxu0
  %12353 = vmatpush.bf16.msra.mxu0 0
  %12354 = vmatpush.bf16.msra.mxu0 0
  %12355 = vmatpush.bf16.msra.mxu0 0
  %12356 = vmatpush.bf16.msra.mxu0 0
  %12357 = vmatpush.bf16.msra.mxu0 0
  %12358 = vmatpush.bf16.msra.mxu0 0
  %12359 = vmatpush.bf16.msra.mxu0 0
  %12360 = vmatpush.bf16.msra.mxu0 %v12205
  %12361 = vmatmul.bf16.gmra.mxu0 %v12196
  %v12362 = vpop.f32.mrf.mxu0
  %v12363 = vadd.f32 %v12350, %v12362
  %v12364 = vpop.f32.mrf.mxu0
  %12365 = vdwg.mxu0
  %12366 = vmatpush.bf16.msra.mxu0 %v12030
  %12367 = vmatpush.bf16.msra.mxu0 %v12026
  %12368 = vmatpush.bf16.msra.mxu0 %v12022
  %12369 = vmatpush.bf16.msra.mxu0 %v12018
  %12370 = vmatpush.bf16.msra.mxu0 %v12014
  %12371 = vmatpush.bf16.msra.mxu0 %v12010
  %12372 = vmatpush.bf16.msra.mxu0 %v12006
  %12373 = vmatpush.bf16.msra.mxu0 %v12002
  %12374 = vmatmul.bf16.gmra.mxu0 %v11692
  %v12375 = vpop.f32.mrf.mxu0
  %v12376 = vadd.f32 0.0, %v12375
  %v12377 = vpop.f32.mrf.mxu0
  %12378 = vdwg.mxu0
  %12379 = vmatpush.bf16.msra.mxu0 %v12062
  %12380 = vmatpush.bf16.msra.mxu0 %v12058
  %12381 = vmatpush.bf16.msra.mxu0 %v12054
  %12382 = vmatpush.bf16.msra.mxu0 %v12050
  %12383 = vmatpush.bf16.msra.mxu0 %v12046
  %12384 = vmatpush.bf16.msra.mxu0 %v12042
  %12385 = vmatpush.bf16.msra.mxu0 %v12038
  %12386 = vmatpush.bf16.msra.mxu0 %v12034
  %12387 = vmatmul.bf16.gmra.mxu0 %v11693
  %v12388 = vpop.f32.mrf.mxu0
  %v12389 = vadd.f32 %v12376, %v12388
  %v12390 = vpop.f32.mrf.mxu0
  %12391 = vdwg.mxu0
  %12392 = vmatpush.bf16.msra.mxu0 %v12094
  %12393 = vmatpush.bf16.msra.mxu0 %v12090
  %12394 = vmatpush.bf16.msra.mxu0 %v12086
  %12395 = vmatpush.bf16.msra.mxu0 %v12082
  %12396 = vmatpush.bf16.msra.mxu0 %v12078
  %12397 = vmatpush.bf16.msra.mxu0 %v12074
  %12398 = vmatpush.bf16.msra.mxu0 %v12070
  %12399 = vmatpush.bf16.msra.mxu0 %v12066
  %12400 = vmatmul.bf16.gmra.mxu0 %v11694
  %v12401 = vpop.f32.mrf.mxu0
  %v12402 = vadd.f32 %v12389, %v12401
  %v12403 = vpop.f32.mrf.mxu0
  %12404 = vdwg.mxu0
  %12405 = vmatpush.bf16.msra.mxu0 0
  %12406 = vmatpush.bf16.msra.mxu0 0
  %12407 = vmatpush.bf16.msra.mxu0 0
  %12408 = vmatpush.bf16.msra.mxu0 0
  %12409 = vmatpush.bf16.msra.mxu0 0
  %12410 = vmatpush.bf16.msra.mxu0 0
  %12411 = vmatpush.bf16.msra.mxu0 0
  %12412 = vmatpush.bf16.msra.mxu0 %v12208
  %12413 = vmatmul.bf16.gmra.mxu0 %v12196
  %v12414 = vpop.f32.mrf.mxu0
  %v12415 = vadd.f32 %v12402, %v12414
  %v12416 = vpop.f32.mrf.mxu0
  %12417 = vdwg.mxu0
  %v12418 = vadd.f32 %v11426, %v12259
  %v12419 = vadd.f32 %v11478, %v12311
  %v12420 = vadd.f32 %v11530, %v12363
  %v12421 = vadd.f32 %v11582, %v12415
  %s12422 = scalar_lea.vmem %s5, 2400
  %v12423 = vld [vmem:[%s12422] sm:$0xff]
  %v12424 = vld [vmem:[%s12422 + $0x8] sm:$0xff]
  %v12425 = vld [vmem:[%s12422 + $0x10] sm:$0xff]
  %v12426 = vld [vmem:[%s12422 + $0x18] sm:$0xff]
  %v12427 = vld [vmem:[%s12422 + $0x20] sm:$0xff]
  %v12428 = vld [vmem:[%s12422 + $0x28] sm:$0xff]
  %v12429 = vld [vmem:[%s12422 + $0x30] sm:$0xff]
  %v12430 = vld [vmem:[%s12422 + $0x38] sm:$0xff]
  %v12431 = vld [vmem:[%s12422 + $0x40] sm:$0xff]
  %v12432 = vld [vmem:[%s12422 + $0x48] sm:$0xff]
  %v12433 = vld [vmem:[%s12422 + $0x50] sm:$0xff]
  %v12434 = vld [vmem:[%s12422 + $0x58] sm:$0xff]
  %v12435 = vld [vmem:[%s12422 + $0x60] sm:$0xff]
  %v12436 = vld [vmem:[%s12422 + $0x68] sm:$0xff]
  %v12437 = vld [vmem:[%s12422 + $0x70] sm:$0xff]
  %v12438 = vld [vmem:[%s12422 + $0x78] sm:$0xff]
  %v12439 = vld [vmem:[%s12422 + $0x80] sm:$0xff]
  %v12440 = vld [vmem:[%s12422 + $0x88] sm:$0xff]
  %v12441 = vld [vmem:[%s12422 + $0x90] sm:$0xff]
  %v12442 = vld [vmem:[%s12422 + $0x98] sm:$0xff]
  %v12443 = vld [vmem:[%s12422 + $0xa0] sm:$0xff]
  %v12444 = vld [vmem:[%s12422 + $0xa8] sm:$0xff]
  %v12445 = vld [vmem:[%s12422 + $0xb0] sm:$0xff]
  %v12446 = vld [vmem:[%s12422 + $0xb8] sm:$0xff]
  %v12447 = vld [vmem:[%s12422 + $0xc0] sm:$0xff]
  %v12448 = vld [vmem:[%s12422 + $0xc8] sm:$0xff]
  %v12449 = vld [vmem:[%s12422 + $0xd0] sm:$0xff]
  %v12450 = vld [vmem:[%s12422 + $0xd8] sm:$0xff]
  %v12451 = vld [vmem:[%s12422 + $0xe0] sm:$0xff]
  %v12452 = vld [vmem:[%s12422 + $0xe8] sm:$0xff]
  %v12453 = vld [vmem:[%s12422 + $0xf0] sm:$0xff]
  %v12454 = vld [vmem:[%s12422 + $0xf8] sm:$0xff]
  %v12455 = vld [vmem:[%s12422 + $0x100] sm:$0xff]
  %v12456 = vld [vmem:[%s12422 + $0x108] sm:$0xff]
  %v12457 = vld [vmem:[%s12422 + $0x110] sm:$0xff]
  %v12458 = vld [vmem:[%s12422 + $0x118] sm:$0xff]
  %v12459 = vld [vmem:[%s12422 + $0x120] sm:$0xff]
  %v12460 = vld [vmem:[%s12422 + $0x128] sm:$0xff]
  %v12461 = vld [vmem:[%s12422 + $0x130] sm:$0xff]
  %v12462 = vld [vmem:[%s12422 + $0x138] sm:$0xff]
  %v12463 = vld [vmem:[%s12422 + $0x140] sm:$0xff]
  %v12464 = vld [vmem:[%s12422 + $0x148] sm:$0xff]
  %v12465 = vld [vmem:[%s12422 + $0x150] sm:$0xff]
  %v12466 = vld [vmem:[%s12422 + $0x158] sm:$0xff]
  %v12467 = vld [vmem:[%s12422 + $0x160] sm:$0xff]
  %v12468 = vld [vmem:[%s12422 + $0x168] sm:$0xff]
  %v12469 = vld [vmem:[%s12422 + $0x170] sm:$0xff]
  %v12470 = vld [vmem:[%s12422 + $0x178] sm:$0xff]
  %v12471 = vld [vmem:[%s12422 + $0x180] sm:$0xff]
  %v12472 = vld [vmem:[%s12422 + $0x188] sm:$0xff]
  %v12473 = vld [vmem:[%s12422 + $0x190] sm:$0xff]
  %v12474 = vld [vmem:[%s12422 + $0x198] sm:$0xff]
  %v12475 = vld [vmem:[%s12422 + $0x1a0] sm:$0xff]
  %v12476 = vld [vmem:[%s12422 + $0x1a8] sm:$0xff]
  %v12477 = vld [vmem:[%s12422 + $0x1b0] sm:$0xff]
  %v12478 = vld [vmem:[%s12422 + $0x1b8] sm:$0xff]
  %v12479 = vld [vmem:[%s12422 + $0x1c0] sm:$0xff]
  %v12480 = vld [vmem:[%s12422 + $0x1c8] sm:$0xff]
  %v12481 = vld [vmem:[%s12422 + $0x1d0] sm:$0xff]
  %v12482 = vld [vmem:[%s12422 + $0x1d8] sm:$0xff]
  %v12483 = vld [vmem:[%s12422 + $0x1e0] sm:$0xff]
  %v12484 = vld [vmem:[%s12422 + $0x1e8] sm:$0xff]
  %v12485 = vld [vmem:[%s12422 + $0x1f0] sm:$0xff]
  %v12486 = vld [vmem:[%s12422 + $0x1f8] sm:$0xff]
  %v12487 = vld [vmem:[%s12422 + $0x200] sm:$0xff]
  %v12488 = vld [vmem:[%s12422 + $0x208] sm:$0xff]
  %v12489 = vld [vmem:[%s12422 + $0x210] sm:$0xff]
  %v12490 = vld [vmem:[%s12422 + $0x218] sm:$0xff]
  %v12491 = vld [vmem:[%s12422 + $0x220] sm:$0xff]
  %v12492 = vld [vmem:[%s12422 + $0x228] sm:$0xff]
  %v12493 = vld [vmem:[%s12422 + $0x230] sm:$0xff]
  %v12494 = vld [vmem:[%s12422 + $0x238] sm:$0xff]
  %v12495 = vld [vmem:[%s12422 + $0x240] sm:$0xff]
  %v12496 = vld [vmem:[%s12422 + $0x248] sm:$0xff]
  %v12497 = vld [vmem:[%s12422 + $0x250] sm:$0xff]
  %v12498 = vld [vmem:[%s12422 + $0x258] sm:$0xff]
  %v12499 = vld [vmem:[%s12422 + $0x260] sm:$0xff]
  %v12500 = vld [vmem:[%s12422 + $0x268] sm:$0xff]
  %v12501 = vld [vmem:[%s12422 + $0x270] sm:$0xff]
  %v12502 = vld [vmem:[%s12422 + $0x278] sm:$0xff]
  %v12503 = vld [vmem:[%s12422 + $0x280] sm:$0xff]
  %v12504 = vld [vmem:[%s12422 + $0x288] sm:$0xff]
  %v12505 = vld [vmem:[%s12422 + $0x290] sm:$0xff]
  %v12506 = vld [vmem:[%s12422 + $0x298] sm:$0xff]
  %v12507 = vld [vmem:[%s12422 + $0x2a0] sm:$0xff]
  %v12508 = vld [vmem:[%s12422 + $0x2a8] sm:$0xff]
  %v12509 = vld [vmem:[%s12422 + $0x2b0] sm:$0xff]
  %v12510 = vld [vmem:[%s12422 + $0x2b8] sm:$0xff]
  %v12511 = vld [vmem:[%s12422 + $0x2c0] sm:$0xff]
  %v12512 = vld [vmem:[%s12422 + $0x2c8] sm:$0xff]
  %v12513 = vld [vmem:[%s12422 + $0x2d0] sm:$0xff]
  %v12514 = vld [vmem:[%s12422 + $0x2d8] sm:$0xff]
  %v12515 = vld [vmem:[%s12422 + $0x2e0] sm:$0xff]
  %v12516 = vld [vmem:[%s12422 + $0x2e8] sm:$0xff]
  %v12517 = vld [vmem:[%s12422 + $0x2f0] sm:$0xff]
  %v12518 = vld [vmem:[%s12422 + $0x2f8] sm:$0xff]
  %v12519 = vld [vmem:[%s12422 + $0x300] sm:$0xff]
  %v12520 = vld [vmem:[%s12422 + $0x308] sm:$0xff]
  %v12521 = vld [vmem:[%s12422 + $0x310] sm:$0xff]
  %v12522 = vld [vmem:[%s12422 + $0x318] sm:$0xff]
  %v12525 = vunpack.c.l.b16 %v9917
  %v12526 = vunpack.c.h.b16 %v9917
  %v12527 = vunpack.c.l.b16 %v9918
  %v12528 = vunpack.c.h.b16 %v9918
  %v12529 = vpack.c.b16 %v12525, %v12525
  %v12530 = vpack.c.b16 %v12526, %v12526
  %v12531 = vpack.c.b16 %v12527, %v12527
  %v12532 = vpack.c.b16 %v12528, %v12528
  %v12636 = vunpack.c.l.b16 %v12423
  %v12637 = vunpack.c.h.b16 %v12423
  %v12638 = vunpack.c.l.b16 %v12424
  %v12639 = vunpack.c.h.b16 %v12424
  %v12640 = vunpack.c.l.b16 %v12425
  %v12641 = vunpack.c.h.b16 %v12425
  %v12642 = vunpack.c.l.b16 %v12426
  %v12643 = vunpack.c.h.b16 %v12426
  %v12644 = vunpack.c.l.b16 %v12427
  %v12645 = vunpack.c.h.b16 %v12427
  %v12646 = vunpack.c.l.b16 %v12428
  %v12647 = vunpack.c.h.b16 %v12428
  %v12648 = vunpack.c.l.b16 %v12429
  %v12649 = vunpack.c.h.b16 %v12429
  %v12650 = vunpack.c.l.b16 %v12430
  %v12651 = vunpack.c.h.b16 %v12430
  %v12652 = vunpack.c.l.b16 %v12431
  %v12653 = vunpack.c.h.b16 %v12431
  %v12654 = vunpack.c.l.b16 %v12432
  %v12655 = vunpack.c.h.b16 %v12432
  %v12656 = vunpack.c.l.b16 %v12433
  %v12657 = vunpack.c.h.b16 %v12433
  %v12658 = vunpack.c.l.b16 %v12434
  %v12659 = vunpack.c.h.b16 %v12434
  %v12660 = vunpack.c.l.b16 %v12435
  %v12661 = vunpack.c.h.b16 %v12435
  %v12662 = vunpack.c.l.b16 %v12436
  %v12663 = vunpack.c.h.b16 %v12436
  %v12664 = vunpack.c.l.b16 %v12437
  %v12665 = vunpack.c.h.b16 %v12437
  %v12666 = vunpack.c.l.b16 %v12438
  %v12667 = vunpack.c.h.b16 %v12438
  %v12668 = vunpack.c.l.b16 %v12439
  %v12669 = vunpack.c.h.b16 %v12439
  %v12670 = vunpack.c.l.b16 %v12440
  %v12671 = vunpack.c.h.b16 %v12440
  %v12672 = vunpack.c.l.b16 %v12441
  %v12673 = vunpack.c.h.b16 %v12441
  %v12674 = vunpack.c.l.b16 %v12442
  %v12675 = vunpack.c.h.b16 %v12442
  %v12676 = vunpack.c.l.b16 %v12443
  %v12677 = vunpack.c.h.b16 %v12443
  %v12678 = vunpack.c.l.b16 %v12444
  %v12679 = vunpack.c.h.b16 %v12444
  %v12680 = vunpack.c.l.b16 %v12445
  %v12681 = vunpack.c.h.b16 %v12445
  %v12682 = vunpack.c.l.b16 %v12446
  %v12683 = vunpack.c.h.b16 %v12446
  %v12684 = vunpack.c.l.b16 %v12447
  %v12685 = vunpack.c.h.b16 %v12447
  %v12686 = vunpack.c.l.b16 %v12448
  %v12687 = vunpack.c.h.b16 %v12448
  %v12688 = vunpack.c.l.b16 %v12449
  %v12689 = vunpack.c.h.b16 %v12449
  %v12690 = vunpack.c.l.b16 %v12450
  %v12691 = vunpack.c.h.b16 %v12450
  %v12692 = vunpack.c.l.b16 %v12451
  %v12693 = vunpack.c.h.b16 %v12451
  %v12694 = vunpack.c.l.b16 %v12452
  %v12695 = vunpack.c.h.b16 %v12452
  %v12696 = vunpack.c.l.b16 %v12453
  %v12697 = vunpack.c.h.b16 %v12453
  %v12698 = vunpack.c.l.b16 %v12454
  %v12699 = vunpack.c.h.b16 %v12454
  %v12700 = vunpack.c.l.b16 %v12455
  %v12701 = vunpack.c.h.b16 %v12455
  %v12702 = vunpack.c.l.b16 %v12456
  %v12703 = vunpack.c.h.b16 %v12456
  %v12704 = vunpack.c.l.b16 %v12457
  %v12705 = vunpack.c.h.b16 %v12457
  %v12706 = vunpack.c.l.b16 %v12458
  %v12707 = vunpack.c.h.b16 %v12458
  %v12708 = vunpack.c.l.b16 %v12459
  %v12709 = vunpack.c.h.b16 %v12459
  %v12710 = vunpack.c.l.b16 %v12460
  %v12711 = vunpack.c.h.b16 %v12460
  %v12712 = vunpack.c.l.b16 %v12461
  %v12713 = vunpack.c.h.b16 %v12461
  %v12714 = vunpack.c.l.b16 %v12462
  %v12715 = vunpack.c.h.b16 %v12462
  %v12716 = vunpack.c.l.b16 %v12463
  %v12717 = vunpack.c.h.b16 %v12463
  %v12718 = vunpack.c.l.b16 %v12464
  %v12719 = vunpack.c.h.b16 %v12464
  %v12720 = vunpack.c.l.b16 %v12465
  %v12721 = vunpack.c.h.b16 %v12465
  %v12722 = vunpack.c.l.b16 %v12466
  %v12723 = vunpack.c.h.b16 %v12466
  %v12724 = vunpack.c.l.b16 %v12467
  %v12725 = vunpack.c.h.b16 %v12467
  %v12726 = vunpack.c.l.b16 %v12468
  %v12727 = vunpack.c.h.b16 %v12468
  %v12728 = vunpack.c.l.b16 %v12469
  %v12729 = vunpack.c.h.b16 %v12469
  %v12730 = vunpack.c.l.b16 %v12470
  %v12731 = vunpack.c.h.b16 %v12470
  %v12732 = vunpack.c.l.b16 %v12471
  %v12733 = vunpack.c.h.b16 %v12471
  %v12734 = vunpack.c.l.b16 %v12472
  %v12735 = vunpack.c.h.b16 %v12472
  %v12736 = vunpack.c.l.b16 %v12473
  %v12737 = vunpack.c.h.b16 %v12473
  %v12738 = vunpack.c.l.b16 %v12474
  %v12739 = vunpack.c.h.b16 %v12474
  %v12740 = vunpack.c.l.b16 %v12475
  %v12741 = vunpack.c.h.b16 %v12475
  %v12742 = vunpack.c.l.b16 %v12476
  %v12743 = vunpack.c.h.b16 %v12476
  %v12744 = vunpack.c.l.b16 %v12477
  %v12745 = vunpack.c.h.b16 %v12477
  %v12746 = vunpack.c.l.b16 %v12478
  %v12747 = vunpack.c.h.b16 %v12478
  %v12748 = vunpack.c.l.b16 %v12479
  %v12749 = vunpack.c.h.b16 %v12479
  %v12750 = vunpack.c.l.b16 %v12480
  %v12751 = vunpack.c.h.b16 %v12480
  %v12752 = vunpack.c.l.b16 %v12481
  %v12753 = vunpack.c.h.b16 %v12481
  %v12754 = vunpack.c.l.b16 %v12482
  %v12755 = vunpack.c.h.b16 %v12482
  %v12756 = vunpack.c.l.b16 %v12483
  %v12757 = vunpack.c.h.b16 %v12483
  %v12758 = vunpack.c.l.b16 %v12484
  %v12759 = vunpack.c.h.b16 %v12484
  %v12760 = vunpack.c.l.b16 %v12485
  %v12761 = vunpack.c.h.b16 %v12485
  %v12762 = vunpack.c.l.b16 %v12486
  %v12763 = vunpack.c.h.b16 %v12486
  %v12764 = vunpack.c.l.b16 %v12487
  %v12765 = vunpack.c.h.b16 %v12487
  %v12766 = vunpack.c.l.b16 %v12488
  %v12767 = vunpack.c.h.b16 %v12488
  %v12768 = vunpack.c.l.b16 %v12489
  %v12769 = vunpack.c.h.b16 %v12489
  %v12770 = vunpack.c.l.b16 %v12490
  %v12771 = vunpack.c.h.b16 %v12490
  %v12772 = vunpack.c.l.b16 %v12491
  %v12773 = vunpack.c.h.b16 %v12491
  %v12774 = vunpack.c.l.b16 %v12492
  %v12775 = vunpack.c.h.b16 %v12492
  %v12776 = vunpack.c.l.b16 %v12493
  %v12777 = vunpack.c.h.b16 %v12493
  %v12778 = vunpack.c.l.b16 %v12494
  %v12779 = vunpack.c.h.b16 %v12494
  %v12780 = vunpack.c.l.b16 %v12495
  %v12781 = vunpack.c.h.b16 %v12495
  %v12782 = vunpack.c.l.b16 %v12496
  %v12783 = vunpack.c.h.b16 %v12496
  %v12784 = vunpack.c.l.b16 %v12497
  %v12785 = vunpack.c.h.b16 %v12497
  %v12786 = vunpack.c.l.b16 %v12498
  %v12787 = vunpack.c.h.b16 %v12498
  %v12788 = vunpack.c.l.b16 %v12499
  %v12789 = vunpack.c.h.b16 %v12499
  %v12790 = vunpack.c.l.b16 %v12500
  %v12791 = vunpack.c.h.b16 %v12500
  %v12792 = vunpack.c.l.b16 %v12501
  %v12793 = vunpack.c.h.b16 %v12501
  %v12794 = vunpack.c.l.b16 %v12502
  %v12795 = vunpack.c.h.b16 %v12502
  %v12796 = vunpack.c.l.b16 %v12503
  %v12797 = vunpack.c.h.b16 %v12503
  %v12798 = vunpack.c.l.b16 %v12504
  %v12799 = vunpack.c.h.b16 %v12504
  %v12800 = vunpack.c.l.b16 %v12505
  %v12801 = vunpack.c.h.b16 %v12505
  %v12802 = vunpack.c.l.b16 %v12506
  %v12803 = vunpack.c.h.b16 %v12506
  %v12804 = vunpack.c.l.b16 %v12507
  %v12805 = vunpack.c.h.b16 %v12507
  %v12806 = vunpack.c.l.b16 %v12508
  %v12807 = vunpack.c.h.b16 %v12508
  %v12808 = vunpack.c.l.b16 %v12509
  %v12809 = vunpack.c.h.b16 %v12509
  %v12810 = vunpack.c.l.b16 %v12510
  %v12811 = vunpack.c.h.b16 %v12510
  %v12812 = vunpack.c.l.b16 %v12511
  %v12813 = vunpack.c.h.b16 %v12511
  %v12814 = vunpack.c.l.b16 %v12512
  %v12815 = vunpack.c.h.b16 %v12512
  %v12816 = vunpack.c.l.b16 %v12513
  %v12817 = vunpack.c.h.b16 %v12513
  %v12818 = vunpack.c.l.b16 %v12514
  %v12819 = vunpack.c.h.b16 %v12514
  %v12820 = vunpack.c.l.b16 %v12515
  %v12821 = vunpack.c.h.b16 %v12515
  %v12822 = vunpack.c.l.b16 %v12516
  %v12823 = vunpack.c.h.b16 %v12516
  %v12824 = vunpack.c.l.b16 %v12517
  %v12825 = vunpack.c.h.b16 %v12517
  %v12826 = vunpack.c.l.b16 %v12518
  %v12827 = vunpack.c.h.b16 %v12518
  %v12828 = vunpack.c.l.b16 %v12519
  %v12829 = vunpack.c.h.b16 %v12519
  %v12830 = vunpack.c.l.b16 %v12520
  %v12831 = vunpack.c.h.b16 %v12520
  %v12832 = vunpack.c.l.b16 %v12521
  %v12833 = vunpack.c.h.b16 %v12521
  %v12834 = vunpack.c.l.b16 %v12522
  %v12835 = vunpack.c.h.b16 %v12522
  %v12836 = vpack.c.b16 %v12640, %v12636
  %v12837 = vpack.c.b16 %v12641, %v12637
  %v12838 = vpack.c.b16 %v12642, %v12638
  %v12839 = vpack.c.b16 %v12643, %v12639
  %v12840 = vpack.c.b16 %v12648, %v12644
  %v12841 = vpack.c.b16 %v12649, %v12645
  %v12842 = vpack.c.b16 %v12650, %v12646
  %v12843 = vpack.c.b16 %v12651, %v12647
  %v12844 = vpack.c.b16 %v12656, %v12652
  %v12845 = vpack.c.b16 %v12657, %v12653
  %v12846 = vpack.c.b16 %v12658, %v12654
  %v12847 = vpack.c.b16 %v12659, %v12655
  %v12848 = vpack.c.b16 %v12664, %v12660
  %v12849 = vpack.c.b16 %v12665, %v12661
  %v12850 = vpack.c.b16 %v12666, %v12662
  %v12851 = vpack.c.b16 %v12667, %v12663
  %v12852 = vpack.c.b16 %v12672, %v12668
  %v12853 = vpack.c.b16 %v12673, %v12669
  %v12854 = vpack.c.b16 %v12674, %v12670
  %v12855 = vpack.c.b16 %v12675, %v12671
  %v12856 = vpack.c.b16 %v12680, %v12676
  %v12857 = vpack.c.b16 %v12681, %v12677
  %v12858 = vpack.c.b16 %v12682, %v12678
  %v12859 = vpack.c.b16 %v12683, %v12679
  %v12860 = vpack.c.b16 %v12688, %v12684
  %v12861 = vpack.c.b16 %v12689, %v12685
  %v12862 = vpack.c.b16 %v12690, %v12686
  %v12863 = vpack.c.b16 %v12691, %v12687
  %v12864 = vpack.c.b16 %v12696, %v12692
  %v12865 = vpack.c.b16 %v12697, %v12693
  %v12866 = vpack.c.b16 %v12698, %v12694
  %v12867 = vpack.c.b16 %v12699, %v12695
  %v12868 = vpack.c.b16 %v12704, %v12700
  %v12869 = vpack.c.b16 %v12705, %v12701
  %v12870 = vpack.c.b16 %v12706, %v12702
  %v12871 = vpack.c.b16 %v12707, %v12703
  %v12872 = vpack.c.b16 %v12712, %v12708
  %v12873 = vpack.c.b16 %v12713, %v12709
  %v12874 = vpack.c.b16 %v12714, %v12710
  %v12875 = vpack.c.b16 %v12715, %v12711
  %v12876 = vpack.c.b16 %v12720, %v12716
  %v12877 = vpack.c.b16 %v12721, %v12717
  %v12878 = vpack.c.b16 %v12722, %v12718
  %v12879 = vpack.c.b16 %v12723, %v12719
  %v12880 = vpack.c.b16 %v12728, %v12724
  %v12881 = vpack.c.b16 %v12729, %v12725
  %v12882 = vpack.c.b16 %v12730, %v12726
  %v12883 = vpack.c.b16 %v12731, %v12727
  %v12884 = vpack.c.b16 %v12736, %v12732
  %v12885 = vpack.c.b16 %v12737, %v12733
  %v12886 = vpack.c.b16 %v12738, %v12734
  %v12887 = vpack.c.b16 %v12739, %v12735
  %v12888 = vpack.c.b16 %v12744, %v12740
  %v12889 = vpack.c.b16 %v12745, %v12741
  %v12890 = vpack.c.b16 %v12746, %v12742
  %v12891 = vpack.c.b16 %v12747, %v12743
  %v12892 = vpack.c.b16 %v12752, %v12748
  %v12893 = vpack.c.b16 %v12753, %v12749
  %v12894 = vpack.c.b16 %v12754, %v12750
  %v12895 = vpack.c.b16 %v12755, %v12751
  %v12896 = vpack.c.b16 %v12760, %v12756
  %v12897 = vpack.c.b16 %v12761, %v12757
  %v12898 = vpack.c.b16 %v12762, %v12758
  %v12899 = vpack.c.b16 %v12763, %v12759
  %v12900 = vpack.c.b16 %v12768, %v12764
  %v12901 = vpack.c.b16 %v12769, %v12765
  %v12902 = vpack.c.b16 %v12770, %v12766
  %v12903 = vpack.c.b16 %v12771, %v12767
  %v12904 = vpack.c.b16 %v12776, %v12772
  %v12905 = vpack.c.b16 %v12777, %v12773
  %v12906 = vpack.c.b16 %v12778, %v12774
  %v12907 = vpack.c.b16 %v12779, %v12775
  %v12908 = vpack.c.b16 %v12784, %v12780
  %v12909 = vpack.c.b16 %v12785, %v12781
  %v12910 = vpack.c.b16 %v12786, %v12782
  %v12911 = vpack.c.b16 %v12787, %v12783
  %v12912 = vpack.c.b16 %v12792, %v12788
  %v12913 = vpack.c.b16 %v12793, %v12789
  %v12914 = vpack.c.b16 %v12794, %v12790
  %v12915 = vpack.c.b16 %v12795, %v12791
  %v12916 = vpack.c.b16 %v12800, %v12796
  %v12917 = vpack.c.b16 %v12801, %v12797
  %v12918 = vpack.c.b16 %v12802, %v12798
  %v12919 = vpack.c.b16 %v12803, %v12799
  %v12920 = vpack.c.b16 %v12808, %v12804
  %v12921 = vpack.c.b16 %v12809, %v12805
  %v12922 = vpack.c.b16 %v12810, %v12806
  %v12923 = vpack.c.b16 %v12811, %v12807
  %v12924 = vpack.c.b16 %v12816, %v12812
  %v12925 = vpack.c.b16 %v12817, %v12813
  %v12926 = vpack.c.b16 %v12818, %v12814
  %v12927 = vpack.c.b16 %v12819, %v12815
  %v12928 = vpack.c.b16 %v12824, %v12820
  %v12929 = vpack.c.b16 %v12825, %v12821
  %v12930 = vpack.c.b16 %v12826, %v12822
  %v12931 = vpack.c.b16 %v12827, %v12823
  %v12932 = vpack.c.b16 %v12832, %v12828
  %v12933 = vpack.c.b16 %v12833, %v12829
  %v12934 = vpack.c.b16 %v12834, %v12830
  %v12935 = vpack.c.b16 %v12835, %v12831
  %v13033 = vsel %vm10629, %v12532, 0
  %v13036 = vand.u32 %v12932, %v4223
  %v13039 = vand.u32 %v12933, %v4223
  %v13042 = vand.u32 %v12934, %v4223
  %v13045 = vand.u32 %v12935, %v4223
  %13047 = vmatpush.bf16.msra.mxu0 %v12864
  %13048 = vmatpush.bf16.msra.mxu0 %v12860
  %13049 = vmatpush.bf16.msra.mxu0 %v12856
  %13050 = vmatpush.bf16.msra.mxu0 %v12852
  %13051 = vmatpush.bf16.msra.mxu0 %v12848
  %13052 = vmatpush.bf16.msra.mxu0 %v12844
  %13053 = vmatpush.bf16.msra.mxu0 %v12840
  %13054 = vmatpush.bf16.msra.mxu0 %v12836
  %13055 = vmatmul.bf16.gmra.mxu0 %v12529
  %v13056 = vpop.f32.mrf.mxu0
  %v13057 = vadd.f32 0.0, %v13056
  %v13058 = vpop.f32.mrf.mxu0
  %13059 = vdwg.mxu0
  %13060 = vmatpush.bf16.msra.mxu0 %v12896
  %13061 = vmatpush.bf16.msra.mxu0 %v12892
  %13062 = vmatpush.bf16.msra.mxu0 %v12888
  %13063 = vmatpush.bf16.msra.mxu0 %v12884
  %13064 = vmatpush.bf16.msra.mxu0 %v12880
  %13065 = vmatpush.bf16.msra.mxu0 %v12876
  %13066 = vmatpush.bf16.msra.mxu0 %v12872
  %13067 = vmatpush.bf16.msra.mxu0 %v12868
  %13068 = vmatmul.bf16.gmra.mxu0 %v12530
  %v13069 = vpop.f32.mrf.mxu0
  %v13070 = vadd.f32 %v13057, %v13069
  %v13071 = vpop.f32.mrf.mxu0
  %13072 = vdwg.mxu0
  %13073 = vmatpush.bf16.msra.mxu0 %v12928
  %13074 = vmatpush.bf16.msra.mxu0 %v12924
  %13075 = vmatpush.bf16.msra.mxu0 %v12920
  %13076 = vmatpush.bf16.msra.mxu0 %v12916
  %13077 = vmatpush.bf16.msra.mxu0 %v12912
  %13078 = vmatpush.bf16.msra.mxu0 %v12908
  %13079 = vmatpush.bf16.msra.mxu0 %v12904
  %13080 = vmatpush.bf16.msra.mxu0 %v12900
  %13081 = vmatmul.bf16.gmra.mxu0 %v12531
  %v13082 = vpop.f32.mrf.mxu0
  %v13083 = vadd.f32 %v13070, %v13082
  %v13084 = vpop.f32.mrf.mxu0
  %13085 = vdwg.mxu0
  %13086 = vmatpush.bf16.msra.mxu0 0
  %13087 = vmatpush.bf16.msra.mxu0 0
  %13088 = vmatpush.bf16.msra.mxu0 0
  %13089 = vmatpush.bf16.msra.mxu0 0
  %13090 = vmatpush.bf16.msra.mxu0 0
  %13091 = vmatpush.bf16.msra.mxu0 0
  %13092 = vmatpush.bf16.msra.mxu0 0
  %13093 = vmatpush.bf16.msra.mxu0 %v13036
  %13094 = vmatmul.bf16.gmra.mxu0 %v13033
  %v13095 = vpop.f32.mrf.mxu0
  %v13096 = vadd.f32 %v13083, %v13095
  %v13097 = vpop.f32.mrf.mxu0
  %13098 = vdwg.mxu0
  %13099 = vmatpush.bf16.msra.mxu0 %v12865
  %13100 = vmatpush.bf16.msra.mxu0 %v12861
  %13101 = vmatpush.bf16.msra.mxu0 %v12857
  %13102 = vmatpush.bf16.msra.mxu0 %v12853
  %13103 = vmatpush.bf16.msra.mxu0 %v12849
  %13104 = vmatpush.bf16.msra.mxu0 %v12845
  %13105 = vmatpush.bf16.msra.mxu0 %v12841
  %13106 = vmatpush.bf16.msra.mxu0 %v12837
  %13107 = vmatmul.bf16.gmra.mxu0 %v12529
  %v13108 = vpop.f32.mrf.mxu0
  %v13109 = vadd.f32 0.0, %v13108
  %v13110 = vpop.f32.mrf.mxu0
  %13111 = vdwg.mxu0
  %13112 = vmatpush.bf16.msra.mxu0 %v12897
  %13113 = vmatpush.bf16.msra.mxu0 %v12893
  %13114 = vmatpush.bf16.msra.mxu0 %v12889
  %13115 = vmatpush.bf16.msra.mxu0 %v12885
  %13116 = vmatpush.bf16.msra.mxu0 %v12881
  %13117 = vmatpush.bf16.msra.mxu0 %v12877
  %13118 = vmatpush.bf16.msra.mxu0 %v12873
  %13119 = vmatpush.bf16.msra.mxu0 %v12869
  %13120 = vmatmul.bf16.gmra.mxu0 %v12530
  %v13121 = vpop.f32.mrf.mxu0
  %v13122 = vadd.f32 %v13109, %v13121
  %v13123 = vpop.f32.mrf.mxu0
  %13124 = vdwg.mxu0
  %13125 = vmatpush.bf16.msra.mxu0 %v12929
  %13126 = vmatpush.bf16.msra.mxu0 %v12925
  %13127 = vmatpush.bf16.msra.mxu0 %v12921
  %13128 = vmatpush.bf16.msra.mxu0 %v12917
  %13129 = vmatpush.bf16.msra.mxu0 %v12913
  %13130 = vmatpush.bf16.msra.mxu0 %v12909
  %13131 = vmatpush.bf16.msra.mxu0 %v12905
  %13132 = vmatpush.bf16.msra.mxu0 %v12901
  %13133 = vmatmul.bf16.gmra.mxu0 %v12531
  %v13134 = vpop.f32.mrf.mxu0
  %v13135 = vadd.f32 %v13122, %v13134
  %v13136 = vpop.f32.mrf.mxu0
  %13137 = vdwg.mxu0
  %13138 = vmatpush.bf16.msra.mxu0 0
  %13139 = vmatpush.bf16.msra.mxu0 0
  %13140 = vmatpush.bf16.msra.mxu0 0
  %13141 = vmatpush.bf16.msra.mxu0 0
  %13142 = vmatpush.bf16.msra.mxu0 0
  %13143 = vmatpush.bf16.msra.mxu0 0
  %13144 = vmatpush.bf16.msra.mxu0 0
  %13145 = vmatpush.bf16.msra.mxu0 %v13039
  %13146 = vmatmul.bf16.gmra.mxu0 %v13033
  %v13147 = vpop.f32.mrf.mxu0
  %v13148 = vadd.f32 %v13135, %v13147
  %v13149 = vpop.f32.mrf.mxu0
  %13150 = vdwg.mxu0
  %13151 = vmatpush.bf16.msra.mxu0 %v12866
  %13152 = vmatpush.bf16.msra.mxu0 %v12862
  %13153 = vmatpush.bf16.msra.mxu0 %v12858
  %13154 = vmatpush.bf16.msra.mxu0 %v12854
  %13155 = vmatpush.bf16.msra.mxu0 %v12850
  %13156 = vmatpush.bf16.msra.mxu0 %v12846
  %13157 = vmatpush.bf16.msra.mxu0 %v12842
  %13158 = vmatpush.bf16.msra.mxu0 %v12838
  %13159 = vmatmul.bf16.gmra.mxu0 %v12529
  %v13160 = vpop.f32.mrf.mxu0
  %v13161 = vadd.f32 0.0, %v13160
  %v13162 = vpop.f32.mrf.mxu0
  %13163 = vdwg.mxu0
  %13164 = vmatpush.bf16.msra.mxu0 %v12898
  %13165 = vmatpush.bf16.msra.mxu0 %v12894
  %13166 = vmatpush.bf16.msra.mxu0 %v12890
  %13167 = vmatpush.bf16.msra.mxu0 %v12886
  %13168 = vmatpush.bf16.msra.mxu0 %v12882
  %13169 = vmatpush.bf16.msra.mxu0 %v12878
  %13170 = vmatpush.bf16.msra.mxu0 %v12874
  %13171 = vmatpush.bf16.msra.mxu0 %v12870
  %13172 = vmatmul.bf16.gmra.mxu0 %v12530
  %v13173 = vpop.f32.mrf.mxu0
  %v13174 = vadd.f32 %v13161, %v13173
  %v13175 = vpop.f32.mrf.mxu0
  %13176 = vdwg.mxu0
  %13177 = vmatpush.bf16.msra.mxu0 %v12930
  %13178 = vmatpush.bf16.msra.mxu0 %v12926
  %13179 = vmatpush.bf16.msra.mxu0 %v12922
  %13180 = vmatpush.bf16.msra.mxu0 %v12918
  %13181 = vmatpush.bf16.msra.mxu0 %v12914
  %13182 = vmatpush.bf16.msra.mxu0 %v12910
  %13183 = vmatpush.bf16.msra.mxu0 %v12906
  %13184 = vmatpush.bf16.msra.mxu0 %v12902
  %13185 = vmatmul.bf16.gmra.mxu0 %v12531
  %v13186 = vpop.f32.mrf.mxu0
  %v13187 = vadd.f32 %v13174, %v13186
  %v13188 = vpop.f32.mrf.mxu0
  %13189 = vdwg.mxu0
  %13190 = vmatpush.bf16.msra.mxu0 0
  %13191 = vmatpush.bf16.msra.mxu0 0
  %13192 = vmatpush.bf16.msra.mxu0 0
  %13193 = vmatpush.bf16.msra.mxu0 0
  %13194 = vmatpush.bf16.msra.mxu0 0
  %13195 = vmatpush.bf16.msra.mxu0 0
  %13196 = vmatpush.bf16.msra.mxu0 0
  %13197 = vmatpush.bf16.msra.mxu0 %v13042
  %13198 = vmatmul.bf16.gmra.mxu0 %v13033
  %v13199 = vpop.f32.mrf.mxu0
  %v13200 = vadd.f32 %v13187, %v13199
  %v13201 = vpop.f32.mrf.mxu0
  %13202 = vdwg.mxu0
  %13203 = vmatpush.bf16.msra.mxu0 %v12867
  %13204 = vmatpush.bf16.msra.mxu0 %v12863
  %13205 = vmatpush.bf16.msra.mxu0 %v12859
  %13206 = vmatpush.bf16.msra.mxu0 %v12855
  %13207 = vmatpush.bf16.msra.mxu0 %v12851
  %13208 = vmatpush.bf16.msra.mxu0 %v12847
  %13209 = vmatpush.bf16.msra.mxu0 %v12843
  %13210 = vmatpush.bf16.msra.mxu0 %v12839
  %13211 = vmatmul.bf16.gmra.mxu0 %v12529
  %v13212 = vpop.f32.mrf.mxu0
  %v13213 = vadd.f32 0.0, %v13212
  %v13214 = vpop.f32.mrf.mxu0
  %13215 = vdwg.mxu0
  %13216 = vmatpush.bf16.msra.mxu0 %v12899
  %13217 = vmatpush.bf16.msra.mxu0 %v12895
  %13218 = vmatpush.bf16.msra.mxu0 %v12891
  %13219 = vmatpush.bf16.msra.mxu0 %v12887
  %13220 = vmatpush.bf16.msra.mxu0 %v12883
  %13221 = vmatpush.bf16.msra.mxu0 %v12879
  %13222 = vmatpush.bf16.msra.mxu0 %v12875
  %13223 = vmatpush.bf16.msra.mxu0 %v12871
  %13224 = vmatmul.bf16.gmra.mxu0 %v12530
  %v13225 = vpop.f32.mrf.mxu0
  %v13226 = vadd.f32 %v13213, %v13225
  %v13227 = vpop.f32.mrf.mxu0
  %13228 = vdwg.mxu0
  %13229 = vmatpush.bf16.msra.mxu0 %v12931
  %13230 = vmatpush.bf16.msra.mxu0 %v12927
  %13231 = vmatpush.bf16.msra.mxu0 %v12923
  %13232 = vmatpush.bf16.msra.mxu0 %v12919
  %13233 = vmatpush.bf16.msra.mxu0 %v12915
  %13234 = vmatpush.bf16.msra.mxu0 %v12911
  %13235 = vmatpush.bf16.msra.mxu0 %v12907
  %13236 = vmatpush.bf16.msra.mxu0 %v12903
  %13237 = vmatmul.bf16.gmra.mxu0 %v12531
  %v13238 = vpop.f32.mrf.mxu0
  %v13239 = vadd.f32 %v13226, %v13238
  %v13240 = vpop.f32.mrf.mxu0
  %13241 = vdwg.mxu0
  %13242 = vmatpush.bf16.msra.mxu0 0
  %13243 = vmatpush.bf16.msra.mxu0 0
  %13244 = vmatpush.bf16.msra.mxu0 0
  %13245 = vmatpush.bf16.msra.mxu0 0
  %13246 = vmatpush.bf16.msra.mxu0 0
  %13247 = vmatpush.bf16.msra.mxu0 0
  %13248 = vmatpush.bf16.msra.mxu0 0
  %13249 = vmatpush.bf16.msra.mxu0 %v13045
  %13250 = vmatmul.bf16.gmra.mxu0 %v13033
  %v13251 = vpop.f32.mrf.mxu0
  %v13252 = vadd.f32 %v13239, %v13251
  %v13253 = vpop.f32.mrf.mxu0
  %13254 = vdwg.mxu0
  %v13255 = vadd.f32 %v12418, %v13096
  %v13256 = vadd.f32 %v12419, %v13148
  %v13257 = vadd.f32 %v12420, %v13200
  %v13258 = vadd.f32 %v12421, %v13252
  %v13259 = vld [vmem:[%s6] sm:$0xf]
  %v13261 = vperm.slane %v13259, 0
  %v13262 = vperm.slane %v13259, 1
  %v13263 = vperm.slane %v13259, 2
  %v13264 = vperm.slane %v13259, 3
  %v13269 = vadd.f32 %v13255, %v13261
  %v13270 = vadd.f32 %v13256, %v13262
  %v13271 = vadd.f32 %v13257, %v13263
  %v13272 = vadd.f32 %v13258, %v13264
  %v13273 = vmax.f32 %v13269, 0.0
  %v13274 = vmax.f32 %v13270, 0.0
  %v13275 = vmax.f32 %v13271, 0.0
  %v13276 = vmax.f32 %v13272, 0.0
  %v13277 = vpack.c.bf16 %v13273, %v13273
  %v13278 = vpack.c.bf16 %v13274, %v13274
  %v13279 = vpack.c.bf16 %v13275, %v13275
  %v13280 = vpack.c.bf16 %v13276, %v13276
  %v13281 = vld [vmem:[%s7] sm:$0xf]
  %v13282 = vld [vmem:[%s7 + $0x4] sm:$0xf]
  %v13283 = vld [vmem:[%s7 + $0x8] sm:$0xf]
  %v13284 = vld [vmem:[%s7 + $0xc] sm:$0xf]
  %v13285 = vld [vmem:[%s7 + $0x10] sm:$0xf]
  %v13286 = vld [vmem:[%s7 + $0x14] sm:$0xf]
  %v13287 = vld [vmem:[%s7 + $0x18] sm:$0xf]
  %v13288 = vld [vmem:[%s7 + $0x1c] sm:$0xf]
  %v13289 = vld [vmem:[%s7 + $0x20] sm:$0xf]
  %v13290 = vld [vmem:[%s7 + $0x24] sm:$0xf]
  %v13291 = vld [vmem:[%s7 + $0x28] sm:$0xf]
  %v13292 = vld [vmem:[%s7 + $0x2c] sm:$0xf]
  %v13293 = vld [vmem:[%s7 + $0x30] sm:$0xf]
  %v13294 = vld [vmem:[%s7 + $0x34] sm:$0xf]
  %v13295 = vld [vmem:[%s7 + $0x38] sm:$0xf]
  %v13296 = vld [vmem:[%s7 + $0x3c] sm:$0xf]
  %v13297 = vld [vmem:[%s7 + $0x40] sm:$0xf]
  %v13298 = vld [vmem:[%s7 + $0x44] sm:$0xf]
  %v13299 = vld [vmem:[%s7 + $0x48] sm:$0xf]
  %v13300 = vld [vmem:[%s7 + $0x4c] sm:$0xf]
  %v13301 = vld [vmem:[%s7 + $0x50] sm:$0xf]
  %v13302 = vld [vmem:[%s7 + $0x54] sm:$0xf]
  %v13303 = vld [vmem:[%s7 + $0x58] sm:$0xf]
  %v13304 = vld [vmem:[%s7 + $0x5c] sm:$0xf]
  %v13305 = vld [vmem:[%s7 + $0x60] sm:$0xf]
  %v13306 = vld [vmem:[%s7 + $0x64] sm:$0xf]
  %v13307 = vld [vmem:[%s7 + $0x68] sm:$0xf]
  %v13308 = vld [vmem:[%s7 + $0x6c] sm:$0xf]
  %v13309 = vld [vmem:[%s7 + $0x70] sm:$0xf]
  %v13310 = vld [vmem:[%s7 + $0x74] sm:$0xf]
  %v13311 = vld [vmem:[%s7 + $0x78] sm:$0xf]
  %v13312 = vld [vmem:[%s7 + $0x7c] sm:$0xf]
  %v13313 = vld [vmem:[%s7 + $0x80] sm:$0xf]
  %v13314 = vld [vmem:[%s7 + $0x84] sm:$0xf]
  %v13315 = vld [vmem:[%s7 + $0x88] sm:$0xf]
  %v13316 = vld [vmem:[%s7 + $0x8c] sm:$0xf]
  %v13317 = vld [vmem:[%s7 + $0x90] sm:$0xf]
  %v13318 = vld [vmem:[%s7 + $0x94] sm:$0xf]
  %v13319 = vld [vmem:[%s7 + $0x98] sm:$0xf]
  %v13320 = vld [vmem:[%s7 + $0x9c] sm:$0xf]
  %v13321 = vld [vmem:[%s7 + $0xa0] sm:$0xf]
  %v13322 = vld [vmem:[%s7 + $0xa4] sm:$0xf]
  %v13323 = vld [vmem:[%s7 + $0xa8] sm:$0xf]
  %v13324 = vld [vmem:[%s7 + $0xac] sm:$0xf]
  %v13325 = vld [vmem:[%s7 + $0xb0] sm:$0xf]
  %v13326 = vld [vmem:[%s7 + $0xb4] sm:$0xf]
  %v13327 = vld [vmem:[%s7 + $0xb8] sm:$0xf]
  %v13328 = vld [vmem:[%s7 + $0xbc] sm:$0xf]
  %v13329 = vld [vmem:[%s7 + $0xc0] sm:$0xf]
  %v13330 = vld [vmem:[%s7 + $0xc4] sm:$0xf]
  %v13331 = vld [vmem:[%s7 + $0xc8] sm:$0xf]
  %v13332 = vld [vmem:[%s7 + $0xcc] sm:$0xf]
  %v13333 = vld [vmem:[%s7 + $0xd0] sm:$0xf]
  %v13334 = vld [vmem:[%s7 + $0xd4] sm:$0xf]
  %v13335 = vld [vmem:[%s7 + $0xd8] sm:$0xf]
  %v13336 = vld [vmem:[%s7 + $0xdc] sm:$0xf]
  %v13337 = vld [vmem:[%s7 + $0xe0] sm:$0xf]
  %v13338 = vld [vmem:[%s7 + $0xe4] sm:$0xf]
  %v13339 = vld [vmem:[%s7 + $0xe8] sm:$0xf]
  %v13340 = vld [vmem:[%s7 + $0xec] sm:$0xf]
  %v13341 = vld [vmem:[%s7 + $0xf0] sm:$0xf]
  %v13342 = vld [vmem:[%s7 + $0xf4] sm:$0xf]
  %v13343 = vld [vmem:[%s7 + $0xf8] sm:$0xf]
  %v13344 = vld [vmem:[%s7 + $0xfc] sm:$0xf]
  %v13345 = vld [vmem:[%s8] sm:$0x1]
  %v13347 = vperm.slane %v13345, 0
  %v13413 = vunpack.c.l.b16 %v13281
  %v13414 = vunpack.c.l.b16 %v13282
  %v13415 = vunpack.c.l.b16 %v13283
  %v13416 = vunpack.c.l.b16 %v13284
  %v13417 = vunpack.c.l.b16 %v13285
  %v13418 = vunpack.c.l.b16 %v13286
  %v13419 = vunpack.c.l.b16 %v13287
  %v13420 = vunpack.c.l.b16 %v13288
  %v13421 = vunpack.c.l.b16 %v13289
  %v13422 = vunpack.c.l.b16 %v13290
  %v13423 = vunpack.c.l.b16 %v13291
  %v13424 = vunpack.c.l.b16 %v13292
  %v13425 = vunpack.c.l.b16 %v13293
  %v13426 = vunpack.c.l.b16 %v13294
  %v13427 = vunpack.c.l.b16 %v13295
  %v13428 = vunpack.c.l.b16 %v13296
  %v13429 = vunpack.c.l.b16 %v13297
  %v13430 = vunpack.c.l.b16 %v13298
  %v13431 = vunpack.c.l.b16 %v13299
  %v13432 = vunpack.c.l.b16 %v13300
  %v13433 = vunpack.c.l.b16 %v13301
  %v13434 = vunpack.c.l.b16 %v13302
  %v13435 = vunpack.c.l.b16 %v13303
  %v13436 = vunpack.c.l.b16 %v13304
  %v13437 = vunpack.c.l.b16 %v13305
  %v13438 = vunpack.c.l.b16 %v13306
  %v13439 = vunpack.c.l.b16 %v13307
  %v13440 = vunpack.c.l.b16 %v13308
  %v13441 = vunpack.c.l.b16 %v13309
  %v13442 = vunpack.c.l.b16 %v13310
  %v13443 = vunpack.c.l.b16 %v13311
  %v13444 = vunpack.c.l.b16 %v13312
  %v13445 = vunpack.c.l.b16 %v13313
  %v13446 = vunpack.c.l.b16 %v13314
  %v13447 = vunpack.c.l.b16 %v13315
  %v13448 = vunpack.c.l.b16 %v13316
  %v13449 = vunpack.c.l.b16 %v13317
  %v13450 = vunpack.c.l.b16 %v13318
  %v13451 = vunpack.c.l.b16 %v13319
  %v13452 = vunpack.c.l.b16 %v13320
  %v13453 = vunpack.c.l.b16 %v13321
  %v13454 = vunpack.c.l.b16 %v13322
  %v13455 = vunpack.c.l.b16 %v13323
  %v13456 = vunpack.c.l.b16 %v13324
  %v13457 = vunpack.c.l.b16 %v13325
  %v13458 = vunpack.c.l.b16 %v13326
  %v13459 = vunpack.c.l.b16 %v13327
  %v13460 = vunpack.c.l.b16 %v13328
  %v13461 = vunpack.c.l.b16 %v13329
  %v13462 = vunpack.c.l.b16 %v13330
  %v13463 = vunpack.c.l.b16 %v13331
  %v13464 = vunpack.c.l.b16 %v13332
  %v13465 = vunpack.c.l.b16 %v13333
  %v13466 = vunpack.c.l.b16 %v13334
  %v13467 = vunpack.c.l.b16 %v13335
  %v13468 = vunpack.c.l.b16 %v13336
  %v13469 = vunpack.c.l.b16 %v13337
  %v13470 = vunpack.c.l.b16 %v13338
  %v13471 = vunpack.c.l.b16 %v13339
  %v13472 = vunpack.c.l.b16 %v13340
  %v13473 = vunpack.c.l.b16 %v13341
  %v13474 = vunpack.c.l.b16 %v13342
  %v13475 = vunpack.c.l.b16 %v13343
  %v13476 = vunpack.c.l.b16 %v13344
  %v13477 = vpack.c.b16 %v13414, %v13413
  %v13478 = vpack.c.b16 %v13416, %v13415
  %v13479 = vpack.c.b16 %v13418, %v13417
  %v13480 = vpack.c.b16 %v13420, %v13419
  %v13481 = vpack.c.b16 %v13422, %v13421
  %v13482 = vpack.c.b16 %v13424, %v13423
  %v13483 = vpack.c.b16 %v13426, %v13425
  %v13484 = vpack.c.b16 %v13428, %v13427
  %v13485 = vpack.c.b16 %v13430, %v13429
  %v13486 = vpack.c.b16 %v13432, %v13431
  %v13487 = vpack.c.b16 %v13434, %v13433
  %v13488 = vpack.c.b16 %v13436, %v13435
  %v13489 = vpack.c.b16 %v13438, %v13437
  %v13490 = vpack.c.b16 %v13440, %v13439
  %v13491 = vpack.c.b16 %v13442, %v13441
  %v13492 = vpack.c.b16 %v13444, %v13443
  %v13493 = vpack.c.b16 %v13446, %v13445
  %v13494 = vpack.c.b16 %v13448, %v13447
  %v13495 = vpack.c.b16 %v13450, %v13449
  %v13496 = vpack.c.b16 %v13452, %v13451
  %v13497 = vpack.c.b16 %v13454, %v13453
  %v13498 = vpack.c.b16 %v13456, %v13455
  %v13499 = vpack.c.b16 %v13458, %v13457
  %v13500 = vpack.c.b16 %v13460, %v13459
  %v13501 = vpack.c.b16 %v13462, %v13461
  %v13502 = vpack.c.b16 %v13464, %v13463
  %v13503 = vpack.c.b16 %v13466, %v13465
  %v13504 = vpack.c.b16 %v13468, %v13467
  %v13505 = vpack.c.b16 %v13470, %v13469
  %v13506 = vpack.c.b16 %v13472, %v13471
  %v13507 = vpack.c.b16 %v13474, %v13473
  %v13508 = vpack.c.b16 %v13476, %v13475
  %13541 = vmatpush.bf16.msra.mxu0 %v13484
  %13542 = vmatpush.bf16.msra.mxu0 %v13483
  %13543 = vmatpush.bf16.msra.mxu0 %v13482
  %13544 = vmatpush.bf16.msra.mxu0 %v13481
  %13545 = vmatpush.bf16.msra.mxu0 %v13480
  %13546 = vmatpush.bf16.msra.mxu0 %v13479
  %13547 = vmatpush.bf16.msra.mxu0 %v13478
  %13548 = vmatpush.bf16.msra.mxu0 %v13477
  %13549 = vmatmul.bf16.gmra.mxu0 %v13277
  %v13550 = vpop.f32.mrf.mxu0
  %v13551 = vadd.f32 %v13347, %v13550
  %v13552 = vpop.f32.mrf.mxu0
  %13553 = vdwg.mxu0
  %13554 = vmatpush.bf16.msra.mxu0 %v13492
  %13555 = vmatpush.bf16.msra.mxu0 %v13491
  %13556 = vmatpush.bf16.msra.mxu0 %v13490
  %13557 = vmatpush.bf16.msra.mxu0 %v13489
  %13558 = vmatpush.bf16.msra.mxu0 %v13488
  %13559 = vmatpush.bf16.msra.mxu0 %v13487
  %13560 = vmatpush.bf16.msra.mxu0 %v13486
  %13561 = vmatpush.bf16.msra.mxu0 %v13485
  %13562 = vmatmul.bf16.gmra.mxu0 %v13278
  %v13563 = vpop.f32.mrf.mxu0
  %v13564 = vadd.f32 %v13551, %v13563
  %v13565 = vpop.f32.mrf.mxu0
  %13566 = vdwg.mxu0
  %13567 = vmatpush.bf16.msra.mxu0 %v13500
  %13568 = vmatpush.bf16.msra.mxu0 %v13499
  %13569 = vmatpush.bf16.msra.mxu0 %v13498
  %13570 = vmatpush.bf16.msra.mxu0 %v13497
  %13571 = vmatpush.bf16.msra.mxu0 %v13496
  %13572 = vmatpush.bf16.msra.mxu0 %v13495
  %13573 = vmatpush.bf16.msra.mxu0 %v13494
  %13574 = vmatpush.bf16.msra.mxu0 %v13493
  %13575 = vmatmul.bf16.gmra.mxu0 %v13279
  %v13576 = vpop.f32.mrf.mxu0
  %v13577 = vadd.f32 %v13564, %v13576
  %v13578 = vpop.f32.mrf.mxu0
  %13579 = vdwg.mxu0
  %13580 = vmatpush.bf16.msra.mxu0 %v13508
  %13581 = vmatpush.bf16.msra.mxu0 %v13507
  %13582 = vmatpush.bf16.msra.mxu0 %v13506
  %13583 = vmatpush.bf16.msra.mxu0 %v13505
  %13584 = vmatpush.bf16.msra.mxu0 %v13504
  %13585 = vmatpush.bf16.msra.mxu0 %v13503
  %13586 = vmatpush.bf16.msra.mxu0 %v13502
  %13587 = vmatpush.bf16.msra.mxu0 %v13501
  %13588 = vmatmul.bf16.gmra.mxu0 %v13280
  %v13589 = vpop.f32.mrf.mxu0
  %v13590 = vadd.f32 %v13577, %v13589
  %v13591 = vpop.f32.mrf.mxu0
  %13592 = vdwg.mxu0
  %13593 = vmax.xlane.f32.xlu0 %v13590
  %v13594 = vpop.xlane.xlu0 %13593
  %v13595 = vsub.f32 %v13590, %v13594
  %v13596 = vmul.f32 %v13595, 1.442695
  %v13597 = vpow.pop %v13596
  %13598 = vadd.xlane.f32.xlu0 %v13597
  %v13599 = vpop.xlane.xlu0 %13598
  %v13600 = vlog2.pop %v13599
  %v13601 = vmul.f32 %v13600, 0.6931472
  %v13602 = vsub.f32 %v13595, %v13601
  %13603 = vst [vmem:[%s9] sm:$0xff] %v13602
  // Predicated region
  $region38: #{lenet5_caffe_forward.1} parent=0 // pred_check
    _
  $region39: #{lenet5_caffe_forward.1} parent=0 // pred_check_branch
    %13605 = sbr.rel (0) target = $region41
  $region40: #{lenet5_caffe_forward.1} parent=0 // pred_region
    _
  $region41: #{lenet5_caffe_forward.1} parent=0 // pred_fallthru
    _
  // Predicated region
  $region42: #{lenet5_caffe_forward.1} parent=0 // pred_check
    _
  $region43: #{lenet5_caffe_forward.1} parent=0 // pred_check_branch
    %13607 = sbr.rel (0) target = $region45
  $region44: #{lenet5_caffe_forward.1} parent=0 // pred_region
    _
  $region45: #{lenet5_caffe_forward.1} parent=0 // pred_fallthru
    _

</llo_original>
